<compile_context>
chip_gen: v6e
topology: v6e:2x2x1
jax: 0.10.0
libtpu: 0.0.40
codegen_flags: <defaults>
</compile_context>

<pallas_src>
import functools

import jax
import jax.numpy as jnp
from jax import lax
from jax.experimental import pallas as pl
from jax.experimental.pallas import tpu as pltpu

# Bump to 256-512 for production-sized inputs (multiples of 256 on v6e/v7x);
# 128 keeps VMEM tiny and is plenty for the small shapes exercised here.
TM = TN = TK = 128


# ---------------------------------------------------------------------------
# Fused matmul kernel:  out = act((A [+ A2]) @ B + bias)
# ---------------------------------------------------------------------------
def _mm_bias_act_kernel(*refs, act, n_valid, fuse_add):
    if fuse_add:
        a_ref, a2_ref, b_ref, bias_ref, o_ref, acc_ref = refs
    else:
        a_ref, b_ref, bias_ref, o_ref, acc_ref = refs
        a2_ref = None
    k = pl.program_id(2)

    @pl.when(k == 0)
    def _():
        acc_ref[...] = jnp.zeros_like(acc_ref)

    a = a_ref[...]
    if fuse_add:
        a = a + a2_ref[...]
    acc_ref[...] += jnp.dot(a, b_ref[...], preferred_element_type=jnp.float32)

    # Epilogue (bias + activation + store) only on the last K step.
    @pl.when(k == pl.num_programs(2) - 1)
    def _():
        out = acc_ref[...] + bias_ref[...]           # (TM,TN) + (1,TN) or (TM,1)
        if act == "leaky_relu":
            out = jnp.where(out >= 0, out, 0.01 * out)
        elif act == "relu":
            out = jnp.maximum(out, 0.0)
        elif act == "softmax":
            # full N fits in one lane tile; mask padded lanes.
            lane = lax.broadcasted_iota(jnp.int32, out.shape, 1)
            out = jnp.where(lane < n_valid, out, -jnp.inf)
            m = jnp.max(out, axis=-1, keepdims=True)
            e = jnp.exp(out - m)
            s = jnp.sum(e, axis=-1, keepdims=True)
            out = e * pl.reciprocal(s, approx=True)
        o_ref[...] = out.astype(o_ref.dtype)


def matmul_bias_act(a, b, bias, act=None, bias_axis=1, a_add=None):
    """act(((M,K) [+ a_add]) @ (K,N) + bias).  bias_axis=1: per-column bias [N];
    bias_axis=0: per-row bias [M].  bf16 MXU inputs, f32 accumulation."""
    M, K = a.shape
    K2, N = b.shape
    assert K == K2, (a.shape, b.shape)
    Mp = pl.cdiv(M, TM) * TM
    Np = pl.cdiv(N, TN) * TN
    Kp = pl.cdiv(K, TK) * TK

    def pad_a(arr):
        return jnp.pad(arr.astype(jnp.float32),
                       ((0, Mp - M), (0, Kp - K))).astype(jnp.bfloat16)

    a_p = pad_a(a)
    b_p = jnp.pad(b.astype(jnp.float32), ((0, Kp - K), (0, Np - N))).astype(jnp.bfloat16)

    if bias_axis == 1:
        bias_p = jnp.pad(bias.astype(jnp.float32), (0, Np - N)).reshape(1, Np)
        bias_spec = pl.BlockSpec((1, TN), lambda i, j, k: (0, j))
    else:
        bias_p = jnp.pad(bias.astype(jnp.float32), (0, Mp - M)).reshape(Mp, 1)
        bias_spec = pl.BlockSpec((TM, 1), lambda i, j, k: (i, 0))

    if act == "softmax":
        assert bias_axis == 1 and Np == TN, "fused softmax needs N in one lane tile"

    fuse_add = a_add is not None
    a_spec = pl.BlockSpec((TM, TK), lambda i, j, k: (i, k))
    in_specs = [a_spec]
    operands = [a_p]
    if fuse_add:
        assert a_add.shape == a.shape
        in_specs.append(pl.BlockSpec((TM, TK), lambda i, j, k: (i, k)))
        operands.append(pad_a(a_add))
    in_specs += [pl.BlockSpec((TK, TN), lambda i, j, k: (k, j)), bias_spec]
    operands += [b_p, bias_p]

    kernel = functools.partial(_mm_bias_act_kernel, act=act, n_valid=N,
                               fuse_add=fuse_add)
    out = pl.pallas_call(
        kernel,
        out_shape=jax.ShapeDtypeStruct((Mp, Np), jnp.float32),
        grid_spec=pltpu.PrefetchScalarGridSpec(
            num_scalar_prefetch=0,
            grid=(Mp // TM, Np // TN, Kp // TK),
            in_specs=in_specs,
            out_specs=pl.BlockSpec((TM, TN), lambda i, j, k: (i, j)),
            scratch_shapes=[pltpu.VMEM((TM, TN), jnp.float32)]),
        compiler_params=pltpu.CompilerParams(
            dimension_semantics=("parallel", "parallel", "arbitrary")),
    )(*operands)
    return out[:M, :N]


# ---------------------------------------------------------------------------
# Layers (im2col glue in jnp, heavy matmuls in the fused Pallas kernel)
# ---------------------------------------------------------------------------
def ssconv_forward(x, p):
    """SSConv: BN (folded) -> Conv3d 3x3x3 same -> LeakyReLU.
    x: [Cin, D, H, W] -> [Cout, D, H, W].  Output computed as [Cout, DHW]
    (lane-dense, no patch transpose, reshapes directly to channels-first)."""
    Cin, D, H, W = x.shape
    Cout = p['b'].shape[0]
    xp = jnp.pad(x, ((0, 0), (1, 1), (1, 1), (1, 1)))
    cols = []
    for dd in range(3):
        for hh in range(3):
            for ww in range(3):
                cols.append(xp[:, dd:dd + D, hh:hh + H, ww:ww + W])
    patches = jnp.stack(cols, axis=1).reshape(Cin * 27, D * H * W)   # [Cin*27, DHW]
    out = matmul_bias_act(p['wmat'], patches, p['b'],
                          act="leaky_relu", bias_axis=0)             # [Cout, DHW]
    return out.reshape(Cout, D, H, W)


def tigcn_forward(H, p, temporal):
    """TIGCN with the temporal loop batched.  H: [N, in_dim*T] -> [N, out_dim*T]."""
    N, in_ch = H.shape
    in_dim = in_ch // temporal
    out_dim = p['time_b'].shape[0]

    Hr = H.reshape(N, in_dim, temporal)
    HH_all = jnp.transpose(Hr, (2, 0, 1)).reshape(temporal * N, in_dim)  # t-major rows

    # theta + out projections (BN folded) as ONE fused matmul.
    proj = matmul_bias_act(HH_all, p['proj_w'], p['proj_b'])     # [T*N, 2*in+out]
    theta = proj[:, :2 * in_dim].reshape(temporal, N, 2 * in_dim)
    lin = proj[:, 2 * in_dim:].reshape(temporal, N, out_dim)

    # n_sp x n_sp adjacency math: sub-tile sizes, keep in plain jnp.
    S = jnp.einsum('tnd,tmd->tnm', theta, theta)
    A = jnp.maximum(jax.nn.sigmoid(S), 0.1) * p['mask'][None] + p['I'][None]
    d = jnp.power(jnp.sum(A, axis=2), -0.5)
    A_hat = A * d[:, :, None] * d[:, None, :]
    gcn = jnp.einsum('tnm,tmd->tnd', A_hat, lin)
    gcn = jnp.where(gcn >= 0, gcn, 0.01 * gcn)                   # LeakyReLU
    cv = jnp.maximum(gcn, 0.0)                                   # ReLU -> [T, N, C]

    # time_conv: Conv2d(C, C, (1,3), pad (0,1)) as im2col matmul, ReLU fused.
    cvt = jnp.transpose(cv, (1, 2, 0))                           # [N, C, T]
    cvp = jnp.pad(cvt, ((0, 0), (0, 0), (1, 1)))
    cols = [cvp[:, :, j:j + temporal] for j in range(3)]
    patches = jnp.stack(cols, axis=3)                            # [N, C, T, 3]
    patches = jnp.transpose(patches, (0, 2, 1, 3)).reshape(N * temporal, out_dim * 3)
    tout = matmul_bias_act(patches, p['time_wmat'], p['time_b'], act="relu")  # [N*T, C]
    tout = jnp.transpose(tout.reshape(N, temporal, out_dim), (0, 2, 1))
    return tout.reshape(N, out_dim * temporal)


# ---------------------------------------------------------------------------
# TSCD forward
# ---------------------------------------------------------------------------
def tscd_forward(x, params, height, width, band, temporal):
    HW = height * width

    y = x.reshape(height, width, temporal, band)
    x3d = jnp.transpose(y, (3, 2, 0, 1))                         # [band, T, H, W]

    # CNN branch
    h = ssconv_forward(x3d, params['p3dc0'])                     # [32, T, H, W]
    h = ssconv_forward(h, params['p3dc1'])                       # [64, T, H, W]
    # d2conv (1x1): lane-dense [HW, 256] output; channel order (t, c) matches PyTorch.
    X2t = jnp.transpose(h, (2, 3, 1, 0)).reshape(HW, 64 * temporal)
    CNN2 = matmul_bias_act(X2t, params['d2conv_wmat'], params['d2conv_b'])   # [HW, 256]

    # GCN branch
    clean_x_flatten = x.reshape(HW, -1)
    # One-hot superpixel pooling: tiny gather-style GEMM, leave to XLA.
    Hf = jnp.matmul(params['norm_col_Q'].T, clean_x_flatten)     # [n_sp, T*band]
    Hf = tigcn_forward(Hf, params['stig0'], temporal)
    Hf = tigcn_forward(Hf, params['stig1'], temporal)            # [n_sp, 64*T]
    H1 = matmul_bias_act(Hf, params['d1conv_wmat'], params['d1conv_b'])      # [n_sp, 256]
    GCN = jnp.matmul(params['Q'], H1)                            # [HW, 256]

    # TODO(synk): GKDM class definition was not provided in the reference source;
    # the fusion of the GCN and CNN feature maps is implemented as elementwise add
    # (fused into the A operand of the final softmax matmul).
    # Softmax_linear + softmax fused into one matmul epilogue.
    return matmul_bias_act(GCN, params['sl_wmat'], params['sl_b'],
                           act="softmax", a_add=CNN2)


# ---------------------------------------------------------------------------
# Deterministic parameter construction (BN folded into weights)
# ---------------------------------------------------------------------------
def _nrm(key, shape, scale=0.1):
    return scale * jax.random.normal(key, shape, jnp.float32)


def _bn_fold(gamma, beta, mean, var, eps=1e-5):
    scale = gamma / jnp.sqrt(var + eps)
    shift = beta - mean * scale
    return scale, shift


def init_params(key, height, width, band, temporal, class_count, n_sp):
    HW = height * width
    C64T = 64 * temporal
    ks = jax.random.split(key, 16)

    # Superpixel assignment Q (one pixel -> one superpixel) and adjacency A.
    seg = jnp.arange(HW) % n_sp
    Q = jax.nn.one_hot(seg, n_sp, dtype=jnp.float32)             # [HW, n_sp]
    norm_col_Q = Q / jnp.sum(Q, axis=0, keepdims=True)
    u = jax.random.uniform(ks[0], (n_sp, n_sp))
    A = ((u + u.T) > 1.0).astype(jnp.float32) + jnp.eye(n_sp, dtype=jnp.float32)
    mask = jnp.ceil(A * 1e-5)
    I = jnp.eye(n_sp, dtype=jnp.float32)

    def bn_stats(c):
        return (jnp.ones((c,), jnp.float32), jnp.zeros((c,), jnp.float32),
                jnp.zeros((c,), jnp.float32), jnp.ones((c,), jnp.float32))

    def ssconv(k, cin, cout):
        k1, k2 = jax.random.split(k)
        w = _nrm(k1, (cout, cin, 3, 3, 3))
        b = _nrm(k2, (cout,), 0.01)
        scale, shift = _bn_fold(*bn_stats(cin))
        # Fold eval-mode BN into the conv.  shift == 0 with the initialized
        # stats, so the shift-vs-zero-padding interaction is exact here.
        w_f = w * scale[None, :, None, None, None]
        b_f = b + jnp.einsum('oidhw,i->o', w, shift)
        wmat = w_f.reshape(cout, cin * 27)          # matches (ci, kidx) patch rows
        return dict(wmat=wmat, b=b_f)

    def tigcn(k, in_dim, out_dim):
        kk = jax.random.split(k, 6)
        theta_w = _nrm(kk[0], (in_dim * 2, in_dim))
        theta_b = _nrm(kk[1], (in_dim * 2,), 0.01)
        out_w = _nrm(kk[2], (out_dim, in_dim))
        out_b = _nrm(kk[3], (out_dim,), 0.01)
        time_w = _nrm(kk[4], (out_dim, out_dim, 1, 3))
        time_b = _nrm(kk[5], (out_dim,), 0.01)
        scale, shift = _bn_fold(*bn_stats(in_dim))
        theta_wf = theta_w * scale[None, :]
        theta_bf = theta_b + theta_w @ shift
        out_wf = out_w * scale[None, :]
        out_bf = out_b + out_w @ shift
        proj_w = jnp.concatenate([theta_wf, out_wf], axis=0).T   # [in_dim, 2*in+out]
        proj_b = jnp.concatenate([theta_bf, out_bf])
        time_wmat = time_w.reshape(out_dim, out_dim * 3).T       # [C*3, C]
        return dict(proj_w=proj_w, proj_b=proj_b,
                    time_wmat=time_wmat, time_b=time_b, mask=mask, I=I)

    d1conv_w = _nrm(ks[5], (256, C64T, 1))
    d1conv_b = _nrm(ks[6], (256,), 0.01)
    d2conv_w = _nrm(ks[7], (256, C64T, 1, 1))
    d2conv_b = _nrm(ks[8], (256,), 0.01)
    sl_w = _nrm(ks[9], (class_count, 256))
    sl_b = _nrm(ks[10], (class_count,), 0.01)

    return dict(
        Q=Q,
        norm_col_Q=norm_col_Q,
        p3dc0=ssconv(ks[1], band, 32),
        p3dc1=ssconv(ks[2], 32, 64),
        stig0=tigcn(ks[3], band, 64),
        stig1=tigcn(ks[4], 64, 64),
        d1conv_wmat=d1conv_w.reshape(256, C64T).T, d1conv_b=d1conv_b,
        d2conv_wmat=d2conv_w.reshape(256, C64T).T, d2conv_b=d2conv_b,
        sl_wmat=sl_w.T, sl_b=sl_b,
    )


# ---------------------------------------------------------------------------
if __name__ == "__main__":
    height, width = 8, 8
    band, temporal = 4, 4
    class_count = 5
    n_superpixels = 16

    key = jax.random.PRNGKey(0)
    k_x, k_p = jax.random.split(key)
    x = jax.random.normal(k_x, (height, width, temporal * band), jnp.float32)
    params = init_params(k_p, height, width, band, temporal, class_count,
                         n_superpixels)

    # JIT the whole forward so all im2col / pad / cast glue around the Pallas
    # matmuls compiles into one XLA program (no per-op dispatch).
    forward = jax.jit(functools.partial(tscd_forward, height=height, width=width,
                                        band=band, temporal=temporal))

    out = forward(x, params)
    out = jax.block_until_ready(out)
    assert out.shape == (height * width, class_count), out.shape
    assert bool(jnp.all(jnp.isfinite(out)))
    print("KERNEL_OK")
</pallas_src>

<mosaic_0001>
module attributes {stable_mosaic.version = 11 : i64} {
  func.func @_mm_bias_act_kernel(%arg0: i32, %arg1: i32, %arg2: i32, %arg3: memref<128x128xbf16, #tpu.memory_space<vmem>>, %arg4: memref<128x128xbf16, #tpu.memory_space<vmem>>, %arg5: memref<128x1xf32, #tpu.memory_space<vmem>>, %arg6: memref<128x128xf32, #tpu.memory_space<vmem>>, %arg7: memref<128x128xf32, #tpu.memory_space<vmem>>) attributes {dimension_semantics = [#tpu.dimension_semantics<parallel>, #tpu.dimension_semantics<parallel>, #tpu.dimension_semantics<arbitrary>], iteration_bounds = array<i64: 1, 2, 1>, scalar_prefetch = 0 : i64, scratch_operands = 1 : i64, tpu.core_type = #tpu.core_type<tc>, window_params = [{transform_indices = @transform_0, window_bounds = array<i64: 128, 128>}, {transform_indices = @transform_1, window_bounds = array<i64: 128, 128>}, {transform_indices = @transform_2, window_bounds = array<i64: 128, 1>}, {transform_indices = @transform_3, window_bounds = array<i64: 128, 128>}]} {
    %c0_i32 = arith.constant 0 : i32
    %0 = arith.cmpi eq, %arg2, %c0_i32 : i32
    %1 = arith.extui %0 : i1 to i32
    %c0_i32_0 = arith.constant 0 : i32
    %2 = arith.cmpi ne, %1, %c0_i32_0 : i32
    scf.if %2 {
      %cst_10 = arith.constant 0.000000e+00 : f32
      %12 = vector.broadcast %cst_10 : f32 to vector<128x128xf32>
      %c0_11 = arith.constant 0 : index
      %c0_12 = arith.constant 0 : index
      %13 = vector.load %arg7[%c0_11, %c0_12] : memref<128x128xf32, #tpu.memory_space<vmem>>, vector<128x128xf32>
      tpu.vector_store %arg7[%c0_11, %c0_12], %12 {strides = array<i32>} : memref<128x128xf32, #tpu.memory_space<vmem>>, vector<128x128xf32>,
    } else {
    }
    %c0 = arith.constant 0 : index
    %c0_1 = arith.constant 0 : index
    %3 = vector.load %arg3[%c0, %c0_1] : memref<128x128xbf16, #tpu.memory_space<vmem>>, vector<128x128xbf16>
    %c0_2 = arith.constant 0 : index
    %c0_3 = arith.constant 0 : index
    %4 = vector.load %arg7[%c0_2, %c0_3] : memref<128x128xf32, #tpu.memory_space<vmem>>, vector<128x128xf32>
    %c0_4 = arith.constant 0 : index
    %c0_5 = arith.constant 0 : index
    %5 = vector.load %arg4[%c0_4, %c0_5] : memref<128x128xbf16, #tpu.memory_space<vmem>>, vector<128x128xbf16>
    %cst = arith.constant dense<0.000000e+00> : vector<128x128xf32>
    %6 = tpu.matmul %3, %5, %cst {dimension_numbers = #tpu.dot_dimension_numbers<[1], [0], [0], [1], [0, 0, 1, 1], [], []>} : vector<128x128xbf16>, vector<128x128xbf16>, vector<128x128xf32> -> vector<128x128xf32>
    %7 = arith.addf %4, %6 : vector<128x128xf32>
    %c0_6 = arith.constant 0 : index
    %c0_7 = arith.constant 0 : index
    %8 = vector.load %arg7[%c0_6, %c0_7] : memref<128x128xf32, #tpu.memory_space<vmem>>, vector<128x128xf32>
    tpu.vector_store %arg7[%c0_6, %c0_7], %7 {strides = array<i32>} : memref<128x128xf32, #tpu.memory_space<vmem>>, vector<128x128xf32>,
    %c0_i32_8 = arith.constant 0 : i32
    %9 = arith.cmpi eq, %arg2, %c0_i32_8 : i32
    %10 = arith.extui %9 : i1 to i32
    %c0_i32_9 = arith.constant 0 : i32
    %11 = arith.cmpi ne, %10, %c0_i32_9 : i32
    scf.if %11 {
      %c0_10 = arith.constant 0 : index
      %c0_11 = arith.constant 0 : index
      %12 = vector.load %arg7[%c0_10, %c0_11] : memref<128x128xf32, #tpu.memory_space<vmem>>, vector<128x128xf32>
      %c0_12 = arith.constant 0 : index
      %c0_13 = arith.constant 0 : index
      %13 = vector.load %arg5[%c0_12, %c0_13] : memref<128x1xf32, #tpu.memory_space<vmem>>, vector<128x1xf32>
      %14 = vector.broadcast %13 : vector<128x1xf32> to vector<128x128xf32>
      %15 = arith.addf %12, %14 : vector<128x128xf32>
      %cst_14 = arith.constant 0.000000e+00 : f32
      %16 = vector.broadcast %cst_14 : f32 to vector<128x128xf32>
      %17 = arith.cmpf oge, %15, %16 : vector<128x128xf32>
      %cst_15 = arith.constant 0.00999999977 : f32
      %18 = vector.broadcast %cst_15 : f32 to vector<128x128xf32>
      %19 = arith.mulf %18, %15 : vector<128x128xf32>
      %20 = arith.select %17, %15, %19 : vector<128x128xi1>, vector<128x128xf32>
      %c0_16 = arith.constant 0 : index
      %c0_17 = arith.constant 0 : index
      %21 = vector.load %arg6[%c0_16, %c0_17] : memref<128x128xf32, #tpu.memory_space<vmem>>, vector<128x128xf32>
      tpu.vector_store %arg6[%c0_16, %c0_17], %20 {strides = array<i32>} : memref<128x128xf32, #tpu.memory_space<vmem>>, vector<128x128xf32>,
    } else {
    }
    return
  }
  func.func @transform_0(%arg0: i32, %arg1: i32, %arg2: i32) -> (i32, i32) {
    %c0_i32 = arith.constant 0 : i32
    return %arg0, %arg2 : i32, i32
  }
  func.func @transform_1(%arg0: i32, %arg1: i32, %arg2: i32) -> (i32, i32) {
    %c0_i32 = arith.constant 0 : i32
    return %arg2, %arg1 : i32, i32
  }
  func.func @transform_2(%arg0: i32, %arg1: i32, %arg2: i32) -> (i32, i32) {
    %c0_i32 = arith.constant 0 : i32
    %c0_i32_0 = arith.constant 0 : i32
    return %arg0, %c0_i32 : i32, i32
  }
  func.func @transform_3(%arg0: i32, %arg1: i32, %arg2: i32) -> (i32, i32) {
    %c0_i32 = arith.constant 0 : i32
    return %arg0, %arg1 : i32, i32
  }
}

module attributes {stable_mosaic.version = 11 : i64} {
  func.func @_mm_bias_act_kernel(%arg0: i32, %arg1: i32, %arg2: i32, %arg3: memref<128x128xbf16, #tpu.memory_space<vmem>>, %arg4: memref<128x128xbf16, #tpu.memory_space<vmem>>, %arg5: memref<128x1xf32, #tpu.memory_space<vmem>>, %arg6: memref<128x128xf32, #tpu.memory_space<vmem>>, %arg7: memref<128x128xf32, #tpu.memory_space<vmem>>) attributes {dimension_semantics = [#tpu.dimension_semantics<parallel>, #tpu.dimension_semantics<parallel>, #tpu.dimension_semantics<arbitrary>], iteration_bounds = array<i64: 1, 2, 7>, scalar_prefetch = 0 : i64, scratch_operands = 1 : i64, tpu.core_type = #tpu.core_type<tc>, window_params = [{transform_indices = @transform_0, window_bounds = array<i64: 128, 128>}, {transform_indices = @transform_1, window_bounds = array<i64: 128, 128>}, {transform_indices = @transform_2, window_bounds = array<i64: 128, 1>}, {transform_indices = @transform_3, window_bounds = array<i64: 128, 128>}]} {
    %c0_i32 = arith.constant 0 : i32
    %0 = arith.cmpi eq, %arg2, %c0_i32 : i32
    %1 = arith.extui %0 : i1 to i32
    %c0_i32_0 = arith.constant 0 : i32
    %2 = arith.cmpi ne, %1, %c0_i32_0 : i32
    scf.if %2 {
      %cst_9 = arith.constant 0.000000e+00 : f32
      %12 = vector.broadcast %cst_9 : f32 to vector<128x128xf32>
      %c0_10 = arith.constant 0 : index
      %c0_11 = arith.constant 0 : index
      %13 = vector.load %arg7[%c0_10, %c0_11] : memref<128x128xf32, #tpu.memory_space<vmem>>, vector<128x128xf32>
      tpu.vector_store %arg7[%c0_10, %c0_11], %12 {strides = array<i32>} : memref<128x128xf32, #tpu.memory_space<vmem>>, vector<128x128xf32>,
    } else {
    }
    %c0 = arith.constant 0 : index
    %c0_1 = arith.constant 0 : index
    %3 = vector.load %arg3[%c0, %c0_1] : memref<128x128xbf16, #tpu.memory_space<vmem>>, vector<128x128xbf16>
    %c0_2 = arith.constant 0 : index
    %c0_3 = arith.constant 0 : index
    %4 = vector.load %arg7[%c0_2, %c0_3] : memref<128x128xf32, #tpu.memory_space<vmem>>, vector<128x128xf32>
    %c0_4 = arith.constant 0 : index
    %c0_5 = arith.constant 0 : index
    %5 = vector.load %arg4[%c0_4, %c0_5] : memref<128x128xbf16, #tpu.memory_space<vmem>>, vector<128x128xbf16>
    %cst = arith.constant dense<0.000000e+00> : vector<128x128xf32>
    %6 = tpu.matmul %3, %5, %cst {dimension_numbers = #tpu.dot_dimension_numbers<[1], [0], [0], [1], [0, 0, 1, 1], [], []>} : vector<128x128xbf16>, vector<128x128xbf16>, vector<128x128xf32> -> vector<128x128xf32>
    %7 = arith.addf %4, %6 : vector<128x128xf32>
    %c0_6 = arith.constant 0 : index
    %c0_7 = arith.constant 0 : index
    %8 = vector.load %arg7[%c0_6, %c0_7] : memref<128x128xf32, #tpu.memory_space<vmem>>, vector<128x128xf32>
    tpu.vector_store %arg7[%c0_6, %c0_7], %7 {strides = array<i32>} : memref<128x128xf32, #tpu.memory_space<vmem>>, vector<128x128xf32>,
    %c6_i32 = arith.constant 6 : i32
    %9 = arith.cmpi eq, %arg2, %c6_i32 : i32
    %10 = arith.extui %9 : i1 to i32
    %c0_i32_8 = arith.constant 0 : i32
    %11 = arith.cmpi ne, %10, %c0_i32_8 : i32
    scf.if %11 {
      %c0_9 = arith.constant 0 : index
      %c0_10 = arith.constant 0 : index
      %12 = vector.load %arg7[%c0_9, %c0_10] : memref<128x128xf32, #tpu.memory_space<vmem>>, vector<128x128xf32>
      %c0_11 = arith.constant 0 : index
      %c0_12 = arith.constant 0 : index
      %13 = vector.load %arg5[%c0_11, %c0_12] : memref<128x1xf32, #tpu.memory_space<vmem>>, vector<128x1xf32>
      %14 = vector.broadcast %13 : vector<128x1xf32> to vector<128x128xf32>
      %15 = arith.addf %12, %14 : vector<128x128xf32>
      %cst_13 = arith.constant 0.000000e+00 : f32
      %16 = vector.broadcast %cst_13 : f32 to vector<128x128xf32>
      %17 = arith.cmpf oge, %15, %16 : vector<128x128xf32>
      %cst_14 = arith.constant 0.00999999977 : f32
      %18 = vector.broadcast %cst_14 : f32 to vector<128x128xf32>
      %19 = arith.mulf %18, %15 : vector<128x128xf32>
      %20 = arith.select %17, %15, %19 : vector<128x128xi1>, vector<128x128xf32>
      %c0_15 = arith.constant 0 : index
      %c0_16 = arith.constant 0 : index
      %21 = vector.load %arg6[%c0_15, %c0_16] : memref<128x128xf32, #tpu.memory_space<vmem>>, vector<128x128xf32>
      tpu.vector_store %arg6[%c0_15, %c0_16], %20 {strides = array<i32>} : memref<128x128xf32, #tpu.memory_space<vmem>>, vector<128x128xf32>,
    } else {
    }
    return
  }
  func.func @transform_0(%arg0: i32, %arg1: i32, %arg2: i32) -> (i32, i32) {
    %c0_i32 = arith.constant 0 : i32
    return %arg0, %arg2 : i32, i32
  }
  func.func @transform_1(%arg0: i32, %arg1: i32, %arg2: i32) -> (i32, i32) {
    %c0_i32 = arith.constant 0 : i32
    return %arg2, %arg1 : i32, i32
  }
  func.func @transform_2(%arg0: i32, %arg1: i32, %arg2: i32) -> (i32, i32) {
    %c0_i32 = arith.constant 0 : i32
    %c0_i32_0 = arith.constant 0 : i32
    return %arg0, %c0_i32 : i32, i32
  }
  func.func @transform_3(%arg0: i32, %arg1: i32, %arg2: i32) -> (i32, i32) {
    %c0_i32 = arith.constant 0 : i32
    return %arg0, %arg1 : i32, i32
  }
}

module attributes {stable_mosaic.version = 11 : i64} {
  func.func @_mm_bias_act_kernel(%arg0: i32, %arg1: i32, %arg2: i32, %arg3: memref<128x128xbf16, #tpu.memory_space<vmem>>, %arg4: memref<128x128xbf16, #tpu.memory_space<vmem>>, %arg5: memref<1x128xf32, #tpu.memory_space<vmem>>, %arg6: memref<128x128xf32, #tpu.memory_space<vmem>>, %arg7: memref<128x128xf32, #tpu.memory_space<vmem>>) attributes {dimension_semantics = [#tpu.dimension_semantics<parallel>, #tpu.dimension_semantics<parallel>, #tpu.dimension_semantics<arbitrary>], iteration_bounds = array<i64: 1, 2, 2>, scalar_prefetch = 0 : i64, scratch_operands = 1 : i64, tpu.core_type = #tpu.core_type<tc>, window_params = [{transform_indices = @transform_0, window_bounds = array<i64: 128, 128>}, {transform_indices = @transform_1, window_bounds = array<i64: 128, 128>}, {transform_indices = @transform_2, window_bounds = array<i64: 1, 128>}, {transform_indices = @transform_3, window_bounds = array<i64: 128, 128>}]} {
    %c0_i32 = arith.constant 0 : i32
    %0 = arith.cmpi eq, %arg2, %c0_i32 : i32
    %1 = arith.extui %0 : i1 to i32
    %c0_i32_0 = arith.constant 0 : i32
    %2 = arith.cmpi ne, %1, %c0_i32_0 : i32
    scf.if %2 {
      %cst_9 = arith.constant 0.000000e+00 : f32
      %12 = vector.broadcast %cst_9 : f32 to vector<128x128xf32>
      %c0_10 = arith.constant 0 : index
      %c0_11 = arith.constant 0 : index
      %13 = vector.load %arg7[%c0_10, %c0_11] : memref<128x128xf32, #tpu.memory_space<vmem>>, vector<128x128xf32>
      tpu.vector_store %arg7[%c0_10, %c0_11], %12 {strides = array<i32>} : memref<128x128xf32, #tpu.memory_space<vmem>>, vector<128x128xf32>,
    } else {
    }
    %c0 = arith.constant 0 : index
    %c0_1 = arith.constant 0 : index
    %3 = vector.load %arg3[%c0, %c0_1] : memref<128x128xbf16, #tpu.memory_space<vmem>>, vector<128x128xbf16>
    %c0_2 = arith.constant 0 : index
    %c0_3 = arith.constant 0 : index
    %4 = vector.load %arg7[%c0_2, %c0_3] : memref<128x128xf32, #tpu.memory_space<vmem>>, vector<128x128xf32>
    %c0_4 = arith.constant 0 : index
    %c0_5 = arith.constant 0 : index
    %5 = vector.load %arg4[%c0_4, %c0_5] : memref<128x128xbf16, #tpu.memory_space<vmem>>, vector<128x128xbf16>
    %cst = arith.constant dense<0.000000e+00> : vector<128x128xf32>
    %6 = tpu.matmul %3, %5, %cst {dimension_numbers = #tpu.dot_dimension_numbers<[1], [0], [0], [1], [0, 0, 1, 1], [], []>} : vector<128x128xbf16>, vector<128x128xbf16>, vector<128x128xf32> -> vector<128x128xf32>
    %7 = arith.addf %4, %6 : vector<128x128xf32>
    %c0_6 = arith.constant 0 : index
    %c0_7 = arith.constant 0 : index
    %8 = vector.load %arg7[%c0_6, %c0_7] : memref<128x128xf32, #tpu.memory_space<vmem>>, vector<128x128xf32>
    tpu.vector_store %arg7[%c0_6, %c0_7], %7 {strides = array<i32>} : memref<128x128xf32, #tpu.memory_space<vmem>>, vector<128x128xf32>,
    %c1_i32 = arith.constant 1 : i32
    %9 = arith.cmpi eq, %arg2, %c1_i32 : i32
    %10 = arith.extui %9 : i1 to i32
    %c0_i32_8 = arith.constant 0 : i32
    %11 = arith.cmpi ne, %10, %c0_i32_8 : i32
    scf.if %11 {
      %c0_9 = arith.constant 0 : index
      %c0_10 = arith.constant 0 : index
      %12 = vector.load %arg7[%c0_9, %c0_10] : memref<128x128xf32, #tpu.memory_space<vmem>>, vector<128x128xf32>
      %c0_11 = arith.constant 0 : index
      %c0_12 = arith.constant 0 : index
      %13 = vector.load %arg5[%c0_11, %c0_12] : memref<1x128xf32, #tpu.memory_space<vmem>>, vector<1x128xf32>
      %14 = vector.broadcast %13 : vector<1x128xf32> to vector<128x128xf32>
      %15 = arith.addf %12, %14 : vector<128x128xf32>
      %c0_13 = arith.constant 0 : index
      %c0_14 = arith.constant 0 : index
      %16 = vector.load %arg6[%c0_13, %c0_14] : memref<128x128xf32, #tpu.memory_space<vmem>>, vector<128x128xf32>
      tpu.vector_store %arg6[%c0_13, %c0_14], %15 {strides = array<i32>} : memref<128x128xf32, #tpu.memory_space<vmem>>, vector<128x128xf32>,
    } else {
    }
    return
  }
  func.func @transform_0(%arg0: i32, %arg1: i32, %arg2: i32) -> (i32, i32) {
    %c0_i32 = arith.constant 0 : i32
    return %arg0, %arg2 : i32, i32
  }
  func.func @transform_1(%arg0: i32, %arg1: i32, %arg2: i32) -> (i32, i32) {
    %c0_i32 = arith.constant 0 : i32
    return %arg2, %arg1 : i32, i32
  }
  func.func @transform_2(%arg0: i32, %arg1: i32, %arg2: i32) -> (i32, i32) {
    %c0_i32 = arith.constant 0 : i32
    %c0_i32_0 = arith.constant 0 : i32
    return %c0_i32, %arg1 : i32, i32
  }
  func.func @transform_3(%arg0: i32, %arg1: i32, %arg2: i32) -> (i32, i32) {
    %c0_i32 = arith.constant 0 : i32
    return %arg0, %arg1 : i32, i32
  }
}

module attributes {stable_mosaic.version = 11 : i64} {
  func.func @_mm_bias_act_kernel(%arg0: i32, %arg1: i32, %arg2: i32, %arg3: memref<128x128xbf16, #tpu.memory_space<vmem>>, %arg4: memref<128x128xbf16, #tpu.memory_space<vmem>>, %arg5: memref<1x128xf32, #tpu.memory_space<vmem>>, %arg6: memref<128x128xf32, #tpu.memory_space<vmem>>, %arg7: memref<128x128xf32, #tpu.memory_space<vmem>>) attributes {dimension_semantics = [#tpu.dimension_semantics<parallel>, #tpu.dimension_semantics<parallel>, #tpu.dimension_semantics<arbitrary>], iteration_bounds = array<i64: 1, 1, 1>, scalar_prefetch = 0 : i64, scratch_operands = 1 : i64, tpu.core_type = #tpu.core_type<tc>, window_params = [{transform_indices = @transform_0, window_bounds = array<i64: 128, 128>}, {transform_indices = @transform_1, window_bounds = array<i64: 128, 128>}, {transform_indices = @transform_2, window_bounds = array<i64: 1, 128>}, {transform_indices = @transform_3, window_bounds = array<i64: 128, 128>}]} {
    %c0_i32 = arith.constant 0 : i32
    %0 = arith.cmpi eq, %arg2, %c0_i32 : i32
    %1 = arith.extui %0 : i1 to i32
    %c0_i32_0 = arith.constant 0 : i32
    %2 = arith.cmpi ne, %1, %c0_i32_0 : i32
    scf.if %2 {
      %cst_10 = arith.constant 0.000000e+00 : f32
      %12 = vector.broadcast %cst_10 : f32 to vector<128x128xf32>
      %c0_11 = arith.constant 0 : index
      %c0_12 = arith.constant 0 : index
      %13 = vector.load %arg7[%c0_11, %c0_12] : memref<128x128xf32, #tpu.memory_space<vmem>>, vector<128x128xf32>
      tpu.vector_store %arg7[%c0_11, %c0_12], %12 {strides = array<i32>} : memref<128x128xf32, #tpu.memory_space<vmem>>, vector<128x128xf32>,
    } else {
    }
    %c0 = arith.constant 0 : index
    %c0_1 = arith.constant 0 : index
    %3 = vector.load %arg3[%c0, %c0_1] : memref<128x128xbf16, #tpu.memory_space<vmem>>, vector<128x128xbf16>
    %c0_2 = arith.constant 0 : index
    %c0_3 = arith.constant 0 : index
    %4 = vector.load %arg7[%c0_2, %c0_3] : memref<128x128xf32, #tpu.memory_space<vmem>>, vector<128x128xf32>
    %c0_4 = arith.constant 0 : index
    %c0_5 = arith.constant 0 : index
    %5 = vector.load %arg4[%c0_4, %c0_5] : memref<128x128xbf16, #tpu.memory_space<vmem>>, vector<128x128xbf16>
    %cst = arith.constant dense<0.000000e+00> : vector<128x128xf32>
    %6 = tpu.matmul %3, %5, %cst {dimension_numbers = #tpu.dot_dimension_numbers<[1], [0], [0], [1], [0, 0, 1, 1], [], []>} : vector<128x128xbf16>, vector<128x128xbf16>, vector<128x128xf32> -> vector<128x128xf32>
    %7 = arith.addf %4, %6 : vector<128x128xf32>
    %c0_6 = arith.constant 0 : index
    %c0_7 = arith.constant 0 : index
    %8 = vector.load %arg7[%c0_6, %c0_7] : memref<128x128xf32, #tpu.memory_space<vmem>>, vector<128x128xf32>
    tpu.vector_store %arg7[%c0_6, %c0_7], %7 {strides = array<i32>} : memref<128x128xf32, #tpu.memory_space<vmem>>, vector<128x128xf32>,
    %c0_i32_8 = arith.constant 0 : i32
    %9 = arith.cmpi eq, %arg2, %c0_i32_8 : i32
    %10 = arith.extui %9 : i1 to i32
    %c0_i32_9 = arith.constant 0 : i32
    %11 = arith.cmpi ne, %10, %c0_i32_9 : i32
    scf.if %11 {
      %c0_10 = arith.constant 0 : index
      %c0_11 = arith.constant 0 : index
      %12 = vector.load %arg7[%c0_10, %c0_11] : memref<128x128xf32, #tpu.memory_space<vmem>>, vector<128x128xf32>
      %c0_12 = arith.constant 0 : index
      %c0_13 = arith.constant 0 : index
      %13 = vector.load %arg5[%c0_12, %c0_13] : memref<1x128xf32, #tpu.memory_space<vmem>>, vector<1x128xf32>
      %14 = vector.broadcast %13 : vector<1x128xf32> to vector<128x128xf32>
      %15 = arith.addf %12, %14 : vector<128x128xf32>
      %c0_14 = arith.constant 0 : index
      %c0_15 = arith.constant 0 : index
      %16 = vector.load %arg6[%c0_14, %c0_15] : memref<128x128xf32, #tpu.memory_space<vmem>>, vector<128x128xf32>
      tpu.vector_store %arg6[%c0_14, %c0_15], %15 {strides = array<i32>} : memref<128x128xf32, #tpu.memory_space<vmem>>, vector<128x128xf32>,
    } else {
    }
    return
  }
  func.func @transform_0(%arg0: i32, %arg1: i32, %arg2: i32) -> (i32, i32) {
    %c0_i32 = arith.constant 0 : i32
    return %arg0, %arg2 : i32, i32
  }
  func.func @transform_1(%arg0: i32, %arg1: i32, %arg2: i32) -> (i32, i32) {
    %c0_i32 = arith.constant 0 : i32
    return %arg2, %arg1 : i32, i32
  }
  func.func @transform_2(%arg0: i32, %arg1: i32, %arg2: i32) -> (i32, i32) {
    %c0_i32 = arith.constant 0 : i32
    %c0_i32_0 = arith.constant 0 : i32
    return %c0_i32, %arg1 : i32, i32
  }
  func.func @transform_3(%arg0: i32, %arg1: i32, %arg2: i32) -> (i32, i32) {
    %c0_i32 = arith.constant 0 : i32
    return %arg0, %arg1 : i32, i32
  }
}

module attributes {stable_mosaic.version = 11 : i64} {
  func.func @_mm_bias_act_kernel(%arg0: i32, %arg1: i32, %arg2: i32, %arg3: memref<128x128xbf16, #tpu.memory_space<vmem>>, %arg4: memref<128x128xbf16, #tpu.memory_space<vmem>>, %arg5: memref<1x128xf32, #tpu.memory_space<vmem>>, %arg6: memref<128x128xf32, #tpu.memory_space<vmem>>, %arg7: memref<128x128xf32, #tpu.memory_space<vmem>>) attributes {dimension_semantics = [#tpu.dimension_semantics<parallel>, #tpu.dimension_semantics<parallel>, #tpu.dimension_semantics<arbitrary>], iteration_bounds = array<i64: 1, 1, 2>, scalar_prefetch = 0 : i64, scratch_operands = 1 : i64, tpu.core_type = #tpu.core_type<tc>, window_params = [{transform_indices = @transform_0, window_bounds = array<i64: 128, 128>}, {transform_indices = @transform_1, window_bounds = array<i64: 128, 128>}, {transform_indices = @transform_2, window_bounds = array<i64: 1, 128>}, {transform_indices = @transform_3, window_bounds = array<i64: 128, 128>}]} {
    %c0_i32 = arith.constant 0 : i32
    %0 = arith.cmpi eq, %arg2, %c0_i32 : i32
    %1 = arith.extui %0 : i1 to i32
    %c0_i32_0 = arith.constant 0 : i32
    %2 = arith.cmpi ne, %1, %c0_i32_0 : i32
    scf.if %2 {
      %cst_9 = arith.constant 0.000000e+00 : f32
      %12 = vector.broadcast %cst_9 : f32 to vector<128x128xf32>
      %c0_10 = arith.constant 0 : index
      %c0_11 = arith.constant 0 : index
      %13 = vector.load %arg7[%c0_10, %c0_11] : memref<128x128xf32, #tpu.memory_space<vmem>>, vector<128x128xf32>
      tpu.vector_store %arg7[%c0_10, %c0_11], %12 {strides = array<i32>} : memref<128x128xf32, #tpu.memory_space<vmem>>, vector<128x128xf32>,
    } else {
    }
    %c0 = arith.constant 0 : index
    %c0_1 = arith.constant 0 : index
    %3 = vector.load %arg3[%c0, %c0_1] : memref<128x128xbf16, #tpu.memory_space<vmem>>, vector<128x128xbf16>
    %c0_2 = arith.constant 0 : index
    %c0_3 = arith.constant 0 : index
    %4 = vector.load %arg7[%c0_2, %c0_3] : memref<128x128xf32, #tpu.memory_space<vmem>>, vector<128x128xf32>
    %c0_4 = arith.constant 0 : index
    %c0_5 = arith.constant 0 : index
    %5 = vector.load %arg4[%c0_4, %c0_5] : memref<128x128xbf16, #tpu.memory_space<vmem>>, vector<128x128xbf16>
    %cst = arith.constant dense<0.000000e+00> : vector<128x128xf32>
    %6 = tpu.matmul %3, %5, %cst {dimension_numbers = #tpu.dot_dimension_numbers<[1], [0], [0], [1], [0, 0, 1, 1], [], []>} : vector<128x128xbf16>, vector<128x128xbf16>, vector<128x128xf32> -> vector<128x128xf32>
    %7 = arith.addf %4, %6 : vector<128x128xf32>
    %c0_6 = arith.constant 0 : index
    %c0_7 = arith.constant 0 : index
    %8 = vector.load %arg7[%c0_6, %c0_7] : memref<128x128xf32, #tpu.memory_space<vmem>>, vector<128x128xf32>
    tpu.vector_store %arg7[%c0_6, %c0_7], %7 {strides = array<i32>} : memref<128x128xf32, #tpu.memory_space<vmem>>, vector<128x128xf32>,
    %c1_i32 = arith.constant 1 : i32
    %9 = arith.cmpi eq, %arg2, %c1_i32 : i32
    %10 = arith.extui %9 : i1 to i32
    %c0_i32_8 = arith.constant 0 : i32
    %11 = arith.cmpi ne, %10, %c0_i32_8 : i32
    scf.if %11 {
      %c0_9 = arith.constant 0 : index
      %c0_10 = arith.constant 0 : index
      %12 = vector.load %arg7[%c0_9, %c0_10] : memref<128x128xf32, #tpu.memory_space<vmem>>, vector<128x128xf32>
      %c0_11 = arith.constant 0 : index
      %c0_12 = arith.constant 0 : index
      %13 = vector.load %arg5[%c0_11, %c0_12] : memref<1x128xf32, #tpu.memory_space<vmem>>, vector<1x128xf32>
      %14 = vector.broadcast %13 : vector<1x128xf32> to vector<128x128xf32>
      %15 = arith.addf %12, %14 : vector<128x128xf32>
      %cst_13 = arith.constant 0.000000e+00 : f32
      %16 = vector.broadcast %cst_13 : f32 to vector<128x128xf32>
      %17 = arith.maximumf %15, %16 : vector<128x128xf32>
      %c0_14 = arith.constant 0 : index
      %c0_15 = arith.constant 0 : index
      %18 = vector.load %arg6[%c0_14, %c0_15] : memref<128x128xf32, #tpu.memory_space<vmem>>, vector<128x128xf32>
      tpu.vector_store %arg6[%c0_14, %c0_15], %17 {strides = array<i32>} : memref<128x128xf32, #tpu.memory_space<vmem>>, vector<128x128xf32>,
    } else {
    }
    return
  }
  func.func @transform_0(%arg0: i32, %arg1: i32, %arg2: i32) -> (i32, i32) {
    %c0_i32 = arith.constant 0 : i32
    return %arg0, %arg2 : i32, i32
  }
  func.func @transform_1(%arg0: i32, %arg1: i32, %arg2: i32) -> (i32, i32) {
    %c0_i32 = arith.constant 0 : i32
    return %arg2, %arg1 : i32, i32
  }
  func.func @transform_2(%arg0: i32, %arg1: i32, %arg2: i32) -> (i32, i32) {
    %c0_i32 = arith.constant 0 : i32
    %c0_i32_0 = arith.constant 0 : i32
    return %c0_i32, %arg1 : i32, i32
  }
  func.func @transform_3(%arg0: i32, %arg1: i32, %arg2: i32) -> (i32, i32) {
    %c0_i32 = arith.constant 0 : i32
    return %arg0, %arg1 : i32, i32
  }
}

module attributes {stable_mosaic.version = 11 : i64} {
  func.func @_mm_bias_act_kernel(%arg0: i32, %arg1: i32, %arg2: i32, %arg3: memref<128x128xbf16, #tpu.memory_space<vmem>>, %arg4: memref<128x128xbf16, #tpu.memory_space<vmem>>, %arg5: memref<1x128xf32, #tpu.memory_space<vmem>>, %arg6: memref<128x128xf32, #tpu.memory_space<vmem>>, %arg7: memref<128x128xf32, #tpu.memory_space<vmem>>) attributes {dimension_semantics = [#tpu.dimension_semantics<parallel>, #tpu.dimension_semantics<parallel>, #tpu.dimension_semantics<arbitrary>], iteration_bounds = array<i64: 1, 2, 1>, scalar_prefetch = 0 : i64, scratch_operands = 1 : i64, tpu.core_type = #tpu.core_type<tc>, window_params = [{transform_indices = @transform_0, window_bounds = array<i64: 128, 128>}, {transform_indices = @transform_1, window_bounds = array<i64: 128, 128>}, {transform_indices = @transform_2, window_bounds = array<i64: 1, 128>}, {transform_indices = @transform_3, window_bounds = array<i64: 128, 128>}]} {
    %c0_i32 = arith.constant 0 : i32
    %0 = arith.cmpi eq, %arg2, %c0_i32 : i32
    %1 = arith.extui %0 : i1 to i32
    %c0_i32_0 = arith.constant 0 : i32
    %2 = arith.cmpi ne, %1, %c0_i32_0 : i32
    scf.if %2 {
      %cst_10 = arith.constant 0.000000e+00 : f32
      %12 = vector.broadcast %cst_10 : f32 to vector<128x128xf32>
      %c0_11 = arith.constant 0 : index
      %c0_12 = arith.constant 0 : index
      %13 = vector.load %arg7[%c0_11, %c0_12] : memref<128x128xf32, #tpu.memory_space<vmem>>, vector<128x128xf32>
      tpu.vector_store %arg7[%c0_11, %c0_12], %12 {strides = array<i32>} : memref<128x128xf32, #tpu.memory_space<vmem>>, vector<128x128xf32>,
    } else {
    }
    %c0 = arith.constant 0 : index
    %c0_1 = arith.constant 0 : index
    %3 = vector.load %arg3[%c0, %c0_1] : memref<128x128xbf16, #tpu.memory_space<vmem>>, vector<128x128xbf16>
    %c0_2 = arith.constant 0 : index
    %c0_3 = arith.constant 0 : index
    %4 = vector.load %arg7[%c0_2, %c0_3] : memref<128x128xf32, #tpu.memory_space<vmem>>, vector<128x128xf32>
    %c0_4 = arith.constant 0 : index
    %c0_5 = arith.constant 0 : index
    %5 = vector.load %arg4[%c0_4, %c0_5] : memref<128x128xbf16, #tpu.memory_space<vmem>>, vector<128x128xbf16>
    %cst = arith.constant dense<0.000000e+00> : vector<128x128xf32>
    %6 = tpu.matmul %3, %5, %cst {dimension_numbers = #tpu.dot_dimension_numbers<[1], [0], [0], [1], [0, 0, 1, 1], [], []>} : vector<128x128xbf16>, vector<128x128xbf16>, vector<128x128xf32> -> vector<128x128xf32>
    %7 = arith.addf %4, %6 : vector<128x128xf32>
    %c0_6 = arith.constant 0 : index
    %c0_7 = arith.constant 0 : index
    %8 = vector.load %arg7[%c0_6, %c0_7] : memref<128x128xf32, #tpu.memory_space<vmem>>, vector<128x128xf32>
    tpu.vector_store %arg7[%c0_6, %c0_7], %7 {strides = array<i32>} : memref<128x128xf32, #tpu.memory_space<vmem>>, vector<128x128xf32>,
    %c0_i32_8 = arith.constant 0 : i32
    %9 = arith.cmpi eq, %arg2, %c0_i32_8 : i32
    %10 = arith.extui %9 : i1 to i32
    %c0_i32_9 = arith.constant 0 : i32
    %11 = arith.cmpi ne, %10, %c0_i32_9 : i32
    scf.if %11 {
      %c0_10 = arith.constant 0 : index
      %c0_11 = arith.constant 0 : index
      %12 = vector.load %arg7[%c0_10, %c0_11] : memref<128x128xf32, #tpu.memory_space<vmem>>, vector<128x128xf32>
      %c0_12 = arith.constant 0 : index
      %c0_13 = arith.constant 0 : index
      %13 = vector.load %arg5[%c0_12, %c0_13] : memref<1x128xf32, #tpu.memory_space<vmem>>, vector<1x128xf32>
      %14 = vector.broadcast %13 : vector<1x128xf32> to vector<128x128xf32>
      %15 = arith.addf %12, %14 : vector<128x128xf32>
      %c0_14 = arith.constant 0 : index
      %c0_15 = arith.constant 0 : index
      %16 = vector.load %arg6[%c0_14, %c0_15] : memref<128x128xf32, #tpu.memory_space<vmem>>, vector<128x128xf32>
      tpu.vector_store %arg6[%c0_14, %c0_15], %15 {strides = array<i32>} : memref<128x128xf32, #tpu.memory_space<vmem>>, vector<128x128xf32>,
    } else {
    }
    return
  }
  func.func @transform_0(%arg0: i32, %arg1: i32, %arg2: i32) -> (i32, i32) {
    %c0_i32 = arith.constant 0 : i32
    return %arg0, %arg2 : i32, i32
  }
  func.func @transform_1(%arg0: i32, %arg1: i32, %arg2: i32) -> (i32, i32) {
    %c0_i32 = arith.constant 0 : i32
    return %arg2, %arg1 : i32, i32
  }
  func.func @transform_2(%arg0: i32, %arg1: i32, %arg2: i32) -> (i32, i32) {
    %c0_i32 = arith.constant 0 : i32
    %c0_i32_0 = arith.constant 0 : i32
    return %c0_i32, %arg1 : i32, i32
  }
  func.func @transform_3(%arg0: i32, %arg1: i32, %arg2: i32) -> (i32, i32) {
    %c0_i32 = arith.constant 0 : i32
    return %arg0, %arg1 : i32, i32
  }
}

module attributes {stable_mosaic.version = 11 : i64} {
  func.func @_mm_bias_act_kernel(%arg0: i32, %arg1: i32, %arg2: i32, %arg3: memref<128x128xbf16, #tpu.memory_space<vmem>>, %arg4: memref<128x128xbf16, #tpu.memory_space<vmem>>, %arg5: memref<128x128xbf16, #tpu.memory_space<vmem>>, %arg6: memref<1x128xf32, #tpu.memory_space<vmem>>, %arg7: memref<128x128xf32, #tpu.memory_space<vmem>>, %arg8: memref<128x128xf32, #tpu.memory_space<vmem>>) attributes {dimension_semantics = [#tpu.dimension_semantics<parallel>, #tpu.dimension_semantics<parallel>, #tpu.dimension_semantics<arbitrary>], iteration_bounds = array<i64: 1, 1, 2>, scalar_prefetch = 0 : i64, scratch_operands = 1 : i64, tpu.core_type = #tpu.core_type<tc>, window_params = [{transform_indices = @transform_0, window_bounds = array<i64: 128, 128>}, {transform_indices = @transform_1, window_bounds = array<i64: 128, 128>}, {transform_indices = @transform_2, window_bounds = array<i64: 128, 128>}, {transform_indices = @transform_3, window_bounds = array<i64: 1, 128>}, {transform_indices = @transform_4, window_bounds = array<i64: 128, 128>}]} {
    %c0_i32 = arith.constant 0 : i32
    %0 = arith.cmpi eq, %arg2, %c0_i32 : i32
    %1 = arith.extui %0 : i1 to i32
    %c0_i32_0 = arith.constant 0 : i32
    %2 = arith.cmpi ne, %1, %c0_i32_0 : i32
    scf.if %2 {
      %cst_11 = arith.constant 0.000000e+00 : f32
      %14 = vector.broadcast %cst_11 : f32 to vector<128x128xf32>
      %c0_12 = arith.constant 0 : index
      %c0_13 = arith.constant 0 : index
      %15 = vector.load %arg8[%c0_12, %c0_13] : memref<128x128xf32, #tpu.memory_space<vmem>>, vector<128x128xf32>
      tpu.vector_store %arg8[%c0_12, %c0_13], %14 {strides = array<i32>} : memref<128x128xf32, #tpu.memory_space<vmem>>, vector<128x128xf32>,
    } else {
    }
    %c0 = arith.constant 0 : index
    %c0_1 = arith.constant 0 : index
    %3 = vector.load %arg3[%c0, %c0_1] : memref<128x128xbf16, #tpu.memory_space<vmem>>, vector<128x128xbf16>
    %c0_2 = arith.constant 0 : index
    %c0_3 = arith.constant 0 : index
    %4 = vector.load %arg4[%c0_2, %c0_3] : memref<128x128xbf16, #tpu.memory_space<vmem>>, vector<128x128xbf16>
    %5 = arith.addf %3, %4 : vector<128x128xbf16>
    %c0_4 = arith.constant 0 : index
    %c0_5 = arith.constant 0 : index
    %6 = vector.load %arg8[%c0_4, %c0_5] : memref<128x128xf32, #tpu.memory_space<vmem>>, vector<128x128xf32>
    %c0_6 = arith.constant 0 : index
    %c0_7 = arith.constant 0 : index
    %7 = vector.load %arg5[%c0_6, %c0_7] : memref<128x128xbf16, #tpu.memory_space<vmem>>, vector<128x128xbf16>
    %cst = arith.constant dense<0.000000e+00> : vector<128x128xf32>
    %8 = tpu.matmul %5, %7, %cst {dimension_numbers = #tpu.dot_dimension_numbers<[1], [0], [0], [1], [0, 0, 1, 1], [], []>} : vector<128x128xbf16>, vector<128x128xbf16>, vector<128x128xf32> -> vector<128x128xf32>
    %9 = arith.addf %6, %8 : vector<128x128xf32>
    %c0_8 = arith.constant 0 : index
    %c0_9 = arith.constant 0 : index
    %10 = vector.load %arg8[%c0_8, %c0_9] : memref<128x128xf32, #tpu.memory_space<vmem>>, vector<128x128xf32>
    tpu.vector_store %arg8[%c0_8, %c0_9], %9 {strides = array<i32>} : memref<128x128xf32, #tpu.memory_space<vmem>>, vector<128x128xf32>,
    %c1_i32 = arith.constant 1 : i32
    %11 = arith.cmpi eq, %arg2, %c1_i32 : i32
    %12 = arith.extui %11 : i1 to i32
    %c0_i32_10 = arith.constant 0 : i32
    %13 = arith.cmpi ne, %12, %c0_i32_10 : i32
    scf.if %13 {
      %c0_11 = arith.constant 0 : index
      %c0_12 = arith.constant 0 : index
      %14 = vector.load %arg8[%c0_11, %c0_12] : memref<128x128xf32, #tpu.memory_space<vmem>>, vector<128x128xf32>
      %c0_13 = arith.constant 0 : index
      %c0_14 = arith.constant 0 : index
      %15 = vector.load %arg6[%c0_13, %c0_14] : memref<1x128xf32, #tpu.memory_space<vmem>>, vector<1x128xf32>
      %16 = vector.broadcast %15 : vector<1x128xf32> to vector<128x128xf32>
      %17 = arith.addf %14, %16 : vector<128x128xf32>
      %18 = tpu.iota {dimensions = array<i32: 1>} : vector<128x128xi32>
      %c5_i32 = arith.constant 5 : i32
      %19 = vector.broadcast %c5_i32 : i32 to vector<128x128xi32>
      %20 = arith.cmpi slt, %18, %19 : vector<128x128xi32>
      %cst_15 = arith.constant 0xFF800000 : f32
      %21 = vector.broadcast %cst_15 : f32 to vector<128x128xf32>
      %22 = arith.select %20, %17, %21 : vector<128x128xi1>, vector<128x128xf32>
      %cst_16 = arith.constant dense<0xFF800000> : vector<128xf32>
      %23 = vector.multi_reduction <maximumf>, %22, %cst_16 [1] : vector<128x128xf32> to vector<128xf32>
      %24 = vector.shape_cast %23 : vector<128xf32> to vector<128x1xf32>
      %25 = vector.broadcast %24 : vector<128x1xf32> to vector<128x128xf32>
      %26 = arith.subf %22, %25 : vector<128x128xf32>
      %27 = math.exp %26 : vector<128x128xf32>
      %cst_17 = arith.constant dense<0.000000e+00> : vector<128xf32>
      %28 = vector.multi_reduction <add>, %27, %cst_17 [1] : vector<128x128xf32> to vector<128xf32>
      %29 = vector.shape_cast %28 : vector<128xf32> to vector<128x1xf32>
      %30 = tpu.reciprocal %29 {approx = true} : vector<128x1xf32> -> vector<128x1xf32>
      %31 = vector.broadcast %30 : vector<128x1xf32> to vector<128x128xf32>
      %32 = arith.mulf %27, %31 : vector<128x128xf32>
      %c0_18 = arith.constant 0 : index
      %c0_19 = arith.constant 0 : index
      %33 = vector.load %arg7[%c0_18, %c0_19] : memref<128x128xf32, #tpu.memory_space<vmem>>, vector<128x128xf32>
      tpu.vector_store %arg7[%c0_18, %c0_19], %32 {strides = array<i32>} : memref<128x128xf32, #tpu.memory_space<vmem>>, vector<128x128xf32>,
    } else {
    }
    return
  }
  func.func @transform_0(%arg0: i32, %arg1: i32, %arg2: i32) -> (i32, i32) {
    %c0_i32 = arith.constant 0 : i32
    return %arg0, %arg2 : i32, i32
  }
  func.func @transform_1(%arg0: i32, %arg1: i32, %arg2: i32) -> (i32, i32) {
    %c0_i32 = arith.constant 0 : i32
    return %arg0, %arg2 : i32, i32
  }
  func.func @transform_2(%arg0: i32, %arg1: i32, %arg2: i32) -> (i32, i32) {
    %c0_i32 = arith.constant 0 : i32
    return %arg2, %arg1 : i32, i32
  }
  func.func @transform_3(%arg0: i32, %arg1: i32, %arg2: i32) -> (i32, i32) {
    %c0_i32 = arith.constant 0 : i32
    %c0_i32_0 = arith.constant 0 : i32
    return %c0_i32, %arg1 : i32, i32
  }
  func.func @transform_4(%arg0: i32, %arg1: i32, %arg2: i32) -> (i32, i32) {
    %c0_i32 = arith.constant 0 : i32
    return %arg0, %arg1 : i32, i32
  }
}

</mosaic_0001>

<llo_original>
// kernel: tscd_forward.9
$region0: #{tscd_forward.9}
  #allocation0 [shape = 'u32[]', space=smem, size = 0x4, offset = 0x4, fixed_abs, tag = 'smem constant byte address 0x4 - core index']
  #allocation1 [shape = 'u32[144,128]{1,0:T(1,128)}', space=vmem, size = 0x12000, scoped, tag = 'internal scratch']
  #allocation2 [shape = 'f32[128,128]{1,0:T(8,128)}', space=vmem, size = 0x10000, scoped, tag = 'scratch operand']
  %s0 = inlined_call_operand.vmem [shape: bf16[128,128], index: 0, kind: input, shape index: {}]
  %s1 = inlined_call_operand.vmem [shape: bf16[128,256], index: 1, kind: input, shape index: {}]
  %s2 = inlined_call_operand.vmem [shape: f32[128,1], index: 2, kind: input, shape index: {}]
  %s3 = inlined_call_operand.vmem [shape: f32[128,256], index: 3, kind: output, shape index: {}]
  %s4 = sld [smem:[#allocation0]]
  $region128: #{tscd_forward.9} parent=0
    _
  %s6 = ssub.s32 1, %s4
  %s7 = scalar_select 0, %s6, %s4
  $region1: #{tscd_forward.9} parent=0
    #allocation3 [shape = 'u8[65536]{0}', space=vmem, size = 0x10000, scoped, tag = 'input window, operand 1']
    #allocation4 [shape = 'u8[131072]{0}', space=vmem, size = 0x20000, scoped, tag = 'output window, operand 0']
    loop: start=0, step=1, limit=4
    $region2: #{tscd_forward.9} parent=1 // loop_pre_header
      _
    $region3: #{tscd_forward.9} parent=1 // loop_header
      %s9 = sphi 0, %s13
      %p10 = scmp.ge.s32.totalorder %s9, 4
      %s16 = sphi 0, %s35
      %s17 = sphi 0, %s31
      %s18 = sphi 0, %s27
      %s19 = sphi 0, %s16
      %s20 = sphi 0, %s17
      %s21 = sphi 0, %s18
      %s22 = sphi 0, %s19
      %s23 = sphi 0, %s20
      %s24 = sphi 0, %s21
      %s40 = sphi 0, %s42
      %s43 = sphi 0, %s40
      %s44 = sphi 0, %s43
      %s60 = sphi 0, %s44
      %s68 = sphi 0, %s70
      %s71 = sphi 0, %s68
      %s72 = sphi 0, %s71
      %s88 = sphi 0, %s72
      %s94 = sphi 0, %s96
      %s97 = sphi 0, %s94
      %s98 = sphi 0, %s97
      %s114 = sphi 0, %s98
      %s122 = sphi 0, %s124
      %s125 = sphi 0, %s122
      %s126 = sphi 0, %s125
      %s142 = sphi 0, %s126
    $region4: #{tscd_forward.9} parent=1 // loop_header_branch
      %12 = sbr.rel (%p10) target = $region8
    $region5: #{tscd_forward.9} parent=1 // loop_body
      %s14 = ssub.s32 %s9, 1
      %s15 = ssub.s32 %s9, 2
      %s25 = sadd.s32 1, %s18
      %p26 = scmp.ge.s32.totalorder %s25, 1
      %s27 = scalar_select %p26, 0, %s25
      %s28 = sadd.s32 1, %s17
      %s29 = scalar_select %p26, %s28, %s17
      %p30 = scmp.ge.s32.totalorder %s29, 2
      %s31 = scalar_select %p30, 0, %s29
      %s32 = sadd.s32 1, %s16
      %s33 = scalar_select %p30, %s32, %s16
      %p34 = scmp.ge.s32.totalorder %s33, 1
      %s35 = scalar_select %p34, 0, %s33
      %s36 = ssub.s32 %s16, %s35
      %s37 = ssub.s32 %s18, %s27
      %s38 = sor.u32 %s36, %s37
      %p39 = scmp.eq.s32.totalorder %s38, 0
      %s41 = sadd.s32 %s40, 1
      %s42 = scalar_select %p39, %s40, %s41
      %p45 = pneg %p39
      %p46 = scmp.eq.s32.totalorder %s9, 1
      %p47 = por %p45, %p46
      %p48 = scmp.ne.s32.totalorder %s40, %s43
      %p49 = scmp.eq.s32.totalorder %s9, 0
      %p50 = por %p48, %p49
      %p51 = scmp.ne.s32.totalorder %s40, %s43
      %p52 = scmp.eq.s32.totalorder %s14, 1
      %p53 = por %p51, %p52
      %p54 = scmp.ne.s32.totalorder %s43, %s44
      %p55 = scmp.eq.s32.totalorder %s14, 0
      %p56 = por %p54, %p55
      %p57 = scmp.ne.s32.totalorder %s43, %s44
      %p58 = scmp.eq.s32.totalorder %s15, 1
      %p59 = por %p57, %p58
      %p61 = scmp.ne.s32.totalorder %s44, %s60
      %p62 = scmp.eq.s32.totalorder %s15, 0
      %p63 = por %p61, %p62
      %s64 = ssub.s32 %s18, %s27
      %s65 = ssub.s32 %s17, %s31
      %s66 = sor.u32 %s64, %s65
      %p67 = scmp.eq.s32.totalorder %s66, 0
      %s69 = sadd.s32 %s68, 1
      %s70 = scalar_select %p67, %s68, %s69
      %p73 = pneg %p67
      %p74 = scmp.eq.s32.totalorder %s9, 1
      %p75 = por %p73, %p74
      %p76 = scmp.ne.s32.totalorder %s68, %s71
      %p77 = scmp.eq.s32.totalorder %s9, 0
      %p78 = por %p76, %p77
      %p79 = scmp.ne.s32.totalorder %s68, %s71
      %p80 = scmp.eq.s32.totalorder %s14, 1
      %p81 = por %p79, %p80
      %p82 = scmp.ne.s32.totalorder %s71, %s72
      %p83 = scmp.eq.s32.totalorder %s14, 0
      %p84 = por %p82, %p83
      %p85 = scmp.ne.s32.totalorder %s71, %s72
      %p86 = scmp.eq.s32.totalorder %s15, 1
      %p87 = por %p85, %p86
      %p89 = scmp.ne.s32.totalorder %s72, %s88
      %p90 = scmp.eq.s32.totalorder %s15, 0
      %p91 = por %p89, %p90
      %s92 = ssub.s32 %s16, %s35
      %p93 = scmp.eq.s32.totalorder %s92, 0
      %s95 = sadd.s32 %s94, 1
      %s96 = scalar_select %p93, %s94, %s95
      %p99 = pneg %p93
      %p100 = scmp.eq.s32.totalorder %s9, 1
      %p101 = por %p99, %p100
      %p102 = scmp.ne.s32.totalorder %s94, %s97
      %p103 = scmp.eq.s32.totalorder %s9, 0
      %p104 = por %p102, %p103
      %p105 = scmp.ne.s32.totalorder %s94, %s97
      %p106 = scmp.eq.s32.totalorder %s14, 1
      %p107 = por %p105, %p106
      %p108 = scmp.ne.s32.totalorder %s97, %s98
      %p109 = scmp.eq.s32.totalorder %s14, 0
      %p110 = por %p108, %p109
      %p111 = scmp.ne.s32.totalorder %s97, %s98
      %p112 = scmp.eq.s32.totalorder %s15, 1
      %p113 = por %p111, %p112
      %p115 = scmp.ne.s32.totalorder %s98, %s114
      %p116 = scmp.eq.s32.totalorder %s15, 0
      %p117 = por %p115, %p116
      %s118 = ssub.s32 %s16, %s35
      %s119 = ssub.s32 %s17, %s31
      %s120 = sor.u32 %s118, %s119
      %p121 = scmp.eq.s32.totalorder %s120, 0
      %s123 = sadd.s32 %s122, 1
      %s124 = scalar_select %p121, %s122, %s123
      %p127 = pneg %p121
      %p128 = scmp.eq.s32.totalorder %s9, 1
      %p129 = por %p127, %p128
      %p130 = scmp.ne.s32.totalorder %s122, %s125
      %p131 = scmp.eq.s32.totalorder %s9, 0
      %p132 = por %p130, %p131
      %p133 = scmp.ne.s32.totalorder %s122, %s125
      %p134 = scmp.eq.s32.totalorder %s14, 1
      %p135 = por %p133, %p134
      %p136 = scmp.ne.s32.totalorder %s125, %s126
      %p137 = scmp.eq.s32.totalorder %s14, 0
      %p138 = por %p136, %p137
      %p139 = scmp.ne.s32.totalorder %s125, %s126
      %p140 = scmp.eq.s32.totalorder %s15, 1
      %p141 = por %p139, %p140
      %p143 = scmp.ne.s32.totalorder %s126, %s142
      %p144 = scmp.eq.s32.totalorder %s15, 0
      %p145 = por %p143, %p144
      %p146 = scmp.le.s32.totalorder 1, %s9
      %p147 = scmp.lt.s32.totalorder %s9, 3
      %p148 = pnand %p146, %p147
      %p149 = pneg %p148
      // Predicated region
      $region9: #{tscd_forward.9} parent=5 // pred_check
        _
      $region10: #{tscd_forward.9} parent=5 // pred_check_branch
        %151 = sbr.rel (%p148) target = $region12
      $region11: #{tscd_forward.9} parent=5 // pred_region
        %s152 = ssub.s32 %s9, 1
        // Predicated region
        $region13: #{tscd_forward.9} parent=11 // pred_check
          %p153 = pneg %p56
        $region14: #{tscd_forward.9} parent=11 // pred_check_branch
          %155 = sbr.rel (%p153) target = $region16
        $region15: #{tscd_forward.9} parent=11 // pred_region
          %s156 = smul.u32 16, %s19
          %p157 = scmp.lt.s32.totalorder %s156, 15
          %s158 = scalar_select %p157, %s156, 15
          %p159 = scmp.lt.s32.totalorder %s21, 0
          %s160 = scalar_select %p159, %s21, 0
          %s161 = sadd.s32 %s160, %s158
          %s162 = smul.addr %s161, 4
          %s163 = scalar_lea.vmem %s0, %s162
          %s164 = smul.u32 16, %s19
        $region16: #{tscd_forward.9} parent=11 // pred_fallthru
          _
        // Predicated region
        $region17: #{tscd_forward.9} parent=11 // pred_check
          %p165 = pneg %p110
        $region18: #{tscd_forward.9} parent=11 // pred_check_branch
          %167 = sbr.rel (%p165) target = $region20
        $region19: #{tscd_forward.9} parent=11 // pred_region
          %s168 = smul.u32 16, %s19
          %p169 = scmp.lt.s32.totalorder %s168, 15
          %s170 = scalar_select %p169, %s168, 15
          %s171 = smul.addr %s170, 8
          %s172 = scalar_lea.vmem %s2, %s171
          %s173 = smul.u32 16, %s19
        $region20: #{tscd_forward.9} parent=11 // pred_fallthru
          _
      $region12: #{tscd_forward.9} parent=5 // pred_fallthru
        _
      %p174 = scmp.lt.s32.totalorder %s9, 2
      // Predicated region
      $region21: #{tscd_forward.9} parent=5 // pred_check
        %p175 = pneg %p174
      $region22: #{tscd_forward.9} parent=5 // pred_check_branch
        %177 = sbr.rel (%p175) target = $region24
      $region23: #{tscd_forward.9} parent=5 // pred_region
        // Predicated region
        $region25: #{tscd_forward.9} parent=23 // pred_check
          %p178 = pneg %p78
        $region26: #{tscd_forward.9} parent=23 // pred_check_branch
          %180 = sbr.rel (%p178) target = $region28
        $region27: #{tscd_forward.9} parent=23 // pred_region
          %s181 = sand.u32 %s68, 1
          %s182 = sand.u32 %s68, 1
          %s183 = smul.addr %s182, 64
          %s184 = scalar_lea.vmem [#allocation3], %s183
          %s185 = smul.u32 16, %s18
          %s186 = smul.addr %s185, 2
          %s187 = sadd.s32 %s17, %s186
          %s188 = smul.addr %s187, 4
          %s189 = scalar_lea.vmem %s1, %s188
          // Predicated region
          $region29: #{tscd_forward.9} parent=27 // pred_check
            _
          $region30: #{tscd_forward.9} parent=27 // pred_check_branch
            %191 = sbr.rel (0) target = $region32
          $region31: #{tscd_forward.9} parent=27 // pred_region
            // Predicated region
            $region33: #{tscd_forward.9} parent=31 // pred_check
              _
            $region34: #{tscd_forward.9} parent=31 // pred_check_branch
              %193 = sbr.rel target = $region36
            $region35: #{tscd_forward.9} parent=31 // pred_region
              // Predicated region
              $region48: #{tscd_forward.9} parent=35 // pred_check
                _
              $region49: #{tscd_forward.9} parent=35 // pred_check_branch
                %239 = sbr.rel (0) target = $region51
              $region50: #{tscd_forward.9} parent=35 // pred_region
                loop: start=0, step=1, limit=1
                $region52: #{tscd_forward.9} parent=50 // loop_pre_header
                  _
                $region53: #{tscd_forward.9} parent=50 // loop_header
                  %s241 = sphi 0, %s245
                  %p242 = scmp.ge.s32.totalorder %s241, 1
                  %s246 = sphi %s189, %s189
                  %s247 = sphi %s184, %s184
                $region54: #{tscd_forward.9} parent=50 // loop_header_branch
                  %244 = sbr.rel (%p242) target = $region58
                $region55: #{tscd_forward.9} parent=50 // loop_body
                  _
                $region56: #{tscd_forward.9} parent=50 // loop_footer
                  %s245 = sadd.s32 1, %s241
                $region57: #{tscd_forward.9} parent=50 // loop_footer_branch
                  %240 = sbr.rel target = $region53
                $region58: #{tscd_forward.9} parent=50 // loop_exit
                  _
                %s249 = ssub.s32 16, 1
                loop: start=0, step=1, limit=1
                $region59: #{tscd_forward.9} parent=50 // loop_pre_header
                  _
                $region60: #{tscd_forward.9} parent=50 // loop_header
                  %s251 = sphi 0, %s255
                  %p252 = scmp.ge.s32.totalorder %s251, 1
                  %s256 = sphi %s189, %s189
                  %s257 = sphi %s184, %s184
                $region61: #{tscd_forward.9} parent=50 // loop_header_branch
                  %254 = sbr.rel (%p252) target = $region65
                $region62: #{tscd_forward.9} parent=50 // loop_body
                  %v258 = vld [vmem:[%s256] sm:%s249]
                  %259 = vst [vmem:[%s257] sm:%s249] %v258
                  %v260 = vld [vmem:[%s256 + $0x8] sm:%s249]
                  %261 = vst [vmem:[%s257 + $0x4] sm:%s249] %v260
                  %v262 = vld [vmem:[%s256 + $0x10] sm:%s249]
                  %263 = vst [vmem:[%s257 + $0x8] sm:%s249] %v262
                  %v264 = vld [vmem:[%s256 + $0x18] sm:%s249]
                  %265 = vst [vmem:[%s257 + $0xc] sm:%s249] %v264
                  %v266 = vld [vmem:[%s256 + $0x20] sm:%s249]
                  %267 = vst [vmem:[%s257 + $0x10] sm:%s249] %v266
                  %v268 = vld [vmem:[%s256 + $0x28] sm:%s249]
                  %269 = vst [vmem:[%s257 + $0x14] sm:%s249] %v268
                  %v270 = vld [vmem:[%s256 + $0x30] sm:%s249]
                  %271 = vst [vmem:[%s257 + $0x18] sm:%s249] %v270
                  %v272 = vld [vmem:[%s256 + $0x38] sm:%s249]
                  %273 = vst [vmem:[%s257 + $0x1c] sm:%s249] %v272
                  %v274 = vld [vmem:[%s256 + $0x40] sm:%s249]
                  %275 = vst [vmem:[%s257 + $0x20] sm:%s249] %v274
                  %v276 = vld [vmem:[%s256 + $0x48] sm:%s249]
                  %277 = vst [vmem:[%s257 + $0x24] sm:%s249] %v276
                  %v278 = vld [vmem:[%s256 + $0x50] sm:%s249]
                  %279 = vst [vmem:[%s257 + $0x28] sm:%s249] %v278
                  %v280 = vld [vmem:[%s256 + $0x58] sm:%s249]
                  %281 = vst [vmem:[%s257 + $0x2c] sm:%s249] %v280
                  %v282 = vld [vmem:[%s256 + $0x60] sm:%s249]
                  %283 = vst [vmem:[%s257 + $0x30] sm:%s249] %v282
                  %v284 = vld [vmem:[%s256 + $0x68] sm:%s249]
                  %285 = vst [vmem:[%s257 + $0x34] sm:%s249] %v284
                  %v286 = vld [vmem:[%s256 + $0x70] sm:%s249]
                  %287 = vst [vmem:[%s257 + $0x38] sm:%s249] %v286
                  %v288 = vld [vmem:[%s256 + $0x78] sm:%s249]
                  %289 = vst [vmem:[%s257 + $0x3c] sm:%s249] %v288
                $region63: #{tscd_forward.9} parent=50 // loop_footer
                  %s255 = sadd.s32 1, %s251
                $region64: #{tscd_forward.9} parent=50 // loop_footer_branch
                  %250 = sbr.rel target = $region60
                $region65: #{tscd_forward.9} parent=50 // loop_exit
                  _
              $region51: #{tscd_forward.9} parent=35 // pred_fallthru
                _
            $region36: #{tscd_forward.9} parent=31 // pred_fallthru
              _
            // Predicated region
            $region37: #{tscd_forward.9} parent=31 // pred_check
              _
            $region38: #{tscd_forward.9} parent=31 // pred_check_branch
              %195 = sbr.rel (0) target = $region40
            $region39: #{tscd_forward.9} parent=31 // pred_region
              %s197 = ssub.s32 16, 1
              loop: start=0, step=1, limit=1
              $region41: #{tscd_forward.9} parent=39 // loop_pre_header
                _
              $region42: #{tscd_forward.9} parent=39 // loop_header
                %s199 = sphi 0, %s203
                %p200 = scmp.ge.s32.totalorder %s199, 1
                %s204 = sphi %s189, %s189
                %s205 = sphi %s184, %s184
              $region43: #{tscd_forward.9} parent=39 // loop_header_branch
                %202 = sbr.rel (%p200) target = $region47
              $region44: #{tscd_forward.9} parent=39 // loop_body
                %v206 = vld [vmem:[%s204] sm:%s197]
                %207 = vst [vmem:[%s205] sm:%s197] %v206
                %v208 = vld [vmem:[%s204 + $0x8] sm:%s197]
                %209 = vst [vmem:[%s205 + $0x4] sm:%s197] %v208
                %v210 = vld [vmem:[%s204 + $0x10] sm:%s197]
                %211 = vst [vmem:[%s205 + $0x8] sm:%s197] %v210
                %v212 = vld [vmem:[%s204 + $0x18] sm:%s197]
                %213 = vst [vmem:[%s205 + $0xc] sm:%s197] %v212
                %v214 = vld [vmem:[%s204 + $0x20] sm:%s197]
                %215 = vst [vmem:[%s205 + $0x10] sm:%s197] %v214
                %v216 = vld [vmem:[%s204 + $0x28] sm:%s197]
                %217 = vst [vmem:[%s205 + $0x14] sm:%s197] %v216
                %v218 = vld [vmem:[%s204 + $0x30] sm:%s197]
                %219 = vst [vmem:[%s205 + $0x18] sm:%s197] %v218
                %v220 = vld [vmem:[%s204 + $0x38] sm:%s197]
                %221 = vst [vmem:[%s205 + $0x1c] sm:%s197] %v220
                %v222 = vld [vmem:[%s204 + $0x40] sm:%s197]
                %223 = vst [vmem:[%s205 + $0x20] sm:%s197] %v222
                %v224 = vld [vmem:[%s204 + $0x48] sm:%s197]
                %225 = vst [vmem:[%s205 + $0x24] sm:%s197] %v224
                %v226 = vld [vmem:[%s204 + $0x50] sm:%s197]
                %227 = vst [vmem:[%s205 + $0x28] sm:%s197] %v226
                %v228 = vld [vmem:[%s204 + $0x58] sm:%s197]
                %229 = vst [vmem:[%s205 + $0x2c] sm:%s197] %v228
                %v230 = vld [vmem:[%s204 + $0x60] sm:%s197]
                %231 = vst [vmem:[%s205 + $0x30] sm:%s197] %v230
                %v232 = vld [vmem:[%s204 + $0x68] sm:%s197]
                %233 = vst [vmem:[%s205 + $0x34] sm:%s197] %v232
                %v234 = vld [vmem:[%s204 + $0x70] sm:%s197]
                %235 = vst [vmem:[%s205 + $0x38] sm:%s197] %v234
                %v236 = vld [vmem:[%s204 + $0x78] sm:%s197]
                %237 = vst [vmem:[%s205 + $0x3c] sm:%s197] %v236
              $region45: #{tscd_forward.9} parent=39 // loop_footer
                %s203 = sadd.s32 1, %s199
              $region46: #{tscd_forward.9} parent=39 // loop_footer_branch
                %198 = sbr.rel target = $region42
              $region47: #{tscd_forward.9} parent=39 // loop_exit
                _
            $region40: #{tscd_forward.9} parent=31 // pred_fallthru
              _
          $region32: #{tscd_forward.9} parent=27 // pred_fallthru
            _
          %290 = vnop
        $region28: #{tscd_forward.9} parent=23 // pred_fallthru
          _
      $region24: #{tscd_forward.9} parent=5 // pred_fallthru
        _
      %p291 = scmp.le.s32.totalorder 1, %s9
      %p292 = scmp.lt.s32.totalorder %s9, 3
      %p293 = pnand %p291, %p292
      %p294 = pneg %p293
      // Predicated region
      $region66: #{tscd_forward.9} parent=5 // pred_check
        _
      $region67: #{tscd_forward.9} parent=5 // pred_check_branch
        %296 = sbr.rel (%p293) target = $region69
      $region68: #{tscd_forward.9} parent=5 // pred_region
        %s297 = ssub.s32 %s9, 1
        %s298 = sand.u32 %s71, 1
        %s299 = sand.u32 %s71, 1
        %s300 = smul.addr %s299, 64
        %s301 = scalar_lea.vmem [#allocation3], %s300
        // Predicated region
        $region70: #{tscd_forward.9} parent=68 // pred_check
          %p302 = pneg %p84
        $region71: #{tscd_forward.9} parent=68 // pred_check_branch
          %304 = sbr.rel (%p302) target = $region73
        $region72: #{tscd_forward.9} parent=68 // pred_region
          _
        $region73: #{tscd_forward.9} parent=68 // pred_fallthru
          _
        %s305 = smul.u32 16, %s19
        %p306 = scmp.lt.s32.totalorder %s305, 15
        %s307 = scalar_select %p306, %s305, 15
        %p308 = scmp.lt.s32.totalorder %s21, 0
        %s309 = scalar_select %p308, %s21, 0
        %s310 = sadd.s32 %s309, %s307
        %s311 = smul.addr %s310, 4
        %s312 = scalar_lea.vmem %s0, %s311
        %p313 = pneg %p56
        %p314 = pneg %p53
        %s315 = sand.u32 %s71, 1
        %s316 = sand.u32 %s71, 1
        %s317 = smul.addr %s316, 64
        %s318 = scalar_lea.vmem [#allocation3], %s317
        %p319 = pneg %p84
        %p320 = pneg %p81
        %s321 = smul.u32 16, %s19
        %p322 = scmp.lt.s32.totalorder %s321, 15
        %s323 = scalar_select %p322, %s321, 15
        %s324 = smul.addr %s323, 8
        %s325 = scalar_lea.vmem %s2, %s324
        %p326 = pneg %p110
        %p327 = pneg %p107
        %p328 = pneg %p138
        %p329 = pneg %p135
        %s330 = sand.u32 %s125, 1
        %s331 = sand.u32 %s125, 1
        %s332 = smul.addr %s331, 128
        %s333 = scalar_lea.vmem [#allocation4], %s332
        %s334 = smul.u32 16, %s19
        %p335 = scmp.lt.s32.totalorder %s334, 15
        %s336 = scalar_select %p335, %s334, 15
        %p337 = scmp.lt.s32.totalorder %s21, 0
        %s338 = scalar_select %p337, %s21, 0
        %s339 = sadd.s32 %s338, %s336
        %s340 = smul.addr %s339, 4
        %s341 = scalar_lea.vmem %s0, %s340
        %s342 = smul.u32 16, %s19
        %s343 = smul.u32 16, %s21
        %s344 = smul.u32 16, %s19
        %p345 = scmp.lt.s32.totalorder %s344, 15
        %s346 = scalar_select %p345, %s344, 15
        %s347 = smul.addr %s346, 8
        %s348 = scalar_lea.vmem %s2, %s347
        %s349 = smul.u32 16, %s19
        %s350 = smul.u32 16, %s19
        %p352 = scmp.eq.s32.totalorder %s21, 0
        // Predicated region
        $region74: #{tscd_forward.9} parent=68 // pred_check
          %p353 = pneg %p352
        $region75: #{tscd_forward.9} parent=68 // pred_check_branch
          %355 = sbr.rel (%p353) target = $region77
        $region76: #{tscd_forward.9} parent=68 // pred_region
          %356 = vst [vmem:[#allocation2] sm:$0xff] 0.0
          %357 = vst [vmem:[#allocation2 + $0x8] sm:$0xff] 0.0
          %358 = vst [vmem:[#allocation2 + $0x10] sm:$0xff] 0.0
          %359 = vst [vmem:[#allocation2 + $0x18] sm:$0xff] 0.0
          %360 = vst [vmem:[#allocation2 + $0x20] sm:$0xff] 0.0
          %361 = vst [vmem:[#allocation2 + $0x28] sm:$0xff] 0.0
          %362 = vst [vmem:[#allocation2 + $0x30] sm:$0xff] 0.0
          %363 = vst [vmem:[#allocation2 + $0x38] sm:$0xff] 0.0
          %364 = vst [vmem:[#allocation2 + $0x40] sm:$0xff] 0.0
          %365 = vst [vmem:[#allocation2 + $0x48] sm:$0xff] 0.0
          %366 = vst [vmem:[#allocation2 + $0x50] sm:$0xff] 0.0
          %367 = vst [vmem:[#allocation2 + $0x58] sm:$0xff] 0.0
          %368 = vst [vmem:[#allocation2 + $0x60] sm:$0xff] 0.0
          %369 = vst [vmem:[#allocation2 + $0x68] sm:$0xff] 0.0
          %370 = vst [vmem:[#allocation2 + $0x70] sm:$0xff] 0.0
          %371 = vst [vmem:[#allocation2 + $0x78] sm:$0xff] 0.0
        $region77: #{tscd_forward.9} parent=68 // pred_fallthru
          _
        %v372 = vld [vmem:[%s341] sm:$0xf]
        %v373 = vld [vmem:[%s341 + $0x4] sm:$0xf]
        %v374 = vld [vmem:[%s341 + $0x8] sm:$0xf]
        %v375 = vld [vmem:[%s341 + $0xc] sm:$0xf]
        %v376 = vld [vmem:[%s341 + $0x10] sm:$0xf]
        %v377 = vld [vmem:[%s341 + $0x14] sm:$0xf]
        %v378 = vld [vmem:[%s341 + $0x18] sm:$0xf]
        %v379 = vld [vmem:[%s341 + $0x1c] sm:$0xf]
        %v380 = vld [vmem:[%s341 + $0x20] sm:$0xf]
        %v381 = vld [vmem:[%s341 + $0x24] sm:$0xf]
        %v382 = vld [vmem:[%s341 + $0x28] sm:$0xf]
        %v383 = vld [vmem:[%s341 + $0x2c] sm:$0xf]
        %v384 = vld [vmem:[%s341 + $0x30] sm:$0xf]
        %v385 = vld [vmem:[%s341 + $0x34] sm:$0xf]
        %v386 = vld [vmem:[%s341 + $0x38] sm:$0xf]
        %v387 = vld [vmem:[%s341 + $0x3c] sm:$0xf]
        %v388 = vld [vmem:[#allocation2] sm:$0xff]
        %v389 = vld [vmem:[#allocation2 + $0x8] sm:$0xff]
        %v390 = vld [vmem:[#allocation2 + $0x10] sm:$0xff]
        %v391 = vld [vmem:[#allocation2 + $0x18] sm:$0xff]
        %v392 = vld [vmem:[#allocation2 + $0x20] sm:$0xff]
        %v393 = vld [vmem:[#allocation2 + $0x28] sm:$0xff]
        %v394 = vld [vmem:[#allocation2 + $0x30] sm:$0xff]
        %v395 = vld [vmem:[#allocation2 + $0x38] sm:$0xff]
        %v396 = vld [vmem:[#allocation2 + $0x40] sm:$0xff]
        %v397 = vld [vmem:[#allocation2 + $0x48] sm:$0xff]
        %v398 = vld [vmem:[#allocation2 + $0x50] sm:$0xff]
        %v399 = vld [vmem:[#allocation2 + $0x58] sm:$0xff]
        %v400 = vld [vmem:[#allocation2 + $0x60] sm:$0xff]
        %v401 = vld [vmem:[#allocation2 + $0x68] sm:$0xff]
        %v402 = vld [vmem:[#allocation2 + $0x70] sm:$0xff]
        %v403 = vld [vmem:[#allocation2 + $0x78] sm:$0xff]
        %v404 = vld [vmem:[%s301] sm:$0xf]
        %v405 = vld [vmem:[%s301 + $0x4] sm:$0xf]
        %v406 = vld [vmem:[%s301 + $0x8] sm:$0xf]
        %v407 = vld [vmem:[%s301 + $0xc] sm:$0xf]
        %v408 = vld [vmem:[%s301 + $0x10] sm:$0xf]
        %v409 = vld [vmem:[%s301 + $0x14] sm:$0xf]
        %v410 = vld [vmem:[%s301 + $0x18] sm:$0xf]
        %v411 = vld [vmem:[%s301 + $0x1c] sm:$0xf]
        %v412 = vld [vmem:[%s301 + $0x20] sm:$0xf]
        %v413 = vld [vmem:[%s301 + $0x24] sm:$0xf]
        %v414 = vld [vmem:[%s301 + $0x28] sm:$0xf]
        %v415 = vld [vmem:[%s301 + $0x2c] sm:$0xf]
        %v416 = vld [vmem:[%s301 + $0x30] sm:$0xf]
        %v417 = vld [vmem:[%s301 + $0x34] sm:$0xf]
        %v418 = vld [vmem:[%s301 + $0x38] sm:$0xf]
        %v419 = vld [vmem:[%s301 + $0x3c] sm:$0xf]
        %v436 = vunpack.c.l.b16 %v372
        %v437 = vunpack.c.l.b16 %v373
        %v438 = vunpack.c.l.b16 %v374
        %v439 = vunpack.c.l.b16 %v375
        %v440 = vunpack.c.l.b16 %v376
        %v441 = vunpack.c.l.b16 %v377
        %v442 = vunpack.c.l.b16 %v378
        %v443 = vunpack.c.l.b16 %v379
        %v444 = vunpack.c.l.b16 %v380
        %v445 = vunpack.c.l.b16 %v381
        %v446 = vunpack.c.l.b16 %v382
        %v447 = vunpack.c.l.b16 %v383
        %v448 = vunpack.c.l.b16 %v384
        %v449 = vunpack.c.l.b16 %v385
        %v450 = vunpack.c.l.b16 %v386
        %v451 = vunpack.c.l.b16 %v387
        %v452 = vpack.c.b16 %v437, %v436
        %v453 = vpack.c.b16 %v439, %v438
        %v454 = vpack.c.b16 %v441, %v440
        %v455 = vpack.c.b16 %v443, %v442
        %v456 = vpack.c.b16 %v445, %v444
        %v457 = vpack.c.b16 %v447, %v446
        %v458 = vpack.c.b16 %v449, %v448
        %v459 = vpack.c.b16 %v451, %v450
        %v484 = vunpack.c.l.b16 %v404
        %v485 = vunpack.c.l.b16 %v405
        %v486 = vunpack.c.l.b16 %v406
        %v487 = vunpack.c.l.b16 %v407
        %v488 = vunpack.c.l.b16 %v408
        %v489 = vunpack.c.l.b16 %v409
        %v490 = vunpack.c.l.b16 %v410
        %v491 = vunpack.c.l.b16 %v411
        %v492 = vunpack.c.l.b16 %v412
        %v493 = vunpack.c.l.b16 %v413
        %v494 = vunpack.c.l.b16 %v414
        %v495 = vunpack.c.l.b16 %v415
        %v496 = vunpack.c.l.b16 %v416
        %v497 = vunpack.c.l.b16 %v417
        %v498 = vunpack.c.l.b16 %v418
        %v499 = vunpack.c.l.b16 %v419
        %v500 = vpack.c.b16 %v485, %v484
        %v501 = vpack.c.b16 %v487, %v486
        %v502 = vpack.c.b16 %v489, %v488
        %v503 = vpack.c.b16 %v491, %v490
        %v504 = vpack.c.b16 %v493, %v492
        %v505 = vpack.c.b16 %v495, %v494
        %v506 = vpack.c.b16 %v497, %v496
        %v507 = vpack.c.b16 %v499, %v498
        %516 = vmatprep.subr.bf16.mxu0 0
        %517 = vmatpush1.bf16.msra.mxu0 %v507
        %518 = vmatprep.subr.bf16.mxu0 0
        %519 = vmatpush1.bf16.msra.mxu0 %v506
        %520 = vmatprep.subr.bf16.mxu0 0
        %521 = vmatpush1.bf16.msra.mxu0 %v505
        %522 = vmatprep.subr.bf16.mxu0 0
        %523 = vmatpush1.bf16.msra.mxu0 %v504
        %524 = vmatprep.subr.bf16.mxu0 0
        %525 = vmatpush1.bf16.msra.mxu0 %v503
        %526 = vmatprep.subr.bf16.mxu0 0
        %527 = vmatpush1.bf16.msra.mxu0 %v502
        %528 = vmatprep.subr.bf16.mxu0 0
        %529 = vmatpush1.bf16.msra.mxu0 %v501
        %530 = vmatprep.subr.bf16.mxu0 0
        %531 = vmatpush1.bf16.msra.mxu0 %v500
        %532 = vmatprep.subr.bf16.mxu0 0
        %533 = vmatpush2.bf16.msra.mxu0 0
        %534 = vmatprep.subr.bf16.mxu0 0
        %535 = vmatpush2.bf16.msra.mxu0 0
        %536 = vmatprep.subr.bf16.mxu0 0
        %537 = vmatpush2.bf16.msra.mxu0 0
        %538 = vmatprep.subr.bf16.mxu0 0
        %539 = vmatpush2.bf16.msra.mxu0 0
        %540 = vmatprep.subr.bf16.mxu0 0
        %541 = vmatpush2.bf16.msra.mxu0 0
        %542 = vmatprep.subr.bf16.mxu0 0
        %543 = vmatpush2.bf16.msra.mxu0 0
        %544 = vmatprep.subr.bf16.mxu0 0
        %545 = vmatpush2.bf16.msra.mxu0 0
        %546 = vmatprep.subr.bf16.mxu0 0
        %547 = vmatpush2.bf16.msra.mxu0 0
        %548 = vmatprep.mubr.bf16.mxu0 0
        %549 = vmatmul.mubr.bf16.gmra.mxu0 %v452
        %v550 = vpop.f32.mrf.mxu0
        %v551 = vadd.f32 0.0, %v550
        %v552 = vpop.f32.mrf.mxu0
        %v553 = vpop.f32.mrf.mxu0
        %v554 = vadd.f32 0.0, %v553
        %v555 = vpop.f32.mrf.mxu0
        %556 = vmatprep.mubr.bf16.mxu0 0
        %557 = vmatmul.mubr.bf16.gmra.mxu0 %v453
        %v558 = vpop.f32.mrf.mxu0
        %v559 = vadd.f32 0.0, %v558
        %v560 = vpop.f32.mrf.mxu0
        %v561 = vpop.f32.mrf.mxu0
        %v562 = vadd.f32 0.0, %v561
        %v563 = vpop.f32.mrf.mxu0
        %564 = vmatprep.mubr.bf16.mxu0 0
        %565 = vmatmul.mubr.bf16.gmra.mxu0 %v454
        %v566 = vpop.f32.mrf.mxu0
        %v567 = vadd.f32 0.0, %v566
        %v568 = vpop.f32.mrf.mxu0
        %v569 = vpop.f32.mrf.mxu0
        %v570 = vadd.f32 0.0, %v569
        %v571 = vpop.f32.mrf.mxu0
        %572 = vmatprep.mubr.bf16.mxu0 0
        %573 = vmatmul.mubr.bf16.gmra.mxu0 %v455
        %v574 = vpop.f32.mrf.mxu0
        %v575 = vadd.f32 0.0, %v574
        %v576 = vpop.f32.mrf.mxu0
        %v577 = vpop.f32.mrf.mxu0
        %v578 = vadd.f32 0.0, %v577
        %v579 = vpop.f32.mrf.mxu0
        %580 = vmatprep.mubr.bf16.mxu0 0
        %581 = vmatmul.mubr.bf16.gmra.mxu0 %v456
        %v582 = vpop.f32.mrf.mxu0
        %v583 = vadd.f32 0.0, %v582
        %v584 = vpop.f32.mrf.mxu0
        %v585 = vpop.f32.mrf.mxu0
        %v586 = vadd.f32 0.0, %v585
        %v587 = vpop.f32.mrf.mxu0
        %588 = vmatprep.mubr.bf16.mxu0 0
        %589 = vmatmul.mubr.bf16.gmra.mxu0 %v457
        %v590 = vpop.f32.mrf.mxu0
        %v591 = vadd.f32 0.0, %v590
        %v592 = vpop.f32.mrf.mxu0
        %v593 = vpop.f32.mrf.mxu0
        %v594 = vadd.f32 0.0, %v593
        %v595 = vpop.f32.mrf.mxu0
        %596 = vmatprep.mubr.bf16.mxu0 0
        %597 = vmatmul.mubr.bf16.gmra.mxu0 %v458
        %v598 = vpop.f32.mrf.mxu0
        %v599 = vadd.f32 0.0, %v598
        %v600 = vpop.f32.mrf.mxu0
        %v601 = vpop.f32.mrf.mxu0
        %v602 = vadd.f32 0.0, %v601
        %v603 = vpop.f32.mrf.mxu0
        %604 = vmatprep.mubr.bf16.mxu0 0
        %605 = vmatmul.mubr.bf16.gmra.mxu0 %v459
        %v606 = vpop.f32.mrf.mxu0
        %v607 = vadd.f32 0.0, %v606
        %v608 = vpop.f32.mrf.mxu0
        %v609 = vpop.f32.mrf.mxu0
        %v610 = vadd.f32 0.0, %v609
        %v611 = vpop.f32.mrf.mxu0
        %612 = vdwg.mxu0
        %v613 = vadd.f32 %v388, %v551
        %v614 = vadd.f32 %v389, %v554
        %v615 = vadd.f32 %v390, %v559
        %v616 = vadd.f32 %v391, %v562
        %v617 = vadd.f32 %v392, %v567
        %v618 = vadd.f32 %v393, %v570
        %v619 = vadd.f32 %v394, %v575
        %v620 = vadd.f32 %v395, %v578
        %v621 = vadd.f32 %v396, %v583
        %v622 = vadd.f32 %v397, %v586
        %v623 = vadd.f32 %v398, %v591
        %v624 = vadd.f32 %v399, %v594
        %v625 = vadd.f32 %v400, %v599
        %v626 = vadd.f32 %v401, %v602
        %v627 = vadd.f32 %v402, %v607
        %v628 = vadd.f32 %v403, %v610
        %629 = vst [vmem:[#allocation2] sm:$0xff] %v613
        %630 = vst [vmem:[#allocation2 + $0x8] sm:$0xff] %v614
        %631 = vst [vmem:[#allocation2 + $0x10] sm:$0xff] %v615
        %632 = vst [vmem:[#allocation2 + $0x18] sm:$0xff] %v616
        %633 = vst [vmem:[#allocation2 + $0x20] sm:$0xff] %v617
        %634 = vst [vmem:[#allocation2 + $0x28] sm:$0xff] %v618
        %635 = vst [vmem:[#allocation2 + $0x30] sm:$0xff] %v619
        %636 = vst [vmem:[#allocation2 + $0x38] sm:$0xff] %v620
        %637 = vst [vmem:[#allocation2 + $0x40] sm:$0xff] %v621
        %638 = vst [vmem:[#allocation2 + $0x48] sm:$0xff] %v622
        %639 = vst [vmem:[#allocation2 + $0x50] sm:$0xff] %v623
        %640 = vst [vmem:[#allocation2 + $0x58] sm:$0xff] %v624
        %641 = vst [vmem:[#allocation2 + $0x60] sm:$0xff] %v625
        %642 = vst [vmem:[#allocation2 + $0x68] sm:$0xff] %v626
        %643 = vst [vmem:[#allocation2 + $0x70] sm:$0xff] %v627
        %644 = vst [vmem:[#allocation2 + $0x78] sm:$0xff] %v628
        // Predicated region
        $region78: #{tscd_forward.9} parent=68 // pred_check
          %p645 = pneg %p352
        $region79: #{tscd_forward.9} parent=68 // pred_check_branch
          %647 = sbr.rel (%p645) target = $region81
        $region80: #{tscd_forward.9} parent=68 // pred_region
          %v648 = vld [vmem:[#allocation2] sm:$0xff]
          %v649 = vld [vmem:[#allocation2 + $0x8] sm:$0xff]
          %v650 = vld [vmem:[#allocation2 + $0x10] sm:$0xff]
          %v651 = vld [vmem:[#allocation2 + $0x18] sm:$0xff]
          %v652 = vld [vmem:[#allocation2 + $0x20] sm:$0xff]
          %v653 = vld [vmem:[#allocation2 + $0x28] sm:$0xff]
          %v654 = vld [vmem:[#allocation2 + $0x30] sm:$0xff]
          %v655 = vld [vmem:[#allocation2 + $0x38] sm:$0xff]
          %v656 = vld [vmem:[#allocation2 + $0x40] sm:$0xff]
          %v657 = vld [vmem:[#allocation2 + $0x48] sm:$0xff]
          %v658 = vld [vmem:[#allocation2 + $0x50] sm:$0xff]
          %v659 = vld [vmem:[#allocation2 + $0x58] sm:$0xff]
          %v660 = vld [vmem:[#allocation2 + $0x60] sm:$0xff]
          %v661 = vld [vmem:[#allocation2 + $0x68] sm:$0xff]
          %v662 = vld [vmem:[#allocation2 + $0x70] sm:$0xff]
          %v663 = vld [vmem:[#allocation2 + $0x78] sm:$0xff]
          %v664 = vld [vmem:[%s348] sm:$0xff]
          %v665 = vld [vmem:[%s348 + $0x8] sm:$0xff]
          %v666 = vld [vmem:[%s348 + $0x10] sm:$0xff]
          %v667 = vld [vmem:[%s348 + $0x18] sm:$0xff]
          %v668 = vld [vmem:[%s348 + $0x20] sm:$0xff]
          %v669 = vld [vmem:[%s348 + $0x28] sm:$0xff]
          %v670 = vld [vmem:[%s348 + $0x30] sm:$0xff]
          %v671 = vld [vmem:[%s348 + $0x38] sm:$0xff]
          %v672 = vld [vmem:[%s348 + $0x40] sm:$0xff]
          %v673 = vld [vmem:[%s348 + $0x48] sm:$0xff]
          %v674 = vld [vmem:[%s348 + $0x50] sm:$0xff]
          %v675 = vld [vmem:[%s348 + $0x58] sm:$0xff]
          %v676 = vld [vmem:[%s348 + $0x60] sm:$0xff]
          %v677 = vld [vmem:[%s348 + $0x68] sm:$0xff]
          %v678 = vld [vmem:[%s348 + $0x70] sm:$0xff]
          %v679 = vld [vmem:[%s348 + $0x78] sm:$0xff]
          %681 = vset.pattern.permute.xlu0 0
          %682 = vperm.xlu0 %681, %v664
          %v683 = vpop.permute.xlu0 %682
          %686 = vset.pattern.permute.xlu0 0
          %687 = vperm.xlu0 %686, %v665
          %v688 = vpop.permute.xlu0 %687
          %691 = vset.pattern.permute.xlu0 0
          %692 = vperm.xlu0 %691, %v666
          %v693 = vpop.permute.xlu0 %692
          %696 = vset.pattern.permute.xlu0 0
          %697 = vperm.xlu0 %696, %v667
          %v698 = vpop.permute.xlu0 %697
          %701 = vset.pattern.permute.xlu0 0
          %702 = vperm.xlu0 %701, %v668
          %v703 = vpop.permute.xlu0 %702
          %706 = vset.pattern.permute.xlu0 0
          %707 = vperm.xlu0 %706, %v669
          %v708 = vpop.permute.xlu0 %707
          %711 = vset.pattern.permute.xlu0 0
          %712 = vperm.xlu0 %711, %v670
          %v713 = vpop.permute.xlu0 %712
          %716 = vset.pattern.permute.xlu0 0
          %717 = vperm.xlu0 %716, %v671
          %v718 = vpop.permute.xlu0 %717
          %721 = vset.pattern.permute.xlu0 0
          %722 = vperm.xlu0 %721, %v672
          %v723 = vpop.permute.xlu0 %722
          %726 = vset.pattern.permute.xlu0 0
          %727 = vperm.xlu0 %726, %v673
          %v728 = vpop.permute.xlu0 %727
          %731 = vset.pattern.permute.xlu0 0
          %732 = vperm.xlu0 %731, %v674
          %v733 = vpop.permute.xlu0 %732
          %736 = vset.pattern.permute.xlu0 0
          %737 = vperm.xlu0 %736, %v675
          %v738 = vpop.permute.xlu0 %737
          %741 = vset.pattern.permute.xlu0 0
          %742 = vperm.xlu0 %741, %v676
          %v743 = vpop.permute.xlu0 %742
          %746 = vset.pattern.permute.xlu0 0
          %747 = vperm.xlu0 %746, %v677
          %v748 = vpop.permute.xlu0 %747
          %751 = vset.pattern.permute.xlu0 0
          %752 = vperm.xlu0 %751, %v678
          %v753 = vpop.permute.xlu0 %752
          %756 = vset.pattern.permute.xlu0 0
          %757 = vperm.xlu0 %756, %v679
          %v758 = vpop.permute.xlu0 %757
          %v760 = vadd.f32 %v648, %v683
          %v761 = vadd.f32 %v649, %v688
          %v762 = vadd.f32 %v650, %v693
          %v763 = vadd.f32 %v651, %v698
          %v764 = vadd.f32 %v652, %v703
          %v765 = vadd.f32 %v653, %v708
          %v766 = vadd.f32 %v654, %v713
          %v767 = vadd.f32 %v655, %v718
          %v768 = vadd.f32 %v656, %v723
          %v769 = vadd.f32 %v657, %v728
          %v770 = vadd.f32 %v658, %v733
          %v771 = vadd.f32 %v659, %v738
          %v772 = vadd.f32 %v660, %v743
          %v773 = vadd.f32 %v661, %v748
          %v774 = vadd.f32 %v662, %v753
          %v775 = vadd.f32 %v663, %v758
          %vm776 = vcmp.ge.f32.partialorder %v760, 0.0
          %vm777 = vcmp.ge.f32.partialorder %v761, 0.0
          %vm778 = vcmp.ge.f32.partialorder %v762, 0.0
          %vm779 = vcmp.ge.f32.partialorder %v763, 0.0
          %vm780 = vcmp.ge.f32.partialorder %v764, 0.0
          %vm781 = vcmp.ge.f32.partialorder %v765, 0.0
          %vm782 = vcmp.ge.f32.partialorder %v766, 0.0
          %vm783 = vcmp.ge.f32.partialorder %v767, 0.0
          %vm784 = vcmp.ge.f32.partialorder %v768, 0.0
          %vm785 = vcmp.ge.f32.partialorder %v769, 0.0
          %vm786 = vcmp.ge.f32.partialorder %v770, 0.0
          %vm787 = vcmp.ge.f32.partialorder %v771, 0.0
          %vm788 = vcmp.ge.f32.partialorder %v772, 0.0
          %vm789 = vcmp.ge.f32.partialorder %v773, 0.0
          %vm790 = vcmp.ge.f32.partialorder %v774, 0.0
          %vm791 = vcmp.ge.f32.partialorder %v775, 0.0
          %v792 = vmul.f32 %v760, 0.01
          %v793 = vmul.f32 %v761, 0.01
          %v794 = vmul.f32 %v762, 0.01
          %v795 = vmul.f32 %v763, 0.01
          %v796 = vmul.f32 %v764, 0.01
          %v797 = vmul.f32 %v765, 0.01
          %v798 = vmul.f32 %v766, 0.01
          %v799 = vmul.f32 %v767, 0.01
          %v800 = vmul.f32 %v768, 0.01
          %v801 = vmul.f32 %v769, 0.01
          %v802 = vmul.f32 %v770, 0.01
          %v803 = vmul.f32 %v771, 0.01
          %v804 = vmul.f32 %v772, 0.01
          %v805 = vmul.f32 %v773, 0.01
          %v806 = vmul.f32 %v774, 0.01
          %v807 = vmul.f32 %v775, 0.01
          %v808 = vsel %vm776, %v760, %v792
          %v809 = vsel %vm777, %v761, %v793
          %v810 = vsel %vm778, %v762, %v794
          %v811 = vsel %vm779, %v763, %v795
          %v812 = vsel %vm780, %v764, %v796
          %v813 = vsel %vm781, %v765, %v797
          %v814 = vsel %vm782, %v766, %v798
          %v815 = vsel %vm783, %v767, %v799
          %v816 = vsel %vm784, %v768, %v800
          %v817 = vsel %vm785, %v769, %v801
          %v818 = vsel %vm786, %v770, %v802
          %v819 = vsel %vm787, %v771, %v803
          %v820 = vsel %vm788, %v772, %v804
          %v821 = vsel %vm789, %v773, %v805
          %v822 = vsel %vm790, %v774, %v806
          %v823 = vsel %vm791, %v775, %v807
          %824 = vst [vmem:[%s333] sm:$0xff] %v808
          %825 = vst [vmem:[%s333 + $0x8] sm:$0xff] %v809
          %826 = vst [vmem:[%s333 + $0x10] sm:$0xff] %v810
          %827 = vst [vmem:[%s333 + $0x18] sm:$0xff] %v811
          %828 = vst [vmem:[%s333 + $0x20] sm:$0xff] %v812
          %829 = vst [vmem:[%s333 + $0x28] sm:$0xff] %v813
          %830 = vst [vmem:[%s333 + $0x30] sm:$0xff] %v814
          %831 = vst [vmem:[%s333 + $0x38] sm:$0xff] %v815
          %832 = vst [vmem:[%s333 + $0x40] sm:$0xff] %v816
          %833 = vst [vmem:[%s333 + $0x48] sm:$0xff] %v817
          %834 = vst [vmem:[%s333 + $0x50] sm:$0xff] %v818
          %835 = vst [vmem:[%s333 + $0x58] sm:$0xff] %v819
          %836 = vst [vmem:[%s333 + $0x60] sm:$0xff] %v820
          %837 = vst [vmem:[%s333 + $0x68] sm:$0xff] %v821
          %838 = vst [vmem:[%s333 + $0x70] sm:$0xff] %v822
          %839 = vst [vmem:[%s333 + $0x78] sm:$0xff] %v823
        $region81: #{tscd_forward.9} parent=68 // pred_fallthru
          _
        %s840 = sand.u32 %s125, 1
        %s841 = sand.u32 %s125, 1
        %s842 = smul.addr %s841, 128
        %s843 = scalar_lea.vmem [#allocation4], %s842
        // Predicated region
        $region82: #{tscd_forward.9} parent=68 // pred_check
          %p844 = pneg %p135
        $region83: #{tscd_forward.9} parent=68 // pred_check_branch
          %846 = sbr.rel (%p844) target = $region85
        $region84: #{tscd_forward.9} parent=68 // pred_region
          %s847 = smul.u32 16, %s19
          %s848 = smul.addr %s847, 2
          %s849 = sadd.s32 %s20, %s848
          %s850 = smul.addr %s849, 8
          %s851 = scalar_lea.vmem %s3, %s850
          // Predicated region
          $region86: #{tscd_forward.9} parent=84 // pred_check
            _
          $region87: #{tscd_forward.9} parent=84 // pred_check_branch
            %853 = sbr.rel (0) target = $region89
          $region88: #{tscd_forward.9} parent=84 // pred_region
            // Predicated region
            $region90: #{tscd_forward.9} parent=88 // pred_check
              _
            $region91: #{tscd_forward.9} parent=88 // pred_check_branch
              %855 = sbr.rel (0) target = $region93
            $region92: #{tscd_forward.9} parent=88 // pred_region
              // Predicated region
              $region105: #{tscd_forward.9} parent=92 // pred_check
                _
              $region106: #{tscd_forward.9} parent=92 // pred_check_branch
                %901 = sbr.rel (0) target = $region108
              $region107: #{tscd_forward.9} parent=92 // pred_region
                loop: start=0, step=1, limit=1
                $region109: #{tscd_forward.9} parent=107 // loop_pre_header
                  _
                $region110: #{tscd_forward.9} parent=107 // loop_header
                  %s903 = sphi 0, %s907
                  %p904 = scmp.ge.s32.totalorder %s903, 1
                  %s908 = sphi %s843, %s843
                  %s909 = sphi %s851, %s851
                $region111: #{tscd_forward.9} parent=107 // loop_header_branch
                  %906 = sbr.rel (%p904) target = $region115
                $region112: #{tscd_forward.9} parent=107 // loop_body
                  %v910 = vld [vmem:[%s908] sm:$0xff]
                  %911 = vst [vmem:[%s909] sm:$0xff] %v910
                  %v912 = vld [vmem:[%s908 + $0x8] sm:$0xff]
                  %913 = vst [vmem:[%s909 + $0x10] sm:$0xff] %v912
                  %v914 = vld [vmem:[%s908 + $0x10] sm:$0xff]
                  %915 = vst [vmem:[%s909 + $0x20] sm:$0xff] %v914
                  %v916 = vld [vmem:[%s908 + $0x18] sm:$0xff]
                  %917 = vst [vmem:[%s909 + $0x30] sm:$0xff] %v916
                  %v918 = vld [vmem:[%s908 + $0x20] sm:$0xff]
                  %919 = vst [vmem:[%s909 + $0x40] sm:$0xff] %v918
                  %v920 = vld [vmem:[%s908 + $0x28] sm:$0xff]
                  %921 = vst [vmem:[%s909 + $0x50] sm:$0xff] %v920
                  %v922 = vld [vmem:[%s908 + $0x30] sm:$0xff]
                  %923 = vst [vmem:[%s909 + $0x60] sm:$0xff] %v922
                  %v924 = vld [vmem:[%s908 + $0x38] sm:$0xff]
                  %925 = vst [vmem:[%s909 + $0x70] sm:$0xff] %v924
                  %v926 = vld [vmem:[%s908 + $0x40] sm:$0xff]
                  %927 = vst [vmem:[%s909 + $0x80] sm:$0xff] %v926
                  %v928 = vld [vmem:[%s908 + $0x48] sm:$0xff]
                  %929 = vst [vmem:[%s909 + $0x90] sm:$0xff] %v928
                  %v930 = vld [vmem:[%s908 + $0x50] sm:$0xff]
                  %931 = vst [vmem:[%s909 + $0xa0] sm:$0xff] %v930
                  %v932 = vld [vmem:[%s908 + $0x58] sm:$0xff]
                  %933 = vst [vmem:[%s909 + $0xb0] sm:$0xff] %v932
                  %v934 = vld [vmem:[%s908 + $0x60] sm:$0xff]
                  %935 = vst [vmem:[%s909 + $0xc0] sm:$0xff] %v934
                  %v936 = vld [vmem:[%s908 + $0x68] sm:$0xff]
                  %937 = vst [vmem:[%s909 + $0xd0] sm:$0xff] %v936
                  %v938 = vld [vmem:[%s908 + $0x70] sm:$0xff]
                  %939 = vst [vmem:[%s909 + $0xe0] sm:$0xff] %v938
                  %v940 = vld [vmem:[%s908 + $0x78] sm:$0xff]
                  %941 = vst [vmem:[%s909 + $0xf0] sm:$0xff] %v940
                $region113: #{tscd_forward.9} parent=107 // loop_footer
                  %s907 = sadd.s32 1, %s903
                $region114: #{tscd_forward.9} parent=107 // loop_footer_branch
                  %902 = sbr.rel target = $region110
                $region115: #{tscd_forward.9} parent=107 // loop_exit
                  _
              $region108: #{tscd_forward.9} parent=92 // pred_fallthru
                _
              // Predicated region
              $region116: #{tscd_forward.9} parent=92 // pred_check
                _
              $region117: #{tscd_forward.9} parent=92 // pred_check_branch
                %943 = sbr.rel target = $region119
              $region118: #{tscd_forward.9} parent=92 // pred_region
                _
              $region119: #{tscd_forward.9} parent=92 // pred_fallthru
                _
            $region93: #{tscd_forward.9} parent=88 // pred_fallthru
              _
            // Predicated region
            $region94: #{tscd_forward.9} parent=88 // pred_check
              _
            $region95: #{tscd_forward.9} parent=88 // pred_check_branch
              %857 = sbr.rel target = $region97
            $region96: #{tscd_forward.9} parent=88 // pred_region
              %s859 = ssub.s32 256, 1
              loop: start=0, step=1, limit=1
              $region98: #{tscd_forward.9} parent=96 // loop_pre_header
                _
              $region99: #{tscd_forward.9} parent=96 // loop_header
                %s861 = sphi 0, %s865
                %p862 = scmp.ge.s32.totalorder %s861, 1
                %s866 = sphi %s843, %s843
                %s867 = sphi %s851, %s851
              $region100: #{tscd_forward.9} parent=96 // loop_header_branch
                %864 = sbr.rel (%p862) target = $region104
              $region101: #{tscd_forward.9} parent=96 // loop_body
                %v868 = vld [vmem:[%s866] sm:%s859]
                %869 = vst [vmem:[%s867] sm:%s859] %v868
                %v870 = vld [vmem:[%s866 + $0x8] sm:%s859]
                %871 = vst [vmem:[%s867 + $0x10] sm:%s859] %v870
                %v872 = vld [vmem:[%s866 + $0x10] sm:%s859]
                %873 = vst [vmem:[%s867 + $0x20] sm:%s859] %v872
                %v874 = vld [vmem:[%s866 + $0x18] sm:%s859]
                %875 = vst [vmem:[%s867 + $0x30] sm:%s859] %v874
                %v876 = vld [vmem:[%s866 + $0x20] sm:%s859]
                %877 = vst [vmem:[%s867 + $0x40] sm:%s859] %v876
                %v878 = vld [vmem:[%s866 + $0x28] sm:%s859]
                %879 = vst [vmem:[%s867 + $0x50] sm:%s859] %v878
                %v880 = vld [vmem:[%s866 + $0x30] sm:%s859]
                %881 = vst [vmem:[%s867 + $0x60] sm:%s859] %v880
                %v882 = vld [vmem:[%s866 + $0x38] sm:%s859]
                %883 = vst [vmem:[%s867 + $0x70] sm:%s859] %v882
                %v884 = vld [vmem:[%s866 + $0x40] sm:%s859]
                %885 = vst [vmem:[%s867 + $0x80] sm:%s859] %v884
                %v886 = vld [vmem:[%s866 + $0x48] sm:%s859]
                %887 = vst [vmem:[%s867 + $0x90] sm:%s859] %v886
                %v888 = vld [vmem:[%s866 + $0x50] sm:%s859]
                %889 = vst [vmem:[%s867 + $0xa0] sm:%s859] %v888
                %v890 = vld [vmem:[%s866 + $0x58] sm:%s859]
                %891 = vst [vmem:[%s867 + $0xb0] sm:%s859] %v890
                %v892 = vld [vmem:[%s866 + $0x60] sm:%s859]
                %893 = vst [vmem:[%s867 + $0xc0] sm:%s859] %v892
                %v894 = vld [vmem:[%s866 + $0x68] sm:%s859]
                %895 = vst [vmem:[%s867 + $0xd0] sm:%s859] %v894
                %v896 = vld [vmem:[%s866 + $0x70] sm:%s859]
                %897 = vst [vmem:[%s867 + $0xe0] sm:%s859] %v896
                %v898 = vld [vmem:[%s866 + $0x78] sm:%s859]
                %899 = vst [vmem:[%s867 + $0xf0] sm:%s859] %v898
              $region102: #{tscd_forward.9} parent=96 // loop_footer
                %s865 = sadd.s32 1, %s861
              $region103: #{tscd_forward.9} parent=96 // loop_footer_branch
                %860 = sbr.rel target = $region99
              $region104: #{tscd_forward.9} parent=96 // loop_exit
                _
            $region97: #{tscd_forward.9} parent=88 // pred_fallthru
              _
          $region89: #{tscd_forward.9} parent=84 // pred_fallthru
            _
          %944 = vnop
        $region85: #{tscd_forward.9} parent=68 // pred_fallthru
          _
      $region69: #{tscd_forward.9} parent=5 // pred_fallthru
        _
      %p945 = scmp.le.s32.totalorder 2, %s9
      // Predicated region
      $region120: #{tscd_forward.9} parent=5 // pred_check
        %p946 = pneg %p945
      $region121: #{tscd_forward.9} parent=5 // pred_check_branch
        %948 = sbr.rel (%p946) target = $region123
      $region122: #{tscd_forward.9} parent=5 // pred_region
        %s949 = ssub.s32 %s9, 2
        // Predicated region
        $region124: #{tscd_forward.9} parent=122 // pred_check
          %p950 = pneg %p141
        $region125: #{tscd_forward.9} parent=122 // pred_check_branch
          %952 = sbr.rel (%p950) target = $region127
        $region126: #{tscd_forward.9} parent=122 // pred_region
          %s953 = sand.u32 %s126, 1
          %s954 = sand.u32 %s126, 1
          %s955 = smul.addr %s954, 128
          %s956 = scalar_lea.vmem [#allocation4], %s955
        $region127: #{tscd_forward.9} parent=122 // pred_fallthru
          _
      $region123: #{tscd_forward.9} parent=5 // pred_fallthru
        _
    $region6: #{tscd_forward.9} parent=1 // loop_footer
      %s13 = sadd.s32 1, %s9
    $region7: #{tscd_forward.9} parent=1 // loop_footer_branch
      %8 = sbr.rel target = $region3
    $region8: #{tscd_forward.9} parent=1 // loop_exit
      _

// kernel: tscd_forward.10
$region0: #{tscd_forward.10}
  #allocation0 [shape = 'u32[]', space=smem, size = 0x4, offset = 0x4, fixed_abs, tag = 'smem constant byte address 0x4 - core index']
  #allocation1 [shape = 'u32[144,128]{1,0:T(1,128)}', space=vmem, size = 0x12000, scoped, tag = 'internal scratch']
  #allocation2 [shape = 'f32[128,128]{1,0:T(8,128)}', space=vmem, size = 0x10000, scoped, tag = 'scratch operand']
  %s0 = inlined_call_operand.vmem [shape: bf16[128,896], index: 0, kind: input, shape index: {}]
  %s1 = inlined_call_operand.vmem [shape: bf16[896,256], index: 1, kind: input, shape index: {}]
  %s2 = inlined_call_operand.vmem [shape: f32[128,1], index: 2, kind: input, shape index: {}]
  %s3 = inlined_call_operand.vmem [shape: f32[128,256], index: 3, kind: output, shape index: {}]
  %s4 = sld [smem:[#allocation0]]
  $region169: #{tscd_forward.10} parent=0
    _
  %s6 = ssub.s32 1, %s4
  %s7 = scalar_select 0, %s6, %s4
  $region1: #{tscd_forward.10} parent=0
    #allocation3 [shape = 'u8[65536]{0}', space=vmem, size = 0x10000, scoped, tag = 'input window, operand 0']
    #allocation4 [shape = 'u8[65536]{0}', space=vmem, size = 0x10000, scoped, tag = 'input window, operand 1']
    #allocation5 [shape = 'u8[131072]{0}', space=vmem, size = 0x20000, scoped, tag = 'output window, operand 0']
    loop: start=0, step=1, limit=16
    $region2: #{tscd_forward.10} parent=1 // loop_pre_header
      _
    $region3: #{tscd_forward.10} parent=1 // loop_header
      %s9 = sphi 0, %s13
      %p10 = scmp.ge.s32.totalorder %s9, 16
      %s16 = sphi 0, %s35
      %s17 = sphi 0, %s31
      %s18 = sphi 0, %s27
      %s19 = sphi 0, %s16
      %s20 = sphi 0, %s17
      %s21 = sphi 0, %s18
      %s22 = sphi 0, %s19
      %s23 = sphi 0, %s20
      %s24 = sphi 0, %s21
      %s40 = sphi 0, %s42
      %s43 = sphi 0, %s40
      %s44 = sphi 0, %s43
      %s60 = sphi 0, %s44
      %s68 = sphi 0, %s70
      %s71 = sphi 0, %s68
      %s72 = sphi 0, %s71
      %s88 = sphi 0, %s72
      %s94 = sphi 0, %s96
      %s97 = sphi 0, %s94
      %s98 = sphi 0, %s97
      %s114 = sphi 0, %s98
      %s122 = sphi 0, %s124
      %s125 = sphi 0, %s122
      %s126 = sphi 0, %s125
      %s142 = sphi 0, %s126
    $region4: #{tscd_forward.10} parent=1 // loop_header_branch
      %12 = sbr.rel (%p10) target = $region8
    $region5: #{tscd_forward.10} parent=1 // loop_body
      %s14 = ssub.s32 %s9, 1
      %s15 = ssub.s32 %s9, 2
      %s25 = sadd.s32 1, %s18
      %p26 = scmp.ge.s32.totalorder %s25, 7
      %s27 = scalar_select %p26, 0, %s25
      %s28 = sadd.s32 1, %s17
      %s29 = scalar_select %p26, %s28, %s17
      %p30 = scmp.ge.s32.totalorder %s29, 2
      %s31 = scalar_select %p30, 0, %s29
      %s32 = sadd.s32 1, %s16
      %s33 = scalar_select %p30, %s32, %s16
      %p34 = scmp.ge.s32.totalorder %s33, 1
      %s35 = scalar_select %p34, 0, %s33
      %s36 = ssub.s32 %s16, %s35
      %s37 = ssub.s32 %s18, %s27
      %s38 = sor.u32 %s36, %s37
      %p39 = scmp.eq.s32.totalorder %s38, 0
      %s41 = sadd.s32 %s40, 1
      %s42 = scalar_select %p39, %s40, %s41
      %p45 = pneg %p39
      %p46 = scmp.eq.s32.totalorder %s9, 13
      %p47 = por %p45, %p46
      %p48 = scmp.ne.s32.totalorder %s40, %s43
      %p49 = scmp.eq.s32.totalorder %s9, 0
      %p50 = por %p48, %p49
      %p51 = scmp.ne.s32.totalorder %s40, %s43
      %p52 = scmp.eq.s32.totalorder %s14, 13
      %p53 = por %p51, %p52
      %p54 = scmp.ne.s32.totalorder %s43, %s44
      %p55 = scmp.eq.s32.totalorder %s14, 0
      %p56 = por %p54, %p55
      %p57 = scmp.ne.s32.totalorder %s43, %s44
      %p58 = scmp.eq.s32.totalorder %s15, 13
      %p59 = por %p57, %p58
      %p61 = scmp.ne.s32.totalorder %s44, %s60
      %p62 = scmp.eq.s32.totalorder %s15, 0
      %p63 = por %p61, %p62
      %s64 = ssub.s32 %s18, %s27
      %s65 = ssub.s32 %s17, %s31
      %s66 = sor.u32 %s64, %s65
      %p67 = scmp.eq.s32.totalorder %s66, 0
      %s69 = sadd.s32 %s68, 1
      %s70 = scalar_select %p67, %s68, %s69
      %p73 = pneg %p67
      %p74 = scmp.eq.s32.totalorder %s9, 13
      %p75 = por %p73, %p74
      %p76 = scmp.ne.s32.totalorder %s68, %s71
      %p77 = scmp.eq.s32.totalorder %s9, 0
      %p78 = por %p76, %p77
      %p79 = scmp.ne.s32.totalorder %s68, %s71
      %p80 = scmp.eq.s32.totalorder %s14, 13
      %p81 = por %p79, %p80
      %p82 = scmp.ne.s32.totalorder %s71, %s72
      %p83 = scmp.eq.s32.totalorder %s14, 0
      %p84 = por %p82, %p83
      %p85 = scmp.ne.s32.totalorder %s71, %s72
      %p86 = scmp.eq.s32.totalorder %s15, 13
      %p87 = por %p85, %p86
      %p89 = scmp.ne.s32.totalorder %s72, %s88
      %p90 = scmp.eq.s32.totalorder %s15, 0
      %p91 = por %p89, %p90
      %s92 = ssub.s32 %s16, %s35
      %p93 = scmp.eq.s32.totalorder %s92, 0
      %s95 = sadd.s32 %s94, 1
      %s96 = scalar_select %p93, %s94, %s95
      %p99 = pneg %p93
      %p100 = scmp.eq.s32.totalorder %s9, 13
      %p101 = por %p99, %p100
      %p102 = scmp.ne.s32.totalorder %s94, %s97
      %p103 = scmp.eq.s32.totalorder %s9, 0
      %p104 = por %p102, %p103
      %p105 = scmp.ne.s32.totalorder %s94, %s97
      %p106 = scmp.eq.s32.totalorder %s14, 13
      %p107 = por %p105, %p106
      %p108 = scmp.ne.s32.totalorder %s97, %s98
      %p109 = scmp.eq.s32.totalorder %s14, 0
      %p110 = por %p108, %p109
      %p111 = scmp.ne.s32.totalorder %s97, %s98
      %p112 = scmp.eq.s32.totalorder %s15, 13
      %p113 = por %p111, %p112
      %p115 = scmp.ne.s32.totalorder %s98, %s114
      %p116 = scmp.eq.s32.totalorder %s15, 0
      %p117 = por %p115, %p116
      %s118 = ssub.s32 %s16, %s35
      %s119 = ssub.s32 %s17, %s31
      %s120 = sor.u32 %s118, %s119
      %p121 = scmp.eq.s32.totalorder %s120, 0
      %s123 = sadd.s32 %s122, 1
      %s124 = scalar_select %p121, %s122, %s123
      %p127 = pneg %p121
      %p128 = scmp.eq.s32.totalorder %s9, 13
      %p129 = por %p127, %p128
      %p130 = scmp.ne.s32.totalorder %s122, %s125
      %p131 = scmp.eq.s32.totalorder %s9, 0
      %p132 = por %p130, %p131
      %p133 = scmp.ne.s32.totalorder %s122, %s125
      %p134 = scmp.eq.s32.totalorder %s14, 13
      %p135 = por %p133, %p134
      %p136 = scmp.ne.s32.totalorder %s125, %s126
      %p137 = scmp.eq.s32.totalorder %s14, 0
      %p138 = por %p136, %p137
      %p139 = scmp.ne.s32.totalorder %s125, %s126
      %p140 = scmp.eq.s32.totalorder %s15, 13
      %p141 = por %p139, %p140
      %p143 = scmp.ne.s32.totalorder %s126, %s142
      %p144 = scmp.eq.s32.totalorder %s15, 0
      %p145 = por %p143, %p144
      %p146 = scmp.le.s32.totalorder 1, %s9
      %p147 = scmp.lt.s32.totalorder %s9, 15
      %p148 = pnand %p146, %p147
      %p149 = pneg %p148
      // Predicated region
      $region9: #{tscd_forward.10} parent=5 // pred_check
        _
      $region10: #{tscd_forward.10} parent=5 // pred_check_branch
        %151 = sbr.rel (%p148) target = $region12
      $region11: #{tscd_forward.10} parent=5 // pred_region
        %s152 = ssub.s32 %s9, 1
        // Predicated region
        $region13: #{tscd_forward.10} parent=11 // pred_check
          %p153 = pneg %p110
        $region14: #{tscd_forward.10} parent=11 // pred_check_branch
          %155 = sbr.rel (%p153) target = $region16
        $region15: #{tscd_forward.10} parent=11 // pred_region
          %s156 = smul.u32 16, %s19
          %p157 = scmp.lt.s32.totalorder %s156, 15
          %s158 = scalar_select %p157, %s156, 15
          %s159 = smul.addr %s158, 8
          %s160 = scalar_lea.vmem %s2, %s159
          %s161 = smul.u32 16, %s19
        $region16: #{tscd_forward.10} parent=11 // pred_fallthru
          _
      $region12: #{tscd_forward.10} parent=5 // pred_fallthru
        _
      %p162 = scmp.lt.s32.totalorder %s9, 14
      // Predicated region
      $region17: #{tscd_forward.10} parent=5 // pred_check
        %p163 = pneg %p162
      $region18: #{tscd_forward.10} parent=5 // pred_check_branch
        %165 = sbr.rel (%p163) target = $region20
      $region19: #{tscd_forward.10} parent=5 // pred_region
        // Predicated region
        $region21: #{tscd_forward.10} parent=19 // pred_check
          %p166 = pneg %p50
        $region22: #{tscd_forward.10} parent=19 // pred_check_branch
          %168 = sbr.rel (%p166) target = $region24
        $region23: #{tscd_forward.10} parent=19 // pred_region
          %s169 = sand.u32 %s40, 1
          %s170 = sand.u32 %s40, 1
          %s171 = smul.addr %s170, 64
          %s172 = scalar_lea.vmem [#allocation3], %s171
          %s173 = smul.u32 16, %s16
          %s174 = smul.addr %s173, 7
          %s175 = sadd.s32 %s18, %s174
          %s176 = smul.addr %s175, 4
          %s177 = scalar_lea.vmem %s0, %s176
          // Predicated region
          $region25: #{tscd_forward.10} parent=23 // pred_check
            _
          $region26: #{tscd_forward.10} parent=23 // pred_check_branch
            %179 = sbr.rel (0) target = $region28
          $region27: #{tscd_forward.10} parent=23 // pred_region
            // Predicated region
            $region29: #{tscd_forward.10} parent=27 // pred_check
              _
            $region30: #{tscd_forward.10} parent=27 // pred_check_branch
              %181 = sbr.rel target = $region32
            $region31: #{tscd_forward.10} parent=27 // pred_region
              // Predicated region
              $region44: #{tscd_forward.10} parent=31 // pred_check
                _
              $region45: #{tscd_forward.10} parent=31 // pred_check_branch
                %227 = sbr.rel (0) target = $region47
              $region46: #{tscd_forward.10} parent=31 // pred_region
                loop: start=0, step=1, limit=1
                $region48: #{tscd_forward.10} parent=46 // loop_pre_header
                  _
                $region49: #{tscd_forward.10} parent=46 // loop_header
                  %s229 = sphi 0, %s233
                  %p230 = scmp.ge.s32.totalorder %s229, 1
                  %s234 = sphi %s177, %s177
                  %s235 = sphi %s172, %s172
                $region50: #{tscd_forward.10} parent=46 // loop_header_branch
                  %232 = sbr.rel (%p230) target = $region54
                $region51: #{tscd_forward.10} parent=46 // loop_body
                  _
                $region52: #{tscd_forward.10} parent=46 // loop_footer
                  %s233 = sadd.s32 1, %s229
                $region53: #{tscd_forward.10} parent=46 // loop_footer_branch
                  %228 = sbr.rel target = $region49
                $region54: #{tscd_forward.10} parent=46 // loop_exit
                  _
                %s237 = ssub.s32 16, 1
                loop: start=0, step=1, limit=1
                $region55: #{tscd_forward.10} parent=46 // loop_pre_header
                  _
                $region56: #{tscd_forward.10} parent=46 // loop_header
                  %s239 = sphi 0, %s243
                  %p240 = scmp.ge.s32.totalorder %s239, 1
                  %s244 = sphi %s177, %s177
                  %s245 = sphi %s172, %s172
                $region57: #{tscd_forward.10} parent=46 // loop_header_branch
                  %242 = sbr.rel (%p240) target = $region61
                $region58: #{tscd_forward.10} parent=46 // loop_body
                  %v246 = vld [vmem:[%s244] sm:%s237]
                  %247 = vst [vmem:[%s245] sm:%s237] %v246
                  %v248 = vld [vmem:[%s244 + $0x1c] sm:%s237]
                  %249 = vst [vmem:[%s245 + $0x4] sm:%s237] %v248
                  %v250 = vld [vmem:[%s244 + $0x38] sm:%s237]
                  %251 = vst [vmem:[%s245 + $0x8] sm:%s237] %v250
                  %v252 = vld [vmem:[%s244 + $0x54] sm:%s237]
                  %253 = vst [vmem:[%s245 + $0xc] sm:%s237] %v252
                  %v254 = vld [vmem:[%s244 + $0x70] sm:%s237]
                  %255 = vst [vmem:[%s245 + $0x10] sm:%s237] %v254
                  %v256 = vld [vmem:[%s244 + $0x8c] sm:%s237]
                  %257 = vst [vmem:[%s245 + $0x14] sm:%s237] %v256
                  %v258 = vld [vmem:[%s244 + $0xa8] sm:%s237]
                  %259 = vst [vmem:[%s245 + $0x18] sm:%s237] %v258
                  %v260 = vld [vmem:[%s244 + $0xc4] sm:%s237]
                  %261 = vst [vmem:[%s245 + $0x1c] sm:%s237] %v260
                  %v262 = vld [vmem:[%s244 + $0xe0] sm:%s237]
                  %263 = vst [vmem:[%s245 + $0x20] sm:%s237] %v262
                  %v264 = vld [vmem:[%s244 + $0xfc] sm:%s237]
                  %265 = vst [vmem:[%s245 + $0x24] sm:%s237] %v264
                  %v266 = vld [vmem:[%s244 + $0x118] sm:%s237]
                  %267 = vst [vmem:[%s245 + $0x28] sm:%s237] %v266
                  %v268 = vld [vmem:[%s244 + $0x134] sm:%s237]
                  %269 = vst [vmem:[%s245 + $0x2c] sm:%s237] %v268
                  %v270 = vld [vmem:[%s244 + $0x150] sm:%s237]
                  %271 = vst [vmem:[%s245 + $0x30] sm:%s237] %v270
                  %v272 = vld [vmem:[%s244 + $0x16c] sm:%s237]
                  %273 = vst [vmem:[%s245 + $0x34] sm:%s237] %v272
                  %v274 = vld [vmem:[%s244 + $0x188] sm:%s237]
                  %275 = vst [vmem:[%s245 + $0x38] sm:%s237] %v274
                  %v276 = vld [vmem:[%s244 + $0x1a4] sm:%s237]
                  %277 = vst [vmem:[%s245 + $0x3c] sm:%s237] %v276
                $region59: #{tscd_forward.10} parent=46 // loop_footer
                  %s243 = sadd.s32 1, %s239
                $region60: #{tscd_forward.10} parent=46 // loop_footer_branch
                  %238 = sbr.rel target = $region56
                $region61: #{tscd_forward.10} parent=46 // loop_exit
                  _
              $region47: #{tscd_forward.10} parent=31 // pred_fallthru
                _
            $region32: #{tscd_forward.10} parent=27 // pred_fallthru
              _
            // Predicated region
            $region33: #{tscd_forward.10} parent=27 // pred_check
              _
            $region34: #{tscd_forward.10} parent=27 // pred_check_branch
              %183 = sbr.rel (0) target = $region36
            $region35: #{tscd_forward.10} parent=27 // pred_region
              %s185 = ssub.s32 16, 1
              loop: start=0, step=1, limit=1
              $region37: #{tscd_forward.10} parent=35 // loop_pre_header
                _
              $region38: #{tscd_forward.10} parent=35 // loop_header
                %s187 = sphi 0, %s191
                %p188 = scmp.ge.s32.totalorder %s187, 1
                %s192 = sphi %s177, %s177
                %s193 = sphi %s172, %s172
              $region39: #{tscd_forward.10} parent=35 // loop_header_branch
                %190 = sbr.rel (%p188) target = $region43
              $region40: #{tscd_forward.10} parent=35 // loop_body
                %v194 = vld [vmem:[%s192] sm:%s185]
                %195 = vst [vmem:[%s193] sm:%s185] %v194
                %v196 = vld [vmem:[%s192 + $0x1c] sm:%s185]
                %197 = vst [vmem:[%s193 + $0x4] sm:%s185] %v196
                %v198 = vld [vmem:[%s192 + $0x38] sm:%s185]
                %199 = vst [vmem:[%s193 + $0x8] sm:%s185] %v198
                %v200 = vld [vmem:[%s192 + $0x54] sm:%s185]
                %201 = vst [vmem:[%s193 + $0xc] sm:%s185] %v200
                %v202 = vld [vmem:[%s192 + $0x70] sm:%s185]
                %203 = vst [vmem:[%s193 + $0x10] sm:%s185] %v202
                %v204 = vld [vmem:[%s192 + $0x8c] sm:%s185]
                %205 = vst [vmem:[%s193 + $0x14] sm:%s185] %v204
                %v206 = vld [vmem:[%s192 + $0xa8] sm:%s185]
                %207 = vst [vmem:[%s193 + $0x18] sm:%s185] %v206
                %v208 = vld [vmem:[%s192 + $0xc4] sm:%s185]
                %209 = vst [vmem:[%s193 + $0x1c] sm:%s185] %v208
                %v210 = vld [vmem:[%s192 + $0xe0] sm:%s185]
                %211 = vst [vmem:[%s193 + $0x20] sm:%s185] %v210
                %v212 = vld [vmem:[%s192 + $0xfc] sm:%s185]
                %213 = vst [vmem:[%s193 + $0x24] sm:%s185] %v212
                %v214 = vld [vmem:[%s192 + $0x118] sm:%s185]
                %215 = vst [vmem:[%s193 + $0x28] sm:%s185] %v214
                %v216 = vld [vmem:[%s192 + $0x134] sm:%s185]
                %217 = vst [vmem:[%s193 + $0x2c] sm:%s185] %v216
                %v218 = vld [vmem:[%s192 + $0x150] sm:%s185]
                %219 = vst [vmem:[%s193 + $0x30] sm:%s185] %v218
                %v220 = vld [vmem:[%s192 + $0x16c] sm:%s185]
                %221 = vst [vmem:[%s193 + $0x34] sm:%s185] %v220
                %v222 = vld [vmem:[%s192 + $0x188] sm:%s185]
                %223 = vst [vmem:[%s193 + $0x38] sm:%s185] %v222
                %v224 = vld [vmem:[%s192 + $0x1a4] sm:%s185]
                %225 = vst [vmem:[%s193 + $0x3c] sm:%s185] %v224
              $region41: #{tscd_forward.10} parent=35 // loop_footer
                %s191 = sadd.s32 1, %s187
              $region42: #{tscd_forward.10} parent=35 // loop_footer_branch
                %186 = sbr.rel target = $region38
              $region43: #{tscd_forward.10} parent=35 // loop_exit
                _
            $region36: #{tscd_forward.10} parent=27 // pred_fallthru
              _
          $region28: #{tscd_forward.10} parent=23 // pred_fallthru
            _
          %278 = vnop
        $region24: #{tscd_forward.10} parent=19 // pred_fallthru
          _
        // Predicated region
        $region62: #{tscd_forward.10} parent=19 // pred_check
          %p279 = pneg %p78
        $region63: #{tscd_forward.10} parent=19 // pred_check_branch
          %281 = sbr.rel (%p279) target = $region65
        $region64: #{tscd_forward.10} parent=19 // pred_region
          %s282 = sand.u32 %s68, 1
          %s283 = sand.u32 %s68, 1
          %s284 = smul.addr %s283, 64
          %s285 = scalar_lea.vmem [#allocation4], %s284
          %s286 = smul.u32 16, %s18
          %s287 = smul.addr %s286, 2
          %s288 = sadd.s32 %s17, %s287
          %s289 = smul.addr %s288, 4
          %s290 = scalar_lea.vmem %s1, %s289
          // Predicated region
          $region66: #{tscd_forward.10} parent=64 // pred_check
            _
          $region67: #{tscd_forward.10} parent=64 // pred_check_branch
            %292 = sbr.rel (0) target = $region69
          $region68: #{tscd_forward.10} parent=64 // pred_region
            // Predicated region
            $region70: #{tscd_forward.10} parent=68 // pred_check
              _
            $region71: #{tscd_forward.10} parent=68 // pred_check_branch
              %294 = sbr.rel target = $region73
            $region72: #{tscd_forward.10} parent=68 // pred_region
              // Predicated region
              $region85: #{tscd_forward.10} parent=72 // pred_check
                _
              $region86: #{tscd_forward.10} parent=72 // pred_check_branch
                %340 = sbr.rel (0) target = $region88
              $region87: #{tscd_forward.10} parent=72 // pred_region
                loop: start=0, step=1, limit=1
                $region89: #{tscd_forward.10} parent=87 // loop_pre_header
                  _
                $region90: #{tscd_forward.10} parent=87 // loop_header
                  %s342 = sphi 0, %s346
                  %p343 = scmp.ge.s32.totalorder %s342, 1
                  %s347 = sphi %s290, %s290
                  %s348 = sphi %s285, %s285
                $region91: #{tscd_forward.10} parent=87 // loop_header_branch
                  %345 = sbr.rel (%p343) target = $region95
                $region92: #{tscd_forward.10} parent=87 // loop_body
                  _
                $region93: #{tscd_forward.10} parent=87 // loop_footer
                  %s346 = sadd.s32 1, %s342
                $region94: #{tscd_forward.10} parent=87 // loop_footer_branch
                  %341 = sbr.rel target = $region90
                $region95: #{tscd_forward.10} parent=87 // loop_exit
                  _
                %s350 = ssub.s32 16, 1
                loop: start=0, step=1, limit=1
                $region96: #{tscd_forward.10} parent=87 // loop_pre_header
                  _
                $region97: #{tscd_forward.10} parent=87 // loop_header
                  %s352 = sphi 0, %s356
                  %p353 = scmp.ge.s32.totalorder %s352, 1
                  %s357 = sphi %s290, %s290
                  %s358 = sphi %s285, %s285
                $region98: #{tscd_forward.10} parent=87 // loop_header_branch
                  %355 = sbr.rel (%p353) target = $region102
                $region99: #{tscd_forward.10} parent=87 // loop_body
                  %v359 = vld [vmem:[%s357] sm:%s350]
                  %360 = vst [vmem:[%s358] sm:%s350] %v359
                  %v361 = vld [vmem:[%s357 + $0x8] sm:%s350]
                  %362 = vst [vmem:[%s358 + $0x4] sm:%s350] %v361
                  %v363 = vld [vmem:[%s357 + $0x10] sm:%s350]
                  %364 = vst [vmem:[%s358 + $0x8] sm:%s350] %v363
                  %v365 = vld [vmem:[%s357 + $0x18] sm:%s350]
                  %366 = vst [vmem:[%s358 + $0xc] sm:%s350] %v365
                  %v367 = vld [vmem:[%s357 + $0x20] sm:%s350]
                  %368 = vst [vmem:[%s358 + $0x10] sm:%s350] %v367
                  %v369 = vld [vmem:[%s357 + $0x28] sm:%s350]
                  %370 = vst [vmem:[%s358 + $0x14] sm:%s350] %v369
                  %v371 = vld [vmem:[%s357 + $0x30] sm:%s350]
                  %372 = vst [vmem:[%s358 + $0x18] sm:%s350] %v371
                  %v373 = vld [vmem:[%s357 + $0x38] sm:%s350]
                  %374 = vst [vmem:[%s358 + $0x1c] sm:%s350] %v373
                  %v375 = vld [vmem:[%s357 + $0x40] sm:%s350]
                  %376 = vst [vmem:[%s358 + $0x20] sm:%s350] %v375
                  %v377 = vld [vmem:[%s357 + $0x48] sm:%s350]
                  %378 = vst [vmem:[%s358 + $0x24] sm:%s350] %v377
                  %v379 = vld [vmem:[%s357 + $0x50] sm:%s350]
                  %380 = vst [vmem:[%s358 + $0x28] sm:%s350] %v379
                  %v381 = vld [vmem:[%s357 + $0x58] sm:%s350]
                  %382 = vst [vmem:[%s358 + $0x2c] sm:%s350] %v381
                  %v383 = vld [vmem:[%s357 + $0x60] sm:%s350]
                  %384 = vst [vmem:[%s358 + $0x30] sm:%s350] %v383
                  %v385 = vld [vmem:[%s357 + $0x68] sm:%s350]
                  %386 = vst [vmem:[%s358 + $0x34] sm:%s350] %v385
                  %v387 = vld [vmem:[%s357 + $0x70] sm:%s350]
                  %388 = vst [vmem:[%s358 + $0x38] sm:%s350] %v387
                  %v389 = vld [vmem:[%s357 + $0x78] sm:%s350]
                  %390 = vst [vmem:[%s358 + $0x3c] sm:%s350] %v389
                $region100: #{tscd_forward.10} parent=87 // loop_footer
                  %s356 = sadd.s32 1, %s352
                $region101: #{tscd_forward.10} parent=87 // loop_footer_branch
                  %351 = sbr.rel target = $region97
                $region102: #{tscd_forward.10} parent=87 // loop_exit
                  _
              $region88: #{tscd_forward.10} parent=72 // pred_fallthru
                _
            $region73: #{tscd_forward.10} parent=68 // pred_fallthru
              _
            // Predicated region
            $region74: #{tscd_forward.10} parent=68 // pred_check
              _
            $region75: #{tscd_forward.10} parent=68 // pred_check_branch
              %296 = sbr.rel (0) target = $region77
            $region76: #{tscd_forward.10} parent=68 // pred_region
              %s298 = ssub.s32 16, 1
              loop: start=0, step=1, limit=1
              $region78: #{tscd_forward.10} parent=76 // loop_pre_header
                _
              $region79: #{tscd_forward.10} parent=76 // loop_header
                %s300 = sphi 0, %s304
                %p301 = scmp.ge.s32.totalorder %s300, 1
                %s305 = sphi %s290, %s290
                %s306 = sphi %s285, %s285
              $region80: #{tscd_forward.10} parent=76 // loop_header_branch
                %303 = sbr.rel (%p301) target = $region84
              $region81: #{tscd_forward.10} parent=76 // loop_body
                %v307 = vld [vmem:[%s305] sm:%s298]
                %308 = vst [vmem:[%s306] sm:%s298] %v307
                %v309 = vld [vmem:[%s305 + $0x8] sm:%s298]
                %310 = vst [vmem:[%s306 + $0x4] sm:%s298] %v309
                %v311 = vld [vmem:[%s305 + $0x10] sm:%s298]
                %312 = vst [vmem:[%s306 + $0x8] sm:%s298] %v311
                %v313 = vld [vmem:[%s305 + $0x18] sm:%s298]
                %314 = vst [vmem:[%s306 + $0xc] sm:%s298] %v313
                %v315 = vld [vmem:[%s305 + $0x20] sm:%s298]
                %316 = vst [vmem:[%s306 + $0x10] sm:%s298] %v315
                %v317 = vld [vmem:[%s305 + $0x28] sm:%s298]
                %318 = vst [vmem:[%s306 + $0x14] sm:%s298] %v317
                %v319 = vld [vmem:[%s305 + $0x30] sm:%s298]
                %320 = vst [vmem:[%s306 + $0x18] sm:%s298] %v319
                %v321 = vld [vmem:[%s305 + $0x38] sm:%s298]
                %322 = vst [vmem:[%s306 + $0x1c] sm:%s298] %v321
                %v323 = vld [vmem:[%s305 + $0x40] sm:%s298]
                %324 = vst [vmem:[%s306 + $0x20] sm:%s298] %v323
                %v325 = vld [vmem:[%s305 + $0x48] sm:%s298]
                %326 = vst [vmem:[%s306 + $0x24] sm:%s298] %v325
                %v327 = vld [vmem:[%s305 + $0x50] sm:%s298]
                %328 = vst [vmem:[%s306 + $0x28] sm:%s298] %v327
                %v329 = vld [vmem:[%s305 + $0x58] sm:%s298]
                %330 = vst [vmem:[%s306 + $0x2c] sm:%s298] %v329
                %v331 = vld [vmem:[%s305 + $0x60] sm:%s298]
                %332 = vst [vmem:[%s306 + $0x30] sm:%s298] %v331
                %v333 = vld [vmem:[%s305 + $0x68] sm:%s298]
                %334 = vst [vmem:[%s306 + $0x34] sm:%s298] %v333
                %v335 = vld [vmem:[%s305 + $0x70] sm:%s298]
                %336 = vst [vmem:[%s306 + $0x38] sm:%s298] %v335
                %v337 = vld [vmem:[%s305 + $0x78] sm:%s298]
                %338 = vst [vmem:[%s306 + $0x3c] sm:%s298] %v337
              $region82: #{tscd_forward.10} parent=76 // loop_footer
                %s304 = sadd.s32 1, %s300
              $region83: #{tscd_forward.10} parent=76 // loop_footer_branch
                %299 = sbr.rel target = $region79
              $region84: #{tscd_forward.10} parent=76 // loop_exit
                _
            $region77: #{tscd_forward.10} parent=68 // pred_fallthru
              _
          $region69: #{tscd_forward.10} parent=64 // pred_fallthru
            _
          %391 = vnop
        $region65: #{tscd_forward.10} parent=19 // pred_fallthru
          _
      $region20: #{tscd_forward.10} parent=5 // pred_fallthru
        _
      %p392 = scmp.le.s32.totalorder 1, %s9
      %p393 = scmp.lt.s32.totalorder %s9, 15
      %p394 = pnand %p392, %p393
      %p395 = pneg %p394
      // Predicated region
      $region103: #{tscd_forward.10} parent=5 // pred_check
        _
      $region104: #{tscd_forward.10} parent=5 // pred_check_branch
        %397 = sbr.rel (%p394) target = $region106
      $region105: #{tscd_forward.10} parent=5 // pred_region
        %s398 = ssub.s32 %s9, 1
        %s399 = sand.u32 %s43, 1
        %s400 = sand.u32 %s43, 1
        %s401 = smul.addr %s400, 64
        %s402 = scalar_lea.vmem [#allocation3], %s401
        // Predicated region
        $region107: #{tscd_forward.10} parent=105 // pred_check
          %p403 = pneg %p56
        $region108: #{tscd_forward.10} parent=105 // pred_check_branch
          %405 = sbr.rel (%p403) target = $region110
        $region109: #{tscd_forward.10} parent=105 // pred_region
          _
        $region110: #{tscd_forward.10} parent=105 // pred_fallthru
          _
        %s406 = sand.u32 %s71, 1
        %s407 = sand.u32 %s71, 1
        %s408 = smul.addr %s407, 64
        %s409 = scalar_lea.vmem [#allocation4], %s408
        // Predicated region
        $region111: #{tscd_forward.10} parent=105 // pred_check
          %p410 = pneg %p84
        $region112: #{tscd_forward.10} parent=105 // pred_check_branch
          %412 = sbr.rel (%p410) target = $region114
        $region113: #{tscd_forward.10} parent=105 // pred_region
          _
        $region114: #{tscd_forward.10} parent=105 // pred_fallthru
          _
        %s413 = sand.u32 %s43, 1
        %s414 = sand.u32 %s43, 1
        %s415 = smul.addr %s414, 64
        %s416 = scalar_lea.vmem [#allocation3], %s415
        %p417 = pneg %p56
        %p418 = pneg %p53
        %s419 = sand.u32 %s71, 1
        %s420 = sand.u32 %s71, 1
        %s421 = smul.addr %s420, 64
        %s422 = scalar_lea.vmem [#allocation4], %s421
        %p423 = pneg %p84
        %p424 = pneg %p81
        %s425 = smul.u32 16, %s19
        %p426 = scmp.lt.s32.totalorder %s425, 15
        %s427 = scalar_select %p426, %s425, 15
        %s428 = smul.addr %s427, 8
        %s429 = scalar_lea.vmem %s2, %s428
        %p430 = pneg %p110
        %p431 = pneg %p107
        %p432 = pneg %p138
        %p433 = pneg %p135
        %s434 = sand.u32 %s125, 1
        %s435 = sand.u32 %s125, 1
        %s436 = smul.addr %s435, 128
        %s437 = scalar_lea.vmem [#allocation5], %s436
        %s438 = smul.u32 16, %s19
        %s439 = smul.u32 16, %s21
        %s440 = smul.u32 16, %s19
        %p441 = scmp.lt.s32.totalorder %s440, 15
        %s442 = scalar_select %p441, %s440, 15
        %s443 = smul.addr %s442, 8
        %s444 = scalar_lea.vmem %s2, %s443
        %s445 = smul.u32 16, %s19
        %s446 = smul.u32 16, %s19
        %p448 = scmp.eq.s32.totalorder %s21, 0
        // Predicated region
        $region115: #{tscd_forward.10} parent=105 // pred_check
          %p449 = pneg %p448
        $region116: #{tscd_forward.10} parent=105 // pred_check_branch
          %451 = sbr.rel (%p449) target = $region118
        $region117: #{tscd_forward.10} parent=105 // pred_region
          %452 = vst [vmem:[#allocation2] sm:$0xff] 0.0
          %453 = vst [vmem:[#allocation2 + $0x8] sm:$0xff] 0.0
          %454 = vst [vmem:[#allocation2 + $0x10] sm:$0xff] 0.0
          %455 = vst [vmem:[#allocation2 + $0x18] sm:$0xff] 0.0
          %456 = vst [vmem:[#allocation2 + $0x20] sm:$0xff] 0.0
          %457 = vst [vmem:[#allocation2 + $0x28] sm:$0xff] 0.0
          %458 = vst [vmem:[#allocation2 + $0x30] sm:$0xff] 0.0
          %459 = vst [vmem:[#allocation2 + $0x38] sm:$0xff] 0.0
          %460 = vst [vmem:[#allocation2 + $0x40] sm:$0xff] 0.0
          %461 = vst [vmem:[#allocation2 + $0x48] sm:$0xff] 0.0
          %462 = vst [vmem:[#allocation2 + $0x50] sm:$0xff] 0.0
          %463 = vst [vmem:[#allocation2 + $0x58] sm:$0xff] 0.0
          %464 = vst [vmem:[#allocation2 + $0x60] sm:$0xff] 0.0
          %465 = vst [vmem:[#allocation2 + $0x68] sm:$0xff] 0.0
          %466 = vst [vmem:[#allocation2 + $0x70] sm:$0xff] 0.0
          %467 = vst [vmem:[#allocation2 + $0x78] sm:$0xff] 0.0
        $region118: #{tscd_forward.10} parent=105 // pred_fallthru
          _
        %v468 = vld [vmem:[%s402] sm:$0xf]
        %v469 = vld [vmem:[%s402 + $0x4] sm:$0xf]
        %v470 = vld [vmem:[%s402 + $0x8] sm:$0xf]
        %v471 = vld [vmem:[%s402 + $0xc] sm:$0xf]
        %v472 = vld [vmem:[%s402 + $0x10] sm:$0xf]
        %v473 = vld [vmem:[%s402 + $0x14] sm:$0xf]
        %v474 = vld [vmem:[%s402 + $0x18] sm:$0xf]
        %v475 = vld [vmem:[%s402 + $0x1c] sm:$0xf]
        %v476 = vld [vmem:[%s402 + $0x20] sm:$0xf]
        %v477 = vld [vmem:[%s402 + $0x24] sm:$0xf]
        %v478 = vld [vmem:[%s402 + $0x28] sm:$0xf]
        %v479 = vld [vmem:[%s402 + $0x2c] sm:$0xf]
        %v480 = vld [vmem:[%s402 + $0x30] sm:$0xf]
        %v481 = vld [vmem:[%s402 + $0x34] sm:$0xf]
        %v482 = vld [vmem:[%s402 + $0x38] sm:$0xf]
        %v483 = vld [vmem:[%s402 + $0x3c] sm:$0xf]
        %v484 = vld [vmem:[#allocation2] sm:$0xff]
        %v485 = vld [vmem:[#allocation2 + $0x8] sm:$0xff]
        %v486 = vld [vmem:[#allocation2 + $0x10] sm:$0xff]
        %v487 = vld [vmem:[#allocation2 + $0x18] sm:$0xff]
        %v488 = vld [vmem:[#allocation2 + $0x20] sm:$0xff]
        %v489 = vld [vmem:[#allocation2 + $0x28] sm:$0xff]
        %v490 = vld [vmem:[#allocation2 + $0x30] sm:$0xff]
        %v491 = vld [vmem:[#allocation2 + $0x38] sm:$0xff]
        %v492 = vld [vmem:[#allocation2 + $0x40] sm:$0xff]
        %v493 = vld [vmem:[#allocation2 + $0x48] sm:$0xff]
        %v494 = vld [vmem:[#allocation2 + $0x50] sm:$0xff]
        %v495 = vld [vmem:[#allocation2 + $0x58] sm:$0xff]
        %v496 = vld [vmem:[#allocation2 + $0x60] sm:$0xff]
        %v497 = vld [vmem:[#allocation2 + $0x68] sm:$0xff]
        %v498 = vld [vmem:[#allocation2 + $0x70] sm:$0xff]
        %v499 = vld [vmem:[#allocation2 + $0x78] sm:$0xff]
        %v500 = vld [vmem:[%s409] sm:$0xf]
        %v501 = vld [vmem:[%s409 + $0x4] sm:$0xf]
        %v502 = vld [vmem:[%s409 + $0x8] sm:$0xf]
        %v503 = vld [vmem:[%s409 + $0xc] sm:$0xf]
        %v504 = vld [vmem:[%s409 + $0x10] sm:$0xf]
        %v505 = vld [vmem:[%s409 + $0x14] sm:$0xf]
        %v506 = vld [vmem:[%s409 + $0x18] sm:$0xf]
        %v507 = vld [vmem:[%s409 + $0x1c] sm:$0xf]
        %v508 = vld [vmem:[%s409 + $0x20] sm:$0xf]
        %v509 = vld [vmem:[%s409 + $0x24] sm:$0xf]
        %v510 = vld [vmem:[%s409 + $0x28] sm:$0xf]
        %v511 = vld [vmem:[%s409 + $0x2c] sm:$0xf]
        %v512 = vld [vmem:[%s409 + $0x30] sm:$0xf]
        %v513 = vld [vmem:[%s409 + $0x34] sm:$0xf]
        %v514 = vld [vmem:[%s409 + $0x38] sm:$0xf]
        %v515 = vld [vmem:[%s409 + $0x3c] sm:$0xf]
        %v532 = vunpack.c.l.b16 %v468
        %v533 = vunpack.c.l.b16 %v469
        %v534 = vunpack.c.l.b16 %v470
        %v535 = vunpack.c.l.b16 %v471
        %v536 = vunpack.c.l.b16 %v472
        %v537 = vunpack.c.l.b16 %v473
        %v538 = vunpack.c.l.b16 %v474
        %v539 = vunpack.c.l.b16 %v475
        %v540 = vunpack.c.l.b16 %v476
        %v541 = vunpack.c.l.b16 %v477
        %v542 = vunpack.c.l.b16 %v478
        %v543 = vunpack.c.l.b16 %v479
        %v544 = vunpack.c.l.b16 %v480
        %v545 = vunpack.c.l.b16 %v481
        %v546 = vunpack.c.l.b16 %v482
        %v547 = vunpack.c.l.b16 %v483
        %v548 = vpack.c.b16 %v533, %v532
        %v549 = vpack.c.b16 %v535, %v534
        %v550 = vpack.c.b16 %v537, %v536
        %v551 = vpack.c.b16 %v539, %v538
        %v552 = vpack.c.b16 %v541, %v540
        %v553 = vpack.c.b16 %v543, %v542
        %v554 = vpack.c.b16 %v545, %v544
        %v555 = vpack.c.b16 %v547, %v546
        %v580 = vunpack.c.l.b16 %v500
        %v581 = vunpack.c.l.b16 %v501
        %v582 = vunpack.c.l.b16 %v502
        %v583 = vunpack.c.l.b16 %v503
        %v584 = vunpack.c.l.b16 %v504
        %v585 = vunpack.c.l.b16 %v505
        %v586 = vunpack.c.l.b16 %v506
        %v587 = vunpack.c.l.b16 %v507
        %v588 = vunpack.c.l.b16 %v508
        %v589 = vunpack.c.l.b16 %v509
        %v590 = vunpack.c.l.b16 %v510
        %v591 = vunpack.c.l.b16 %v511
        %v592 = vunpack.c.l.b16 %v512
        %v593 = vunpack.c.l.b16 %v513
        %v594 = vunpack.c.l.b16 %v514
        %v595 = vunpack.c.l.b16 %v515
        %v596 = vpack.c.b16 %v581, %v580
        %v597 = vpack.c.b16 %v583, %v582
        %v598 = vpack.c.b16 %v585, %v584
        %v599 = vpack.c.b16 %v587, %v586
        %v600 = vpack.c.b16 %v589, %v588
        %v601 = vpack.c.b16 %v591, %v590
        %v602 = vpack.c.b16 %v593, %v592
        %v603 = vpack.c.b16 %v595, %v594
        %612 = vmatprep.subr.bf16.mxu0 0
        %613 = vmatpush1.bf16.msra.mxu0 %v603
        %614 = vmatprep.subr.bf16.mxu0 0
        %615 = vmatpush1.bf16.msra.mxu0 %v602
        %616 = vmatprep.subr.bf16.mxu0 0
        %617 = vmatpush1.bf16.msra.mxu0 %v601
        %618 = vmatprep.subr.bf16.mxu0 0
        %619 = vmatpush1.bf16.msra.mxu0 %v600
        %620 = vmatprep.subr.bf16.mxu0 0
        %621 = vmatpush1.bf16.msra.mxu0 %v599
        %622 = vmatprep.subr.bf16.mxu0 0
        %623 = vmatpush1.bf16.msra.mxu0 %v598
        %624 = vmatprep.subr.bf16.mxu0 0
        %625 = vmatpush1.bf16.msra.mxu0 %v597
        %626 = vmatprep.subr.bf16.mxu0 0
        %627 = vmatpush1.bf16.msra.mxu0 %v596
        %628 = vmatprep.subr.bf16.mxu0 0
        %629 = vmatpush2.bf16.msra.mxu0 0
        %630 = vmatprep.subr.bf16.mxu0 0
        %631 = vmatpush2.bf16.msra.mxu0 0
        %632 = vmatprep.subr.bf16.mxu0 0
        %633 = vmatpush2.bf16.msra.mxu0 0
        %634 = vmatprep.subr.bf16.mxu0 0
        %635 = vmatpush2.bf16.msra.mxu0 0
        %636 = vmatprep.subr.bf16.mxu0 0
        %637 = vmatpush2.bf16.msra.mxu0 0
        %638 = vmatprep.subr.bf16.mxu0 0
        %639 = vmatpush2.bf16.msra.mxu0 0
        %640 = vmatprep.subr.bf16.mxu0 0
        %641 = vmatpush2.bf16.msra.mxu0 0
        %642 = vmatprep.subr.bf16.mxu0 0
        %643 = vmatpush2.bf16.msra.mxu0 0
        %644 = vmatprep.mubr.bf16.mxu0 0
        %645 = vmatmul.mubr.bf16.gmra.mxu0 %v548
        %v646 = vpop.f32.mrf.mxu0
        %v647 = vadd.f32 0.0, %v646
        %v648 = vpop.f32.mrf.mxu0
        %v649 = vpop.f32.mrf.mxu0
        %v650 = vadd.f32 0.0, %v649
        %v651 = vpop.f32.mrf.mxu0
        %652 = vmatprep.mubr.bf16.mxu0 0
        %653 = vmatmul.mubr.bf16.gmra.mxu0 %v549
        %v654 = vpop.f32.mrf.mxu0
        %v655 = vadd.f32 0.0, %v654
        %v656 = vpop.f32.mrf.mxu0
        %v657 = vpop.f32.mrf.mxu0
        %v658 = vadd.f32 0.0, %v657
        %v659 = vpop.f32.mrf.mxu0
        %660 = vmatprep.mubr.bf16.mxu0 0
        %661 = vmatmul.mubr.bf16.gmra.mxu0 %v550
        %v662 = vpop.f32.mrf.mxu0
        %v663 = vadd.f32 0.0, %v662
        %v664 = vpop.f32.mrf.mxu0
        %v665 = vpop.f32.mrf.mxu0
        %v666 = vadd.f32 0.0, %v665
        %v667 = vpop.f32.mrf.mxu0
        %668 = vmatprep.mubr.bf16.mxu0 0
        %669 = vmatmul.mubr.bf16.gmra.mxu0 %v551
        %v670 = vpop.f32.mrf.mxu0
        %v671 = vadd.f32 0.0, %v670
        %v672 = vpop.f32.mrf.mxu0
        %v673 = vpop.f32.mrf.mxu0
        %v674 = vadd.f32 0.0, %v673
        %v675 = vpop.f32.mrf.mxu0
        %676 = vmatprep.mubr.bf16.mxu0 0
        %677 = vmatmul.mubr.bf16.gmra.mxu0 %v552
        %v678 = vpop.f32.mrf.mxu0
        %v679 = vadd.f32 0.0, %v678
        %v680 = vpop.f32.mrf.mxu0
        %v681 = vpop.f32.mrf.mxu0
        %v682 = vadd.f32 0.0, %v681
        %v683 = vpop.f32.mrf.mxu0
        %684 = vmatprep.mubr.bf16.mxu0 0
        %685 = vmatmul.mubr.bf16.gmra.mxu0 %v553
        %v686 = vpop.f32.mrf.mxu0
        %v687 = vadd.f32 0.0, %v686
        %v688 = vpop.f32.mrf.mxu0
        %v689 = vpop.f32.mrf.mxu0
        %v690 = vadd.f32 0.0, %v689
        %v691 = vpop.f32.mrf.mxu0
        %692 = vmatprep.mubr.bf16.mxu0 0
        %693 = vmatmul.mubr.bf16.gmra.mxu0 %v554
        %v694 = vpop.f32.mrf.mxu0
        %v695 = vadd.f32 0.0, %v694
        %v696 = vpop.f32.mrf.mxu0
        %v697 = vpop.f32.mrf.mxu0
        %v698 = vadd.f32 0.0, %v697
        %v699 = vpop.f32.mrf.mxu0
        %700 = vmatprep.mubr.bf16.mxu0 0
        %701 = vmatmul.mubr.bf16.gmra.mxu0 %v555
        %v702 = vpop.f32.mrf.mxu0
        %v703 = vadd.f32 0.0, %v702
        %v704 = vpop.f32.mrf.mxu0
        %v705 = vpop.f32.mrf.mxu0
        %v706 = vadd.f32 0.0, %v705
        %v707 = vpop.f32.mrf.mxu0
        %708 = vdwg.mxu0
        %v709 = vadd.f32 %v484, %v647
        %v710 = vadd.f32 %v485, %v650
        %v711 = vadd.f32 %v486, %v655
        %v712 = vadd.f32 %v487, %v658
        %v713 = vadd.f32 %v488, %v663
        %v714 = vadd.f32 %v489, %v666
        %v715 = vadd.f32 %v490, %v671
        %v716 = vadd.f32 %v491, %v674
        %v717 = vadd.f32 %v492, %v679
        %v718 = vadd.f32 %v493, %v682
        %v719 = vadd.f32 %v494, %v687
        %v720 = vadd.f32 %v495, %v690
        %v721 = vadd.f32 %v496, %v695
        %v722 = vadd.f32 %v497, %v698
        %v723 = vadd.f32 %v498, %v703
        %v724 = vadd.f32 %v499, %v706
        %725 = vst [vmem:[#allocation2] sm:$0xff] %v709
        %726 = vst [vmem:[#allocation2 + $0x8] sm:$0xff] %v710
        %727 = vst [vmem:[#allocation2 + $0x10] sm:$0xff] %v711
        %728 = vst [vmem:[#allocation2 + $0x18] sm:$0xff] %v712
        %729 = vst [vmem:[#allocation2 + $0x20] sm:$0xff] %v713
        %730 = vst [vmem:[#allocation2 + $0x28] sm:$0xff] %v714
        %731 = vst [vmem:[#allocation2 + $0x30] sm:$0xff] %v715
        %732 = vst [vmem:[#allocation2 + $0x38] sm:$0xff] %v716
        %733 = vst [vmem:[#allocation2 + $0x40] sm:$0xff] %v717
        %734 = vst [vmem:[#allocation2 + $0x48] sm:$0xff] %v718
        %735 = vst [vmem:[#allocation2 + $0x50] sm:$0xff] %v719
        %736 = vst [vmem:[#allocation2 + $0x58] sm:$0xff] %v720
        %737 = vst [vmem:[#allocation2 + $0x60] sm:$0xff] %v721
        %738 = vst [vmem:[#allocation2 + $0x68] sm:$0xff] %v722
        %739 = vst [vmem:[#allocation2 + $0x70] sm:$0xff] %v723
        %740 = vst [vmem:[#allocation2 + $0x78] sm:$0xff] %v724
        %p741 = scmp.eq.s32.totalorder %s21, 6
        // Predicated region
        $region119: #{tscd_forward.10} parent=105 // pred_check
          %p742 = pneg %p741
        $region120: #{tscd_forward.10} parent=105 // pred_check_branch
          %744 = sbr.rel (%p742) target = $region122
        $region121: #{tscd_forward.10} parent=105 // pred_region
          %v745 = vld [vmem:[#allocation2] sm:$0xff]
          %v746 = vld [vmem:[#allocation2 + $0x8] sm:$0xff]
          %v747 = vld [vmem:[#allocation2 + $0x10] sm:$0xff]
          %v748 = vld [vmem:[#allocation2 + $0x18] sm:$0xff]
          %v749 = vld [vmem:[#allocation2 + $0x20] sm:$0xff]
          %v750 = vld [vmem:[#allocation2 + $0x28] sm:$0xff]
          %v751 = vld [vmem:[#allocation2 + $0x30] sm:$0xff]
          %v752 = vld [vmem:[#allocation2 + $0x38] sm:$0xff]
          %v753 = vld [vmem:[#allocation2 + $0x40] sm:$0xff]
          %v754 = vld [vmem:[#allocation2 + $0x48] sm:$0xff]
          %v755 = vld [vmem:[#allocation2 + $0x50] sm:$0xff]
          %v756 = vld [vmem:[#allocation2 + $0x58] sm:$0xff]
          %v757 = vld [vmem:[#allocation2 + $0x60] sm:$0xff]
          %v758 = vld [vmem:[#allocation2 + $0x68] sm:$0xff]
          %v759 = vld [vmem:[#allocation2 + $0x70] sm:$0xff]
          %v760 = vld [vmem:[#allocation2 + $0x78] sm:$0xff]
          %v761 = vld [vmem:[%s444] sm:$0xff]
          %v762 = vld [vmem:[%s444 + $0x8] sm:$0xff]
          %v763 = vld [vmem:[%s444 + $0x10] sm:$0xff]
          %v764 = vld [vmem:[%s444 + $0x18] sm:$0xff]
          %v765 = vld [vmem:[%s444 + $0x20] sm:$0xff]
          %v766 = vld [vmem:[%s444 + $0x28] sm:$0xff]
          %v767 = vld [vmem:[%s444 + $0x30] sm:$0xff]
          %v768 = vld [vmem:[%s444 + $0x38] sm:$0xff]
          %v769 = vld [vmem:[%s444 + $0x40] sm:$0xff]
          %v770 = vld [vmem:[%s444 + $0x48] sm:$0xff]
          %v771 = vld [vmem:[%s444 + $0x50] sm:$0xff]
          %v772 = vld [vmem:[%s444 + $0x58] sm:$0xff]
          %v773 = vld [vmem:[%s444 + $0x60] sm:$0xff]
          %v774 = vld [vmem:[%s444 + $0x68] sm:$0xff]
          %v775 = vld [vmem:[%s444 + $0x70] sm:$0xff]
          %v776 = vld [vmem:[%s444 + $0x78] sm:$0xff]
          %778 = vset.pattern.permute.xlu0 0
          %779 = vperm.xlu0 %778, %v761
          %v780 = vpop.permute.xlu0 %779
          %783 = vset.pattern.permute.xlu0 0
          %784 = vperm.xlu0 %783, %v762
          %v785 = vpop.permute.xlu0 %784
          %788 = vset.pattern.permute.xlu0 0
          %789 = vperm.xlu0 %788, %v763
          %v790 = vpop.permute.xlu0 %789
          %793 = vset.pattern.permute.xlu0 0
          %794 = vperm.xlu0 %793, %v764
          %v795 = vpop.permute.xlu0 %794
          %798 = vset.pattern.permute.xlu0 0
          %799 = vperm.xlu0 %798, %v765
          %v800 = vpop.permute.xlu0 %799
          %803 = vset.pattern.permute.xlu0 0
          %804 = vperm.xlu0 %803, %v766
          %v805 = vpop.permute.xlu0 %804
          %808 = vset.pattern.permute.xlu0 0
          %809 = vperm.xlu0 %808, %v767
          %v810 = vpop.permute.xlu0 %809
          %813 = vset.pattern.permute.xlu0 0
          %814 = vperm.xlu0 %813, %v768
          %v815 = vpop.permute.xlu0 %814
          %818 = vset.pattern.permute.xlu0 0
          %819 = vperm.xlu0 %818, %v769
          %v820 = vpop.permute.xlu0 %819
          %823 = vset.pattern.permute.xlu0 0
          %824 = vperm.xlu0 %823, %v770
          %v825 = vpop.permute.xlu0 %824
          %828 = vset.pattern.permute.xlu0 0
          %829 = vperm.xlu0 %828, %v771
          %v830 = vpop.permute.xlu0 %829
          %833 = vset.pattern.permute.xlu0 0
          %834 = vperm.xlu0 %833, %v772
          %v835 = vpop.permute.xlu0 %834
          %838 = vset.pattern.permute.xlu0 0
          %839 = vperm.xlu0 %838, %v773
          %v840 = vpop.permute.xlu0 %839
          %843 = vset.pattern.permute.xlu0 0
          %844 = vperm.xlu0 %843, %v774
          %v845 = vpop.permute.xlu0 %844
          %848 = vset.pattern.permute.xlu0 0
          %849 = vperm.xlu0 %848, %v775
          %v850 = vpop.permute.xlu0 %849
          %853 = vset.pattern.permute.xlu0 0
          %854 = vperm.xlu0 %853, %v776
          %v855 = vpop.permute.xlu0 %854
          %v857 = vadd.f32 %v745, %v780
          %v858 = vadd.f32 %v746, %v785
          %v859 = vadd.f32 %v747, %v790
          %v860 = vadd.f32 %v748, %v795
          %v861 = vadd.f32 %v749, %v800
          %v862 = vadd.f32 %v750, %v805
          %v863 = vadd.f32 %v751, %v810
          %v864 = vadd.f32 %v752, %v815
          %v865 = vadd.f32 %v753, %v820
          %v866 = vadd.f32 %v754, %v825
          %v867 = vadd.f32 %v755, %v830
          %v868 = vadd.f32 %v756, %v835
          %v869 = vadd.f32 %v757, %v840
          %v870 = vadd.f32 %v758, %v845
          %v871 = vadd.f32 %v759, %v850
          %v872 = vadd.f32 %v760, %v855
          %vm873 = vcmp.ge.f32.partialorder %v857, 0.0
          %vm874 = vcmp.ge.f32.partialorder %v858, 0.0
          %vm875 = vcmp.ge.f32.partialorder %v859, 0.0
          %vm876 = vcmp.ge.f32.partialorder %v860, 0.0
          %vm877 = vcmp.ge.f32.partialorder %v861, 0.0
          %vm878 = vcmp.ge.f32.partialorder %v862, 0.0
          %vm879 = vcmp.ge.f32.partialorder %v863, 0.0
          %vm880 = vcmp.ge.f32.partialorder %v864, 0.0
          %vm881 = vcmp.ge.f32.partialorder %v865, 0.0
          %vm882 = vcmp.ge.f32.partialorder %v866, 0.0
          %vm883 = vcmp.ge.f32.partialorder %v867, 0.0
          %vm884 = vcmp.ge.f32.partialorder %v868, 0.0
          %vm885 = vcmp.ge.f32.partialorder %v869, 0.0
          %vm886 = vcmp.ge.f32.partialorder %v870, 0.0
          %vm887 = vcmp.ge.f32.partialorder %v871, 0.0
          %vm888 = vcmp.ge.f32.partialorder %v872, 0.0
          %v889 = vmul.f32 %v857, 0.01
          %v890 = vmul.f32 %v858, 0.01
          %v891 = vmul.f32 %v859, 0.01
          %v892 = vmul.f32 %v860, 0.01
          %v893 = vmul.f32 %v861, 0.01
          %v894 = vmul.f32 %v862, 0.01
          %v895 = vmul.f32 %v863, 0.01
          %v896 = vmul.f32 %v864, 0.01
          %v897 = vmul.f32 %v865, 0.01
          %v898 = vmul.f32 %v866, 0.01
          %v899 = vmul.f32 %v867, 0.01
          %v900 = vmul.f32 %v868, 0.01
          %v901 = vmul.f32 %v869, 0.01
          %v902 = vmul.f32 %v870, 0.01
          %v903 = vmul.f32 %v871, 0.01
          %v904 = vmul.f32 %v872, 0.01
          %v905 = vsel %vm873, %v857, %v889
          %v906 = vsel %vm874, %v858, %v890
          %v907 = vsel %vm875, %v859, %v891
          %v908 = vsel %vm876, %v860, %v892
          %v909 = vsel %vm877, %v861, %v893
          %v910 = vsel %vm878, %v862, %v894
          %v911 = vsel %vm879, %v863, %v895
          %v912 = vsel %vm880, %v864, %v896
          %v913 = vsel %vm881, %v865, %v897
          %v914 = vsel %vm882, %v866, %v898
          %v915 = vsel %vm883, %v867, %v899
          %v916 = vsel %vm884, %v868, %v900
          %v917 = vsel %vm885, %v869, %v901
          %v918 = vsel %vm886, %v870, %v902
          %v919 = vsel %vm887, %v871, %v903
          %v920 = vsel %vm888, %v872, %v904
          %921 = vst [vmem:[%s437] sm:$0xff] %v905
          %922 = vst [vmem:[%s437 + $0x8] sm:$0xff] %v906
          %923 = vst [vmem:[%s437 + $0x10] sm:$0xff] %v907
          %924 = vst [vmem:[%s437 + $0x18] sm:$0xff] %v908
          %925 = vst [vmem:[%s437 + $0x20] sm:$0xff] %v909
          %926 = vst [vmem:[%s437 + $0x28] sm:$0xff] %v910
          %927 = vst [vmem:[%s437 + $0x30] sm:$0xff] %v911
          %928 = vst [vmem:[%s437 + $0x38] sm:$0xff] %v912
          %929 = vst [vmem:[%s437 + $0x40] sm:$0xff] %v913
          %930 = vst [vmem:[%s437 + $0x48] sm:$0xff] %v914
          %931 = vst [vmem:[%s437 + $0x50] sm:$0xff] %v915
          %932 = vst [vmem:[%s437 + $0x58] sm:$0xff] %v916
          %933 = vst [vmem:[%s437 + $0x60] sm:$0xff] %v917
          %934 = vst [vmem:[%s437 + $0x68] sm:$0xff] %v918
          %935 = vst [vmem:[%s437 + $0x70] sm:$0xff] %v919
          %936 = vst [vmem:[%s437 + $0x78] sm:$0xff] %v920
        $region122: #{tscd_forward.10} parent=105 // pred_fallthru
          _
        %s937 = sand.u32 %s125, 1
        %s938 = sand.u32 %s125, 1
        %s939 = smul.addr %s938, 128
        %s940 = scalar_lea.vmem [#allocation5], %s939
        // Predicated region
        $region123: #{tscd_forward.10} parent=105 // pred_check
          %p941 = pneg %p135
        $region124: #{tscd_forward.10} parent=105 // pred_check_branch
          %943 = sbr.rel (%p941) target = $region126
        $region125: #{tscd_forward.10} parent=105 // pred_region
          %s944 = smul.u32 16, %s19
          %s945 = smul.addr %s944, 2
          %s946 = sadd.s32 %s20, %s945
          %s947 = smul.addr %s946, 8
          %s948 = scalar_lea.vmem %s3, %s947
          // Predicated region
          $region127: #{tscd_forward.10} parent=125 // pred_check
            _
          $region128: #{tscd_forward.10} parent=125 // pred_check_branch
            %950 = sbr.rel (0) target = $region130
          $region129: #{tscd_forward.10} parent=125 // pred_region
            // Predicated region
            $region131: #{tscd_forward.10} parent=129 // pred_check
              _
            $region132: #{tscd_forward.10} parent=129 // pred_check_branch
              %952 = sbr.rel (0) target = $region134
            $region133: #{tscd_forward.10} parent=129 // pred_region
              // Predicated region
              $region146: #{tscd_forward.10} parent=133 // pred_check
                _
              $region147: #{tscd_forward.10} parent=133 // pred_check_branch
                %998 = sbr.rel (0) target = $region149
              $region148: #{tscd_forward.10} parent=133 // pred_region
                loop: start=0, step=1, limit=1
                $region150: #{tscd_forward.10} parent=148 // loop_pre_header
                  _
                $region151: #{tscd_forward.10} parent=148 // loop_header
                  %s1000 = sphi 0, %s1004
                  %p1001 = scmp.ge.s32.totalorder %s1000, 1
                  %s1005 = sphi %s940, %s940
                  %s1006 = sphi %s948, %s948
                $region152: #{tscd_forward.10} parent=148 // loop_header_branch
                  %1003 = sbr.rel (%p1001) target = $region156
                $region153: #{tscd_forward.10} parent=148 // loop_body
                  %v1007 = vld [vmem:[%s1005] sm:$0xff]
                  %1008 = vst [vmem:[%s1006] sm:$0xff] %v1007
                  %v1009 = vld [vmem:[%s1005 + $0x8] sm:$0xff]
                  %1010 = vst [vmem:[%s1006 + $0x10] sm:$0xff] %v1009
                  %v1011 = vld [vmem:[%s1005 + $0x10] sm:$0xff]
                  %1012 = vst [vmem:[%s1006 + $0x20] sm:$0xff] %v1011
                  %v1013 = vld [vmem:[%s1005 + $0x18] sm:$0xff]
                  %1014 = vst [vmem:[%s1006 + $0x30] sm:$0xff] %v1013
                  %v1015 = vld [vmem:[%s1005 + $0x20] sm:$0xff]
                  %1016 = vst [vmem:[%s1006 + $0x40] sm:$0xff] %v1015
                  %v1017 = vld [vmem:[%s1005 + $0x28] sm:$0xff]
                  %1018 = vst [vmem:[%s1006 + $0x50] sm:$0xff] %v1017
                  %v1019 = vld [vmem:[%s1005 + $0x30] sm:$0xff]
                  %1020 = vst [vmem:[%s1006 + $0x60] sm:$0xff] %v1019
                  %v1021 = vld [vmem:[%s1005 + $0x38] sm:$0xff]
                  %1022 = vst [vmem:[%s1006 + $0x70] sm:$0xff] %v1021
                  %v1023 = vld [vmem:[%s1005 + $0x40] sm:$0xff]
                  %1024 = vst [vmem:[%s1006 + $0x80] sm:$0xff] %v1023
                  %v1025 = vld [vmem:[%s1005 + $0x48] sm:$0xff]
                  %1026 = vst [vmem:[%s1006 + $0x90] sm:$0xff] %v1025
                  %v1027 = vld [vmem:[%s1005 + $0x50] sm:$0xff]
                  %1028 = vst [vmem:[%s1006 + $0xa0] sm:$0xff] %v1027
                  %v1029 = vld [vmem:[%s1005 + $0x58] sm:$0xff]
                  %1030 = vst [vmem:[%s1006 + $0xb0] sm:$0xff] %v1029
                  %v1031 = vld [vmem:[%s1005 + $0x60] sm:$0xff]
                  %1032 = vst [vmem:[%s1006 + $0xc0] sm:$0xff] %v1031
                  %v1033 = vld [vmem:[%s1005 + $0x68] sm:$0xff]
                  %1034 = vst [vmem:[%s1006 + $0xd0] sm:$0xff] %v1033
                  %v1035 = vld [vmem:[%s1005 + $0x70] sm:$0xff]
                  %1036 = vst [vmem:[%s1006 + $0xe0] sm:$0xff] %v1035
                  %v1037 = vld [vmem:[%s1005 + $0x78] sm:$0xff]
                  %1038 = vst [vmem:[%s1006 + $0xf0] sm:$0xff] %v1037
                $region154: #{tscd_forward.10} parent=148 // loop_footer
                  %s1004 = sadd.s32 1, %s1000
                $region155: #{tscd_forward.10} parent=148 // loop_footer_branch
                  %999 = sbr.rel target = $region151
                $region156: #{tscd_forward.10} parent=148 // loop_exit
                  _
              $region149: #{tscd_forward.10} parent=133 // pred_fallthru
                _
              // Predicated region
              $region157: #{tscd_forward.10} parent=133 // pred_check
                _
              $region158: #{tscd_forward.10} parent=133 // pred_check_branch
                %1040 = sbr.rel target = $region160
              $region159: #{tscd_forward.10} parent=133 // pred_region
                _
              $region160: #{tscd_forward.10} parent=133 // pred_fallthru
                _
            $region134: #{tscd_forward.10} parent=129 // pred_fallthru
              _
            // Predicated region
            $region135: #{tscd_forward.10} parent=129 // pred_check
              _
            $region136: #{tscd_forward.10} parent=129 // pred_check_branch
              %954 = sbr.rel target = $region138
            $region137: #{tscd_forward.10} parent=129 // pred_region
              %s956 = ssub.s32 256, 1
              loop: start=0, step=1, limit=1
              $region139: #{tscd_forward.10} parent=137 // loop_pre_header
                _
              $region140: #{tscd_forward.10} parent=137 // loop_header
                %s958 = sphi 0, %s962
                %p959 = scmp.ge.s32.totalorder %s958, 1
                %s963 = sphi %s940, %s940
                %s964 = sphi %s948, %s948
              $region141: #{tscd_forward.10} parent=137 // loop_header_branch
                %961 = sbr.rel (%p959) target = $region145
              $region142: #{tscd_forward.10} parent=137 // loop_body
                %v965 = vld [vmem:[%s963] sm:%s956]
                %966 = vst [vmem:[%s964] sm:%s956] %v965
                %v967 = vld [vmem:[%s963 + $0x8] sm:%s956]
                %968 = vst [vmem:[%s964 + $0x10] sm:%s956] %v967
                %v969 = vld [vmem:[%s963 + $0x10] sm:%s956]
                %970 = vst [vmem:[%s964 + $0x20] sm:%s956] %v969
                %v971 = vld [vmem:[%s963 + $0x18] sm:%s956]
                %972 = vst [vmem:[%s964 + $0x30] sm:%s956] %v971
                %v973 = vld [vmem:[%s963 + $0x20] sm:%s956]
                %974 = vst [vmem:[%s964 + $0x40] sm:%s956] %v973
                %v975 = vld [vmem:[%s963 + $0x28] sm:%s956]
                %976 = vst [vmem:[%s964 + $0x50] sm:%s956] %v975
                %v977 = vld [vmem:[%s963 + $0x30] sm:%s956]
                %978 = vst [vmem:[%s964 + $0x60] sm:%s956] %v977
                %v979 = vld [vmem:[%s963 + $0x38] sm:%s956]
                %980 = vst [vmem:[%s964 + $0x70] sm:%s956] %v979
                %v981 = vld [vmem:[%s963 + $0x40] sm:%s956]
                %982 = vst [vmem:[%s964 + $0x80] sm:%s956] %v981
                %v983 = vld [vmem:[%s963 + $0x48] sm:%s956]
                %984 = vst [vmem:[%s964 + $0x90] sm:%s956] %v983
                %v985 = vld [vmem:[%s963 + $0x50] sm:%s956]
                %986 = vst [vmem:[%s964 + $0xa0] sm:%s956] %v985
                %v987 = vld [vmem:[%s963 + $0x58] sm:%s956]
                %988 = vst [vmem:[%s964 + $0xb0] sm:%s956] %v987
                %v989 = vld [vmem:[%s963 + $0x60] sm:%s956]
                %990 = vst [vmem:[%s964 + $0xc0] sm:%s956] %v989
                %v991 = vld [vmem:[%s963 + $0x68] sm:%s956]
                %992 = vst [vmem:[%s964 + $0xd0] sm:%s956] %v991
                %v993 = vld [vmem:[%s963 + $0x70] sm:%s956]
                %994 = vst [vmem:[%s964 + $0xe0] sm:%s956] %v993
                %v995 = vld [vmem:[%s963 + $0x78] sm:%s956]
                %996 = vst [vmem:[%s964 + $0xf0] sm:%s956] %v995
              $region143: #{tscd_forward.10} parent=137 // loop_footer
                %s962 = sadd.s32 1, %s958
              $region144: #{tscd_forward.10} parent=137 // loop_footer_branch
                %957 = sbr.rel target = $region140
              $region145: #{tscd_forward.10} parent=137 // loop_exit
                _
            $region138: #{tscd_forward.10} parent=129 // pred_fallthru
              _
          $region130: #{tscd_forward.10} parent=125 // pred_fallthru
            _
          %1041 = vnop
        $region126: #{tscd_forward.10} parent=105 // pred_fallthru
          _
      $region106: #{tscd_forward.10} parent=5 // pred_fallthru
        _
      %p1042 = scmp.le.s32.totalorder 2, %s9
      // Predicated region
      $region161: #{tscd_forward.10} parent=5 // pred_check
        %p1043 = pneg %p1042
      $region162: #{tscd_forward.10} parent=5 // pred_check_branch
        %1045 = sbr.rel (%p1043) target = $region164
      $region163: #{tscd_forward.10} parent=5 // pred_region
        %s1046 = ssub.s32 %s9, 2
        // Predicated region
        $region165: #{tscd_forward.10} parent=163 // pred_check
          %p1047 = pneg %p141
        $region166: #{tscd_forward.10} parent=163 // pred_check_branch
          %1049 = sbr.rel (%p1047) target = $region168
        $region167: #{tscd_forward.10} parent=163 // pred_region
          %s1050 = sand.u32 %s126, 1
          %s1051 = sand.u32 %s126, 1
          %s1052 = smul.addr %s1051, 128
          %s1053 = scalar_lea.vmem [#allocation5], %s1052
        $region168: #{tscd_forward.10} parent=163 // pred_fallthru
          _
      $region164: #{tscd_forward.10} parent=5 // pred_fallthru
        _
    $region6: #{tscd_forward.10} parent=1 // loop_footer
      %s13 = sadd.s32 1, %s9
    $region7: #{tscd_forward.10} parent=1 // loop_footer_branch
      %8 = sbr.rel target = $region3
    $region8: #{tscd_forward.10} parent=1 // loop_exit
      _

// kernel: tscd_forward.11
$region0: #{tscd_forward.11}
  #allocation0 [shape = 'u32[]', space=smem, size = 0x4, offset = 0x4, fixed_abs, tag = 'smem constant byte address 0x4 - core index']
  #allocation1 [shape = 'u32[144,128]{1,0:T(1,128)}', space=vmem, size = 0x12000, scoped, tag = 'internal scratch']
  #allocation2 [shape = 'f32[128,128]{1,0:T(8,128)}', space=vmem, size = 0x10000, scoped, tag = 'scratch operand']
  %s0 = inlined_call_operand.vmem [shape: bf16[128,256], index: 0, kind: input, shape index: {}]
  %s1 = inlined_call_operand.vmem [shape: bf16[256,256], index: 1, kind: input, shape index: {}]
  %s2 = inlined_call_operand.vmem [shape: f32[1,256], index: 2, kind: input, shape index: {}]
  %s3 = inlined_call_operand.vmem [shape: f32[128,256], index: 3, kind: output, shape index: {}]
  %s4 = sld [smem:[#allocation0]]
  $region169: #{tscd_forward.11} parent=0
    _
  %s6 = ssub.s32 1, %s4
  %s7 = scalar_select 0, %s6, %s4
  $region1: #{tscd_forward.11} parent=0
    #allocation3 [shape = 'u8[65536]{0}', space=vmem, size = 0x10000, scoped, tag = 'input window, operand 0']
    #allocation4 [shape = 'u8[65536]{0}', space=vmem, size = 0x10000, scoped, tag = 'input window, operand 1']
    #allocation5 [shape = 'u8[131072]{0}', space=vmem, size = 0x20000, scoped, tag = 'output window, operand 0']
    loop: start=0, step=1, limit=6
    $region2: #{tscd_forward.11} parent=1 // loop_pre_header
      _
    $region3: #{tscd_forward.11} parent=1 // loop_header
      %s9 = sphi 0, %s13
      %p10 = scmp.ge.s32.totalorder %s9, 6
      %s16 = sphi 0, %s35
      %s17 = sphi 0, %s31
      %s18 = sphi 0, %s27
      %s19 = sphi 0, %s16
      %s20 = sphi 0, %s17
      %s21 = sphi 0, %s18
      %s22 = sphi 0, %s19
      %s23 = sphi 0, %s20
      %s24 = sphi 0, %s21
      %s40 = sphi 0, %s42
      %s43 = sphi 0, %s40
      %s44 = sphi 0, %s43
      %s60 = sphi 0, %s44
      %s68 = sphi 0, %s70
      %s71 = sphi 0, %s68
      %s72 = sphi 0, %s71
      %s88 = sphi 0, %s72
      %s94 = sphi 0, %s96
      %s97 = sphi 0, %s94
      %s98 = sphi 0, %s97
      %s114 = sphi 0, %s98
      %s122 = sphi 0, %s124
      %s125 = sphi 0, %s122
      %s126 = sphi 0, %s125
      %s142 = sphi 0, %s126
    $region4: #{tscd_forward.11} parent=1 // loop_header_branch
      %12 = sbr.rel (%p10) target = $region8
    $region5: #{tscd_forward.11} parent=1 // loop_body
      %s14 = ssub.s32 %s9, 1
      %s15 = ssub.s32 %s9, 2
      %s25 = sadd.s32 1, %s18
      %p26 = scmp.ge.s32.totalorder %s25, 2
      %s27 = scalar_select %p26, 0, %s25
      %s28 = sadd.s32 1, %s17
      %s29 = scalar_select %p26, %s28, %s17
      %p30 = scmp.ge.s32.totalorder %s29, 2
      %s31 = scalar_select %p30, 0, %s29
      %s32 = sadd.s32 1, %s16
      %s33 = scalar_select %p30, %s32, %s16
      %p34 = scmp.ge.s32.totalorder %s33, 1
      %s35 = scalar_select %p34, 0, %s33
      %s36 = ssub.s32 %s16, %s35
      %s37 = ssub.s32 %s18, %s27
      %s38 = sor.u32 %s36, %s37
      %p39 = scmp.eq.s32.totalorder %s38, 0
      %s41 = sadd.s32 %s40, 1
      %s42 = scalar_select %p39, %s40, %s41
      %p45 = pneg %p39
      %p46 = scmp.eq.s32.totalorder %s9, 3
      %p47 = por %p45, %p46
      %p48 = scmp.ne.s32.totalorder %s40, %s43
      %p49 = scmp.eq.s32.totalorder %s9, 0
      %p50 = por %p48, %p49
      %p51 = scmp.ne.s32.totalorder %s40, %s43
      %p52 = scmp.eq.s32.totalorder %s14, 3
      %p53 = por %p51, %p52
      %p54 = scmp.ne.s32.totalorder %s43, %s44
      %p55 = scmp.eq.s32.totalorder %s14, 0
      %p56 = por %p54, %p55
      %p57 = scmp.ne.s32.totalorder %s43, %s44
      %p58 = scmp.eq.s32.totalorder %s15, 3
      %p59 = por %p57, %p58
      %p61 = scmp.ne.s32.totalorder %s44, %s60
      %p62 = scmp.eq.s32.totalorder %s15, 0
      %p63 = por %p61, %p62
      %s64 = ssub.s32 %s18, %s27
      %s65 = ssub.s32 %s17, %s31
      %s66 = sor.u32 %s64, %s65
      %p67 = scmp.eq.s32.totalorder %s66, 0
      %s69 = sadd.s32 %s68, 1
      %s70 = scalar_select %p67, %s68, %s69
      %p73 = pneg %p67
      %p74 = scmp.eq.s32.totalorder %s9, 3
      %p75 = por %p73, %p74
      %p76 = scmp.ne.s32.totalorder %s68, %s71
      %p77 = scmp.eq.s32.totalorder %s9, 0
      %p78 = por %p76, %p77
      %p79 = scmp.ne.s32.totalorder %s68, %s71
      %p80 = scmp.eq.s32.totalorder %s14, 3
      %p81 = por %p79, %p80
      %p82 = scmp.ne.s32.totalorder %s71, %s72
      %p83 = scmp.eq.s32.totalorder %s14, 0
      %p84 = por %p82, %p83
      %p85 = scmp.ne.s32.totalorder %s71, %s72
      %p86 = scmp.eq.s32.totalorder %s15, 3
      %p87 = por %p85, %p86
      %p89 = scmp.ne.s32.totalorder %s72, %s88
      %p90 = scmp.eq.s32.totalorder %s15, 0
      %p91 = por %p89, %p90
      %s92 = ssub.s32 %s17, %s31
      %p93 = scmp.eq.s32.totalorder %s92, 0
      %s95 = sadd.s32 %s94, 1
      %s96 = scalar_select %p93, %s94, %s95
      %p99 = pneg %p93
      %p100 = scmp.eq.s32.totalorder %s9, 3
      %p101 = por %p99, %p100
      %p102 = scmp.ne.s32.totalorder %s94, %s97
      %p103 = scmp.eq.s32.totalorder %s9, 0
      %p104 = por %p102, %p103
      %p105 = scmp.ne.s32.totalorder %s94, %s97
      %p106 = scmp.eq.s32.totalorder %s14, 3
      %p107 = por %p105, %p106
      %p108 = scmp.ne.s32.totalorder %s97, %s98
      %p109 = scmp.eq.s32.totalorder %s14, 0
      %p110 = por %p108, %p109
      %p111 = scmp.ne.s32.totalorder %s97, %s98
      %p112 = scmp.eq.s32.totalorder %s15, 3
      %p113 = por %p111, %p112
      %p115 = scmp.ne.s32.totalorder %s98, %s114
      %p116 = scmp.eq.s32.totalorder %s15, 0
      %p117 = por %p115, %p116
      %s118 = ssub.s32 %s16, %s35
      %s119 = ssub.s32 %s17, %s31
      %s120 = sor.u32 %s118, %s119
      %p121 = scmp.eq.s32.totalorder %s120, 0
      %s123 = sadd.s32 %s122, 1
      %s124 = scalar_select %p121, %s122, %s123
      %p127 = pneg %p121
      %p128 = scmp.eq.s32.totalorder %s9, 3
      %p129 = por %p127, %p128
      %p130 = scmp.ne.s32.totalorder %s122, %s125
      %p131 = scmp.eq.s32.totalorder %s9, 0
      %p132 = por %p130, %p131
      %p133 = scmp.ne.s32.totalorder %s122, %s125
      %p134 = scmp.eq.s32.totalorder %s14, 3
      %p135 = por %p133, %p134
      %p136 = scmp.ne.s32.totalorder %s125, %s126
      %p137 = scmp.eq.s32.totalorder %s14, 0
      %p138 = por %p136, %p137
      %p139 = scmp.ne.s32.totalorder %s125, %s126
      %p140 = scmp.eq.s32.totalorder %s15, 3
      %p141 = por %p139, %p140
      %p143 = scmp.ne.s32.totalorder %s126, %s142
      %p144 = scmp.eq.s32.totalorder %s15, 0
      %p145 = por %p143, %p144
      %p146 = scmp.le.s32.totalorder 1, %s9
      %p147 = scmp.lt.s32.totalorder %s9, 5
      %p148 = pnand %p146, %p147
      %p149 = pneg %p148
      // Predicated region
      $region9: #{tscd_forward.11} parent=5 // pred_check
        _
      $region10: #{tscd_forward.11} parent=5 // pred_check_branch
        %151 = sbr.rel (%p148) target = $region12
      $region11: #{tscd_forward.11} parent=5 // pred_region
        %s152 = ssub.s32 %s9, 1
      $region12: #{tscd_forward.11} parent=5 // pred_fallthru
        _
      %p153 = scmp.lt.s32.totalorder %s9, 4
      // Predicated region
      $region13: #{tscd_forward.11} parent=5 // pred_check
        %p154 = pneg %p153
      $region14: #{tscd_forward.11} parent=5 // pred_check_branch
        %156 = sbr.rel (%p154) target = $region16
      $region15: #{tscd_forward.11} parent=5 // pred_region
        // Predicated region
        $region17: #{tscd_forward.11} parent=15 // pred_check
          %p157 = pneg %p50
        $region18: #{tscd_forward.11} parent=15 // pred_check_branch
          %159 = sbr.rel (%p157) target = $region20
        $region19: #{tscd_forward.11} parent=15 // pred_region
          %s160 = sand.u32 %s40, 1
          %s161 = sand.u32 %s40, 1
          %s162 = smul.addr %s161, 64
          %s163 = scalar_lea.vmem [#allocation3], %s162
          %s164 = smul.u32 16, %s16
          %s165 = smul.addr %s164, 2
          %s166 = sadd.s32 %s18, %s165
          %s167 = smul.addr %s166, 4
          %s168 = scalar_lea.vmem %s0, %s167
          // Predicated region
          $region21: #{tscd_forward.11} parent=19 // pred_check
            _
          $region22: #{tscd_forward.11} parent=19 // pred_check_branch
            %170 = sbr.rel (0) target = $region24
          $region23: #{tscd_forward.11} parent=19 // pred_region
            // Predicated region
            $region25: #{tscd_forward.11} parent=23 // pred_check
              _
            $region26: #{tscd_forward.11} parent=23 // pred_check_branch
              %172 = sbr.rel target = $region28
            $region27: #{tscd_forward.11} parent=23 // pred_region
              // Predicated region
              $region40: #{tscd_forward.11} parent=27 // pred_check
                _
              $region41: #{tscd_forward.11} parent=27 // pred_check_branch
                %218 = sbr.rel (0) target = $region43
              $region42: #{tscd_forward.11} parent=27 // pred_region
                loop: start=0, step=1, limit=1
                $region44: #{tscd_forward.11} parent=42 // loop_pre_header
                  _
                $region45: #{tscd_forward.11} parent=42 // loop_header
                  %s220 = sphi 0, %s224
                  %p221 = scmp.ge.s32.totalorder %s220, 1
                  %s225 = sphi %s168, %s168
                  %s226 = sphi %s163, %s163
                $region46: #{tscd_forward.11} parent=42 // loop_header_branch
                  %223 = sbr.rel (%p221) target = $region50
                $region47: #{tscd_forward.11} parent=42 // loop_body
                  _
                $region48: #{tscd_forward.11} parent=42 // loop_footer
                  %s224 = sadd.s32 1, %s220
                $region49: #{tscd_forward.11} parent=42 // loop_footer_branch
                  %219 = sbr.rel target = $region45
                $region50: #{tscd_forward.11} parent=42 // loop_exit
                  _
                %s228 = ssub.s32 16, 1
                loop: start=0, step=1, limit=1
                $region51: #{tscd_forward.11} parent=42 // loop_pre_header
                  _
                $region52: #{tscd_forward.11} parent=42 // loop_header
                  %s230 = sphi 0, %s234
                  %p231 = scmp.ge.s32.totalorder %s230, 1
                  %s235 = sphi %s168, %s168
                  %s236 = sphi %s163, %s163
                $region53: #{tscd_forward.11} parent=42 // loop_header_branch
                  %233 = sbr.rel (%p231) target = $region57
                $region54: #{tscd_forward.11} parent=42 // loop_body
                  %v237 = vld [vmem:[%s235] sm:%s228]
                  %238 = vst [vmem:[%s236] sm:%s228] %v237
                  %v239 = vld [vmem:[%s235 + $0x8] sm:%s228]
                  %240 = vst [vmem:[%s236 + $0x4] sm:%s228] %v239
                  %v241 = vld [vmem:[%s235 + $0x10] sm:%s228]
                  %242 = vst [vmem:[%s236 + $0x8] sm:%s228] %v241
                  %v243 = vld [vmem:[%s235 + $0x18] sm:%s228]
                  %244 = vst [vmem:[%s236 + $0xc] sm:%s228] %v243
                  %v245 = vld [vmem:[%s235 + $0x20] sm:%s228]
                  %246 = vst [vmem:[%s236 + $0x10] sm:%s228] %v245
                  %v247 = vld [vmem:[%s235 + $0x28] sm:%s228]
                  %248 = vst [vmem:[%s236 + $0x14] sm:%s228] %v247
                  %v249 = vld [vmem:[%s235 + $0x30] sm:%s228]
                  %250 = vst [vmem:[%s236 + $0x18] sm:%s228] %v249
                  %v251 = vld [vmem:[%s235 + $0x38] sm:%s228]
                  %252 = vst [vmem:[%s236 + $0x1c] sm:%s228] %v251
                  %v253 = vld [vmem:[%s235 + $0x40] sm:%s228]
                  %254 = vst [vmem:[%s236 + $0x20] sm:%s228] %v253
                  %v255 = vld [vmem:[%s235 + $0x48] sm:%s228]
                  %256 = vst [vmem:[%s236 + $0x24] sm:%s228] %v255
                  %v257 = vld [vmem:[%s235 + $0x50] sm:%s228]
                  %258 = vst [vmem:[%s236 + $0x28] sm:%s228] %v257
                  %v259 = vld [vmem:[%s235 + $0x58] sm:%s228]
                  %260 = vst [vmem:[%s236 + $0x2c] sm:%s228] %v259
                  %v261 = vld [vmem:[%s235 + $0x60] sm:%s228]
                  %262 = vst [vmem:[%s236 + $0x30] sm:%s228] %v261
                  %v263 = vld [vmem:[%s235 + $0x68] sm:%s228]
                  %264 = vst [vmem:[%s236 + $0x34] sm:%s228] %v263
                  %v265 = vld [vmem:[%s235 + $0x70] sm:%s228]
                  %266 = vst [vmem:[%s236 + $0x38] sm:%s228] %v265
                  %v267 = vld [vmem:[%s235 + $0x78] sm:%s228]
                  %268 = vst [vmem:[%s236 + $0x3c] sm:%s228] %v267
                $region55: #{tscd_forward.11} parent=42 // loop_footer
                  %s234 = sadd.s32 1, %s230
                $region56: #{tscd_forward.11} parent=42 // loop_footer_branch
                  %229 = sbr.rel target = $region52
                $region57: #{tscd_forward.11} parent=42 // loop_exit
                  _
              $region43: #{tscd_forward.11} parent=27 // pred_fallthru
                _
            $region28: #{tscd_forward.11} parent=23 // pred_fallthru
              _
            // Predicated region
            $region29: #{tscd_forward.11} parent=23 // pred_check
              _
            $region30: #{tscd_forward.11} parent=23 // pred_check_branch
              %174 = sbr.rel (0) target = $region32
            $region31: #{tscd_forward.11} parent=23 // pred_region
              %s176 = ssub.s32 16, 1
              loop: start=0, step=1, limit=1
              $region33: #{tscd_forward.11} parent=31 // loop_pre_header
                _
              $region34: #{tscd_forward.11} parent=31 // loop_header
                %s178 = sphi 0, %s182
                %p179 = scmp.ge.s32.totalorder %s178, 1
                %s183 = sphi %s168, %s168
                %s184 = sphi %s163, %s163
              $region35: #{tscd_forward.11} parent=31 // loop_header_branch
                %181 = sbr.rel (%p179) target = $region39
              $region36: #{tscd_forward.11} parent=31 // loop_body
                %v185 = vld [vmem:[%s183] sm:%s176]
                %186 = vst [vmem:[%s184] sm:%s176] %v185
                %v187 = vld [vmem:[%s183 + $0x8] sm:%s176]
                %188 = vst [vmem:[%s184 + $0x4] sm:%s176] %v187
                %v189 = vld [vmem:[%s183 + $0x10] sm:%s176]
                %190 = vst [vmem:[%s184 + $0x8] sm:%s176] %v189
                %v191 = vld [vmem:[%s183 + $0x18] sm:%s176]
                %192 = vst [vmem:[%s184 + $0xc] sm:%s176] %v191
                %v193 = vld [vmem:[%s183 + $0x20] sm:%s176]
                %194 = vst [vmem:[%s184 + $0x10] sm:%s176] %v193
                %v195 = vld [vmem:[%s183 + $0x28] sm:%s176]
                %196 = vst [vmem:[%s184 + $0x14] sm:%s176] %v195
                %v197 = vld [vmem:[%s183 + $0x30] sm:%s176]
                %198 = vst [vmem:[%s184 + $0x18] sm:%s176] %v197
                %v199 = vld [vmem:[%s183 + $0x38] sm:%s176]
                %200 = vst [vmem:[%s184 + $0x1c] sm:%s176] %v199
                %v201 = vld [vmem:[%s183 + $0x40] sm:%s176]
                %202 = vst [vmem:[%s184 + $0x20] sm:%s176] %v201
                %v203 = vld [vmem:[%s183 + $0x48] sm:%s176]
                %204 = vst [vmem:[%s184 + $0x24] sm:%s176] %v203
                %v205 = vld [vmem:[%s183 + $0x50] sm:%s176]
                %206 = vst [vmem:[%s184 + $0x28] sm:%s176] %v205
                %v207 = vld [vmem:[%s183 + $0x58] sm:%s176]
                %208 = vst [vmem:[%s184 + $0x2c] sm:%s176] %v207
                %v209 = vld [vmem:[%s183 + $0x60] sm:%s176]
                %210 = vst [vmem:[%s184 + $0x30] sm:%s176] %v209
                %v211 = vld [vmem:[%s183 + $0x68] sm:%s176]
                %212 = vst [vmem:[%s184 + $0x34] sm:%s176] %v211
                %v213 = vld [vmem:[%s183 + $0x70] sm:%s176]
                %214 = vst [vmem:[%s184 + $0x38] sm:%s176] %v213
                %v215 = vld [vmem:[%s183 + $0x78] sm:%s176]
                %216 = vst [vmem:[%s184 + $0x3c] sm:%s176] %v215
              $region37: #{tscd_forward.11} parent=31 // loop_footer
                %s182 = sadd.s32 1, %s178
              $region38: #{tscd_forward.11} parent=31 // loop_footer_branch
                %177 = sbr.rel target = $region34
              $region39: #{tscd_forward.11} parent=31 // loop_exit
                _
            $region32: #{tscd_forward.11} parent=23 // pred_fallthru
              _
          $region24: #{tscd_forward.11} parent=19 // pred_fallthru
            _
          %269 = vnop
        $region20: #{tscd_forward.11} parent=15 // pred_fallthru
          _
        // Predicated region
        $region58: #{tscd_forward.11} parent=15 // pred_check
          %p270 = pneg %p78
        $region59: #{tscd_forward.11} parent=15 // pred_check_branch
          %272 = sbr.rel (%p270) target = $region61
        $region60: #{tscd_forward.11} parent=15 // pred_region
          %s273 = sand.u32 %s68, 1
          %s274 = sand.u32 %s68, 1
          %s275 = smul.addr %s274, 64
          %s276 = scalar_lea.vmem [#allocation4], %s275
          %s277 = smul.u32 16, %s18
          %s278 = smul.addr %s277, 2
          %s279 = sadd.s32 %s17, %s278
          %s280 = smul.addr %s279, 4
          %s281 = scalar_lea.vmem %s1, %s280
          // Predicated region
          $region62: #{tscd_forward.11} parent=60 // pred_check
            _
          $region63: #{tscd_forward.11} parent=60 // pred_check_branch
            %283 = sbr.rel (0) target = $region65
          $region64: #{tscd_forward.11} parent=60 // pred_region
            // Predicated region
            $region66: #{tscd_forward.11} parent=64 // pred_check
              _
            $region67: #{tscd_forward.11} parent=64 // pred_check_branch
              %285 = sbr.rel target = $region69
            $region68: #{tscd_forward.11} parent=64 // pred_region
              // Predicated region
              $region81: #{tscd_forward.11} parent=68 // pred_check
                _
              $region82: #{tscd_forward.11} parent=68 // pred_check_branch
                %331 = sbr.rel (0) target = $region84
              $region83: #{tscd_forward.11} parent=68 // pred_region
                loop: start=0, step=1, limit=1
                $region85: #{tscd_forward.11} parent=83 // loop_pre_header
                  _
                $region86: #{tscd_forward.11} parent=83 // loop_header
                  %s333 = sphi 0, %s337
                  %p334 = scmp.ge.s32.totalorder %s333, 1
                  %s338 = sphi %s281, %s281
                  %s339 = sphi %s276, %s276
                $region87: #{tscd_forward.11} parent=83 // loop_header_branch
                  %336 = sbr.rel (%p334) target = $region91
                $region88: #{tscd_forward.11} parent=83 // loop_body
                  _
                $region89: #{tscd_forward.11} parent=83 // loop_footer
                  %s337 = sadd.s32 1, %s333
                $region90: #{tscd_forward.11} parent=83 // loop_footer_branch
                  %332 = sbr.rel target = $region86
                $region91: #{tscd_forward.11} parent=83 // loop_exit
                  _
                %s341 = ssub.s32 16, 1
                loop: start=0, step=1, limit=1
                $region92: #{tscd_forward.11} parent=83 // loop_pre_header
                  _
                $region93: #{tscd_forward.11} parent=83 // loop_header
                  %s343 = sphi 0, %s347
                  %p344 = scmp.ge.s32.totalorder %s343, 1
                  %s348 = sphi %s281, %s281
                  %s349 = sphi %s276, %s276
                $region94: #{tscd_forward.11} parent=83 // loop_header_branch
                  %346 = sbr.rel (%p344) target = $region98
                $region95: #{tscd_forward.11} parent=83 // loop_body
                  %v350 = vld [vmem:[%s348] sm:%s341]
                  %351 = vst [vmem:[%s349] sm:%s341] %v350
                  %v352 = vld [vmem:[%s348 + $0x8] sm:%s341]
                  %353 = vst [vmem:[%s349 + $0x4] sm:%s341] %v352
                  %v354 = vld [vmem:[%s348 + $0x10] sm:%s341]
                  %355 = vst [vmem:[%s349 + $0x8] sm:%s341] %v354
                  %v356 = vld [vmem:[%s348 + $0x18] sm:%s341]
                  %357 = vst [vmem:[%s349 + $0xc] sm:%s341] %v356
                  %v358 = vld [vmem:[%s348 + $0x20] sm:%s341]
                  %359 = vst [vmem:[%s349 + $0x10] sm:%s341] %v358
                  %v360 = vld [vmem:[%s348 + $0x28] sm:%s341]
                  %361 = vst [vmem:[%s349 + $0x14] sm:%s341] %v360
                  %v362 = vld [vmem:[%s348 + $0x30] sm:%s341]
                  %363 = vst [vmem:[%s349 + $0x18] sm:%s341] %v362
                  %v364 = vld [vmem:[%s348 + $0x38] sm:%s341]
                  %365 = vst [vmem:[%s349 + $0x1c] sm:%s341] %v364
                  %v366 = vld [vmem:[%s348 + $0x40] sm:%s341]
                  %367 = vst [vmem:[%s349 + $0x20] sm:%s341] %v366
                  %v368 = vld [vmem:[%s348 + $0x48] sm:%s341]
                  %369 = vst [vmem:[%s349 + $0x24] sm:%s341] %v368
                  %v370 = vld [vmem:[%s348 + $0x50] sm:%s341]
                  %371 = vst [vmem:[%s349 + $0x28] sm:%s341] %v370
                  %v372 = vld [vmem:[%s348 + $0x58] sm:%s341]
                  %373 = vst [vmem:[%s349 + $0x2c] sm:%s341] %v372
                  %v374 = vld [vmem:[%s348 + $0x60] sm:%s341]
                  %375 = vst [vmem:[%s349 + $0x30] sm:%s341] %v374
                  %v376 = vld [vmem:[%s348 + $0x68] sm:%s341]
                  %377 = vst [vmem:[%s349 + $0x34] sm:%s341] %v376
                  %v378 = vld [vmem:[%s348 + $0x70] sm:%s341]
                  %379 = vst [vmem:[%s349 + $0x38] sm:%s341] %v378
                  %v380 = vld [vmem:[%s348 + $0x78] sm:%s341]
                  %381 = vst [vmem:[%s349 + $0x3c] sm:%s341] %v380
                $region96: #{tscd_forward.11} parent=83 // loop_footer
                  %s347 = sadd.s32 1, %s343
                $region97: #{tscd_forward.11} parent=83 // loop_footer_branch
                  %342 = sbr.rel target = $region93
                $region98: #{tscd_forward.11} parent=83 // loop_exit
                  _
              $region84: #{tscd_forward.11} parent=68 // pred_fallthru
                _
            $region69: #{tscd_forward.11} parent=64 // pred_fallthru
              _
            // Predicated region
            $region70: #{tscd_forward.11} parent=64 // pred_check
              _
            $region71: #{tscd_forward.11} parent=64 // pred_check_branch
              %287 = sbr.rel (0) target = $region73
            $region72: #{tscd_forward.11} parent=64 // pred_region
              %s289 = ssub.s32 16, 1
              loop: start=0, step=1, limit=1
              $region74: #{tscd_forward.11} parent=72 // loop_pre_header
                _
              $region75: #{tscd_forward.11} parent=72 // loop_header
                %s291 = sphi 0, %s295
                %p292 = scmp.ge.s32.totalorder %s291, 1
                %s296 = sphi %s281, %s281
                %s297 = sphi %s276, %s276
              $region76: #{tscd_forward.11} parent=72 // loop_header_branch
                %294 = sbr.rel (%p292) target = $region80
              $region77: #{tscd_forward.11} parent=72 // loop_body
                %v298 = vld [vmem:[%s296] sm:%s289]
                %299 = vst [vmem:[%s297] sm:%s289] %v298
                %v300 = vld [vmem:[%s296 + $0x8] sm:%s289]
                %301 = vst [vmem:[%s297 + $0x4] sm:%s289] %v300
                %v302 = vld [vmem:[%s296 + $0x10] sm:%s289]
                %303 = vst [vmem:[%s297 + $0x8] sm:%s289] %v302
                %v304 = vld [vmem:[%s296 + $0x18] sm:%s289]
                %305 = vst [vmem:[%s297 + $0xc] sm:%s289] %v304
                %v306 = vld [vmem:[%s296 + $0x20] sm:%s289]
                %307 = vst [vmem:[%s297 + $0x10] sm:%s289] %v306
                %v308 = vld [vmem:[%s296 + $0x28] sm:%s289]
                %309 = vst [vmem:[%s297 + $0x14] sm:%s289] %v308
                %v310 = vld [vmem:[%s296 + $0x30] sm:%s289]
                %311 = vst [vmem:[%s297 + $0x18] sm:%s289] %v310
                %v312 = vld [vmem:[%s296 + $0x38] sm:%s289]
                %313 = vst [vmem:[%s297 + $0x1c] sm:%s289] %v312
                %v314 = vld [vmem:[%s296 + $0x40] sm:%s289]
                %315 = vst [vmem:[%s297 + $0x20] sm:%s289] %v314
                %v316 = vld [vmem:[%s296 + $0x48] sm:%s289]
                %317 = vst [vmem:[%s297 + $0x24] sm:%s289] %v316
                %v318 = vld [vmem:[%s296 + $0x50] sm:%s289]
                %319 = vst [vmem:[%s297 + $0x28] sm:%s289] %v318
                %v320 = vld [vmem:[%s296 + $0x58] sm:%s289]
                %321 = vst [vmem:[%s297 + $0x2c] sm:%s289] %v320
                %v322 = vld [vmem:[%s296 + $0x60] sm:%s289]
                %323 = vst [vmem:[%s297 + $0x30] sm:%s289] %v322
                %v324 = vld [vmem:[%s296 + $0x68] sm:%s289]
                %325 = vst [vmem:[%s297 + $0x34] sm:%s289] %v324
                %v326 = vld [vmem:[%s296 + $0x70] sm:%s289]
                %327 = vst [vmem:[%s297 + $0x38] sm:%s289] %v326
                %v328 = vld [vmem:[%s296 + $0x78] sm:%s289]
                %329 = vst [vmem:[%s297 + $0x3c] sm:%s289] %v328
              $region78: #{tscd_forward.11} parent=72 // loop_footer
                %s295 = sadd.s32 1, %s291
              $region79: #{tscd_forward.11} parent=72 // loop_footer_branch
                %290 = sbr.rel target = $region75
              $region80: #{tscd_forward.11} parent=72 // loop_exit
                _
            $region73: #{tscd_forward.11} parent=64 // pred_fallthru
              _
          $region65: #{tscd_forward.11} parent=60 // pred_fallthru
            _
          %382 = vnop
        $region61: #{tscd_forward.11} parent=15 // pred_fallthru
          _
        // Predicated region
        $region99: #{tscd_forward.11} parent=15 // pred_check
          %p383 = pneg %p104
        $region100: #{tscd_forward.11} parent=15 // pred_check_branch
          %385 = sbr.rel (%p383) target = $region102
        $region101: #{tscd_forward.11} parent=15 // pred_region
          %p386 = scmp.lt.s32.totalorder %s17, 1
          %s387 = scalar_select %p386, %s17, 1
          %s388 = scalar_lea.vmem %s2, %s387
        $region102: #{tscd_forward.11} parent=15 // pred_fallthru
          _
      $region16: #{tscd_forward.11} parent=5 // pred_fallthru
        _
      %p389 = scmp.le.s32.totalorder 1, %s9
      %p390 = scmp.lt.s32.totalorder %s9, 5
      %p391 = pnand %p389, %p390
      %p392 = pneg %p391
      // Predicated region
      $region103: #{tscd_forward.11} parent=5 // pred_check
        _
      $region104: #{tscd_forward.11} parent=5 // pred_check_branch
        %394 = sbr.rel (%p391) target = $region106
      $region105: #{tscd_forward.11} parent=5 // pred_region
        %s395 = ssub.s32 %s9, 1
        %s396 = sand.u32 %s43, 1
        %s397 = sand.u32 %s43, 1
        %s398 = smul.addr %s397, 64
        %s399 = scalar_lea.vmem [#allocation3], %s398
        // Predicated region
        $region107: #{tscd_forward.11} parent=105 // pred_check
          %p400 = pneg %p56
        $region108: #{tscd_forward.11} parent=105 // pred_check_branch
          %402 = sbr.rel (%p400) target = $region110
        $region109: #{tscd_forward.11} parent=105 // pred_region
          _
        $region110: #{tscd_forward.11} parent=105 // pred_fallthru
          _
        %s403 = sand.u32 %s71, 1
        %s404 = sand.u32 %s71, 1
        %s405 = smul.addr %s404, 64
        %s406 = scalar_lea.vmem [#allocation4], %s405
        // Predicated region
        $region111: #{tscd_forward.11} parent=105 // pred_check
          %p407 = pneg %p84
        $region112: #{tscd_forward.11} parent=105 // pred_check_branch
          %409 = sbr.rel (%p407) target = $region114
        $region113: #{tscd_forward.11} parent=105 // pred_region
          _
        $region114: #{tscd_forward.11} parent=105 // pred_fallthru
          _
        %s410 = sand.u32 %s43, 1
        %s411 = sand.u32 %s43, 1
        %s412 = smul.addr %s411, 64
        %s413 = scalar_lea.vmem [#allocation3], %s412
        %p414 = pneg %p56
        %p415 = pneg %p53
        %s416 = sand.u32 %s71, 1
        %s417 = sand.u32 %s71, 1
        %s418 = smul.addr %s417, 64
        %s419 = scalar_lea.vmem [#allocation4], %s418
        %p420 = pneg %p84
        %p421 = pneg %p81
        %p422 = scmp.lt.s32.totalorder %s20, 1
        %s423 = scalar_select %p422, %s20, 1
        %s424 = scalar_lea.vmem %s2, %s423
        %p425 = pneg %p110
        %p426 = pneg %p107
        %p427 = pneg %p138
        %p428 = pneg %p135
        %s429 = sand.u32 %s125, 1
        %s430 = sand.u32 %s125, 1
        %s431 = smul.addr %s430, 128
        %s432 = scalar_lea.vmem [#allocation5], %s431
        %s433 = smul.u32 16, %s19
        %s434 = smul.u32 16, %s21
        %p435 = scmp.lt.s32.totalorder %s20, 1
        %s436 = scalar_select %p435, %s20, 1
        %s437 = scalar_lea.vmem %s2, %s436
        %s438 = smul.u32 16, %s19
        %p440 = scmp.eq.s32.totalorder %s21, 0
        // Predicated region
        $region115: #{tscd_forward.11} parent=105 // pred_check
          %p441 = pneg %p440
        $region116: #{tscd_forward.11} parent=105 // pred_check_branch
          %443 = sbr.rel (%p441) target = $region118
        $region117: #{tscd_forward.11} parent=105 // pred_region
          %444 = vst [vmem:[#allocation2] sm:$0xff] 0.0
          %445 = vst [vmem:[#allocation2 + $0x8] sm:$0xff] 0.0
          %446 = vst [vmem:[#allocation2 + $0x10] sm:$0xff] 0.0
          %447 = vst [vmem:[#allocation2 + $0x18] sm:$0xff] 0.0
          %448 = vst [vmem:[#allocation2 + $0x20] sm:$0xff] 0.0
          %449 = vst [vmem:[#allocation2 + $0x28] sm:$0xff] 0.0
          %450 = vst [vmem:[#allocation2 + $0x30] sm:$0xff] 0.0
          %451 = vst [vmem:[#allocation2 + $0x38] sm:$0xff] 0.0
          %452 = vst [vmem:[#allocation2 + $0x40] sm:$0xff] 0.0
          %453 = vst [vmem:[#allocation2 + $0x48] sm:$0xff] 0.0
          %454 = vst [vmem:[#allocation2 + $0x50] sm:$0xff] 0.0
          %455 = vst [vmem:[#allocation2 + $0x58] sm:$0xff] 0.0
          %456 = vst [vmem:[#allocation2 + $0x60] sm:$0xff] 0.0
          %457 = vst [vmem:[#allocation2 + $0x68] sm:$0xff] 0.0
          %458 = vst [vmem:[#allocation2 + $0x70] sm:$0xff] 0.0
          %459 = vst [vmem:[#allocation2 + $0x78] sm:$0xff] 0.0
        $region118: #{tscd_forward.11} parent=105 // pred_fallthru
          _
        %v460 = vld [vmem:[%s399] sm:$0xf]
        %v461 = vld [vmem:[%s399 + $0x4] sm:$0xf]
        %v462 = vld [vmem:[%s399 + $0x8] sm:$0xf]
        %v463 = vld [vmem:[%s399 + $0xc] sm:$0xf]
        %v464 = vld [vmem:[%s399 + $0x10] sm:$0xf]
        %v465 = vld [vmem:[%s399 + $0x14] sm:$0xf]
        %v466 = vld [vmem:[%s399 + $0x18] sm:$0xf]
        %v467 = vld [vmem:[%s399 + $0x1c] sm:$0xf]
        %v468 = vld [vmem:[%s399 + $0x20] sm:$0xf]
        %v469 = vld [vmem:[%s399 + $0x24] sm:$0xf]
        %v470 = vld [vmem:[%s399 + $0x28] sm:$0xf]
        %v471 = vld [vmem:[%s399 + $0x2c] sm:$0xf]
        %v472 = vld [vmem:[%s399 + $0x30] sm:$0xf]
        %v473 = vld [vmem:[%s399 + $0x34] sm:$0xf]
        %v474 = vld [vmem:[%s399 + $0x38] sm:$0xf]
        %v475 = vld [vmem:[%s399 + $0x3c] sm:$0xf]
        %v476 = vld [vmem:[#allocation2] sm:$0xff]
        %v477 = vld [vmem:[#allocation2 + $0x8] sm:$0xff]
        %v478 = vld [vmem:[#allocation2 + $0x10] sm:$0xff]
        %v479 = vld [vmem:[#allocation2 + $0x18] sm:$0xff]
        %v480 = vld [vmem:[#allocation2 + $0x20] sm:$0xff]
        %v481 = vld [vmem:[#allocation2 + $0x28] sm:$0xff]
        %v482 = vld [vmem:[#allocation2 + $0x30] sm:$0xff]
        %v483 = vld [vmem:[#allocation2 + $0x38] sm:$0xff]
        %v484 = vld [vmem:[#allocation2 + $0x40] sm:$0xff]
        %v485 = vld [vmem:[#allocation2 + $0x48] sm:$0xff]
        %v486 = vld [vmem:[#allocation2 + $0x50] sm:$0xff]
        %v487 = vld [vmem:[#allocation2 + $0x58] sm:$0xff]
        %v488 = vld [vmem:[#allocation2 + $0x60] sm:$0xff]
        %v489 = vld [vmem:[#allocation2 + $0x68] sm:$0xff]
        %v490 = vld [vmem:[#allocation2 + $0x70] sm:$0xff]
        %v491 = vld [vmem:[#allocation2 + $0x78] sm:$0xff]
        %v492 = vld [vmem:[%s406] sm:$0xf]
        %v493 = vld [vmem:[%s406 + $0x4] sm:$0xf]
        %v494 = vld [vmem:[%s406 + $0x8] sm:$0xf]
        %v495 = vld [vmem:[%s406 + $0xc] sm:$0xf]
        %v496 = vld [vmem:[%s406 + $0x10] sm:$0xf]
        %v497 = vld [vmem:[%s406 + $0x14] sm:$0xf]
        %v498 = vld [vmem:[%s406 + $0x18] sm:$0xf]
        %v499 = vld [vmem:[%s406 + $0x1c] sm:$0xf]
        %v500 = vld [vmem:[%s406 + $0x20] sm:$0xf]
        %v501 = vld [vmem:[%s406 + $0x24] sm:$0xf]
        %v502 = vld [vmem:[%s406 + $0x28] sm:$0xf]
        %v503 = vld [vmem:[%s406 + $0x2c] sm:$0xf]
        %v504 = vld [vmem:[%s406 + $0x30] sm:$0xf]
        %v505 = vld [vmem:[%s406 + $0x34] sm:$0xf]
        %v506 = vld [vmem:[%s406 + $0x38] sm:$0xf]
        %v507 = vld [vmem:[%s406 + $0x3c] sm:$0xf]
        %v524 = vunpack.c.l.b16 %v460
        %v525 = vunpack.c.l.b16 %v461
        %v526 = vunpack.c.l.b16 %v462
        %v527 = vunpack.c.l.b16 %v463
        %v528 = vunpack.c.l.b16 %v464
        %v529 = vunpack.c.l.b16 %v465
        %v530 = vunpack.c.l.b16 %v466
        %v531 = vunpack.c.l.b16 %v467
        %v532 = vunpack.c.l.b16 %v468
        %v533 = vunpack.c.l.b16 %v469
        %v534 = vunpack.c.l.b16 %v470
        %v535 = vunpack.c.l.b16 %v471
        %v536 = vunpack.c.l.b16 %v472
        %v537 = vunpack.c.l.b16 %v473
        %v538 = vunpack.c.l.b16 %v474
        %v539 = vunpack.c.l.b16 %v475
        %v540 = vpack.c.b16 %v525, %v524
        %v541 = vpack.c.b16 %v527, %v526
        %v542 = vpack.c.b16 %v529, %v528
        %v543 = vpack.c.b16 %v531, %v530
        %v544 = vpack.c.b16 %v533, %v532
        %v545 = vpack.c.b16 %v535, %v534
        %v546 = vpack.c.b16 %v537, %v536
        %v547 = vpack.c.b16 %v539, %v538
        %v572 = vunpack.c.l.b16 %v492
        %v573 = vunpack.c.l.b16 %v493
        %v574 = vunpack.c.l.b16 %v494
        %v575 = vunpack.c.l.b16 %v495
        %v576 = vunpack.c.l.b16 %v496
        %v577 = vunpack.c.l.b16 %v497
        %v578 = vunpack.c.l.b16 %v498
        %v579 = vunpack.c.l.b16 %v499
        %v580 = vunpack.c.l.b16 %v500
        %v581 = vunpack.c.l.b16 %v501
        %v582 = vunpack.c.l.b16 %v502
        %v583 = vunpack.c.l.b16 %v503
        %v584 = vunpack.c.l.b16 %v504
        %v585 = vunpack.c.l.b16 %v505
        %v586 = vunpack.c.l.b16 %v506
        %v587 = vunpack.c.l.b16 %v507
        %v588 = vpack.c.b16 %v573, %v572
        %v589 = vpack.c.b16 %v575, %v574
        %v590 = vpack.c.b16 %v577, %v576
        %v591 = vpack.c.b16 %v579, %v578
        %v592 = vpack.c.b16 %v581, %v580
        %v593 = vpack.c.b16 %v583, %v582
        %v594 = vpack.c.b16 %v585, %v584
        %v595 = vpack.c.b16 %v587, %v586
        %604 = vmatprep.subr.bf16.mxu0 0
        %605 = vmatpush1.bf16.msra.mxu0 %v595
        %606 = vmatprep.subr.bf16.mxu0 0
        %607 = vmatpush1.bf16.msra.mxu0 %v594
        %608 = vmatprep.subr.bf16.mxu0 0
        %609 = vmatpush1.bf16.msra.mxu0 %v593
        %610 = vmatprep.subr.bf16.mxu0 0
        %611 = vmatpush1.bf16.msra.mxu0 %v592
        %612 = vmatprep.subr.bf16.mxu0 0
        %613 = vmatpush1.bf16.msra.mxu0 %v591
        %614 = vmatprep.subr.bf16.mxu0 0
        %615 = vmatpush1.bf16.msra.mxu0 %v590
        %616 = vmatprep.subr.bf16.mxu0 0
        %617 = vmatpush1.bf16.msra.mxu0 %v589
        %618 = vmatprep.subr.bf16.mxu0 0
        %619 = vmatpush1.bf16.msra.mxu0 %v588
        %620 = vmatprep.subr.bf16.mxu0 0
        %621 = vmatpush2.bf16.msra.mxu0 0
        %622 = vmatprep.subr.bf16.mxu0 0
        %623 = vmatpush2.bf16.msra.mxu0 0
        %624 = vmatprep.subr.bf16.mxu0 0
        %625 = vmatpush2.bf16.msra.mxu0 0
        %626 = vmatprep.subr.bf16.mxu0 0
        %627 = vmatpush2.bf16.msra.mxu0 0
        %628 = vmatprep.subr.bf16.mxu0 0
        %629 = vmatpush2.bf16.msra.mxu0 0
        %630 = vmatprep.subr.bf16.mxu0 0
        %631 = vmatpush2.bf16.msra.mxu0 0
        %632 = vmatprep.subr.bf16.mxu0 0
        %633 = vmatpush2.bf16.msra.mxu0 0
        %634 = vmatprep.subr.bf16.mxu0 0
        %635 = vmatpush2.bf16.msra.mxu0 0
        %636 = vmatprep.mubr.bf16.mxu0 0
        %637 = vmatmul.mubr.bf16.gmra.mxu0 %v540
        %v638 = vpop.f32.mrf.mxu0
        %v639 = vadd.f32 0.0, %v638
        %v640 = vpop.f32.mrf.mxu0
        %v641 = vpop.f32.mrf.mxu0
        %v642 = vadd.f32 0.0, %v641
        %v643 = vpop.f32.mrf.mxu0
        %644 = vmatprep.mubr.bf16.mxu0 0
        %645 = vmatmul.mubr.bf16.gmra.mxu0 %v541
        %v646 = vpop.f32.mrf.mxu0
        %v647 = vadd.f32 0.0, %v646
        %v648 = vpop.f32.mrf.mxu0
        %v649 = vpop.f32.mrf.mxu0
        %v650 = vadd.f32 0.0, %v649
        %v651 = vpop.f32.mrf.mxu0
        %652 = vmatprep.mubr.bf16.mxu0 0
        %653 = vmatmul.mubr.bf16.gmra.mxu0 %v542
        %v654 = vpop.f32.mrf.mxu0
        %v655 = vadd.f32 0.0, %v654
        %v656 = vpop.f32.mrf.mxu0
        %v657 = vpop.f32.mrf.mxu0
        %v658 = vadd.f32 0.0, %v657
        %v659 = vpop.f32.mrf.mxu0
        %660 = vmatprep.mubr.bf16.mxu0 0
        %661 = vmatmul.mubr.bf16.gmra.mxu0 %v543
        %v662 = vpop.f32.mrf.mxu0
        %v663 = vadd.f32 0.0, %v662
        %v664 = vpop.f32.mrf.mxu0
        %v665 = vpop.f32.mrf.mxu0
        %v666 = vadd.f32 0.0, %v665
        %v667 = vpop.f32.mrf.mxu0
        %668 = vmatprep.mubr.bf16.mxu0 0
        %669 = vmatmul.mubr.bf16.gmra.mxu0 %v544
        %v670 = vpop.f32.mrf.mxu0
        %v671 = vadd.f32 0.0, %v670
        %v672 = vpop.f32.mrf.mxu0
        %v673 = vpop.f32.mrf.mxu0
        %v674 = vadd.f32 0.0, %v673
        %v675 = vpop.f32.mrf.mxu0
        %676 = vmatprep.mubr.bf16.mxu0 0
        %677 = vmatmul.mubr.bf16.gmra.mxu0 %v545
        %v678 = vpop.f32.mrf.mxu0
        %v679 = vadd.f32 0.0, %v678
        %v680 = vpop.f32.mrf.mxu0
        %v681 = vpop.f32.mrf.mxu0
        %v682 = vadd.f32 0.0, %v681
        %v683 = vpop.f32.mrf.mxu0
        %684 = vmatprep.mubr.bf16.mxu0 0
        %685 = vmatmul.mubr.bf16.gmra.mxu0 %v546
        %v686 = vpop.f32.mrf.mxu0
        %v687 = vadd.f32 0.0, %v686
        %v688 = vpop.f32.mrf.mxu0
        %v689 = vpop.f32.mrf.mxu0
        %v690 = vadd.f32 0.0, %v689
        %v691 = vpop.f32.mrf.mxu0
        %692 = vmatprep.mubr.bf16.mxu0 0
        %693 = vmatmul.mubr.bf16.gmra.mxu0 %v547
        %v694 = vpop.f32.mrf.mxu0
        %v695 = vadd.f32 0.0, %v694
        %v696 = vpop.f32.mrf.mxu0
        %v697 = vpop.f32.mrf.mxu0
        %v698 = vadd.f32 0.0, %v697
        %v699 = vpop.f32.mrf.mxu0
        %700 = vdwg.mxu0
        %v701 = vadd.f32 %v476, %v639
        %v702 = vadd.f32 %v477, %v642
        %v703 = vadd.f32 %v478, %v647
        %v704 = vadd.f32 %v479, %v650
        %v705 = vadd.f32 %v480, %v655
        %v706 = vadd.f32 %v481, %v658
        %v707 = vadd.f32 %v482, %v663
        %v708 = vadd.f32 %v483, %v666
        %v709 = vadd.f32 %v484, %v671
        %v710 = vadd.f32 %v485, %v674
        %v711 = vadd.f32 %v486, %v679
        %v712 = vadd.f32 %v487, %v682
        %v713 = vadd.f32 %v488, %v687
        %v714 = vadd.f32 %v489, %v690
        %v715 = vadd.f32 %v490, %v695
        %v716 = vadd.f32 %v491, %v698
        %717 = vst [vmem:[#allocation2] sm:$0xff] %v701
        %718 = vst [vmem:[#allocation2 + $0x8] sm:$0xff] %v702
        %719 = vst [vmem:[#allocation2 + $0x10] sm:$0xff] %v703
        %720 = vst [vmem:[#allocation2 + $0x18] sm:$0xff] %v704
        %721 = vst [vmem:[#allocation2 + $0x20] sm:$0xff] %v705
        %722 = vst [vmem:[#allocation2 + $0x28] sm:$0xff] %v706
        %723 = vst [vmem:[#allocation2 + $0x30] sm:$0xff] %v707
        %724 = vst [vmem:[#allocation2 + $0x38] sm:$0xff] %v708
        %725 = vst [vmem:[#allocation2 + $0x40] sm:$0xff] %v709
        %726 = vst [vmem:[#allocation2 + $0x48] sm:$0xff] %v710
        %727 = vst [vmem:[#allocation2 + $0x50] sm:$0xff] %v711
        %728 = vst [vmem:[#allocation2 + $0x58] sm:$0xff] %v712
        %729 = vst [vmem:[#allocation2 + $0x60] sm:$0xff] %v713
        %730 = vst [vmem:[#allocation2 + $0x68] sm:$0xff] %v714
        %731 = vst [vmem:[#allocation2 + $0x70] sm:$0xff] %v715
        %732 = vst [vmem:[#allocation2 + $0x78] sm:$0xff] %v716
        %p733 = scmp.eq.s32.totalorder %s21, 1
        // Predicated region
        $region119: #{tscd_forward.11} parent=105 // pred_check
          %p734 = pneg %p733
        $region120: #{tscd_forward.11} parent=105 // pred_check_branch
          %736 = sbr.rel (%p734) target = $region122
        $region121: #{tscd_forward.11} parent=105 // pred_region
          %v737 = vld [vmem:[#allocation2] sm:$0xff]
          %v738 = vld [vmem:[#allocation2 + $0x8] sm:$0xff]
          %v739 = vld [vmem:[#allocation2 + $0x10] sm:$0xff]
          %v740 = vld [vmem:[#allocation2 + $0x18] sm:$0xff]
          %v741 = vld [vmem:[#allocation2 + $0x20] sm:$0xff]
          %v742 = vld [vmem:[#allocation2 + $0x28] sm:$0xff]
          %v743 = vld [vmem:[#allocation2 + $0x30] sm:$0xff]
          %v744 = vld [vmem:[#allocation2 + $0x38] sm:$0xff]
          %v745 = vld [vmem:[#allocation2 + $0x40] sm:$0xff]
          %v746 = vld [vmem:[#allocation2 + $0x48] sm:$0xff]
          %v747 = vld [vmem:[#allocation2 + $0x50] sm:$0xff]
          %v748 = vld [vmem:[#allocation2 + $0x58] sm:$0xff]
          %v749 = vld [vmem:[#allocation2 + $0x60] sm:$0xff]
          %v750 = vld [vmem:[#allocation2 + $0x68] sm:$0xff]
          %v751 = vld [vmem:[#allocation2 + $0x70] sm:$0xff]
          %v752 = vld [vmem:[#allocation2 + $0x78] sm:$0xff]
          %v753 = vld [vmem:[%s437] sm:$0x1]
          %v755 = vlaneseq
          %v756 = vshrl.u32 %v755, 7
          %v757 = vsub.s32 0, %v756
          %v758 = vrot.slane %v753, %v757
          %v760 = vadd.f32 %v737, %v758
          %v761 = vadd.f32 %v738, %v758
          %v762 = vadd.f32 %v739, %v758
          %v763 = vadd.f32 %v740, %v758
          %v764 = vadd.f32 %v741, %v758
          %v765 = vadd.f32 %v742, %v758
          %v766 = vadd.f32 %v743, %v758
          %v767 = vadd.f32 %v744, %v758
          %v768 = vadd.f32 %v745, %v758
          %v769 = vadd.f32 %v746, %v758
          %v770 = vadd.f32 %v747, %v758
          %v771 = vadd.f32 %v748, %v758
          %v772 = vadd.f32 %v749, %v758
          %v773 = vadd.f32 %v750, %v758
          %v774 = vadd.f32 %v751, %v758
          %v775 = vadd.f32 %v752, %v758
          %776 = vst [vmem:[%s432] sm:$0xff] %v760
          %777 = vst [vmem:[%s432 + $0x8] sm:$0xff] %v761
          %778 = vst [vmem:[%s432 + $0x10] sm:$0xff] %v762
          %779 = vst [vmem:[%s432 + $0x18] sm:$0xff] %v763
          %780 = vst [vmem:[%s432 + $0x20] sm:$0xff] %v764
          %781 = vst [vmem:[%s432 + $0x28] sm:$0xff] %v765
          %782 = vst [vmem:[%s432 + $0x30] sm:$0xff] %v766
          %783 = vst [vmem:[%s432 + $0x38] sm:$0xff] %v767
          %784 = vst [vmem:[%s432 + $0x40] sm:$0xff] %v768
          %785 = vst [vmem:[%s432 + $0x48] sm:$0xff] %v769
          %786 = vst [vmem:[%s432 + $0x50] sm:$0xff] %v770
          %787 = vst [vmem:[%s432 + $0x58] sm:$0xff] %v771
          %788 = vst [vmem:[%s432 + $0x60] sm:$0xff] %v772
          %789 = vst [vmem:[%s432 + $0x68] sm:$0xff] %v773
          %790 = vst [vmem:[%s432 + $0x70] sm:$0xff] %v774
          %791 = vst [vmem:[%s432 + $0x78] sm:$0xff] %v775
        $region122: #{tscd_forward.11} parent=105 // pred_fallthru
          _
        %s792 = sand.u32 %s125, 1
        %s793 = sand.u32 %s125, 1
        %s794 = smul.addr %s793, 128
        %s795 = scalar_lea.vmem [#allocation5], %s794
        // Predicated region
        $region123: #{tscd_forward.11} parent=105 // pred_check
          %p796 = pneg %p135
        $region124: #{tscd_forward.11} parent=105 // pred_check_branch
          %798 = sbr.rel (%p796) target = $region126
        $region125: #{tscd_forward.11} parent=105 // pred_region
          %s799 = smul.u32 16, %s19
          %s800 = smul.addr %s799, 2
          %s801 = sadd.s32 %s20, %s800
          %s802 = smul.addr %s801, 8
          %s803 = scalar_lea.vmem %s3, %s802
          // Predicated region
          $region127: #{tscd_forward.11} parent=125 // pred_check
            _
          $region128: #{tscd_forward.11} parent=125 // pred_check_branch
            %805 = sbr.rel (0) target = $region130
          $region129: #{tscd_forward.11} parent=125 // pred_region
            // Predicated region
            $region131: #{tscd_forward.11} parent=129 // pred_check
              _
            $region132: #{tscd_forward.11} parent=129 // pred_check_branch
              %807 = sbr.rel (0) target = $region134
            $region133: #{tscd_forward.11} parent=129 // pred_region
              // Predicated region
              $region146: #{tscd_forward.11} parent=133 // pred_check
                _
              $region147: #{tscd_forward.11} parent=133 // pred_check_branch
                %853 = sbr.rel (0) target = $region149
              $region148: #{tscd_forward.11} parent=133 // pred_region
                loop: start=0, step=1, limit=1
                $region150: #{tscd_forward.11} parent=148 // loop_pre_header
                  _
                $region151: #{tscd_forward.11} parent=148 // loop_header
                  %s855 = sphi 0, %s859
                  %p856 = scmp.ge.s32.totalorder %s855, 1
                  %s860 = sphi %s795, %s795
                  %s861 = sphi %s803, %s803
                $region152: #{tscd_forward.11} parent=148 // loop_header_branch
                  %858 = sbr.rel (%p856) target = $region156
                $region153: #{tscd_forward.11} parent=148 // loop_body
                  %v862 = vld [vmem:[%s860] sm:$0xff]
                  %863 = vst [vmem:[%s861] sm:$0xff] %v862
                  %v864 = vld [vmem:[%s860 + $0x8] sm:$0xff]
                  %865 = vst [vmem:[%s861 + $0x10] sm:$0xff] %v864
                  %v866 = vld [vmem:[%s860 + $0x10] sm:$0xff]
                  %867 = vst [vmem:[%s861 + $0x20] sm:$0xff] %v866
                  %v868 = vld [vmem:[%s860 + $0x18] sm:$0xff]
                  %869 = vst [vmem:[%s861 + $0x30] sm:$0xff] %v868
                  %v870 = vld [vmem:[%s860 + $0x20] sm:$0xff]
                  %871 = vst [vmem:[%s861 + $0x40] sm:$0xff] %v870
                  %v872 = vld [vmem:[%s860 + $0x28] sm:$0xff]
                  %873 = vst [vmem:[%s861 + $0x50] sm:$0xff] %v872
                  %v874 = vld [vmem:[%s860 + $0x30] sm:$0xff]
                  %875 = vst [vmem:[%s861 + $0x60] sm:$0xff] %v874
                  %v876 = vld [vmem:[%s860 + $0x38] sm:$0xff]
                  %877 = vst [vmem:[%s861 + $0x70] sm:$0xff] %v876
                  %v878 = vld [vmem:[%s860 + $0x40] sm:$0xff]
                  %879 = vst [vmem:[%s861 + $0x80] sm:$0xff] %v878
                  %v880 = vld [vmem:[%s860 + $0x48] sm:$0xff]
                  %881 = vst [vmem:[%s861 + $0x90] sm:$0xff] %v880
                  %v882 = vld [vmem:[%s860 + $0x50] sm:$0xff]
                  %883 = vst [vmem:[%s861 + $0xa0] sm:$0xff] %v882
                  %v884 = vld [vmem:[%s860 + $0x58] sm:$0xff]
                  %885 = vst [vmem:[%s861 + $0xb0] sm:$0xff] %v884
                  %v886 = vld [vmem:[%s860 + $0x60] sm:$0xff]
                  %887 = vst [vmem:[%s861 + $0xc0] sm:$0xff] %v886
                  %v888 = vld [vmem:[%s860 + $0x68] sm:$0xff]
                  %889 = vst [vmem:[%s861 + $0xd0] sm:$0xff] %v888
                  %v890 = vld [vmem:[%s860 + $0x70] sm:$0xff]
                  %891 = vst [vmem:[%s861 + $0xe0] sm:$0xff] %v890
                  %v892 = vld [vmem:[%s860 + $0x78] sm:$0xff]
                  %893 = vst [vmem:[%s861 + $0xf0] sm:$0xff] %v892
                $region154: #{tscd_forward.11} parent=148 // loop_footer
                  %s859 = sadd.s32 1, %s855
                $region155: #{tscd_forward.11} parent=148 // loop_footer_branch
                  %854 = sbr.rel target = $region151
                $region156: #{tscd_forward.11} parent=148 // loop_exit
                  _
              $region149: #{tscd_forward.11} parent=133 // pred_fallthru
                _
              // Predicated region
              $region157: #{tscd_forward.11} parent=133 // pred_check
                _
              $region158: #{tscd_forward.11} parent=133 // pred_check_branch
                %895 = sbr.rel target = $region160
              $region159: #{tscd_forward.11} parent=133 // pred_region
                _
              $region160: #{tscd_forward.11} parent=133 // pred_fallthru
                _
            $region134: #{tscd_forward.11} parent=129 // pred_fallthru
              _
            // Predicated region
            $region135: #{tscd_forward.11} parent=129 // pred_check
              _
            $region136: #{tscd_forward.11} parent=129 // pred_check_branch
              %809 = sbr.rel target = $region138
            $region137: #{tscd_forward.11} parent=129 // pred_region
              %s811 = ssub.s32 256, 1
              loop: start=0, step=1, limit=1
              $region139: #{tscd_forward.11} parent=137 // loop_pre_header
                _
              $region140: #{tscd_forward.11} parent=137 // loop_header
                %s813 = sphi 0, %s817
                %p814 = scmp.ge.s32.totalorder %s813, 1
                %s818 = sphi %s795, %s795
                %s819 = sphi %s803, %s803
              $region141: #{tscd_forward.11} parent=137 // loop_header_branch
                %816 = sbr.rel (%p814) target = $region145
              $region142: #{tscd_forward.11} parent=137 // loop_body
                %v820 = vld [vmem:[%s818] sm:%s811]
                %821 = vst [vmem:[%s819] sm:%s811] %v820
                %v822 = vld [vmem:[%s818 + $0x8] sm:%s811]
                %823 = vst [vmem:[%s819 + $0x10] sm:%s811] %v822
                %v824 = vld [vmem:[%s818 + $0x10] sm:%s811]
                %825 = vst [vmem:[%s819 + $0x20] sm:%s811] %v824
                %v826 = vld [vmem:[%s818 + $0x18] sm:%s811]
                %827 = vst [vmem:[%s819 + $0x30] sm:%s811] %v826
                %v828 = vld [vmem:[%s818 + $0x20] sm:%s811]
                %829 = vst [vmem:[%s819 + $0x40] sm:%s811] %v828
                %v830 = vld [vmem:[%s818 + $0x28] sm:%s811]
                %831 = vst [vmem:[%s819 + $0x50] sm:%s811] %v830
                %v832 = vld [vmem:[%s818 + $0x30] sm:%s811]
                %833 = vst [vmem:[%s819 + $0x60] sm:%s811] %v832
                %v834 = vld [vmem:[%s818 + $0x38] sm:%s811]
                %835 = vst [vmem:[%s819 + $0x70] sm:%s811] %v834
                %v836 = vld [vmem:[%s818 + $0x40] sm:%s811]
                %837 = vst [vmem:[%s819 + $0x80] sm:%s811] %v836
                %v838 = vld [vmem:[%s818 + $0x48] sm:%s811]
                %839 = vst [vmem:[%s819 + $0x90] sm:%s811] %v838
                %v840 = vld [vmem:[%s818 + $0x50] sm:%s811]
                %841 = vst [vmem:[%s819 + $0xa0] sm:%s811] %v840
                %v842 = vld [vmem:[%s818 + $0x58] sm:%s811]
                %843 = vst [vmem:[%s819 + $0xb0] sm:%s811] %v842
                %v844 = vld [vmem:[%s818 + $0x60] sm:%s811]
                %845 = vst [vmem:[%s819 + $0xc0] sm:%s811] %v844
                %v846 = vld [vmem:[%s818 + $0x68] sm:%s811]
                %847 = vst [vmem:[%s819 + $0xd0] sm:%s811] %v846
                %v848 = vld [vmem:[%s818 + $0x70] sm:%s811]
                %849 = vst [vmem:[%s819 + $0xe0] sm:%s811] %v848
                %v850 = vld [vmem:[%s818 + $0x78] sm:%s811]
                %851 = vst [vmem:[%s819 + $0xf0] sm:%s811] %v850
              $region143: #{tscd_forward.11} parent=137 // loop_footer
                %s817 = sadd.s32 1, %s813
              $region144: #{tscd_forward.11} parent=137 // loop_footer_branch
                %812 = sbr.rel target = $region140
              $region145: #{tscd_forward.11} parent=137 // loop_exit
                _
            $region138: #{tscd_forward.11} parent=129 // pred_fallthru
              _
          $region130: #{tscd_forward.11} parent=125 // pred_fallthru
            _
          %896 = vnop
        $region126: #{tscd_forward.11} parent=105 // pred_fallthru
          _
      $region106: #{tscd_forward.11} parent=5 // pred_fallthru
        _
      %p897 = scmp.le.s32.totalorder 2, %s9
      // Predicated region
      $region161: #{tscd_forward.11} parent=5 // pred_check
        %p898 = pneg %p897
      $region162: #{tscd_forward.11} parent=5 // pred_check_branch
        %900 = sbr.rel (%p898) target = $region164
      $region163: #{tscd_forward.11} parent=5 // pred_region
        %s901 = ssub.s32 %s9, 2
        // Predicated region
        $region165: #{tscd_forward.11} parent=163 // pred_check
          %p902 = pneg %p141
        $region166: #{tscd_forward.11} parent=163 // pred_check_branch
          %904 = sbr.rel (%p902) target = $region168
        $region167: #{tscd_forward.11} parent=163 // pred_region
          %s905 = sand.u32 %s126, 1
          %s906 = sand.u32 %s126, 1
          %s907 = smul.addr %s906, 128
          %s908 = scalar_lea.vmem [#allocation5], %s907
        $region168: #{tscd_forward.11} parent=163 // pred_fallthru
          _
      $region164: #{tscd_forward.11} parent=5 // pred_fallthru
        _
    $region6: #{tscd_forward.11} parent=1 // loop_footer
      %s13 = sadd.s32 1, %s9
    $region7: #{tscd_forward.11} parent=1 // loop_footer_branch
      %8 = sbr.rel target = $region3
    $region8: #{tscd_forward.11} parent=1 // loop_exit
      _

// kernel: tscd_forward.12
$region0: #{tscd_forward.12}
  #allocation0 [shape = 'u32[]', space=smem, size = 0x4, offset = 0x4, fixed_abs, tag = 'smem constant byte address 0x4 - core index']
  #allocation1 [shape = 'u32[144,128]{1,0:T(1,128)}', space=vmem, size = 0x12000, scoped, tag = 'internal scratch']
  #allocation2 [shape = 'f32[128,128]{1,0:T(8,128)}', space=vmem, size = 0x10000, scoped, tag = 'scratch operand']
  %s0 = inlined_call_operand.vmem [shape: bf16[128,128], index: 0, kind: input, shape index: {}]
  %s1 = inlined_call_operand.vmem [shape: bf16[128,128], index: 1, kind: input, shape index: {}]
  %s2 = inlined_call_operand.vmem [shape: f32[1,128], index: 2, kind: input, shape index: {}]
  %s3 = inlined_call_operand.vmem [shape: f32[128,128], index: 3, kind: output, shape index: {}]
  %s4 = sld [smem:[#allocation0]]
  $region30: #{tscd_forward.12} parent=0
    _
  %s6 = ssub.s32 1, %s4
  %s7 = scalar_select 0, %s6, %s4
  // Predicated region
  $region2: #{tscd_forward.12} parent=0 // pred_check
    _
  $region3: #{tscd_forward.12} parent=0 // pred_check_branch
    %9 = sbr.rel (0) target = $region5
  $region4: #{tscd_forward.12} parent=0 // pred_region
    _
  $region5: #{tscd_forward.12} parent=0 // pred_fallthru
    _
  // Predicated region
  $region6: #{tscd_forward.12} parent=0 // pred_check
    _
  $region7: #{tscd_forward.12} parent=0 // pred_check_branch
    %11 = sbr.rel (0) target = $region9
  $region8: #{tscd_forward.12} parent=0 // pred_region
    _
  $region9: #{tscd_forward.12} parent=0 // pred_fallthru
    _
  // Predicated region
  $region10: #{tscd_forward.12} parent=0 // pred_check
    _
  $region11: #{tscd_forward.12} parent=0 // pred_check_branch
    %13 = sbr.rel (0) target = $region13
  $region12: #{tscd_forward.12} parent=0 // pred_region
    _
  $region13: #{tscd_forward.12} parent=0 // pred_fallthru
    _
  %p15 = scmp.eq.s32.totalorder 0, 0
  // Predicated region
  $region14: #{tscd_forward.12} parent=0 // pred_check
    %p16 = pneg %p15
  $region15: #{tscd_forward.12} parent=0 // pred_check_branch
    %18 = sbr.rel (%p16) target = $region17
  $region16: #{tscd_forward.12} parent=0 // pred_region
    %19 = vst [vmem:[#allocation2] sm:$0xff] 0.0
    %20 = vst [vmem:[#allocation2 + $0x8] sm:$0xff] 0.0
    %21 = vst [vmem:[#allocation2 + $0x10] sm:$0xff] 0.0
    %22 = vst [vmem:[#allocation2 + $0x18] sm:$0xff] 0.0
    %23 = vst [vmem:[#allocation2 + $0x20] sm:$0xff] 0.0
    %24 = vst [vmem:[#allocation2 + $0x28] sm:$0xff] 0.0
    %25 = vst [vmem:[#allocation2 + $0x30] sm:$0xff] 0.0
    %26 = vst [vmem:[#allocation2 + $0x38] sm:$0xff] 0.0
    %27 = vst [vmem:[#allocation2 + $0x40] sm:$0xff] 0.0
    %28 = vst [vmem:[#allocation2 + $0x48] sm:$0xff] 0.0
    %29 = vst [vmem:[#allocation2 + $0x50] sm:$0xff] 0.0
    %30 = vst [vmem:[#allocation2 + $0x58] sm:$0xff] 0.0
    %31 = vst [vmem:[#allocation2 + $0x60] sm:$0xff] 0.0
    %32 = vst [vmem:[#allocation2 + $0x68] sm:$0xff] 0.0
    %33 = vst [vmem:[#allocation2 + $0x70] sm:$0xff] 0.0
    %34 = vst [vmem:[#allocation2 + $0x78] sm:$0xff] 0.0
  $region17: #{tscd_forward.12} parent=0 // pred_fallthru
    _
  %v35 = vld [vmem:[%s0] sm:$0xf]
  %v36 = vld [vmem:[%s0 + $0x4] sm:$0xf]
  %v37 = vld [vmem:[%s0 + $0x8] sm:$0xf]
  %v38 = vld [vmem:[%s0 + $0xc] sm:$0xf]
  %v39 = vld [vmem:[%s0 + $0x10] sm:$0xf]
  %v40 = vld [vmem:[%s0 + $0x14] sm:$0xf]
  %v41 = vld [vmem:[%s0 + $0x18] sm:$0xf]
  %v42 = vld [vmem:[%s0 + $0x1c] sm:$0xf]
  %v43 = vld [vmem:[%s0 + $0x20] sm:$0xf]
  %v44 = vld [vmem:[%s0 + $0x24] sm:$0xf]
  %v45 = vld [vmem:[%s0 + $0x28] sm:$0xf]
  %v46 = vld [vmem:[%s0 + $0x2c] sm:$0xf]
  %v47 = vld [vmem:[%s0 + $0x30] sm:$0xf]
  %v48 = vld [vmem:[%s0 + $0x34] sm:$0xf]
  %v49 = vld [vmem:[%s0 + $0x38] sm:$0xf]
  %v50 = vld [vmem:[%s0 + $0x3c] sm:$0xf]
  %v51 = vld [vmem:[#allocation2] sm:$0xff]
  %v52 = vld [vmem:[#allocation2 + $0x8] sm:$0xff]
  %v53 = vld [vmem:[#allocation2 + $0x10] sm:$0xff]
  %v54 = vld [vmem:[#allocation2 + $0x18] sm:$0xff]
  %v55 = vld [vmem:[#allocation2 + $0x20] sm:$0xff]
  %v56 = vld [vmem:[#allocation2 + $0x28] sm:$0xff]
  %v57 = vld [vmem:[#allocation2 + $0x30] sm:$0xff]
  %v58 = vld [vmem:[#allocation2 + $0x38] sm:$0xff]
  %v59 = vld [vmem:[#allocation2 + $0x40] sm:$0xff]
  %v60 = vld [vmem:[#allocation2 + $0x48] sm:$0xff]
  %v61 = vld [vmem:[#allocation2 + $0x50] sm:$0xff]
  %v62 = vld [vmem:[#allocation2 + $0x58] sm:$0xff]
  %v63 = vld [vmem:[#allocation2 + $0x60] sm:$0xff]
  %v64 = vld [vmem:[#allocation2 + $0x68] sm:$0xff]
  %v65 = vld [vmem:[#allocation2 + $0x70] sm:$0xff]
  %v66 = vld [vmem:[#allocation2 + $0x78] sm:$0xff]
  %v67 = vld [vmem:[%s1] sm:$0xf]
  %v68 = vld [vmem:[%s1 + $0x4] sm:$0xf]
  %v69 = vld [vmem:[%s1 + $0x8] sm:$0xf]
  %v70 = vld [vmem:[%s1 + $0xc] sm:$0xf]
  %v71 = vld [vmem:[%s1 + $0x10] sm:$0xf]
  %v72 = vld [vmem:[%s1 + $0x14] sm:$0xf]
  %v73 = vld [vmem:[%s1 + $0x18] sm:$0xf]
  %v74 = vld [vmem:[%s1 + $0x1c] sm:$0xf]
  %v75 = vld [vmem:[%s1 + $0x20] sm:$0xf]
  %v76 = vld [vmem:[%s1 + $0x24] sm:$0xf]
  %v77 = vld [vmem:[%s1 + $0x28] sm:$0xf]
  %v78 = vld [vmem:[%s1 + $0x2c] sm:$0xf]
  %v79 = vld [vmem:[%s1 + $0x30] sm:$0xf]
  %v80 = vld [vmem:[%s1 + $0x34] sm:$0xf]
  %v81 = vld [vmem:[%s1 + $0x38] sm:$0xf]
  %v82 = vld [vmem:[%s1 + $0x3c] sm:$0xf]
  %v99 = vunpack.c.l.b16 %v35
  %v100 = vunpack.c.l.b16 %v36
  %v101 = vunpack.c.l.b16 %v37
  %v102 = vunpack.c.l.b16 %v38
  %v103 = vunpack.c.l.b16 %v39
  %v104 = vunpack.c.l.b16 %v40
  %v105 = vunpack.c.l.b16 %v41
  %v106 = vunpack.c.l.b16 %v42
  %v107 = vunpack.c.l.b16 %v43
  %v108 = vunpack.c.l.b16 %v44
  %v109 = vunpack.c.l.b16 %v45
  %v110 = vunpack.c.l.b16 %v46
  %v111 = vunpack.c.l.b16 %v47
  %v112 = vunpack.c.l.b16 %v48
  %v113 = vunpack.c.l.b16 %v49
  %v114 = vunpack.c.l.b16 %v50
  %v115 = vpack.c.b16 %v100, %v99
  %v116 = vpack.c.b16 %v102, %v101
  %v117 = vpack.c.b16 %v104, %v103
  %v118 = vpack.c.b16 %v106, %v105
  %v119 = vpack.c.b16 %v108, %v107
  %v120 = vpack.c.b16 %v110, %v109
  %v121 = vpack.c.b16 %v112, %v111
  %v122 = vpack.c.b16 %v114, %v113
  %v147 = vunpack.c.l.b16 %v67
  %v148 = vunpack.c.l.b16 %v68
  %v149 = vunpack.c.l.b16 %v69
  %v150 = vunpack.c.l.b16 %v70
  %v151 = vunpack.c.l.b16 %v71
  %v152 = vunpack.c.l.b16 %v72
  %v153 = vunpack.c.l.b16 %v73
  %v154 = vunpack.c.l.b16 %v74
  %v155 = vunpack.c.l.b16 %v75
  %v156 = vunpack.c.l.b16 %v76
  %v157 = vunpack.c.l.b16 %v77
  %v158 = vunpack.c.l.b16 %v78
  %v159 = vunpack.c.l.b16 %v79
  %v160 = vunpack.c.l.b16 %v80
  %v161 = vunpack.c.l.b16 %v81
  %v162 = vunpack.c.l.b16 %v82
  %v163 = vpack.c.b16 %v148, %v147
  %v164 = vpack.c.b16 %v150, %v149
  %v165 = vpack.c.b16 %v152, %v151
  %v166 = vpack.c.b16 %v154, %v153
  %v167 = vpack.c.b16 %v156, %v155
  %v168 = vpack.c.b16 %v158, %v157
  %v169 = vpack.c.b16 %v160, %v159
  %v170 = vpack.c.b16 %v162, %v161
  %179 = vmatprep.subr.bf16.mxu0 0
  %180 = vmatpush1.bf16.msra.mxu0 %v170
  %181 = vmatprep.subr.bf16.mxu0 0
  %182 = vmatpush1.bf16.msra.mxu0 %v169
  %183 = vmatprep.subr.bf16.mxu0 0
  %184 = vmatpush1.bf16.msra.mxu0 %v168
  %185 = vmatprep.subr.bf16.mxu0 0
  %186 = vmatpush1.bf16.msra.mxu0 %v167
  %187 = vmatprep.subr.bf16.mxu0 0
  %188 = vmatpush1.bf16.msra.mxu0 %v166
  %189 = vmatprep.subr.bf16.mxu0 0
  %190 = vmatpush1.bf16.msra.mxu0 %v165
  %191 = vmatprep.subr.bf16.mxu0 0
  %192 = vmatpush1.bf16.msra.mxu0 %v164
  %193 = vmatprep.subr.bf16.mxu0 0
  %194 = vmatpush1.bf16.msra.mxu0 %v163
  %195 = vmatprep.subr.bf16.mxu0 0
  %196 = vmatpush2.bf16.msra.mxu0 0
  %197 = vmatprep.subr.bf16.mxu0 0
  %198 = vmatpush2.bf16.msra.mxu0 0
  %199 = vmatprep.subr.bf16.mxu0 0
  %200 = vmatpush2.bf16.msra.mxu0 0
  %201 = vmatprep.subr.bf16.mxu0 0
  %202 = vmatpush2.bf16.msra.mxu0 0
  %203 = vmatprep.subr.bf16.mxu0 0
  %204 = vmatpush2.bf16.msra.mxu0 0
  %205 = vmatprep.subr.bf16.mxu0 0
  %206 = vmatpush2.bf16.msra.mxu0 0
  %207 = vmatprep.subr.bf16.mxu0 0
  %208 = vmatpush2.bf16.msra.mxu0 0
  %209 = vmatprep.subr.bf16.mxu0 0
  %210 = vmatpush2.bf16.msra.mxu0 0
  %211 = vmatprep.mubr.bf16.mxu0 0
  %212 = vmatmul.mubr.bf16.gmra.mxu0 %v115
  %v213 = vpop.f32.mrf.mxu0
  %v214 = vadd.f32 0.0, %v213
  %v215 = vpop.f32.mrf.mxu0
  %v216 = vpop.f32.mrf.mxu0
  %v217 = vadd.f32 0.0, %v216
  %v218 = vpop.f32.mrf.mxu0
  %219 = vmatprep.mubr.bf16.mxu0 0
  %220 = vmatmul.mubr.bf16.gmra.mxu0 %v116
  %v221 = vpop.f32.mrf.mxu0
  %v222 = vadd.f32 0.0, %v221
  %v223 = vpop.f32.mrf.mxu0
  %v224 = vpop.f32.mrf.mxu0
  %v225 = vadd.f32 0.0, %v224
  %v226 = vpop.f32.mrf.mxu0
  %227 = vmatprep.mubr.bf16.mxu0 0
  %228 = vmatmul.mubr.bf16.gmra.mxu0 %v117
  %v229 = vpop.f32.mrf.mxu0
  %v230 = vadd.f32 0.0, %v229
  %v231 = vpop.f32.mrf.mxu0
  %v232 = vpop.f32.mrf.mxu0
  %v233 = vadd.f32 0.0, %v232
  %v234 = vpop.f32.mrf.mxu0
  %235 = vmatprep.mubr.bf16.mxu0 0
  %236 = vmatmul.mubr.bf16.gmra.mxu0 %v118
  %v237 = vpop.f32.mrf.mxu0
  %v238 = vadd.f32 0.0, %v237
  %v239 = vpop.f32.mrf.mxu0
  %v240 = vpop.f32.mrf.mxu0
  %v241 = vadd.f32 0.0, %v240
  %v242 = vpop.f32.mrf.mxu0
  %243 = vmatprep.mubr.bf16.mxu0 0
  %244 = vmatmul.mubr.bf16.gmra.mxu0 %v119
  %v245 = vpop.f32.mrf.mxu0
  %v246 = vadd.f32 0.0, %v245
  %v247 = vpop.f32.mrf.mxu0
  %v248 = vpop.f32.mrf.mxu0
  %v249 = vadd.f32 0.0, %v248
  %v250 = vpop.f32.mrf.mxu0
  %251 = vmatprep.mubr.bf16.mxu0 0
  %252 = vmatmul.mubr.bf16.gmra.mxu0 %v120
  %v253 = vpop.f32.mrf.mxu0
  %v254 = vadd.f32 0.0, %v253
  %v255 = vpop.f32.mrf.mxu0
  %v256 = vpop.f32.mrf.mxu0
  %v257 = vadd.f32 0.0, %v256
  %v258 = vpop.f32.mrf.mxu0
  %259 = vmatprep.mubr.bf16.mxu0 0
  %260 = vmatmul.mubr.bf16.gmra.mxu0 %v121
  %v261 = vpop.f32.mrf.mxu0
  %v262 = vadd.f32 0.0, %v261
  %v263 = vpop.f32.mrf.mxu0
  %v264 = vpop.f32.mrf.mxu0
  %v265 = vadd.f32 0.0, %v264
  %v266 = vpop.f32.mrf.mxu0
  %267 = vmatprep.mubr.bf16.mxu0 0
  %268 = vmatmul.mubr.bf16.gmra.mxu0 %v122
  %v269 = vpop.f32.mrf.mxu0
  %v270 = vadd.f32 0.0, %v269
  %v271 = vpop.f32.mrf.mxu0
  %v272 = vpop.f32.mrf.mxu0
  %v273 = vadd.f32 0.0, %v272
  %v274 = vpop.f32.mrf.mxu0
  %275 = vdwg.mxu0
  %v276 = vadd.f32 %v51, %v214
  %v277 = vadd.f32 %v52, %v217
  %v278 = vadd.f32 %v53, %v222
  %v279 = vadd.f32 %v54, %v225
  %v280 = vadd.f32 %v55, %v230
  %v281 = vadd.f32 %v56, %v233
  %v282 = vadd.f32 %v57, %v238
  %v283 = vadd.f32 %v58, %v241
  %v284 = vadd.f32 %v59, %v246
  %v285 = vadd.f32 %v60, %v249
  %v286 = vadd.f32 %v61, %v254
  %v287 = vadd.f32 %v62, %v257
  %v288 = vadd.f32 %v63, %v262
  %v289 = vadd.f32 %v64, %v265
  %v290 = vadd.f32 %v65, %v270
  %v291 = vadd.f32 %v66, %v273
  %292 = vst [vmem:[#allocation2] sm:$0xff] %v276
  %293 = vst [vmem:[#allocation2 + $0x8] sm:$0xff] %v277
  %294 = vst [vmem:[#allocation2 + $0x10] sm:$0xff] %v278
  %295 = vst [vmem:[#allocation2 + $0x18] sm:$0xff] %v279
  %296 = vst [vmem:[#allocation2 + $0x20] sm:$0xff] %v280
  %297 = vst [vmem:[#allocation2 + $0x28] sm:$0xff] %v281
  %298 = vst [vmem:[#allocation2 + $0x30] sm:$0xff] %v282
  %299 = vst [vmem:[#allocation2 + $0x38] sm:$0xff] %v283
  %300 = vst [vmem:[#allocation2 + $0x40] sm:$0xff] %v284
  %301 = vst [vmem:[#allocation2 + $0x48] sm:$0xff] %v285
  %302 = vst [vmem:[#allocation2 + $0x50] sm:$0xff] %v286
  %303 = vst [vmem:[#allocation2 + $0x58] sm:$0xff] %v287
  %304 = vst [vmem:[#allocation2 + $0x60] sm:$0xff] %v288
  %305 = vst [vmem:[#allocation2 + $0x68] sm:$0xff] %v289
  %306 = vst [vmem:[#allocation2 + $0x70] sm:$0xff] %v290
  %307 = vst [vmem:[#allocation2 + $0x78] sm:$0xff] %v291
  // Predicated region
  $region18: #{tscd_forward.12} parent=0 // pred_check
    %p308 = pneg %p15
  $region19: #{tscd_forward.12} parent=0 // pred_check_branch
    %310 = sbr.rel (%p308) target = $region21
  $region20: #{tscd_forward.12} parent=0 // pred_region
    %v311 = vld [vmem:[#allocation2] sm:$0xff]
    %v312 = vld [vmem:[#allocation2 + $0x8] sm:$0xff]
    %v313 = vld [vmem:[#allocation2 + $0x10] sm:$0xff]
    %v314 = vld [vmem:[#allocation2 + $0x18] sm:$0xff]
    %v315 = vld [vmem:[#allocation2 + $0x20] sm:$0xff]
    %v316 = vld [vmem:[#allocation2 + $0x28] sm:$0xff]
    %v317 = vld [vmem:[#allocation2 + $0x30] sm:$0xff]
    %v318 = vld [vmem:[#allocation2 + $0x38] sm:$0xff]
    %v319 = vld [vmem:[#allocation2 + $0x40] sm:$0xff]
    %v320 = vld [vmem:[#allocation2 + $0x48] sm:$0xff]
    %v321 = vld [vmem:[#allocation2 + $0x50] sm:$0xff]
    %v322 = vld [vmem:[#allocation2 + $0x58] sm:$0xff]
    %v323 = vld [vmem:[#allocation2 + $0x60] sm:$0xff]
    %v324 = vld [vmem:[#allocation2 + $0x68] sm:$0xff]
    %v325 = vld [vmem:[#allocation2 + $0x70] sm:$0xff]
    %v326 = vld [vmem:[#allocation2 + $0x78] sm:$0xff]
    %v327 = vld [vmem:[%s2] sm:$0x1]
    %v329 = vlaneseq
    %v330 = vshrl.u32 %v329, 7
    %v331 = vsub.s32 0, %v330
    %v332 = vrot.slane %v327, %v331
    %v334 = vadd.f32 %v311, %v332
    %v335 = vadd.f32 %v312, %v332
    %v336 = vadd.f32 %v313, %v332
    %v337 = vadd.f32 %v314, %v332
    %v338 = vadd.f32 %v315, %v332
    %v339 = vadd.f32 %v316, %v332
    %v340 = vadd.f32 %v317, %v332
    %v341 = vadd.f32 %v318, %v332
    %v342 = vadd.f32 %v319, %v332
    %v343 = vadd.f32 %v320, %v332
    %v344 = vadd.f32 %v321, %v332
    %v345 = vadd.f32 %v322, %v332
    %v346 = vadd.f32 %v323, %v332
    %v347 = vadd.f32 %v324, %v332
    %v348 = vadd.f32 %v325, %v332
    %v349 = vadd.f32 %v326, %v332
    %350 = vst [vmem:[%s3] sm:$0xff] %v334
    %351 = vst [vmem:[%s3 + $0x8] sm:$0xff] %v335
    %352 = vst [vmem:[%s3 + $0x10] sm:$0xff] %v336
    %353 = vst [vmem:[%s3 + $0x18] sm:$0xff] %v337
    %354 = vst [vmem:[%s3 + $0x20] sm:$0xff] %v338
    %355 = vst [vmem:[%s3 + $0x28] sm:$0xff] %v339
    %356 = vst [vmem:[%s3 + $0x30] sm:$0xff] %v340
    %357 = vst [vmem:[%s3 + $0x38] sm:$0xff] %v341
    %358 = vst [vmem:[%s3 + $0x40] sm:$0xff] %v342
    %359 = vst [vmem:[%s3 + $0x48] sm:$0xff] %v343
    %360 = vst [vmem:[%s3 + $0x50] sm:$0xff] %v344
    %361 = vst [vmem:[%s3 + $0x58] sm:$0xff] %v345
    %362 = vst [vmem:[%s3 + $0x60] sm:$0xff] %v346
    %363 = vst [vmem:[%s3 + $0x68] sm:$0xff] %v347
    %364 = vst [vmem:[%s3 + $0x70] sm:$0xff] %v348
    %365 = vst [vmem:[%s3 + $0x78] sm:$0xff] %v349
  $region21: #{tscd_forward.12} parent=0 // pred_fallthru
    _
  // Predicated region
  $region22: #{tscd_forward.12} parent=0 // pred_check
    _
  $region23: #{tscd_forward.12} parent=0 // pred_check_branch
    %367 = sbr.rel (0) target = $region25
  $region24: #{tscd_forward.12} parent=0 // pred_region
    _
  $region25: #{tscd_forward.12} parent=0 // pred_fallthru
    _
  // Predicated region
  $region26: #{tscd_forward.12} parent=0 // pred_check
    _
  $region27: #{tscd_forward.12} parent=0 // pred_check_branch
    %369 = sbr.rel (0) target = $region29
  $region28: #{tscd_forward.12} parent=0 // pred_region
    _
  $region29: #{tscd_forward.12} parent=0 // pred_fallthru
    _

// kernel: tscd_forward.13
$region0: #{tscd_forward.13}
  #allocation0 [shape = 'u32[]', space=smem, size = 0x4, offset = 0x4, fixed_abs, tag = 'smem constant byte address 0x4 - core index']
  #allocation1 [shape = 'u32[144,128]{1,0:T(1,128)}', space=vmem, size = 0x12000, scoped, tag = 'internal scratch']
  #allocation2 [shape = 'f32[128,128]{1,0:T(8,128)}', space=vmem, size = 0x10000, scoped, tag = 'scratch operand']
  %s0 = inlined_call_operand.vmem [shape: bf16[128,256], index: 0, kind: input, shape index: {}]
  %s1 = inlined_call_operand.vmem [shape: bf16[256,128], index: 1, kind: input, shape index: {}]
  %s2 = inlined_call_operand.vmem [shape: f32[1,128], index: 2, kind: input, shape index: {}]
  %s3 = inlined_call_operand.vmem [shape: f32[128,128], index: 3, kind: output, shape index: {}]
  %s4 = sld [smem:[#allocation0]]
  $region94: #{tscd_forward.13} parent=0
    _
  %s6 = ssub.s32 1, %s4
  %s7 = scalar_select 0, %s6, %s4
  $region1: #{tscd_forward.13} parent=0
    #allocation3 [shape = 'u8[65536]{0}', space=vmem, size = 0x10000, scoped, tag = 'input window, operand 0']
    loop: start=0, step=1, limit=4
    $region2: #{tscd_forward.13} parent=1 // loop_pre_header
      _
    $region3: #{tscd_forward.13} parent=1 // loop_header
      %s9 = sphi 0, %s13
      %p10 = scmp.ge.s32.totalorder %s9, 4
      %s16 = sphi 0, %s35
      %s17 = sphi 0, %s31
      %s18 = sphi 0, %s27
      %s19 = sphi 0, %s16
      %s20 = sphi 0, %s17
      %s21 = sphi 0, %s18
      %s22 = sphi 0, %s19
      %s23 = sphi 0, %s20
      %s24 = sphi 0, %s21
      %s40 = sphi 0, %s42
      %s43 = sphi 0, %s40
      %s44 = sphi 0, %s43
      %s60 = sphi 0, %s44
      %s68 = sphi 0, %s70
      %s71 = sphi 0, %s68
      %s72 = sphi 0, %s71
      %s88 = sphi 0, %s72
      %s94 = sphi 0, %s96
      %s97 = sphi 0, %s94
      %s98 = sphi 0, %s97
      %s114 = sphi 0, %s98
      %s122 = sphi 0, %s124
      %s125 = sphi 0, %s122
      %s126 = sphi 0, %s125
      %s142 = sphi 0, %s126
    $region4: #{tscd_forward.13} parent=1 // loop_header_branch
      %12 = sbr.rel (%p10) target = $region8
    $region5: #{tscd_forward.13} parent=1 // loop_body
      %s14 = ssub.s32 %s9, 1
      %s15 = ssub.s32 %s9, 2
      %s25 = sadd.s32 1, %s18
      %p26 = scmp.ge.s32.totalorder %s25, 2
      %s27 = scalar_select %p26, 0, %s25
      %s28 = sadd.s32 1, %s17
      %s29 = scalar_select %p26, %s28, %s17
      %p30 = scmp.ge.s32.totalorder %s29, 1
      %s31 = scalar_select %p30, 0, %s29
      %s32 = sadd.s32 1, %s16
      %s33 = scalar_select %p30, %s32, %s16
      %p34 = scmp.ge.s32.totalorder %s33, 1
      %s35 = scalar_select %p34, 0, %s33
      %s36 = ssub.s32 %s16, %s35
      %s37 = ssub.s32 %s18, %s27
      %s38 = sor.u32 %s36, %s37
      %p39 = scmp.eq.s32.totalorder %s38, 0
      %s41 = sadd.s32 %s40, 1
      %s42 = scalar_select %p39, %s40, %s41
      %p45 = pneg %p39
      %p46 = scmp.eq.s32.totalorder %s9, 1
      %p47 = por %p45, %p46
      %p48 = scmp.ne.s32.totalorder %s40, %s43
      %p49 = scmp.eq.s32.totalorder %s9, 0
      %p50 = por %p48, %p49
      %p51 = scmp.ne.s32.totalorder %s40, %s43
      %p52 = scmp.eq.s32.totalorder %s14, 1
      %p53 = por %p51, %p52
      %p54 = scmp.ne.s32.totalorder %s43, %s44
      %p55 = scmp.eq.s32.totalorder %s14, 0
      %p56 = por %p54, %p55
      %p57 = scmp.ne.s32.totalorder %s43, %s44
      %p58 = scmp.eq.s32.totalorder %s15, 1
      %p59 = por %p57, %p58
      %p61 = scmp.ne.s32.totalorder %s44, %s60
      %p62 = scmp.eq.s32.totalorder %s15, 0
      %p63 = por %p61, %p62
      %s64 = ssub.s32 %s18, %s27
      %s65 = ssub.s32 %s17, %s31
      %s66 = sor.u32 %s64, %s65
      %p67 = scmp.eq.s32.totalorder %s66, 0
      %s69 = sadd.s32 %s68, 1
      %s70 = scalar_select %p67, %s68, %s69
      %p73 = pneg %p67
      %p74 = scmp.eq.s32.totalorder %s9, 1
      %p75 = por %p73, %p74
      %p76 = scmp.ne.s32.totalorder %s68, %s71
      %p77 = scmp.eq.s32.totalorder %s9, 0
      %p78 = por %p76, %p77
      %p79 = scmp.ne.s32.totalorder %s68, %s71
      %p80 = scmp.eq.s32.totalorder %s14, 1
      %p81 = por %p79, %p80
      %p82 = scmp.ne.s32.totalorder %s71, %s72
      %p83 = scmp.eq.s32.totalorder %s14, 0
      %p84 = por %p82, %p83
      %p85 = scmp.ne.s32.totalorder %s71, %s72
      %p86 = scmp.eq.s32.totalorder %s15, 1
      %p87 = por %p85, %p86
      %p89 = scmp.ne.s32.totalorder %s72, %s88
      %p90 = scmp.eq.s32.totalorder %s15, 0
      %p91 = por %p89, %p90
      %s92 = ssub.s32 %s17, %s31
      %p93 = scmp.eq.s32.totalorder %s92, 0
      %s95 = sadd.s32 %s94, 1
      %s96 = scalar_select %p93, %s94, %s95
      %p99 = pneg %p93
      %p100 = scmp.eq.s32.totalorder %s9, 1
      %p101 = por %p99, %p100
      %p102 = scmp.ne.s32.totalorder %s94, %s97
      %p103 = scmp.eq.s32.totalorder %s9, 0
      %p104 = por %p102, %p103
      %p105 = scmp.ne.s32.totalorder %s94, %s97
      %p106 = scmp.eq.s32.totalorder %s14, 1
      %p107 = por %p105, %p106
      %p108 = scmp.ne.s32.totalorder %s97, %s98
      %p109 = scmp.eq.s32.totalorder %s14, 0
      %p110 = por %p108, %p109
      %p111 = scmp.ne.s32.totalorder %s97, %s98
      %p112 = scmp.eq.s32.totalorder %s15, 1
      %p113 = por %p111, %p112
      %p115 = scmp.ne.s32.totalorder %s98, %s114
      %p116 = scmp.eq.s32.totalorder %s15, 0
      %p117 = por %p115, %p116
      %s118 = ssub.s32 %s16, %s35
      %s119 = ssub.s32 %s17, %s31
      %s120 = sor.u32 %s118, %s119
      %p121 = scmp.eq.s32.totalorder %s120, 0
      %s123 = sadd.s32 %s122, 1
      %s124 = scalar_select %p121, %s122, %s123
      %p127 = pneg %p121
      %p128 = scmp.eq.s32.totalorder %s9, 1
      %p129 = por %p127, %p128
      %p130 = scmp.ne.s32.totalorder %s122, %s125
      %p131 = scmp.eq.s32.totalorder %s9, 0
      %p132 = por %p130, %p131
      %p133 = scmp.ne.s32.totalorder %s122, %s125
      %p134 = scmp.eq.s32.totalorder %s14, 1
      %p135 = por %p133, %p134
      %p136 = scmp.ne.s32.totalorder %s125, %s126
      %p137 = scmp.eq.s32.totalorder %s14, 0
      %p138 = por %p136, %p137
      %p139 = scmp.ne.s32.totalorder %s125, %s126
      %p140 = scmp.eq.s32.totalorder %s15, 1
      %p141 = por %p139, %p140
      %p143 = scmp.ne.s32.totalorder %s126, %s142
      %p144 = scmp.eq.s32.totalorder %s15, 0
      %p145 = por %p143, %p144
      %p146 = scmp.le.s32.totalorder 1, %s9
      %p147 = scmp.lt.s32.totalorder %s9, 3
      %p148 = pnand %p146, %p147
      %p149 = pneg %p148
      // Predicated region
      $region9: #{tscd_forward.13} parent=5 // pred_check
        _
      $region10: #{tscd_forward.13} parent=5 // pred_check_branch
        %151 = sbr.rel (%p148) target = $region12
      $region11: #{tscd_forward.13} parent=5 // pred_region
        %s152 = ssub.s32 %s9, 1
        // Predicated region
        $region13: #{tscd_forward.13} parent=11 // pred_check
          %p153 = pneg %p110
        $region14: #{tscd_forward.13} parent=11 // pred_check_branch
          %155 = sbr.rel (%p153) target = $region16
        $region15: #{tscd_forward.13} parent=11 // pred_region
          %p156 = scmp.lt.s32.totalorder %s20, 0
          %s157 = scalar_select %p156, %s20, 0
          %s158 = scalar_lea.vmem %s2, %s157
        $region16: #{tscd_forward.13} parent=11 // pred_fallthru
          _
      $region12: #{tscd_forward.13} parent=5 // pred_fallthru
        _
      %p159 = scmp.lt.s32.totalorder %s9, 2
      // Predicated region
      $region17: #{tscd_forward.13} parent=5 // pred_check
        %p160 = pneg %p159
      $region18: #{tscd_forward.13} parent=5 // pred_check_branch
        %162 = sbr.rel (%p160) target = $region20
      $region19: #{tscd_forward.13} parent=5 // pred_region
        // Predicated region
        $region21: #{tscd_forward.13} parent=19 // pred_check
          %p163 = pneg %p50
        $region22: #{tscd_forward.13} parent=19 // pred_check_branch
          %165 = sbr.rel (%p163) target = $region24
        $region23: #{tscd_forward.13} parent=19 // pred_region
          %s166 = sand.u32 %s40, 1
          %s167 = sand.u32 %s40, 1
          %s168 = smul.addr %s167, 64
          %s169 = scalar_lea.vmem [#allocation3], %s168
          %s170 = smul.u32 16, %s16
          %s171 = smul.addr %s170, 2
          %s172 = sadd.s32 %s18, %s171
          %s173 = smul.addr %s172, 4
          %s174 = scalar_lea.vmem %s0, %s173
          // Predicated region
          $region25: #{tscd_forward.13} parent=23 // pred_check
            _
          $region26: #{tscd_forward.13} parent=23 // pred_check_branch
            %176 = sbr.rel (0) target = $region28
          $region27: #{tscd_forward.13} parent=23 // pred_region
            // Predicated region
            $region29: #{tscd_forward.13} parent=27 // pred_check
              _
            $region30: #{tscd_forward.13} parent=27 // pred_check_branch
              %178 = sbr.rel target = $region32
            $region31: #{tscd_forward.13} parent=27 // pred_region
              // Predicated region
              $region44: #{tscd_forward.13} parent=31 // pred_check
                _
              $region45: #{tscd_forward.13} parent=31 // pred_check_branch
                %224 = sbr.rel (0) target = $region47
              $region46: #{tscd_forward.13} parent=31 // pred_region
                loop: start=0, step=1, limit=1
                $region48: #{tscd_forward.13} parent=46 // loop_pre_header
                  _
                $region49: #{tscd_forward.13} parent=46 // loop_header
                  %s226 = sphi 0, %s230
                  %p227 = scmp.ge.s32.totalorder %s226, 1
                  %s231 = sphi %s174, %s174
                  %s232 = sphi %s169, %s169
                $region50: #{tscd_forward.13} parent=46 // loop_header_branch
                  %229 = sbr.rel (%p227) target = $region54
                $region51: #{tscd_forward.13} parent=46 // loop_body
                  _
                $region52: #{tscd_forward.13} parent=46 // loop_footer
                  %s230 = sadd.s32 1, %s226
                $region53: #{tscd_forward.13} parent=46 // loop_footer_branch
                  %225 = sbr.rel target = $region49
                $region54: #{tscd_forward.13} parent=46 // loop_exit
                  _
                %s234 = ssub.s32 16, 1
                loop: start=0, step=1, limit=1
                $region55: #{tscd_forward.13} parent=46 // loop_pre_header
                  _
                $region56: #{tscd_forward.13} parent=46 // loop_header
                  %s236 = sphi 0, %s240
                  %p237 = scmp.ge.s32.totalorder %s236, 1
                  %s241 = sphi %s174, %s174
                  %s242 = sphi %s169, %s169
                $region57: #{tscd_forward.13} parent=46 // loop_header_branch
                  %239 = sbr.rel (%p237) target = $region61
                $region58: #{tscd_forward.13} parent=46 // loop_body
                  %v243 = vld [vmem:[%s241] sm:%s234]
                  %244 = vst [vmem:[%s242] sm:%s234] %v243
                  %v245 = vld [vmem:[%s241 + $0x8] sm:%s234]
                  %246 = vst [vmem:[%s242 + $0x4] sm:%s234] %v245
                  %v247 = vld [vmem:[%s241 + $0x10] sm:%s234]
                  %248 = vst [vmem:[%s242 + $0x8] sm:%s234] %v247
                  %v249 = vld [vmem:[%s241 + $0x18] sm:%s234]
                  %250 = vst [vmem:[%s242 + $0xc] sm:%s234] %v249
                  %v251 = vld [vmem:[%s241 + $0x20] sm:%s234]
                  %252 = vst [vmem:[%s242 + $0x10] sm:%s234] %v251
                  %v253 = vld [vmem:[%s241 + $0x28] sm:%s234]
                  %254 = vst [vmem:[%s242 + $0x14] sm:%s234] %v253
                  %v255 = vld [vmem:[%s241 + $0x30] sm:%s234]
                  %256 = vst [vmem:[%s242 + $0x18] sm:%s234] %v255
                  %v257 = vld [vmem:[%s241 + $0x38] sm:%s234]
                  %258 = vst [vmem:[%s242 + $0x1c] sm:%s234] %v257
                  %v259 = vld [vmem:[%s241 + $0x40] sm:%s234]
                  %260 = vst [vmem:[%s242 + $0x20] sm:%s234] %v259
                  %v261 = vld [vmem:[%s241 + $0x48] sm:%s234]
                  %262 = vst [vmem:[%s242 + $0x24] sm:%s234] %v261
                  %v263 = vld [vmem:[%s241 + $0x50] sm:%s234]
                  %264 = vst [vmem:[%s242 + $0x28] sm:%s234] %v263
                  %v265 = vld [vmem:[%s241 + $0x58] sm:%s234]
                  %266 = vst [vmem:[%s242 + $0x2c] sm:%s234] %v265
                  %v267 = vld [vmem:[%s241 + $0x60] sm:%s234]
                  %268 = vst [vmem:[%s242 + $0x30] sm:%s234] %v267
                  %v269 = vld [vmem:[%s241 + $0x68] sm:%s234]
                  %270 = vst [vmem:[%s242 + $0x34] sm:%s234] %v269
                  %v271 = vld [vmem:[%s241 + $0x70] sm:%s234]
                  %272 = vst [vmem:[%s242 + $0x38] sm:%s234] %v271
                  %v273 = vld [vmem:[%s241 + $0x78] sm:%s234]
                  %274 = vst [vmem:[%s242 + $0x3c] sm:%s234] %v273
                $region59: #{tscd_forward.13} parent=46 // loop_footer
                  %s240 = sadd.s32 1, %s236
                $region60: #{tscd_forward.13} parent=46 // loop_footer_branch
                  %235 = sbr.rel target = $region56
                $region61: #{tscd_forward.13} parent=46 // loop_exit
                  _
              $region47: #{tscd_forward.13} parent=31 // pred_fallthru
                _
            $region32: #{tscd_forward.13} parent=27 // pred_fallthru
              _
            // Predicated region
            $region33: #{tscd_forward.13} parent=27 // pred_check
              _
            $region34: #{tscd_forward.13} parent=27 // pred_check_branch
              %180 = sbr.rel (0) target = $region36
            $region35: #{tscd_forward.13} parent=27 // pred_region
              %s182 = ssub.s32 16, 1
              loop: start=0, step=1, limit=1
              $region37: #{tscd_forward.13} parent=35 // loop_pre_header
                _
              $region38: #{tscd_forward.13} parent=35 // loop_header
                %s184 = sphi 0, %s188
                %p185 = scmp.ge.s32.totalorder %s184, 1
                %s189 = sphi %s174, %s174
                %s190 = sphi %s169, %s169
              $region39: #{tscd_forward.13} parent=35 // loop_header_branch
                %187 = sbr.rel (%p185) target = $region43
              $region40: #{tscd_forward.13} parent=35 // loop_body
                %v191 = vld [vmem:[%s189] sm:%s182]
                %192 = vst [vmem:[%s190] sm:%s182] %v191
                %v193 = vld [vmem:[%s189 + $0x8] sm:%s182]
                %194 = vst [vmem:[%s190 + $0x4] sm:%s182] %v193
                %v195 = vld [vmem:[%s189 + $0x10] sm:%s182]
                %196 = vst [vmem:[%s190 + $0x8] sm:%s182] %v195
                %v197 = vld [vmem:[%s189 + $0x18] sm:%s182]
                %198 = vst [vmem:[%s190 + $0xc] sm:%s182] %v197
                %v199 = vld [vmem:[%s189 + $0x20] sm:%s182]
                %200 = vst [vmem:[%s190 + $0x10] sm:%s182] %v199
                %v201 = vld [vmem:[%s189 + $0x28] sm:%s182]
                %202 = vst [vmem:[%s190 + $0x14] sm:%s182] %v201
                %v203 = vld [vmem:[%s189 + $0x30] sm:%s182]
                %204 = vst [vmem:[%s190 + $0x18] sm:%s182] %v203
                %v205 = vld [vmem:[%s189 + $0x38] sm:%s182]
                %206 = vst [vmem:[%s190 + $0x1c] sm:%s182] %v205
                %v207 = vld [vmem:[%s189 + $0x40] sm:%s182]
                %208 = vst [vmem:[%s190 + $0x20] sm:%s182] %v207
                %v209 = vld [vmem:[%s189 + $0x48] sm:%s182]
                %210 = vst [vmem:[%s190 + $0x24] sm:%s182] %v209
                %v211 = vld [vmem:[%s189 + $0x50] sm:%s182]
                %212 = vst [vmem:[%s190 + $0x28] sm:%s182] %v211
                %v213 = vld [vmem:[%s189 + $0x58] sm:%s182]
                %214 = vst [vmem:[%s190 + $0x2c] sm:%s182] %v213
                %v215 = vld [vmem:[%s189 + $0x60] sm:%s182]
                %216 = vst [vmem:[%s190 + $0x30] sm:%s182] %v215
                %v217 = vld [vmem:[%s189 + $0x68] sm:%s182]
                %218 = vst [vmem:[%s190 + $0x34] sm:%s182] %v217
                %v219 = vld [vmem:[%s189 + $0x70] sm:%s182]
                %220 = vst [vmem:[%s190 + $0x38] sm:%s182] %v219
                %v221 = vld [vmem:[%s189 + $0x78] sm:%s182]
                %222 = vst [vmem:[%s190 + $0x3c] sm:%s182] %v221
              $region41: #{tscd_forward.13} parent=35 // loop_footer
                %s188 = sadd.s32 1, %s184
              $region42: #{tscd_forward.13} parent=35 // loop_footer_branch
                %183 = sbr.rel target = $region38
              $region43: #{tscd_forward.13} parent=35 // loop_exit
                _
            $region36: #{tscd_forward.13} parent=27 // pred_fallthru
              _
          $region28: #{tscd_forward.13} parent=23 // pred_fallthru
            _
          %275 = vnop
        $region24: #{tscd_forward.13} parent=19 // pred_fallthru
          _
        // Predicated region
        $region62: #{tscd_forward.13} parent=19 // pred_check
          %p276 = pneg %p78
        $region63: #{tscd_forward.13} parent=19 // pred_check_branch
          %278 = sbr.rel (%p276) target = $region65
        $region64: #{tscd_forward.13} parent=19 // pred_region
          %s279 = smul.u32 16, %s18
          %p280 = scmp.lt.s32.totalorder %s279, 31
          %s281 = scalar_select %p280, %s279, 31
          %p282 = scmp.lt.s32.totalorder %s17, 0
          %s283 = scalar_select %p282, %s17, 0
          %s284 = sadd.s32 %s283, %s281
          %s285 = smul.addr %s284, 4
          %s286 = scalar_lea.vmem %s1, %s285
          %s287 = smul.u32 16, %s18
        $region65: #{tscd_forward.13} parent=19 // pred_fallthru
          _
      $region20: #{tscd_forward.13} parent=5 // pred_fallthru
        _
      %p288 = scmp.le.s32.totalorder 1, %s9
      %p289 = scmp.lt.s32.totalorder %s9, 3
      %p290 = pnand %p288, %p289
      %p291 = pneg %p290
      // Predicated region
      $region66: #{tscd_forward.13} parent=5 // pred_check
        _
      $region67: #{tscd_forward.13} parent=5 // pred_check_branch
        %293 = sbr.rel (%p290) target = $region69
      $region68: #{tscd_forward.13} parent=5 // pred_region
        %s294 = ssub.s32 %s9, 1
        %s295 = sand.u32 %s43, 1
        %s296 = sand.u32 %s43, 1
        %s297 = smul.addr %s296, 64
        %s298 = scalar_lea.vmem [#allocation3], %s297
        // Predicated region
        $region70: #{tscd_forward.13} parent=68 // pred_check
          %p299 = pneg %p56
        $region71: #{tscd_forward.13} parent=68 // pred_check_branch
          %301 = sbr.rel (%p299) target = $region73
        $region72: #{tscd_forward.13} parent=68 // pred_region
          _
        $region73: #{tscd_forward.13} parent=68 // pred_fallthru
          _
        %s302 = sand.u32 %s43, 1
        %s303 = sand.u32 %s43, 1
        %s304 = smul.addr %s303, 64
        %s305 = scalar_lea.vmem [#allocation3], %s304
        %p306 = pneg %p56
        %p307 = pneg %p53
        %s308 = smul.u32 16, %s21
        %p309 = scmp.lt.s32.totalorder %s308, 31
        %s310 = scalar_select %p309, %s308, 31
        %p311 = scmp.lt.s32.totalorder %s20, 0
        %s312 = scalar_select %p311, %s20, 0
        %s313 = sadd.s32 %s312, %s310
        %s314 = smul.addr %s313, 4
        %s315 = scalar_lea.vmem %s1, %s314
        %p316 = pneg %p84
        %p317 = pneg %p81
        %p318 = scmp.lt.s32.totalorder %s20, 0
        %s319 = scalar_select %p318, %s20, 0
        %s320 = scalar_lea.vmem %s2, %s319
        %p321 = pneg %p110
        %p322 = pneg %p107
        %p323 = pneg %p138
        %p324 = pneg %p135
        %s325 = smul.u32 16, %s19
        %p326 = scmp.lt.s32.totalorder %s325, 15
        %s327 = scalar_select %p326, %s325, 15
        %p328 = scmp.lt.s32.totalorder %s20, 0
        %s329 = scalar_select %p328, %s20, 0
        %s330 = sadd.s32 %s329, %s327
        %s331 = smul.addr %s330, 8
        %s332 = scalar_lea.vmem %s3, %s331
        %s333 = smul.u32 16, %s19
        %s334 = smul.u32 16, %s21
        %p335 = scmp.lt.s32.totalorder %s334, 31
        %s336 = scalar_select %p335, %s334, 31
        %p337 = scmp.lt.s32.totalorder %s20, 0
        %s338 = scalar_select %p337, %s20, 0
        %s339 = sadd.s32 %s338, %s336
        %s340 = smul.addr %s339, 4
        %s341 = scalar_lea.vmem %s1, %s340
        %s342 = smul.u32 16, %s21
        %p343 = scmp.lt.s32.totalorder %s20, 0
        %s344 = scalar_select %p343, %s20, 0
        %s345 = scalar_lea.vmem %s2, %s344
        %s346 = smul.u32 16, %s19
        %p347 = scmp.lt.s32.totalorder %s346, 15
        %s348 = scalar_select %p347, %s346, 15
        %p349 = scmp.lt.s32.totalorder %s20, 0
        %s350 = scalar_select %p349, %s20, 0
        %s351 = sadd.s32 %s350, %s348
        %s352 = smul.addr %s351, 8
        %s353 = scalar_lea.vmem %s3, %s352
        %s354 = smul.u32 16, %s19
        %p356 = scmp.eq.s32.totalorder %s21, 0
        // Predicated region
        $region74: #{tscd_forward.13} parent=68 // pred_check
          %p357 = pneg %p356
        $region75: #{tscd_forward.13} parent=68 // pred_check_branch
          %359 = sbr.rel (%p357) target = $region77
        $region76: #{tscd_forward.13} parent=68 // pred_region
          %360 = vst [vmem:[#allocation2] sm:$0xff] 0.0
          %361 = vst [vmem:[#allocation2 + $0x8] sm:$0xff] 0.0
          %362 = vst [vmem:[#allocation2 + $0x10] sm:$0xff] 0.0
          %363 = vst [vmem:[#allocation2 + $0x18] sm:$0xff] 0.0
          %364 = vst [vmem:[#allocation2 + $0x20] sm:$0xff] 0.0
          %365 = vst [vmem:[#allocation2 + $0x28] sm:$0xff] 0.0
          %366 = vst [vmem:[#allocation2 + $0x30] sm:$0xff] 0.0
          %367 = vst [vmem:[#allocation2 + $0x38] sm:$0xff] 0.0
          %368 = vst [vmem:[#allocation2 + $0x40] sm:$0xff] 0.0
          %369 = vst [vmem:[#allocation2 + $0x48] sm:$0xff] 0.0
          %370 = vst [vmem:[#allocation2 + $0x50] sm:$0xff] 0.0
          %371 = vst [vmem:[#allocation2 + $0x58] sm:$0xff] 0.0
          %372 = vst [vmem:[#allocation2 + $0x60] sm:$0xff] 0.0
          %373 = vst [vmem:[#allocation2 + $0x68] sm:$0xff] 0.0
          %374 = vst [vmem:[#allocation2 + $0x70] sm:$0xff] 0.0
          %375 = vst [vmem:[#allocation2 + $0x78] sm:$0xff] 0.0
        $region77: #{tscd_forward.13} parent=68 // pred_fallthru
          _
        %v376 = vld [vmem:[%s298] sm:$0xf]
        %v377 = vld [vmem:[%s298 + $0x4] sm:$0xf]
        %v378 = vld [vmem:[%s298 + $0x8] sm:$0xf]
        %v379 = vld [vmem:[%s298 + $0xc] sm:$0xf]
        %v380 = vld [vmem:[%s298 + $0x10] sm:$0xf]
        %v381 = vld [vmem:[%s298 + $0x14] sm:$0xf]
        %v382 = vld [vmem:[%s298 + $0x18] sm:$0xf]
        %v383 = vld [vmem:[%s298 + $0x1c] sm:$0xf]
        %v384 = vld [vmem:[%s298 + $0x20] sm:$0xf]
        %v385 = vld [vmem:[%s298 + $0x24] sm:$0xf]
        %v386 = vld [vmem:[%s298 + $0x28] sm:$0xf]
        %v387 = vld [vmem:[%s298 + $0x2c] sm:$0xf]
        %v388 = vld [vmem:[%s298 + $0x30] sm:$0xf]
        %v389 = vld [vmem:[%s298 + $0x34] sm:$0xf]
        %v390 = vld [vmem:[%s298 + $0x38] sm:$0xf]
        %v391 = vld [vmem:[%s298 + $0x3c] sm:$0xf]
        %v392 = vld [vmem:[#allocation2] sm:$0xff]
        %v393 = vld [vmem:[#allocation2 + $0x8] sm:$0xff]
        %v394 = vld [vmem:[#allocation2 + $0x10] sm:$0xff]
        %v395 = vld [vmem:[#allocation2 + $0x18] sm:$0xff]
        %v396 = vld [vmem:[#allocation2 + $0x20] sm:$0xff]
        %v397 = vld [vmem:[#allocation2 + $0x28] sm:$0xff]
        %v398 = vld [vmem:[#allocation2 + $0x30] sm:$0xff]
        %v399 = vld [vmem:[#allocation2 + $0x38] sm:$0xff]
        %v400 = vld [vmem:[#allocation2 + $0x40] sm:$0xff]
        %v401 = vld [vmem:[#allocation2 + $0x48] sm:$0xff]
        %v402 = vld [vmem:[#allocation2 + $0x50] sm:$0xff]
        %v403 = vld [vmem:[#allocation2 + $0x58] sm:$0xff]
        %v404 = vld [vmem:[#allocation2 + $0x60] sm:$0xff]
        %v405 = vld [vmem:[#allocation2 + $0x68] sm:$0xff]
        %v406 = vld [vmem:[#allocation2 + $0x70] sm:$0xff]
        %v407 = vld [vmem:[#allocation2 + $0x78] sm:$0xff]
        %v408 = vld [vmem:[%s341] sm:$0xf]
        %v409 = vld [vmem:[%s341 + $0x4] sm:$0xf]
        %v410 = vld [vmem:[%s341 + $0x8] sm:$0xf]
        %v411 = vld [vmem:[%s341 + $0xc] sm:$0xf]
        %v412 = vld [vmem:[%s341 + $0x10] sm:$0xf]
        %v413 = vld [vmem:[%s341 + $0x14] sm:$0xf]
        %v414 = vld [vmem:[%s341 + $0x18] sm:$0xf]
        %v415 = vld [vmem:[%s341 + $0x1c] sm:$0xf]
        %v416 = vld [vmem:[%s341 + $0x20] sm:$0xf]
        %v417 = vld [vmem:[%s341 + $0x24] sm:$0xf]
        %v418 = vld [vmem:[%s341 + $0x28] sm:$0xf]
        %v419 = vld [vmem:[%s341 + $0x2c] sm:$0xf]
        %v420 = vld [vmem:[%s341 + $0x30] sm:$0xf]
        %v421 = vld [vmem:[%s341 + $0x34] sm:$0xf]
        %v422 = vld [vmem:[%s341 + $0x38] sm:$0xf]
        %v423 = vld [vmem:[%s341 + $0x3c] sm:$0xf]
        %v440 = vunpack.c.l.b16 %v376
        %v441 = vunpack.c.l.b16 %v377
        %v442 = vunpack.c.l.b16 %v378
        %v443 = vunpack.c.l.b16 %v379
        %v444 = vunpack.c.l.b16 %v380
        %v445 = vunpack.c.l.b16 %v381
        %v446 = vunpack.c.l.b16 %v382
        %v447 = vunpack.c.l.b16 %v383
        %v448 = vunpack.c.l.b16 %v384
        %v449 = vunpack.c.l.b16 %v385
        %v450 = vunpack.c.l.b16 %v386
        %v451 = vunpack.c.l.b16 %v387
        %v452 = vunpack.c.l.b16 %v388
        %v453 = vunpack.c.l.b16 %v389
        %v454 = vunpack.c.l.b16 %v390
        %v455 = vunpack.c.l.b16 %v391
        %v456 = vpack.c.b16 %v441, %v440
        %v457 = vpack.c.b16 %v443, %v442
        %v458 = vpack.c.b16 %v445, %v444
        %v459 = vpack.c.b16 %v447, %v446
        %v460 = vpack.c.b16 %v449, %v448
        %v461 = vpack.c.b16 %v451, %v450
        %v462 = vpack.c.b16 %v453, %v452
        %v463 = vpack.c.b16 %v455, %v454
        %v488 = vunpack.c.l.b16 %v408
        %v489 = vunpack.c.l.b16 %v409
        %v490 = vunpack.c.l.b16 %v410
        %v491 = vunpack.c.l.b16 %v411
        %v492 = vunpack.c.l.b16 %v412
        %v493 = vunpack.c.l.b16 %v413
        %v494 = vunpack.c.l.b16 %v414
        %v495 = vunpack.c.l.b16 %v415
        %v496 = vunpack.c.l.b16 %v416
        %v497 = vunpack.c.l.b16 %v417
        %v498 = vunpack.c.l.b16 %v418
        %v499 = vunpack.c.l.b16 %v419
        %v500 = vunpack.c.l.b16 %v420
        %v501 = vunpack.c.l.b16 %v421
        %v502 = vunpack.c.l.b16 %v422
        %v503 = vunpack.c.l.b16 %v423
        %v504 = vpack.c.b16 %v489, %v488
        %v505 = vpack.c.b16 %v491, %v490
        %v506 = vpack.c.b16 %v493, %v492
        %v507 = vpack.c.b16 %v495, %v494
        %v508 = vpack.c.b16 %v497, %v496
        %v509 = vpack.c.b16 %v499, %v498
        %v510 = vpack.c.b16 %v501, %v500
        %v511 = vpack.c.b16 %v503, %v502
        %520 = vmatprep.subr.bf16.mxu0 0
        %521 = vmatpush1.bf16.msra.mxu0 %v511
        %522 = vmatprep.subr.bf16.mxu0 0
        %523 = vmatpush1.bf16.msra.mxu0 %v510
        %524 = vmatprep.subr.bf16.mxu0 0
        %525 = vmatpush1.bf16.msra.mxu0 %v509
        %526 = vmatprep.subr.bf16.mxu0 0
        %527 = vmatpush1.bf16.msra.mxu0 %v508
        %528 = vmatprep.subr.bf16.mxu0 0
        %529 = vmatpush1.bf16.msra.mxu0 %v507
        %530 = vmatprep.subr.bf16.mxu0 0
        %531 = vmatpush1.bf16.msra.mxu0 %v506
        %532 = vmatprep.subr.bf16.mxu0 0
        %533 = vmatpush1.bf16.msra.mxu0 %v505
        %534 = vmatprep.subr.bf16.mxu0 0
        %535 = vmatpush1.bf16.msra.mxu0 %v504
        %536 = vmatprep.subr.bf16.mxu0 0
        %537 = vmatpush2.bf16.msra.mxu0 0
        %538 = vmatprep.subr.bf16.mxu0 0
        %539 = vmatpush2.bf16.msra.mxu0 0
        %540 = vmatprep.subr.bf16.mxu0 0
        %541 = vmatpush2.bf16.msra.mxu0 0
        %542 = vmatprep.subr.bf16.mxu0 0
        %543 = vmatpush2.bf16.msra.mxu0 0
        %544 = vmatprep.subr.bf16.mxu0 0
        %545 = vmatpush2.bf16.msra.mxu0 0
        %546 = vmatprep.subr.bf16.mxu0 0
        %547 = vmatpush2.bf16.msra.mxu0 0
        %548 = vmatprep.subr.bf16.mxu0 0
        %549 = vmatpush2.bf16.msra.mxu0 0
        %550 = vmatprep.subr.bf16.mxu0 0
        %551 = vmatpush2.bf16.msra.mxu0 0
        %552 = vmatprep.mubr.bf16.mxu0 0
        %553 = vmatmul.mubr.bf16.gmra.mxu0 %v456
        %v554 = vpop.f32.mrf.mxu0
        %v555 = vadd.f32 0.0, %v554
        %v556 = vpop.f32.mrf.mxu0
        %v557 = vpop.f32.mrf.mxu0
        %v558 = vadd.f32 0.0, %v557
        %v559 = vpop.f32.mrf.mxu0
        %560 = vmatprep.mubr.bf16.mxu0 0
        %561 = vmatmul.mubr.bf16.gmra.mxu0 %v457
        %v562 = vpop.f32.mrf.mxu0
        %v563 = vadd.f32 0.0, %v562
        %v564 = vpop.f32.mrf.mxu0
        %v565 = vpop.f32.mrf.mxu0
        %v566 = vadd.f32 0.0, %v565
        %v567 = vpop.f32.mrf.mxu0
        %568 = vmatprep.mubr.bf16.mxu0 0
        %569 = vmatmul.mubr.bf16.gmra.mxu0 %v458
        %v570 = vpop.f32.mrf.mxu0
        %v571 = vadd.f32 0.0, %v570
        %v572 = vpop.f32.mrf.mxu0
        %v573 = vpop.f32.mrf.mxu0
        %v574 = vadd.f32 0.0, %v573
        %v575 = vpop.f32.mrf.mxu0
        %576 = vmatprep.mubr.bf16.mxu0 0
        %577 = vmatmul.mubr.bf16.gmra.mxu0 %v459
        %v578 = vpop.f32.mrf.mxu0
        %v579 = vadd.f32 0.0, %v578
        %v580 = vpop.f32.mrf.mxu0
        %v581 = vpop.f32.mrf.mxu0
        %v582 = vadd.f32 0.0, %v581
        %v583 = vpop.f32.mrf.mxu0
        %584 = vmatprep.mubr.bf16.mxu0 0
        %585 = vmatmul.mubr.bf16.gmra.mxu0 %v460
        %v586 = vpop.f32.mrf.mxu0
        %v587 = vadd.f32 0.0, %v586
        %v588 = vpop.f32.mrf.mxu0
        %v589 = vpop.f32.mrf.mxu0
        %v590 = vadd.f32 0.0, %v589
        %v591 = vpop.f32.mrf.mxu0
        %592 = vmatprep.mubr.bf16.mxu0 0
        %593 = vmatmul.mubr.bf16.gmra.mxu0 %v461
        %v594 = vpop.f32.mrf.mxu0
        %v595 = vadd.f32 0.0, %v594
        %v596 = vpop.f32.mrf.mxu0
        %v597 = vpop.f32.mrf.mxu0
        %v598 = vadd.f32 0.0, %v597
        %v599 = vpop.f32.mrf.mxu0
        %600 = vmatprep.mubr.bf16.mxu0 0
        %601 = vmatmul.mubr.bf16.gmra.mxu0 %v462
        %v602 = vpop.f32.mrf.mxu0
        %v603 = vadd.f32 0.0, %v602
        %v604 = vpop.f32.mrf.mxu0
        %v605 = vpop.f32.mrf.mxu0
        %v606 = vadd.f32 0.0, %v605
        %v607 = vpop.f32.mrf.mxu0
        %608 = vmatprep.mubr.bf16.mxu0 0
        %609 = vmatmul.mubr.bf16.gmra.mxu0 %v463
        %v610 = vpop.f32.mrf.mxu0
        %v611 = vadd.f32 0.0, %v610
        %v612 = vpop.f32.mrf.mxu0
        %v613 = vpop.f32.mrf.mxu0
        %v614 = vadd.f32 0.0, %v613
        %v615 = vpop.f32.mrf.mxu0
        %616 = vdwg.mxu0
        %v617 = vadd.f32 %v392, %v555
        %v618 = vadd.f32 %v393, %v558
        %v619 = vadd.f32 %v394, %v563
        %v620 = vadd.f32 %v395, %v566
        %v621 = vadd.f32 %v396, %v571
        %v622 = vadd.f32 %v397, %v574
        %v623 = vadd.f32 %v398, %v579
        %v624 = vadd.f32 %v399, %v582
        %v625 = vadd.f32 %v400, %v587
        %v626 = vadd.f32 %v401, %v590
        %v627 = vadd.f32 %v402, %v595
        %v628 = vadd.f32 %v403, %v598
        %v629 = vadd.f32 %v404, %v603
        %v630 = vadd.f32 %v405, %v606
        %v631 = vadd.f32 %v406, %v611
        %v632 = vadd.f32 %v407, %v614
        %633 = vst [vmem:[#allocation2] sm:$0xff] %v617
        %634 = vst [vmem:[#allocation2 + $0x8] sm:$0xff] %v618
        %635 = vst [vmem:[#allocation2 + $0x10] sm:$0xff] %v619
        %636 = vst [vmem:[#allocation2 + $0x18] sm:$0xff] %v620
        %637 = vst [vmem:[#allocation2 + $0x20] sm:$0xff] %v621
        %638 = vst [vmem:[#allocation2 + $0x28] sm:$0xff] %v622
        %639 = vst [vmem:[#allocation2 + $0x30] sm:$0xff] %v623
        %640 = vst [vmem:[#allocation2 + $0x38] sm:$0xff] %v624
        %641 = vst [vmem:[#allocation2 + $0x40] sm:$0xff] %v625
        %642 = vst [vmem:[#allocation2 + $0x48] sm:$0xff] %v626
        %643 = vst [vmem:[#allocation2 + $0x50] sm:$0xff] %v627
        %644 = vst [vmem:[#allocation2 + $0x58] sm:$0xff] %v628
        %645 = vst [vmem:[#allocation2 + $0x60] sm:$0xff] %v629
        %646 = vst [vmem:[#allocation2 + $0x68] sm:$0xff] %v630
        %647 = vst [vmem:[#allocation2 + $0x70] sm:$0xff] %v631
        %648 = vst [vmem:[#allocation2 + $0x78] sm:$0xff] %v632
        %p649 = scmp.eq.s32.totalorder %s21, 1
        // Predicated region
        $region78: #{tscd_forward.13} parent=68 // pred_check
          %p650 = pneg %p649
        $region79: #{tscd_forward.13} parent=68 // pred_check_branch
          %652 = sbr.rel (%p650) target = $region81
        $region80: #{tscd_forward.13} parent=68 // pred_region
          %v653 = vld [vmem:[#allocation2] sm:$0xff]
          %v654 = vld [vmem:[#allocation2 + $0x8] sm:$0xff]
          %v655 = vld [vmem:[#allocation2 + $0x10] sm:$0xff]
          %v656 = vld [vmem:[#allocation2 + $0x18] sm:$0xff]
          %v657 = vld [vmem:[#allocation2 + $0x20] sm:$0xff]
          %v658 = vld [vmem:[#allocation2 + $0x28] sm:$0xff]
          %v659 = vld [vmem:[#allocation2 + $0x30] sm:$0xff]
          %v660 = vld [vmem:[#allocation2 + $0x38] sm:$0xff]
          %v661 = vld [vmem:[#allocation2 + $0x40] sm:$0xff]
          %v662 = vld [vmem:[#allocation2 + $0x48] sm:$0xff]
          %v663 = vld [vmem:[#allocation2 + $0x50] sm:$0xff]
          %v664 = vld [vmem:[#allocation2 + $0x58] sm:$0xff]
          %v665 = vld [vmem:[#allocation2 + $0x60] sm:$0xff]
          %v666 = vld [vmem:[#allocation2 + $0x68] sm:$0xff]
          %v667 = vld [vmem:[#allocation2 + $0x70] sm:$0xff]
          %v668 = vld [vmem:[#allocation2 + $0x78] sm:$0xff]
          %v669 = vld [vmem:[%s345] sm:$0x1]
          %v671 = vlaneseq
          %v672 = vshrl.u32 %v671, 7
          %v673 = vsub.s32 0, %v672
          %v674 = vrot.slane %v669, %v673
          %v676 = vadd.f32 %v653, %v674
          %v677 = vadd.f32 %v654, %v674
          %v678 = vadd.f32 %v655, %v674
          %v679 = vadd.f32 %v656, %v674
          %v680 = vadd.f32 %v657, %v674
          %v681 = vadd.f32 %v658, %v674
          %v682 = vadd.f32 %v659, %v674
          %v683 = vadd.f32 %v660, %v674
          %v684 = vadd.f32 %v661, %v674
          %v685 = vadd.f32 %v662, %v674
          %v686 = vadd.f32 %v663, %v674
          %v687 = vadd.f32 %v664, %v674
          %v688 = vadd.f32 %v665, %v674
          %v689 = vadd.f32 %v666, %v674
          %v690 = vadd.f32 %v667, %v674
          %v691 = vadd.f32 %v668, %v674
          %v692 = vmax.f32 %v676, 0.0
          %v693 = vmax.f32 %v677, 0.0
          %v694 = vmax.f32 %v678, 0.0
          %v695 = vmax.f32 %v679, 0.0
          %v696 = vmax.f32 %v680, 0.0
          %v697 = vmax.f32 %v681, 0.0
          %v698 = vmax.f32 %v682, 0.0
          %v699 = vmax.f32 %v683, 0.0
          %v700 = vmax.f32 %v684, 0.0
          %v701 = vmax.f32 %v685, 0.0
          %v702 = vmax.f32 %v686, 0.0
          %v703 = vmax.f32 %v687, 0.0
          %v704 = vmax.f32 %v688, 0.0
          %v705 = vmax.f32 %v689, 0.0
          %v706 = vmax.f32 %v690, 0.0
          %v707 = vmax.f32 %v691, 0.0
          %708 = vst [vmem:[%s353] sm:$0xff] %v692
          %709 = vst [vmem:[%s353 + $0x8] sm:$0xff] %v693
          %710 = vst [vmem:[%s353 + $0x10] sm:$0xff] %v694
          %711 = vst [vmem:[%s353 + $0x18] sm:$0xff] %v695
          %712 = vst [vmem:[%s353 + $0x20] sm:$0xff] %v696
          %713 = vst [vmem:[%s353 + $0x28] sm:$0xff] %v697
          %714 = vst [vmem:[%s353 + $0x30] sm:$0xff] %v698
          %715 = vst [vmem:[%s353 + $0x38] sm:$0xff] %v699
          %716 = vst [vmem:[%s353 + $0x40] sm:$0xff] %v700
          %717 = vst [vmem:[%s353 + $0x48] sm:$0xff] %v701
          %718 = vst [vmem:[%s353 + $0x50] sm:$0xff] %v702
          %719 = vst [vmem:[%s353 + $0x58] sm:$0xff] %v703
          %720 = vst [vmem:[%s353 + $0x60] sm:$0xff] %v704
          %721 = vst [vmem:[%s353 + $0x68] sm:$0xff] %v705
          %722 = vst [vmem:[%s353 + $0x70] sm:$0xff] %v706
          %723 = vst [vmem:[%s353 + $0x78] sm:$0xff] %v707
        $region81: #{tscd_forward.13} parent=68 // pred_fallthru
          _
        %s724 = smul.u32 16, %s19
        %p725 = scmp.lt.s32.totalorder %s724, 15
        %s726 = scalar_select %p725, %s724, 15
        %p727 = scmp.lt.s32.totalorder %s20, 0
        %s728 = scalar_select %p727, %s20, 0
        %s729 = sadd.s32 %s728, %s726
        %s730 = smul.addr %s729, 8
        %s731 = scalar_lea.vmem %s3, %s730
        // Predicated region
        $region82: #{tscd_forward.13} parent=68 // pred_check
          %p732 = pneg %p135
        $region83: #{tscd_forward.13} parent=68 // pred_check_branch
          %734 = sbr.rel (%p732) target = $region85
        $region84: #{tscd_forward.13} parent=68 // pred_region
          %s735 = smul.u32 16, %s19
        $region85: #{tscd_forward.13} parent=68 // pred_fallthru
          _
        // Predicated region
        $region86: #{tscd_forward.13} parent=68 // pred_check
          %p736 = pneg %p135
        $region87: #{tscd_forward.13} parent=68 // pred_check_branch
          %738 = sbr.rel (%p736) target = $region89
        $region88: #{tscd_forward.13} parent=68 // pred_region
          %s739 = smul.u32 16, %s19
          %p740 = scmp.lt.s32.totalorder %s739, 15
          %s741 = scalar_select %p740, %s739, 15
          %p742 = scmp.lt.s32.totalorder %s20, 0
          %s743 = scalar_select %p742, %s20, 0
          %s744 = sadd.s32 %s743, %s741
          %s745 = smul.addr %s744, 8
          %s746 = scalar_lea.vmem %s3, %s745
        $region89: #{tscd_forward.13} parent=68 // pred_fallthru
          _
      $region69: #{tscd_forward.13} parent=5 // pred_fallthru
        _
      %p747 = scmp.le.s32.totalorder 2, %s9
      // Predicated region
      $region90: #{tscd_forward.13} parent=5 // pred_check
        %p748 = pneg %p747
      $region91: #{tscd_forward.13} parent=5 // pred_check_branch
        %750 = sbr.rel (%p748) target = $region93
      $region92: #{tscd_forward.13} parent=5 // pred_region
        %s751 = ssub.s32 %s9, 2
      $region93: #{tscd_forward.13} parent=5 // pred_fallthru
        _
    $region6: #{tscd_forward.13} parent=1 // loop_footer
      %s13 = sadd.s32 1, %s9
    $region7: #{tscd_forward.13} parent=1 // loop_footer_branch
      %8 = sbr.rel target = $region3
    $region8: #{tscd_forward.13} parent=1 // loop_exit
      _

// kernel: tscd_forward.14
$region0: #{tscd_forward.14}
  #allocation0 [shape = 'u32[]', space=smem, size = 0x4, offset = 0x4, fixed_abs, tag = 'smem constant byte address 0x4 - core index']
  #allocation1 [shape = 'u32[144,128]{1,0:T(1,128)}', space=vmem, size = 0x12000, scoped, tag = 'internal scratch']
  #allocation2 [shape = 'f32[128,128]{1,0:T(8,128)}', space=vmem, size = 0x10000, scoped, tag = 'scratch operand']
  %s0 = inlined_call_operand.vmem [shape: bf16[128,128], index: 0, kind: input, shape index: {}]
  %s1 = inlined_call_operand.vmem [shape: bf16[128,256], index: 1, kind: input, shape index: {}]
  %s2 = inlined_call_operand.vmem [shape: f32[1,256], index: 2, kind: input, shape index: {}]
  %s3 = inlined_call_operand.vmem [shape: f32[128,256], index: 3, kind: output, shape index: {}]
  %s4 = sld [smem:[#allocation0]]
  $region128: #{tscd_forward.14} parent=0
    _
  %s6 = ssub.s32 1, %s4
  %s7 = scalar_select 0, %s6, %s4
  $region1: #{tscd_forward.14} parent=0
    #allocation3 [shape = 'u8[65536]{0}', space=vmem, size = 0x10000, scoped, tag = 'input window, operand 1']
    #allocation4 [shape = 'u8[131072]{0}', space=vmem, size = 0x20000, scoped, tag = 'output window, operand 0']
    loop: start=0, step=1, limit=4
    $region2: #{tscd_forward.14} parent=1 // loop_pre_header
      _
    $region3: #{tscd_forward.14} parent=1 // loop_header
      %s9 = sphi 0, %s13
      %p10 = scmp.ge.s32.totalorder %s9, 4
      %s16 = sphi 0, %s35
      %s17 = sphi 0, %s31
      %s18 = sphi 0, %s27
      %s19 = sphi 0, %s16
      %s20 = sphi 0, %s17
      %s21 = sphi 0, %s18
      %s22 = sphi 0, %s19
      %s23 = sphi 0, %s20
      %s24 = sphi 0, %s21
      %s40 = sphi 0, %s42
      %s43 = sphi 0, %s40
      %s44 = sphi 0, %s43
      %s60 = sphi 0, %s44
      %s68 = sphi 0, %s70
      %s71 = sphi 0, %s68
      %s72 = sphi 0, %s71
      %s88 = sphi 0, %s72
      %s94 = sphi 0, %s96
      %s97 = sphi 0, %s94
      %s98 = sphi 0, %s97
      %s114 = sphi 0, %s98
      %s122 = sphi 0, %s124
      %s125 = sphi 0, %s122
      %s126 = sphi 0, %s125
      %s142 = sphi 0, %s126
    $region4: #{tscd_forward.14} parent=1 // loop_header_branch
      %12 = sbr.rel (%p10) target = $region8
    $region5: #{tscd_forward.14} parent=1 // loop_body
      %s14 = ssub.s32 %s9, 1
      %s15 = ssub.s32 %s9, 2
      %s25 = sadd.s32 1, %s18
      %p26 = scmp.ge.s32.totalorder %s25, 1
      %s27 = scalar_select %p26, 0, %s25
      %s28 = sadd.s32 1, %s17
      %s29 = scalar_select %p26, %s28, %s17
      %p30 = scmp.ge.s32.totalorder %s29, 2
      %s31 = scalar_select %p30, 0, %s29
      %s32 = sadd.s32 1, %s16
      %s33 = scalar_select %p30, %s32, %s16
      %p34 = scmp.ge.s32.totalorder %s33, 1
      %s35 = scalar_select %p34, 0, %s33
      %s36 = ssub.s32 %s16, %s35
      %s37 = ssub.s32 %s18, %s27
      %s38 = sor.u32 %s36, %s37
      %p39 = scmp.eq.s32.totalorder %s38, 0
      %s41 = sadd.s32 %s40, 1
      %s42 = scalar_select %p39, %s40, %s41
      %p45 = pneg %p39
      %p46 = scmp.eq.s32.totalorder %s9, 1
      %p47 = por %p45, %p46
      %p48 = scmp.ne.s32.totalorder %s40, %s43
      %p49 = scmp.eq.s32.totalorder %s9, 0
      %p50 = por %p48, %p49
      %p51 = scmp.ne.s32.totalorder %s40, %s43
      %p52 = scmp.eq.s32.totalorder %s14, 1
      %p53 = por %p51, %p52
      %p54 = scmp.ne.s32.totalorder %s43, %s44
      %p55 = scmp.eq.s32.totalorder %s14, 0
      %p56 = por %p54, %p55
      %p57 = scmp.ne.s32.totalorder %s43, %s44
      %p58 = scmp.eq.s32.totalorder %s15, 1
      %p59 = por %p57, %p58
      %p61 = scmp.ne.s32.totalorder %s44, %s60
      %p62 = scmp.eq.s32.totalorder %s15, 0
      %p63 = por %p61, %p62
      %s64 = ssub.s32 %s18, %s27
      %s65 = ssub.s32 %s17, %s31
      %s66 = sor.u32 %s64, %s65
      %p67 = scmp.eq.s32.totalorder %s66, 0
      %s69 = sadd.s32 %s68, 1
      %s70 = scalar_select %p67, %s68, %s69
      %p73 = pneg %p67
      %p74 = scmp.eq.s32.totalorder %s9, 1
      %p75 = por %p73, %p74
      %p76 = scmp.ne.s32.totalorder %s68, %s71
      %p77 = scmp.eq.s32.totalorder %s9, 0
      %p78 = por %p76, %p77
      %p79 = scmp.ne.s32.totalorder %s68, %s71
      %p80 = scmp.eq.s32.totalorder %s14, 1
      %p81 = por %p79, %p80
      %p82 = scmp.ne.s32.totalorder %s71, %s72
      %p83 = scmp.eq.s32.totalorder %s14, 0
      %p84 = por %p82, %p83
      %p85 = scmp.ne.s32.totalorder %s71, %s72
      %p86 = scmp.eq.s32.totalorder %s15, 1
      %p87 = por %p85, %p86
      %p89 = scmp.ne.s32.totalorder %s72, %s88
      %p90 = scmp.eq.s32.totalorder %s15, 0
      %p91 = por %p89, %p90
      %s92 = ssub.s32 %s17, %s31
      %p93 = scmp.eq.s32.totalorder %s92, 0
      %s95 = sadd.s32 %s94, 1
      %s96 = scalar_select %p93, %s94, %s95
      %p99 = pneg %p93
      %p100 = scmp.eq.s32.totalorder %s9, 1
      %p101 = por %p99, %p100
      %p102 = scmp.ne.s32.totalorder %s94, %s97
      %p103 = scmp.eq.s32.totalorder %s9, 0
      %p104 = por %p102, %p103
      %p105 = scmp.ne.s32.totalorder %s94, %s97
      %p106 = scmp.eq.s32.totalorder %s14, 1
      %p107 = por %p105, %p106
      %p108 = scmp.ne.s32.totalorder %s97, %s98
      %p109 = scmp.eq.s32.totalorder %s14, 0
      %p110 = por %p108, %p109
      %p111 = scmp.ne.s32.totalorder %s97, %s98
      %p112 = scmp.eq.s32.totalorder %s15, 1
      %p113 = por %p111, %p112
      %p115 = scmp.ne.s32.totalorder %s98, %s114
      %p116 = scmp.eq.s32.totalorder %s15, 0
      %p117 = por %p115, %p116
      %s118 = ssub.s32 %s16, %s35
      %s119 = ssub.s32 %s17, %s31
      %s120 = sor.u32 %s118, %s119
      %p121 = scmp.eq.s32.totalorder %s120, 0
      %s123 = sadd.s32 %s122, 1
      %s124 = scalar_select %p121, %s122, %s123
      %p127 = pneg %p121
      %p128 = scmp.eq.s32.totalorder %s9, 1
      %p129 = por %p127, %p128
      %p130 = scmp.ne.s32.totalorder %s122, %s125
      %p131 = scmp.eq.s32.totalorder %s9, 0
      %p132 = por %p130, %p131
      %p133 = scmp.ne.s32.totalorder %s122, %s125
      %p134 = scmp.eq.s32.totalorder %s14, 1
      %p135 = por %p133, %p134
      %p136 = scmp.ne.s32.totalorder %s125, %s126
      %p137 = scmp.eq.s32.totalorder %s14, 0
      %p138 = por %p136, %p137
      %p139 = scmp.ne.s32.totalorder %s125, %s126
      %p140 = scmp.eq.s32.totalorder %s15, 1
      %p141 = por %p139, %p140
      %p143 = scmp.ne.s32.totalorder %s126, %s142
      %p144 = scmp.eq.s32.totalorder %s15, 0
      %p145 = por %p143, %p144
      %p146 = scmp.le.s32.totalorder 1, %s9
      %p147 = scmp.lt.s32.totalorder %s9, 3
      %p148 = pnand %p146, %p147
      %p149 = pneg %p148
      // Predicated region
      $region9: #{tscd_forward.14} parent=5 // pred_check
        _
      $region10: #{tscd_forward.14} parent=5 // pred_check_branch
        %151 = sbr.rel (%p148) target = $region12
      $region11: #{tscd_forward.14} parent=5 // pred_region
        %s152 = ssub.s32 %s9, 1
        // Predicated region
        $region13: #{tscd_forward.14} parent=11 // pred_check
          %p153 = pneg %p56
        $region14: #{tscd_forward.14} parent=11 // pred_check_branch
          %155 = sbr.rel (%p153) target = $region16
        $region15: #{tscd_forward.14} parent=11 // pred_region
          %s156 = smul.u32 16, %s19
          %p157 = scmp.lt.s32.totalorder %s156, 15
          %s158 = scalar_select %p157, %s156, 15
          %p159 = scmp.lt.s32.totalorder %s21, 0
          %s160 = scalar_select %p159, %s21, 0
          %s161 = sadd.s32 %s160, %s158
          %s162 = smul.addr %s161, 4
          %s163 = scalar_lea.vmem %s0, %s162
          %s164 = smul.u32 16, %s19
        $region16: #{tscd_forward.14} parent=11 // pred_fallthru
          _
      $region12: #{tscd_forward.14} parent=5 // pred_fallthru
        _
      %p165 = scmp.lt.s32.totalorder %s9, 2
      // Predicated region
      $region17: #{tscd_forward.14} parent=5 // pred_check
        %p166 = pneg %p165
      $region18: #{tscd_forward.14} parent=5 // pred_check_branch
        %168 = sbr.rel (%p166) target = $region20
      $region19: #{tscd_forward.14} parent=5 // pred_region
        // Predicated region
        $region21: #{tscd_forward.14} parent=19 // pred_check
          %p169 = pneg %p78
        $region22: #{tscd_forward.14} parent=19 // pred_check_branch
          %171 = sbr.rel (%p169) target = $region24
        $region23: #{tscd_forward.14} parent=19 // pred_region
          %s172 = sand.u32 %s68, 1
          %s173 = sand.u32 %s68, 1
          %s174 = smul.addr %s173, 64
          %s175 = scalar_lea.vmem [#allocation3], %s174
          %s176 = smul.u32 16, %s18
          %s177 = smul.addr %s176, 2
          %s178 = sadd.s32 %s17, %s177
          %s179 = smul.addr %s178, 4
          %s180 = scalar_lea.vmem %s1, %s179
          // Predicated region
          $region25: #{tscd_forward.14} parent=23 // pred_check
            _
          $region26: #{tscd_forward.14} parent=23 // pred_check_branch
            %182 = sbr.rel (0) target = $region28
          $region27: #{tscd_forward.14} parent=23 // pred_region
            // Predicated region
            $region29: #{tscd_forward.14} parent=27 // pred_check
              _
            $region30: #{tscd_forward.14} parent=27 // pred_check_branch
              %184 = sbr.rel target = $region32
            $region31: #{tscd_forward.14} parent=27 // pred_region
              // Predicated region
              $region44: #{tscd_forward.14} parent=31 // pred_check
                _
              $region45: #{tscd_forward.14} parent=31 // pred_check_branch
                %230 = sbr.rel (0) target = $region47
              $region46: #{tscd_forward.14} parent=31 // pred_region
                loop: start=0, step=1, limit=1
                $region48: #{tscd_forward.14} parent=46 // loop_pre_header
                  _
                $region49: #{tscd_forward.14} parent=46 // loop_header
                  %s232 = sphi 0, %s236
                  %p233 = scmp.ge.s32.totalorder %s232, 1
                  %s237 = sphi %s180, %s180
                  %s238 = sphi %s175, %s175
                $region50: #{tscd_forward.14} parent=46 // loop_header_branch
                  %235 = sbr.rel (%p233) target = $region54
                $region51: #{tscd_forward.14} parent=46 // loop_body
                  _
                $region52: #{tscd_forward.14} parent=46 // loop_footer
                  %s236 = sadd.s32 1, %s232
                $region53: #{tscd_forward.14} parent=46 // loop_footer_branch
                  %231 = sbr.rel target = $region49
                $region54: #{tscd_forward.14} parent=46 // loop_exit
                  _
                %s240 = ssub.s32 16, 1
                loop: start=0, step=1, limit=1
                $region55: #{tscd_forward.14} parent=46 // loop_pre_header
                  _
                $region56: #{tscd_forward.14} parent=46 // loop_header
                  %s242 = sphi 0, %s246
                  %p243 = scmp.ge.s32.totalorder %s242, 1
                  %s247 = sphi %s180, %s180
                  %s248 = sphi %s175, %s175
                $region57: #{tscd_forward.14} parent=46 // loop_header_branch
                  %245 = sbr.rel (%p243) target = $region61
                $region58: #{tscd_forward.14} parent=46 // loop_body
                  %v249 = vld [vmem:[%s247] sm:%s240]
                  %250 = vst [vmem:[%s248] sm:%s240] %v249
                  %v251 = vld [vmem:[%s247 + $0x8] sm:%s240]
                  %252 = vst [vmem:[%s248 + $0x4] sm:%s240] %v251
                  %v253 = vld [vmem:[%s247 + $0x10] sm:%s240]
                  %254 = vst [vmem:[%s248 + $0x8] sm:%s240] %v253
                  %v255 = vld [vmem:[%s247 + $0x18] sm:%s240]
                  %256 = vst [vmem:[%s248 + $0xc] sm:%s240] %v255
                  %v257 = vld [vmem:[%s247 + $0x20] sm:%s240]
                  %258 = vst [vmem:[%s248 + $0x10] sm:%s240] %v257
                  %v259 = vld [vmem:[%s247 + $0x28] sm:%s240]
                  %260 = vst [vmem:[%s248 + $0x14] sm:%s240] %v259
                  %v261 = vld [vmem:[%s247 + $0x30] sm:%s240]
                  %262 = vst [vmem:[%s248 + $0x18] sm:%s240] %v261
                  %v263 = vld [vmem:[%s247 + $0x38] sm:%s240]
                  %264 = vst [vmem:[%s248 + $0x1c] sm:%s240] %v263
                  %v265 = vld [vmem:[%s247 + $0x40] sm:%s240]
                  %266 = vst [vmem:[%s248 + $0x20] sm:%s240] %v265
                  %v267 = vld [vmem:[%s247 + $0x48] sm:%s240]
                  %268 = vst [vmem:[%s248 + $0x24] sm:%s240] %v267
                  %v269 = vld [vmem:[%s247 + $0x50] sm:%s240]
                  %270 = vst [vmem:[%s248 + $0x28] sm:%s240] %v269
                  %v271 = vld [vmem:[%s247 + $0x58] sm:%s240]
                  %272 = vst [vmem:[%s248 + $0x2c] sm:%s240] %v271
                  %v273 = vld [vmem:[%s247 + $0x60] sm:%s240]
                  %274 = vst [vmem:[%s248 + $0x30] sm:%s240] %v273
                  %v275 = vld [vmem:[%s247 + $0x68] sm:%s240]
                  %276 = vst [vmem:[%s248 + $0x34] sm:%s240] %v275
                  %v277 = vld [vmem:[%s247 + $0x70] sm:%s240]
                  %278 = vst [vmem:[%s248 + $0x38] sm:%s240] %v277
                  %v279 = vld [vmem:[%s247 + $0x78] sm:%s240]
                  %280 = vst [vmem:[%s248 + $0x3c] sm:%s240] %v279
                $region59: #{tscd_forward.14} parent=46 // loop_footer
                  %s246 = sadd.s32 1, %s242
                $region60: #{tscd_forward.14} parent=46 // loop_footer_branch
                  %241 = sbr.rel target = $region56
                $region61: #{tscd_forward.14} parent=46 // loop_exit
                  _
              $region47: #{tscd_forward.14} parent=31 // pred_fallthru
                _
            $region32: #{tscd_forward.14} parent=27 // pred_fallthru
              _
            // Predicated region
            $region33: #{tscd_forward.14} parent=27 // pred_check
              _
            $region34: #{tscd_forward.14} parent=27 // pred_check_branch
              %186 = sbr.rel (0) target = $region36
            $region35: #{tscd_forward.14} parent=27 // pred_region
              %s188 = ssub.s32 16, 1
              loop: start=0, step=1, limit=1
              $region37: #{tscd_forward.14} parent=35 // loop_pre_header
                _
              $region38: #{tscd_forward.14} parent=35 // loop_header
                %s190 = sphi 0, %s194
                %p191 = scmp.ge.s32.totalorder %s190, 1
                %s195 = sphi %s180, %s180
                %s196 = sphi %s175, %s175
              $region39: #{tscd_forward.14} parent=35 // loop_header_branch
                %193 = sbr.rel (%p191) target = $region43
              $region40: #{tscd_forward.14} parent=35 // loop_body
                %v197 = vld [vmem:[%s195] sm:%s188]
                %198 = vst [vmem:[%s196] sm:%s188] %v197
                %v199 = vld [vmem:[%s195 + $0x8] sm:%s188]
                %200 = vst [vmem:[%s196 + $0x4] sm:%s188] %v199
                %v201 = vld [vmem:[%s195 + $0x10] sm:%s188]
                %202 = vst [vmem:[%s196 + $0x8] sm:%s188] %v201
                %v203 = vld [vmem:[%s195 + $0x18] sm:%s188]
                %204 = vst [vmem:[%s196 + $0xc] sm:%s188] %v203
                %v205 = vld [vmem:[%s195 + $0x20] sm:%s188]
                %206 = vst [vmem:[%s196 + $0x10] sm:%s188] %v205
                %v207 = vld [vmem:[%s195 + $0x28] sm:%s188]
                %208 = vst [vmem:[%s196 + $0x14] sm:%s188] %v207
                %v209 = vld [vmem:[%s195 + $0x30] sm:%s188]
                %210 = vst [vmem:[%s196 + $0x18] sm:%s188] %v209
                %v211 = vld [vmem:[%s195 + $0x38] sm:%s188]
                %212 = vst [vmem:[%s196 + $0x1c] sm:%s188] %v211
                %v213 = vld [vmem:[%s195 + $0x40] sm:%s188]
                %214 = vst [vmem:[%s196 + $0x20] sm:%s188] %v213
                %v215 = vld [vmem:[%s195 + $0x48] sm:%s188]
                %216 = vst [vmem:[%s196 + $0x24] sm:%s188] %v215
                %v217 = vld [vmem:[%s195 + $0x50] sm:%s188]
                %218 = vst [vmem:[%s196 + $0x28] sm:%s188] %v217
                %v219 = vld [vmem:[%s195 + $0x58] sm:%s188]
                %220 = vst [vmem:[%s196 + $0x2c] sm:%s188] %v219
                %v221 = vld [vmem:[%s195 + $0x60] sm:%s188]
                %222 = vst [vmem:[%s196 + $0x30] sm:%s188] %v221
                %v223 = vld [vmem:[%s195 + $0x68] sm:%s188]
                %224 = vst [vmem:[%s196 + $0x34] sm:%s188] %v223
                %v225 = vld [vmem:[%s195 + $0x70] sm:%s188]
                %226 = vst [vmem:[%s196 + $0x38] sm:%s188] %v225
                %v227 = vld [vmem:[%s195 + $0x78] sm:%s188]
                %228 = vst [vmem:[%s196 + $0x3c] sm:%s188] %v227
              $region41: #{tscd_forward.14} parent=35 // loop_footer
                %s194 = sadd.s32 1, %s190
              $region42: #{tscd_forward.14} parent=35 // loop_footer_branch
                %189 = sbr.rel target = $region38
              $region43: #{tscd_forward.14} parent=35 // loop_exit
                _
            $region36: #{tscd_forward.14} parent=27 // pred_fallthru
              _
          $region28: #{tscd_forward.14} parent=23 // pred_fallthru
            _
          %281 = vnop
        $region24: #{tscd_forward.14} parent=19 // pred_fallthru
          _
        // Predicated region
        $region62: #{tscd_forward.14} parent=19 // pred_check
          %p282 = pneg %p104
        $region63: #{tscd_forward.14} parent=19 // pred_check_branch
          %284 = sbr.rel (%p282) target = $region65
        $region64: #{tscd_forward.14} parent=19 // pred_region
          %p285 = scmp.lt.s32.totalorder %s17, 1
          %s286 = scalar_select %p285, %s17, 1
          %s287 = scalar_lea.vmem %s2, %s286
        $region65: #{tscd_forward.14} parent=19 // pred_fallthru
          _
      $region20: #{tscd_forward.14} parent=5 // pred_fallthru
        _
      %p288 = scmp.le.s32.totalorder 1, %s9
      %p289 = scmp.lt.s32.totalorder %s9, 3
      %p290 = pnand %p288, %p289
      %p291 = pneg %p290
      // Predicated region
      $region66: #{tscd_forward.14} parent=5 // pred_check
        _
      $region67: #{tscd_forward.14} parent=5 // pred_check_branch
        %293 = sbr.rel (%p290) target = $region69
      $region68: #{tscd_forward.14} parent=5 // pred_region
        %s294 = ssub.s32 %s9, 1
        %s295 = sand.u32 %s71, 1
        %s296 = sand.u32 %s71, 1
        %s297 = smul.addr %s296, 64
        %s298 = scalar_lea.vmem [#allocation3], %s297
        // Predicated region
        $region70: #{tscd_forward.14} parent=68 // pred_check
          %p299 = pneg %p84
        $region71: #{tscd_forward.14} parent=68 // pred_check_branch
          %301 = sbr.rel (%p299) target = $region73
        $region72: #{tscd_forward.14} parent=68 // pred_region
          _
        $region73: #{tscd_forward.14} parent=68 // pred_fallthru
          _
        %s302 = smul.u32 16, %s19
        %p303 = scmp.lt.s32.totalorder %s302, 15
        %s304 = scalar_select %p303, %s302, 15
        %p305 = scmp.lt.s32.totalorder %s21, 0
        %s306 = scalar_select %p305, %s21, 0
        %s307 = sadd.s32 %s306, %s304
        %s308 = smul.addr %s307, 4
        %s309 = scalar_lea.vmem %s0, %s308
        %p310 = pneg %p56
        %p311 = pneg %p53
        %s312 = sand.u32 %s71, 1
        %s313 = sand.u32 %s71, 1
        %s314 = smul.addr %s313, 64
        %s315 = scalar_lea.vmem [#allocation3], %s314
        %p316 = pneg %p84
        %p317 = pneg %p81
        %p318 = scmp.lt.s32.totalorder %s20, 1
        %s319 = scalar_select %p318, %s20, 1
        %s320 = scalar_lea.vmem %s2, %s319
        %p321 = pneg %p110
        %p322 = pneg %p107
        %p323 = pneg %p138
        %p324 = pneg %p135
        %s325 = sand.u32 %s125, 1
        %s326 = sand.u32 %s125, 1
        %s327 = smul.addr %s326, 128
        %s328 = scalar_lea.vmem [#allocation4], %s327
        %s329 = smul.u32 16, %s19
        %p330 = scmp.lt.s32.totalorder %s329, 15
        %s331 = scalar_select %p330, %s329, 15
        %p332 = scmp.lt.s32.totalorder %s21, 0
        %s333 = scalar_select %p332, %s21, 0
        %s334 = sadd.s32 %s333, %s331
        %s335 = smul.addr %s334, 4
        %s336 = scalar_lea.vmem %s0, %s335
        %s337 = smul.u32 16, %s19
        %s338 = smul.u32 16, %s21
        %p339 = scmp.lt.s32.totalorder %s20, 1
        %s340 = scalar_select %p339, %s20, 1
        %s341 = scalar_lea.vmem %s2, %s340
        %s342 = smul.u32 16, %s19
        %p344 = scmp.eq.s32.totalorder %s21, 0
        // Predicated region
        $region74: #{tscd_forward.14} parent=68 // pred_check
          %p345 = pneg %p344
        $region75: #{tscd_forward.14} parent=68 // pred_check_branch
          %347 = sbr.rel (%p345) target = $region77
        $region76: #{tscd_forward.14} parent=68 // pred_region
          %348 = vst [vmem:[#allocation2] sm:$0xff] 0.0
          %349 = vst [vmem:[#allocation2 + $0x8] sm:$0xff] 0.0
          %350 = vst [vmem:[#allocation2 + $0x10] sm:$0xff] 0.0
          %351 = vst [vmem:[#allocation2 + $0x18] sm:$0xff] 0.0
          %352 = vst [vmem:[#allocation2 + $0x20] sm:$0xff] 0.0
          %353 = vst [vmem:[#allocation2 + $0x28] sm:$0xff] 0.0
          %354 = vst [vmem:[#allocation2 + $0x30] sm:$0xff] 0.0
          %355 = vst [vmem:[#allocation2 + $0x38] sm:$0xff] 0.0
          %356 = vst [vmem:[#allocation2 + $0x40] sm:$0xff] 0.0
          %357 = vst [vmem:[#allocation2 + $0x48] sm:$0xff] 0.0
          %358 = vst [vmem:[#allocation2 + $0x50] sm:$0xff] 0.0
          %359 = vst [vmem:[#allocation2 + $0x58] sm:$0xff] 0.0
          %360 = vst [vmem:[#allocation2 + $0x60] sm:$0xff] 0.0
          %361 = vst [vmem:[#allocation2 + $0x68] sm:$0xff] 0.0
          %362 = vst [vmem:[#allocation2 + $0x70] sm:$0xff] 0.0
          %363 = vst [vmem:[#allocation2 + $0x78] sm:$0xff] 0.0
        $region77: #{tscd_forward.14} parent=68 // pred_fallthru
          _
        %v364 = vld [vmem:[%s336] sm:$0xf]
        %v365 = vld [vmem:[%s336 + $0x4] sm:$0xf]
        %v366 = vld [vmem:[%s336 + $0x8] sm:$0xf]
        %v367 = vld [vmem:[%s336 + $0xc] sm:$0xf]
        %v368 = vld [vmem:[%s336 + $0x10] sm:$0xf]
        %v369 = vld [vmem:[%s336 + $0x14] sm:$0xf]
        %v370 = vld [vmem:[%s336 + $0x18] sm:$0xf]
        %v371 = vld [vmem:[%s336 + $0x1c] sm:$0xf]
        %v372 = vld [vmem:[%s336 + $0x20] sm:$0xf]
        %v373 = vld [vmem:[%s336 + $0x24] sm:$0xf]
        %v374 = vld [vmem:[%s336 + $0x28] sm:$0xf]
        %v375 = vld [vmem:[%s336 + $0x2c] sm:$0xf]
        %v376 = vld [vmem:[%s336 + $0x30] sm:$0xf]
        %v377 = vld [vmem:[%s336 + $0x34] sm:$0xf]
        %v378 = vld [vmem:[%s336 + $0x38] sm:$0xf]
        %v379 = vld [vmem:[%s336 + $0x3c] sm:$0xf]
        %v380 = vld [vmem:[#allocation2] sm:$0xff]
        %v381 = vld [vmem:[#allocation2 + $0x8] sm:$0xff]
        %v382 = vld [vmem:[#allocation2 + $0x10] sm:$0xff]
        %v383 = vld [vmem:[#allocation2 + $0x18] sm:$0xff]
        %v384 = vld [vmem:[#allocation2 + $0x20] sm:$0xff]
        %v385 = vld [vmem:[#allocation2 + $0x28] sm:$0xff]
        %v386 = vld [vmem:[#allocation2 + $0x30] sm:$0xff]
        %v387 = vld [vmem:[#allocation2 + $0x38] sm:$0xff]
        %v388 = vld [vmem:[#allocation2 + $0x40] sm:$0xff]
        %v389 = vld [vmem:[#allocation2 + $0x48] sm:$0xff]
        %v390 = vld [vmem:[#allocation2 + $0x50] sm:$0xff]
        %v391 = vld [vmem:[#allocation2 + $0x58] sm:$0xff]
        %v392 = vld [vmem:[#allocation2 + $0x60] sm:$0xff]
        %v393 = vld [vmem:[#allocation2 + $0x68] sm:$0xff]
        %v394 = vld [vmem:[#allocation2 + $0x70] sm:$0xff]
        %v395 = vld [vmem:[#allocation2 + $0x78] sm:$0xff]
        %v396 = vld [vmem:[%s298] sm:$0xf]
        %v397 = vld [vmem:[%s298 + $0x4] sm:$0xf]
        %v398 = vld [vmem:[%s298 + $0x8] sm:$0xf]
        %v399 = vld [vmem:[%s298 + $0xc] sm:$0xf]
        %v400 = vld [vmem:[%s298 + $0x10] sm:$0xf]
        %v401 = vld [vmem:[%s298 + $0x14] sm:$0xf]
        %v402 = vld [vmem:[%s298 + $0x18] sm:$0xf]
        %v403 = vld [vmem:[%s298 + $0x1c] sm:$0xf]
        %v404 = vld [vmem:[%s298 + $0x20] sm:$0xf]
        %v405 = vld [vmem:[%s298 + $0x24] sm:$0xf]
        %v406 = vld [vmem:[%s298 + $0x28] sm:$0xf]
        %v407 = vld [vmem:[%s298 + $0x2c] sm:$0xf]
        %v408 = vld [vmem:[%s298 + $0x30] sm:$0xf]
        %v409 = vld [vmem:[%s298 + $0x34] sm:$0xf]
        %v410 = vld [vmem:[%s298 + $0x38] sm:$0xf]
        %v411 = vld [vmem:[%s298 + $0x3c] sm:$0xf]
        %v428 = vunpack.c.l.b16 %v364
        %v429 = vunpack.c.l.b16 %v365
        %v430 = vunpack.c.l.b16 %v366
        %v431 = vunpack.c.l.b16 %v367
        %v432 = vunpack.c.l.b16 %v368
        %v433 = vunpack.c.l.b16 %v369
        %v434 = vunpack.c.l.b16 %v370
        %v435 = vunpack.c.l.b16 %v371
        %v436 = vunpack.c.l.b16 %v372
        %v437 = vunpack.c.l.b16 %v373
        %v438 = vunpack.c.l.b16 %v374
        %v439 = vunpack.c.l.b16 %v375
        %v440 = vunpack.c.l.b16 %v376
        %v441 = vunpack.c.l.b16 %v377
        %v442 = vunpack.c.l.b16 %v378
        %v443 = vunpack.c.l.b16 %v379
        %v444 = vpack.c.b16 %v429, %v428
        %v445 = vpack.c.b16 %v431, %v430
        %v446 = vpack.c.b16 %v433, %v432
        %v447 = vpack.c.b16 %v435, %v434
        %v448 = vpack.c.b16 %v437, %v436
        %v449 = vpack.c.b16 %v439, %v438
        %v450 = vpack.c.b16 %v441, %v440
        %v451 = vpack.c.b16 %v443, %v442
        %v476 = vunpack.c.l.b16 %v396
        %v477 = vunpack.c.l.b16 %v397
        %v478 = vunpack.c.l.b16 %v398
        %v479 = vunpack.c.l.b16 %v399
        %v480 = vunpack.c.l.b16 %v400
        %v481 = vunpack.c.l.b16 %v401
        %v482 = vunpack.c.l.b16 %v402
        %v483 = vunpack.c.l.b16 %v403
        %v484 = vunpack.c.l.b16 %v404
        %v485 = vunpack.c.l.b16 %v405
        %v486 = vunpack.c.l.b16 %v406
        %v487 = vunpack.c.l.b16 %v407
        %v488 = vunpack.c.l.b16 %v408
        %v489 = vunpack.c.l.b16 %v409
        %v490 = vunpack.c.l.b16 %v410
        %v491 = vunpack.c.l.b16 %v411
        %v492 = vpack.c.b16 %v477, %v476
        %v493 = vpack.c.b16 %v479, %v478
        %v494 = vpack.c.b16 %v481, %v480
        %v495 = vpack.c.b16 %v483, %v482
        %v496 = vpack.c.b16 %v485, %v484
        %v497 = vpack.c.b16 %v487, %v486
        %v498 = vpack.c.b16 %v489, %v488
        %v499 = vpack.c.b16 %v491, %v490
        %508 = vmatprep.subr.bf16.mxu0 0
        %509 = vmatpush1.bf16.msra.mxu0 %v499
        %510 = vmatprep.subr.bf16.mxu0 0
        %511 = vmatpush1.bf16.msra.mxu0 %v498
        %512 = vmatprep.subr.bf16.mxu0 0
        %513 = vmatpush1.bf16.msra.mxu0 %v497
        %514 = vmatprep.subr.bf16.mxu0 0
        %515 = vmatpush1.bf16.msra.mxu0 %v496
        %516 = vmatprep.subr.bf16.mxu0 0
        %517 = vmatpush1.bf16.msra.mxu0 %v495
        %518 = vmatprep.subr.bf16.mxu0 0
        %519 = vmatpush1.bf16.msra.mxu0 %v494
        %520 = vmatprep.subr.bf16.mxu0 0
        %521 = vmatpush1.bf16.msra.mxu0 %v493
        %522 = vmatprep.subr.bf16.mxu0 0
        %523 = vmatpush1.bf16.msra.mxu0 %v492
        %524 = vmatprep.subr.bf16.mxu0 0
        %525 = vmatpush2.bf16.msra.mxu0 0
        %526 = vmatprep.subr.bf16.mxu0 0
        %527 = vmatpush2.bf16.msra.mxu0 0
        %528 = vmatprep.subr.bf16.mxu0 0
        %529 = vmatpush2.bf16.msra.mxu0 0
        %530 = vmatprep.subr.bf16.mxu0 0
        %531 = vmatpush2.bf16.msra.mxu0 0
        %532 = vmatprep.subr.bf16.mxu0 0
        %533 = vmatpush2.bf16.msra.mxu0 0
        %534 = vmatprep.subr.bf16.mxu0 0
        %535 = vmatpush2.bf16.msra.mxu0 0
        %536 = vmatprep.subr.bf16.mxu0 0
        %537 = vmatpush2.bf16.msra.mxu0 0
        %538 = vmatprep.subr.bf16.mxu0 0
        %539 = vmatpush2.bf16.msra.mxu0 0
        %540 = vmatprep.mubr.bf16.mxu0 0
        %541 = vmatmul.mubr.bf16.gmra.mxu0 %v444
        %v542 = vpop.f32.mrf.mxu0
        %v543 = vadd.f32 0.0, %v542
        %v544 = vpop.f32.mrf.mxu0
        %v545 = vpop.f32.mrf.mxu0
        %v546 = vadd.f32 0.0, %v545
        %v547 = vpop.f32.mrf.mxu0
        %548 = vmatprep.mubr.bf16.mxu0 0
        %549 = vmatmul.mubr.bf16.gmra.mxu0 %v445
        %v550 = vpop.f32.mrf.mxu0
        %v551 = vadd.f32 0.0, %v550
        %v552 = vpop.f32.mrf.mxu0
        %v553 = vpop.f32.mrf.mxu0
        %v554 = vadd.f32 0.0, %v553
        %v555 = vpop.f32.mrf.mxu0
        %556 = vmatprep.mubr.bf16.mxu0 0
        %557 = vmatmul.mubr.bf16.gmra.mxu0 %v446
        %v558 = vpop.f32.mrf.mxu0
        %v559 = vadd.f32 0.0, %v558
        %v560 = vpop.f32.mrf.mxu0
        %v561 = vpop.f32.mrf.mxu0
        %v562 = vadd.f32 0.0, %v561
        %v563 = vpop.f32.mrf.mxu0
        %564 = vmatprep.mubr.bf16.mxu0 0
        %565 = vmatmul.mubr.bf16.gmra.mxu0 %v447
        %v566 = vpop.f32.mrf.mxu0
        %v567 = vadd.f32 0.0, %v566
        %v568 = vpop.f32.mrf.mxu0
        %v569 = vpop.f32.mrf.mxu0
        %v570 = vadd.f32 0.0, %v569
        %v571 = vpop.f32.mrf.mxu0
        %572 = vmatprep.mubr.bf16.mxu0 0
        %573 = vmatmul.mubr.bf16.gmra.mxu0 %v448
        %v574 = vpop.f32.mrf.mxu0
        %v575 = vadd.f32 0.0, %v574
        %v576 = vpop.f32.mrf.mxu0
        %v577 = vpop.f32.mrf.mxu0
        %v578 = vadd.f32 0.0, %v577
        %v579 = vpop.f32.mrf.mxu0
        %580 = vmatprep.mubr.bf16.mxu0 0
        %581 = vmatmul.mubr.bf16.gmra.mxu0 %v449
        %v582 = vpop.f32.mrf.mxu0
        %v583 = vadd.f32 0.0, %v582
        %v584 = vpop.f32.mrf.mxu0
        %v585 = vpop.f32.mrf.mxu0
        %v586 = vadd.f32 0.0, %v585
        %v587 = vpop.f32.mrf.mxu0
        %588 = vmatprep.mubr.bf16.mxu0 0
        %589 = vmatmul.mubr.bf16.gmra.mxu0 %v450
        %v590 = vpop.f32.mrf.mxu0
        %v591 = vadd.f32 0.0, %v590
        %v592 = vpop.f32.mrf.mxu0
        %v593 = vpop.f32.mrf.mxu0
        %v594 = vadd.f32 0.0, %v593
        %v595 = vpop.f32.mrf.mxu0
        %596 = vmatprep.mubr.bf16.mxu0 0
        %597 = vmatmul.mubr.bf16.gmra.mxu0 %v451
        %v598 = vpop.f32.mrf.mxu0
        %v599 = vadd.f32 0.0, %v598
        %v600 = vpop.f32.mrf.mxu0
        %v601 = vpop.f32.mrf.mxu0
        %v602 = vadd.f32 0.0, %v601
        %v603 = vpop.f32.mrf.mxu0
        %604 = vdwg.mxu0
        %v605 = vadd.f32 %v380, %v543
        %v606 = vadd.f32 %v381, %v546
        %v607 = vadd.f32 %v382, %v551
        %v608 = vadd.f32 %v383, %v554
        %v609 = vadd.f32 %v384, %v559
        %v610 = vadd.f32 %v385, %v562
        %v611 = vadd.f32 %v386, %v567
        %v612 = vadd.f32 %v387, %v570
        %v613 = vadd.f32 %v388, %v575
        %v614 = vadd.f32 %v389, %v578
        %v615 = vadd.f32 %v390, %v583
        %v616 = vadd.f32 %v391, %v586
        %v617 = vadd.f32 %v392, %v591
        %v618 = vadd.f32 %v393, %v594
        %v619 = vadd.f32 %v394, %v599
        %v620 = vadd.f32 %v395, %v602
        %621 = vst [vmem:[#allocation2] sm:$0xff] %v605
        %622 = vst [vmem:[#allocation2 + $0x8] sm:$0xff] %v606
        %623 = vst [vmem:[#allocation2 + $0x10] sm:$0xff] %v607
        %624 = vst [vmem:[#allocation2 + $0x18] sm:$0xff] %v608
        %625 = vst [vmem:[#allocation2 + $0x20] sm:$0xff] %v609
        %626 = vst [vmem:[#allocation2 + $0x28] sm:$0xff] %v610
        %627 = vst [vmem:[#allocation2 + $0x30] sm:$0xff] %v611
        %628 = vst [vmem:[#allocation2 + $0x38] sm:$0xff] %v612
        %629 = vst [vmem:[#allocation2 + $0x40] sm:$0xff] %v613
        %630 = vst [vmem:[#allocation2 + $0x48] sm:$0xff] %v614
        %631 = vst [vmem:[#allocation2 + $0x50] sm:$0xff] %v615
        %632 = vst [vmem:[#allocation2 + $0x58] sm:$0xff] %v616
        %633 = vst [vmem:[#allocation2 + $0x60] sm:$0xff] %v617
        %634 = vst [vmem:[#allocation2 + $0x68] sm:$0xff] %v618
        %635 = vst [vmem:[#allocation2 + $0x70] sm:$0xff] %v619
        %636 = vst [vmem:[#allocation2 + $0x78] sm:$0xff] %v620
        // Predicated region
        $region78: #{tscd_forward.14} parent=68 // pred_check
          %p637 = pneg %p344
        $region79: #{tscd_forward.14} parent=68 // pred_check_branch
          %639 = sbr.rel (%p637) target = $region81
        $region80: #{tscd_forward.14} parent=68 // pred_region
          %v640 = vld [vmem:[#allocation2] sm:$0xff]
          %v641 = vld [vmem:[#allocation2 + $0x8] sm:$0xff]
          %v642 = vld [vmem:[#allocation2 + $0x10] sm:$0xff]
          %v643 = vld [vmem:[#allocation2 + $0x18] sm:$0xff]
          %v644 = vld [vmem:[#allocation2 + $0x20] sm:$0xff]
          %v645 = vld [vmem:[#allocation2 + $0x28] sm:$0xff]
          %v646 = vld [vmem:[#allocation2 + $0x30] sm:$0xff]
          %v647 = vld [vmem:[#allocation2 + $0x38] sm:$0xff]
          %v648 = vld [vmem:[#allocation2 + $0x40] sm:$0xff]
          %v649 = vld [vmem:[#allocation2 + $0x48] sm:$0xff]
          %v650 = vld [vmem:[#allocation2 + $0x50] sm:$0xff]
          %v651 = vld [vmem:[#allocation2 + $0x58] sm:$0xff]
          %v652 = vld [vmem:[#allocation2 + $0x60] sm:$0xff]
          %v653 = vld [vmem:[#allocation2 + $0x68] sm:$0xff]
          %v654 = vld [vmem:[#allocation2 + $0x70] sm:$0xff]
          %v655 = vld [vmem:[#allocation2 + $0x78] sm:$0xff]
          %v656 = vld [vmem:[%s341] sm:$0x1]
          %v658 = vlaneseq
          %v659 = vshrl.u32 %v658, 7
          %v660 = vsub.s32 0, %v659
          %v661 = vrot.slane %v656, %v660
          %v663 = vadd.f32 %v640, %v661
          %v664 = vadd.f32 %v641, %v661
          %v665 = vadd.f32 %v642, %v661
          %v666 = vadd.f32 %v643, %v661
          %v667 = vadd.f32 %v644, %v661
          %v668 = vadd.f32 %v645, %v661
          %v669 = vadd.f32 %v646, %v661
          %v670 = vadd.f32 %v647, %v661
          %v671 = vadd.f32 %v648, %v661
          %v672 = vadd.f32 %v649, %v661
          %v673 = vadd.f32 %v650, %v661
          %v674 = vadd.f32 %v651, %v661
          %v675 = vadd.f32 %v652, %v661
          %v676 = vadd.f32 %v653, %v661
          %v677 = vadd.f32 %v654, %v661
          %v678 = vadd.f32 %v655, %v661
          %679 = vst [vmem:[%s328] sm:$0xff] %v663
          %680 = vst [vmem:[%s328 + $0x8] sm:$0xff] %v664
          %681 = vst [vmem:[%s328 + $0x10] sm:$0xff] %v665
          %682 = vst [vmem:[%s328 + $0x18] sm:$0xff] %v666
          %683 = vst [vmem:[%s328 + $0x20] sm:$0xff] %v667
          %684 = vst [vmem:[%s328 + $0x28] sm:$0xff] %v668
          %685 = vst [vmem:[%s328 + $0x30] sm:$0xff] %v669
          %686 = vst [vmem:[%s328 + $0x38] sm:$0xff] %v670
          %687 = vst [vmem:[%s328 + $0x40] sm:$0xff] %v671
          %688 = vst [vmem:[%s328 + $0x48] sm:$0xff] %v672
          %689 = vst [vmem:[%s328 + $0x50] sm:$0xff] %v673
          %690 = vst [vmem:[%s328 + $0x58] sm:$0xff] %v674
          %691 = vst [vmem:[%s328 + $0x60] sm:$0xff] %v675
          %692 = vst [vmem:[%s328 + $0x68] sm:$0xff] %v676
          %693 = vst [vmem:[%s328 + $0x70] sm:$0xff] %v677
          %694 = vst [vmem:[%s328 + $0x78] sm:$0xff] %v678
        $region81: #{tscd_forward.14} parent=68 // pred_fallthru
          _
        %s695 = sand.u32 %s125, 1
        %s696 = sand.u32 %s125, 1
        %s697 = smul.addr %s696, 128
        %s698 = scalar_lea.vmem [#allocation4], %s697
        // Predicated region
        $region82: #{tscd_forward.14} parent=68 // pred_check
          %p699 = pneg %p135
        $region83: #{tscd_forward.14} parent=68 // pred_check_branch
          %701 = sbr.rel (%p699) target = $region85
        $region84: #{tscd_forward.14} parent=68 // pred_region
          %s702 = smul.u32 16, %s19
          %s703 = smul.addr %s702, 2
          %s704 = sadd.s32 %s20, %s703
          %s705 = smul.addr %s704, 8
          %s706 = scalar_lea.vmem %s3, %s705
          // Predicated region
          $region86: #{tscd_forward.14} parent=84 // pred_check
            _
          $region87: #{tscd_forward.14} parent=84 // pred_check_branch
            %708 = sbr.rel (0) target = $region89
          $region88: #{tscd_forward.14} parent=84 // pred_region
            // Predicated region
            $region90: #{tscd_forward.14} parent=88 // pred_check
              _
            $region91: #{tscd_forward.14} parent=88 // pred_check_branch
              %710 = sbr.rel (0) target = $region93
            $region92: #{tscd_forward.14} parent=88 // pred_region
              // Predicated region
              $region105: #{tscd_forward.14} parent=92 // pred_check
                _
              $region106: #{tscd_forward.14} parent=92 // pred_check_branch
                %756 = sbr.rel (0) target = $region108
              $region107: #{tscd_forward.14} parent=92 // pred_region
                loop: start=0, step=1, limit=1
                $region109: #{tscd_forward.14} parent=107 // loop_pre_header
                  _
                $region110: #{tscd_forward.14} parent=107 // loop_header
                  %s758 = sphi 0, %s762
                  %p759 = scmp.ge.s32.totalorder %s758, 1
                  %s763 = sphi %s698, %s698
                  %s764 = sphi %s706, %s706
                $region111: #{tscd_forward.14} parent=107 // loop_header_branch
                  %761 = sbr.rel (%p759) target = $region115
                $region112: #{tscd_forward.14} parent=107 // loop_body
                  %v765 = vld [vmem:[%s763] sm:$0xff]
                  %766 = vst [vmem:[%s764] sm:$0xff] %v765
                  %v767 = vld [vmem:[%s763 + $0x8] sm:$0xff]
                  %768 = vst [vmem:[%s764 + $0x10] sm:$0xff] %v767
                  %v769 = vld [vmem:[%s763 + $0x10] sm:$0xff]
                  %770 = vst [vmem:[%s764 + $0x20] sm:$0xff] %v769
                  %v771 = vld [vmem:[%s763 + $0x18] sm:$0xff]
                  %772 = vst [vmem:[%s764 + $0x30] sm:$0xff] %v771
                  %v773 = vld [vmem:[%s763 + $0x20] sm:$0xff]
                  %774 = vst [vmem:[%s764 + $0x40] sm:$0xff] %v773
                  %v775 = vld [vmem:[%s763 + $0x28] sm:$0xff]
                  %776 = vst [vmem:[%s764 + $0x50] sm:$0xff] %v775
                  %v777 = vld [vmem:[%s763 + $0x30] sm:$0xff]
                  %778 = vst [vmem:[%s764 + $0x60] sm:$0xff] %v777
                  %v779 = vld [vmem:[%s763 + $0x38] sm:$0xff]
                  %780 = vst [vmem:[%s764 + $0x70] sm:$0xff] %v779
                  %v781 = vld [vmem:[%s763 + $0x40] sm:$0xff]
                  %782 = vst [vmem:[%s764 + $0x80] sm:$0xff] %v781
                  %v783 = vld [vmem:[%s763 + $0x48] sm:$0xff]
                  %784 = vst [vmem:[%s764 + $0x90] sm:$0xff] %v783
                  %v785 = vld [vmem:[%s763 + $0x50] sm:$0xff]
                  %786 = vst [vmem:[%s764 + $0xa0] sm:$0xff] %v785
                  %v787 = vld [vmem:[%s763 + $0x58] sm:$0xff]
                  %788 = vst [vmem:[%s764 + $0xb0] sm:$0xff] %v787
                  %v789 = vld [vmem:[%s763 + $0x60] sm:$0xff]
                  %790 = vst [vmem:[%s764 + $0xc0] sm:$0xff] %v789
                  %v791 = vld [vmem:[%s763 + $0x68] sm:$0xff]
                  %792 = vst [vmem:[%s764 + $0xd0] sm:$0xff] %v791
                  %v793 = vld [vmem:[%s763 + $0x70] sm:$0xff]
                  %794 = vst [vmem:[%s764 + $0xe0] sm:$0xff] %v793
                  %v795 = vld [vmem:[%s763 + $0x78] sm:$0xff]
                  %796 = vst [vmem:[%s764 + $0xf0] sm:$0xff] %v795
                $region113: #{tscd_forward.14} parent=107 // loop_footer
                  %s762 = sadd.s32 1, %s758
                $region114: #{tscd_forward.14} parent=107 // loop_footer_branch
                  %757 = sbr.rel target = $region110
                $region115: #{tscd_forward.14} parent=107 // loop_exit
                  _
              $region108: #{tscd_forward.14} parent=92 // pred_fallthru
                _
              // Predicated region
              $region116: #{tscd_forward.14} parent=92 // pred_check
                _
              $region117: #{tscd_forward.14} parent=92 // pred_check_branch
                %798 = sbr.rel target = $region119
              $region118: #{tscd_forward.14} parent=92 // pred_region
                _
              $region119: #{tscd_forward.14} parent=92 // pred_fallthru
                _
            $region93: #{tscd_forward.14} parent=88 // pred_fallthru
              _
            // Predicated region
            $region94: #{tscd_forward.14} parent=88 // pred_check
              _
            $region95: #{tscd_forward.14} parent=88 // pred_check_branch
              %712 = sbr.rel target = $region97
            $region96: #{tscd_forward.14} parent=88 // pred_region
              %s714 = ssub.s32 256, 1
              loop: start=0, step=1, limit=1
              $region98: #{tscd_forward.14} parent=96 // loop_pre_header
                _
              $region99: #{tscd_forward.14} parent=96 // loop_header
                %s716 = sphi 0, %s720
                %p717 = scmp.ge.s32.totalorder %s716, 1
                %s721 = sphi %s698, %s698
                %s722 = sphi %s706, %s706
              $region100: #{tscd_forward.14} parent=96 // loop_header_branch
                %719 = sbr.rel (%p717) target = $region104
              $region101: #{tscd_forward.14} parent=96 // loop_body
                %v723 = vld [vmem:[%s721] sm:%s714]
                %724 = vst [vmem:[%s722] sm:%s714] %v723
                %v725 = vld [vmem:[%s721 + $0x8] sm:%s714]
                %726 = vst [vmem:[%s722 + $0x10] sm:%s714] %v725
                %v727 = vld [vmem:[%s721 + $0x10] sm:%s714]
                %728 = vst [vmem:[%s722 + $0x20] sm:%s714] %v727
                %v729 = vld [vmem:[%s721 + $0x18] sm:%s714]
                %730 = vst [vmem:[%s722 + $0x30] sm:%s714] %v729
                %v731 = vld [vmem:[%s721 + $0x20] sm:%s714]
                %732 = vst [vmem:[%s722 + $0x40] sm:%s714] %v731
                %v733 = vld [vmem:[%s721 + $0x28] sm:%s714]
                %734 = vst [vmem:[%s722 + $0x50] sm:%s714] %v733
                %v735 = vld [vmem:[%s721 + $0x30] sm:%s714]
                %736 = vst [vmem:[%s722 + $0x60] sm:%s714] %v735
                %v737 = vld [vmem:[%s721 + $0x38] sm:%s714]
                %738 = vst [vmem:[%s722 + $0x70] sm:%s714] %v737
                %v739 = vld [vmem:[%s721 + $0x40] sm:%s714]
                %740 = vst [vmem:[%s722 + $0x80] sm:%s714] %v739
                %v741 = vld [vmem:[%s721 + $0x48] sm:%s714]
                %742 = vst [vmem:[%s722 + $0x90] sm:%s714] %v741
                %v743 = vld [vmem:[%s721 + $0x50] sm:%s714]
                %744 = vst [vmem:[%s722 + $0xa0] sm:%s714] %v743
                %v745 = vld [vmem:[%s721 + $0x58] sm:%s714]
                %746 = vst [vmem:[%s722 + $0xb0] sm:%s714] %v745
                %v747 = vld [vmem:[%s721 + $0x60] sm:%s714]
                %748 = vst [vmem:[%s722 + $0xc0] sm:%s714] %v747
                %v749 = vld [vmem:[%s721 + $0x68] sm:%s714]
                %750 = vst [vmem:[%s722 + $0xd0] sm:%s714] %v749
                %v751 = vld [vmem:[%s721 + $0x70] sm:%s714]
                %752 = vst [vmem:[%s722 + $0xe0] sm:%s714] %v751
                %v753 = vld [vmem:[%s721 + $0x78] sm:%s714]
                %754 = vst [vmem:[%s722 + $0xf0] sm:%s714] %v753
              $region102: #{tscd_forward.14} parent=96 // loop_footer
                %s720 = sadd.s32 1, %s716
              $region103: #{tscd_forward.14} parent=96 // loop_footer_branch
                %715 = sbr.rel target = $region99
              $region104: #{tscd_forward.14} parent=96 // loop_exit
                _
            $region97: #{tscd_forward.14} parent=88 // pred_fallthru
              _
          $region89: #{tscd_forward.14} parent=84 // pred_fallthru
            _
          %799 = vnop
        $region85: #{tscd_forward.14} parent=68 // pred_fallthru
          _
      $region69: #{tscd_forward.14} parent=5 // pred_fallthru
        _
      %p800 = scmp.le.s32.totalorder 2, %s9
      // Predicated region
      $region120: #{tscd_forward.14} parent=5 // pred_check
        %p801 = pneg %p800
      $region121: #{tscd_forward.14} parent=5 // pred_check_branch
        %803 = sbr.rel (%p801) target = $region123
      $region122: #{tscd_forward.14} parent=5 // pred_region
        %s804 = ssub.s32 %s9, 2
        // Predicated region
        $region124: #{tscd_forward.14} parent=122 // pred_check
          %p805 = pneg %p141
        $region125: #{tscd_forward.14} parent=122 // pred_check_branch
          %807 = sbr.rel (%p805) target = $region127
        $region126: #{tscd_forward.14} parent=122 // pred_region
          %s808 = sand.u32 %s126, 1
          %s809 = sand.u32 %s126, 1
          %s810 = smul.addr %s809, 128
          %s811 = scalar_lea.vmem [#allocation4], %s810
        $region127: #{tscd_forward.14} parent=122 // pred_fallthru
          _
      $region123: #{tscd_forward.14} parent=5 // pred_fallthru
        _
    $region6: #{tscd_forward.14} parent=1 // loop_footer
      %s13 = sadd.s32 1, %s9
    $region7: #{tscd_forward.14} parent=1 // loop_footer_branch
      %8 = sbr.rel target = $region3
    $region8: #{tscd_forward.14} parent=1 // loop_exit
      _

// kernel: tscd_forward.17
$region0: #{tscd_forward.17}
  #allocation0 [shape = 'u32[]', space=smem, size = 0x4, offset = 0x4, fixed_abs, tag = 'smem constant byte address 0x4 - core index']
  #allocation1 [shape = 'u32[144,128]{1,0:T(1,128)}', space=vmem, size = 0x12000, scoped, tag = 'internal scratch']
  #allocation2 [shape = 'f32[128,128]{1,0:T(8,128)}', space=vmem, size = 0x10000, scoped, tag = 'scratch operand']
  %s0 = inlined_call_operand.vmem [shape: bf16[128,256], index: 0, kind: input, shape index: {}]
  %s1 = inlined_call_operand.vmem [shape: bf16[128,256], index: 1, kind: input, shape index: {}]
  %s2 = inlined_call_operand.vmem [shape: bf16[256,128], index: 2, kind: input, shape index: {}]
  %s3 = inlined_call_operand.vmem [shape: f32[1,128], index: 3, kind: input, shape index: {}]
  %s4 = inlined_call_operand.vmem [shape: f32[128,128], index: 4, kind: output, shape index: {}]
  %s5 = sld [smem:[#allocation0]]
  $region139: #{tscd_forward.17} parent=0
    _
  %s7 = ssub.s32 1, %s5
  %s8 = scalar_select 0, %s7, %s5
  $region1: #{tscd_forward.17} parent=0
    #allocation3 [shape = 'u8[65536]{0}', space=vmem, size = 0x10000, scoped, tag = 'input window, operand 0']
    #allocation4 [shape = 'u8[65536]{0}', space=vmem, size = 0x10000, scoped, tag = 'input window, operand 1']
    loop: start=0, step=1, limit=4
    $region2: #{tscd_forward.17} parent=1 // loop_pre_header
      _
    $region3: #{tscd_forward.17} parent=1 // loop_header
      %s10 = sphi 0, %s14
      %p11 = scmp.ge.s32.totalorder %s10, 4
      %s17 = sphi 0, %s36
      %s18 = sphi 0, %s32
      %s19 = sphi 0, %s28
      %s20 = sphi 0, %s17
      %s21 = sphi 0, %s18
      %s22 = sphi 0, %s19
      %s23 = sphi 0, %s20
      %s24 = sphi 0, %s21
      %s25 = sphi 0, %s22
      %s41 = sphi 0, %s43
      %s44 = sphi 0, %s41
      %s45 = sphi 0, %s44
      %s61 = sphi 0, %s45
      %s69 = sphi 0, %s71
      %s72 = sphi 0, %s69
      %s73 = sphi 0, %s72
      %s89 = sphi 0, %s73
      %s97 = sphi 0, %s99
      %s100 = sphi 0, %s97
      %s101 = sphi 0, %s100
      %s117 = sphi 0, %s101
      %s123 = sphi 0, %s125
      %s126 = sphi 0, %s123
      %s127 = sphi 0, %s126
      %s143 = sphi 0, %s127
      %s151 = sphi 0, %s153
      %s154 = sphi 0, %s151
      %s155 = sphi 0, %s154
      %s171 = sphi 0, %s155
    $region4: #{tscd_forward.17} parent=1 // loop_header_branch
      %13 = sbr.rel (%p11) target = $region8
    $region5: #{tscd_forward.17} parent=1 // loop_body
      %s15 = ssub.s32 %s10, 1
      %s16 = ssub.s32 %s10, 2
      %s26 = sadd.s32 1, %s19
      %p27 = scmp.ge.s32.totalorder %s26, 2
      %s28 = scalar_select %p27, 0, %s26
      %s29 = sadd.s32 1, %s18
      %s30 = scalar_select %p27, %s29, %s18
      %p31 = scmp.ge.s32.totalorder %s30, 1
      %s32 = scalar_select %p31, 0, %s30
      %s33 = sadd.s32 1, %s17
      %s34 = scalar_select %p31, %s33, %s17
      %p35 = scmp.ge.s32.totalorder %s34, 1
      %s36 = scalar_select %p35, 0, %s34
      %s37 = ssub.s32 %s17, %s36
      %s38 = ssub.s32 %s19, %s28
      %s39 = sor.u32 %s37, %s38
      %p40 = scmp.eq.s32.totalorder %s39, 0
      %s42 = sadd.s32 %s41, 1
      %s43 = scalar_select %p40, %s41, %s42
      %p46 = pneg %p40
      %p47 = scmp.eq.s32.totalorder %s10, 1
      %p48 = por %p46, %p47
      %p49 = scmp.ne.s32.totalorder %s41, %s44
      %p50 = scmp.eq.s32.totalorder %s10, 0
      %p51 = por %p49, %p50
      %p52 = scmp.ne.s32.totalorder %s41, %s44
      %p53 = scmp.eq.s32.totalorder %s15, 1
      %p54 = por %p52, %p53
      %p55 = scmp.ne.s32.totalorder %s44, %s45
      %p56 = scmp.eq.s32.totalorder %s15, 0
      %p57 = por %p55, %p56
      %p58 = scmp.ne.s32.totalorder %s44, %s45
      %p59 = scmp.eq.s32.totalorder %s16, 1
      %p60 = por %p58, %p59
      %p62 = scmp.ne.s32.totalorder %s45, %s61
      %p63 = scmp.eq.s32.totalorder %s16, 0
      %p64 = por %p62, %p63
      %s65 = ssub.s32 %s17, %s36
      %s66 = ssub.s32 %s19, %s28
      %s67 = sor.u32 %s65, %s66
      %p68 = scmp.eq.s32.totalorder %s67, 0
      %s70 = sadd.s32 %s69, 1
      %s71 = scalar_select %p68, %s69, %s70
      %p74 = pneg %p68
      %p75 = scmp.eq.s32.totalorder %s10, 1
      %p76 = por %p74, %p75
      %p77 = scmp.ne.s32.totalorder %s69, %s72
      %p78 = scmp.eq.s32.totalorder %s10, 0
      %p79 = por %p77, %p78
      %p80 = scmp.ne.s32.totalorder %s69, %s72
      %p81 = scmp.eq.s32.totalorder %s15, 1
      %p82 = por %p80, %p81
      %p83 = scmp.ne.s32.totalorder %s72, %s73
      %p84 = scmp.eq.s32.totalorder %s15, 0
      %p85 = por %p83, %p84
      %p86 = scmp.ne.s32.totalorder %s72, %s73
      %p87 = scmp.eq.s32.totalorder %s16, 1
      %p88 = por %p86, %p87
      %p90 = scmp.ne.s32.totalorder %s73, %s89
      %p91 = scmp.eq.s32.totalorder %s16, 0
      %p92 = por %p90, %p91
      %s93 = ssub.s32 %s19, %s28
      %s94 = ssub.s32 %s18, %s32
      %s95 = sor.u32 %s93, %s94
      %p96 = scmp.eq.s32.totalorder %s95, 0
      %s98 = sadd.s32 %s97, 1
      %s99 = scalar_select %p96, %s97, %s98
      %p102 = pneg %p96
      %p103 = scmp.eq.s32.totalorder %s10, 1
      %p104 = por %p102, %p103
      %p105 = scmp.ne.s32.totalorder %s97, %s100
      %p106 = scmp.eq.s32.totalorder %s10, 0
      %p107 = por %p105, %p106
      %p108 = scmp.ne.s32.totalorder %s97, %s100
      %p109 = scmp.eq.s32.totalorder %s15, 1
      %p110 = por %p108, %p109
      %p111 = scmp.ne.s32.totalorder %s100, %s101
      %p112 = scmp.eq.s32.totalorder %s15, 0
      %p113 = por %p111, %p112
      %p114 = scmp.ne.s32.totalorder %s100, %s101
      %p115 = scmp.eq.s32.totalorder %s16, 1
      %p116 = por %p114, %p115
      %p118 = scmp.ne.s32.totalorder %s101, %s117
      %p119 = scmp.eq.s32.totalorder %s16, 0
      %p120 = por %p118, %p119
      %s121 = ssub.s32 %s18, %s32
      %p122 = scmp.eq.s32.totalorder %s121, 0
      %s124 = sadd.s32 %s123, 1
      %s125 = scalar_select %p122, %s123, %s124
      %p128 = pneg %p122
      %p129 = scmp.eq.s32.totalorder %s10, 1
      %p130 = por %p128, %p129
      %p131 = scmp.ne.s32.totalorder %s123, %s126
      %p132 = scmp.eq.s32.totalorder %s10, 0
      %p133 = por %p131, %p132
      %p134 = scmp.ne.s32.totalorder %s123, %s126
      %p135 = scmp.eq.s32.totalorder %s15, 1
      %p136 = por %p134, %p135
      %p137 = scmp.ne.s32.totalorder %s126, %s127
      %p138 = scmp.eq.s32.totalorder %s15, 0
      %p139 = por %p137, %p138
      %p140 = scmp.ne.s32.totalorder %s126, %s127
      %p141 = scmp.eq.s32.totalorder %s16, 1
      %p142 = por %p140, %p141
      %p144 = scmp.ne.s32.totalorder %s127, %s143
      %p145 = scmp.eq.s32.totalorder %s16, 0
      %p146 = por %p144, %p145
      %s147 = ssub.s32 %s17, %s36
      %s148 = ssub.s32 %s18, %s32
      %s149 = sor.u32 %s147, %s148
      %p150 = scmp.eq.s32.totalorder %s149, 0
      %s152 = sadd.s32 %s151, 1
      %s153 = scalar_select %p150, %s151, %s152
      %p156 = pneg %p150
      %p157 = scmp.eq.s32.totalorder %s10, 1
      %p158 = por %p156, %p157
      %p159 = scmp.ne.s32.totalorder %s151, %s154
      %p160 = scmp.eq.s32.totalorder %s10, 0
      %p161 = por %p159, %p160
      %p162 = scmp.ne.s32.totalorder %s151, %s154
      %p163 = scmp.eq.s32.totalorder %s15, 1
      %p164 = por %p162, %p163
      %p165 = scmp.ne.s32.totalorder %s154, %s155
      %p166 = scmp.eq.s32.totalorder %s15, 0
      %p167 = por %p165, %p166
      %p168 = scmp.ne.s32.totalorder %s154, %s155
      %p169 = scmp.eq.s32.totalorder %s16, 1
      %p170 = por %p168, %p169
      %p172 = scmp.ne.s32.totalorder %s155, %s171
      %p173 = scmp.eq.s32.totalorder %s16, 0
      %p174 = por %p172, %p173
      %p175 = scmp.le.s32.totalorder 1, %s10
      %p176 = scmp.lt.s32.totalorder %s10, 3
      %p177 = pnand %p175, %p176
      %p178 = pneg %p177
      // Predicated region
      $region9: #{tscd_forward.17} parent=5 // pred_check
        _
      $region10: #{tscd_forward.17} parent=5 // pred_check_branch
        %180 = sbr.rel (%p177) target = $region12
      $region11: #{tscd_forward.17} parent=5 // pred_region
        %s181 = ssub.s32 %s10, 1
        // Predicated region
        $region13: #{tscd_forward.17} parent=11 // pred_check
          %p182 = pneg %p139
        $region14: #{tscd_forward.17} parent=11 // pred_check_branch
          %184 = sbr.rel (%p182) target = $region16
        $region15: #{tscd_forward.17} parent=11 // pred_region
          %p185 = scmp.lt.s32.totalorder %s21, 0
          %s186 = scalar_select %p185, %s21, 0
          %s187 = scalar_lea.vmem %s3, %s186
        $region16: #{tscd_forward.17} parent=11 // pred_fallthru
          _
      $region12: #{tscd_forward.17} parent=5 // pred_fallthru
        _
      %p188 = scmp.lt.s32.totalorder %s10, 2
      // Predicated region
      $region17: #{tscd_forward.17} parent=5 // pred_check
        %p189 = pneg %p188
      $region18: #{tscd_forward.17} parent=5 // pred_check_branch
        %191 = sbr.rel (%p189) target = $region20
      $region19: #{tscd_forward.17} parent=5 // pred_region
        // Predicated region
        $region21: #{tscd_forward.17} parent=19 // pred_check
          %p192 = pneg %p51
        $region22: #{tscd_forward.17} parent=19 // pred_check_branch
          %194 = sbr.rel (%p192) target = $region24
        $region23: #{tscd_forward.17} parent=19 // pred_region
          %s195 = sand.u32 %s41, 1
          %s196 = sand.u32 %s41, 1
          %s197 = smul.addr %s196, 64
          %s198 = scalar_lea.vmem [#allocation3], %s197
          %s199 = smul.u32 16, %s17
          %s200 = smul.addr %s199, 2
          %s201 = sadd.s32 %s19, %s200
          %s202 = smul.addr %s201, 4
          %s203 = scalar_lea.vmem %s0, %s202
          // Predicated region
          $region25: #{tscd_forward.17} parent=23 // pred_check
            _
          $region26: #{tscd_forward.17} parent=23 // pred_check_branch
            %205 = sbr.rel (0) target = $region28
          $region27: #{tscd_forward.17} parent=23 // pred_region
            // Predicated region
            $region29: #{tscd_forward.17} parent=27 // pred_check
              _
            $region30: #{tscd_forward.17} parent=27 // pred_check_branch
              %207 = sbr.rel target = $region32
            $region31: #{tscd_forward.17} parent=27 // pred_region
              // Predicated region
              $region44: #{tscd_forward.17} parent=31 // pred_check
                _
              $region45: #{tscd_forward.17} parent=31 // pred_check_branch
                %253 = sbr.rel (0) target = $region47
              $region46: #{tscd_forward.17} parent=31 // pred_region
                loop: start=0, step=1, limit=1
                $region48: #{tscd_forward.17} parent=46 // loop_pre_header
                  _
                $region49: #{tscd_forward.17} parent=46 // loop_header
                  %s255 = sphi 0, %s259
                  %p256 = scmp.ge.s32.totalorder %s255, 1
                  %s260 = sphi %s203, %s203
                  %s261 = sphi %s198, %s198
                $region50: #{tscd_forward.17} parent=46 // loop_header_branch
                  %258 = sbr.rel (%p256) target = $region54
                $region51: #{tscd_forward.17} parent=46 // loop_body
                  _
                $region52: #{tscd_forward.17} parent=46 // loop_footer
                  %s259 = sadd.s32 1, %s255
                $region53: #{tscd_forward.17} parent=46 // loop_footer_branch
                  %254 = sbr.rel target = $region49
                $region54: #{tscd_forward.17} parent=46 // loop_exit
                  _
                %s263 = ssub.s32 16, 1
                loop: start=0, step=1, limit=1
                $region55: #{tscd_forward.17} parent=46 // loop_pre_header
                  _
                $region56: #{tscd_forward.17} parent=46 // loop_header
                  %s265 = sphi 0, %s269
                  %p266 = scmp.ge.s32.totalorder %s265, 1
                  %s270 = sphi %s203, %s203
                  %s271 = sphi %s198, %s198
                $region57: #{tscd_forward.17} parent=46 // loop_header_branch
                  %268 = sbr.rel (%p266) target = $region61
                $region58: #{tscd_forward.17} parent=46 // loop_body
                  %v272 = vld [vmem:[%s270] sm:%s263]
                  %273 = vst [vmem:[%s271] sm:%s263] %v272
                  %v274 = vld [vmem:[%s270 + $0x8] sm:%s263]
                  %275 = vst [vmem:[%s271 + $0x4] sm:%s263] %v274
                  %v276 = vld [vmem:[%s270 + $0x10] sm:%s263]
                  %277 = vst [vmem:[%s271 + $0x8] sm:%s263] %v276
                  %v278 = vld [vmem:[%s270 + $0x18] sm:%s263]
                  %279 = vst [vmem:[%s271 + $0xc] sm:%s263] %v278
                  %v280 = vld [vmem:[%s270 + $0x20] sm:%s263]
                  %281 = vst [vmem:[%s271 + $0x10] sm:%s263] %v280
                  %v282 = vld [vmem:[%s270 + $0x28] sm:%s263]
                  %283 = vst [vmem:[%s271 + $0x14] sm:%s263] %v282
                  %v284 = vld [vmem:[%s270 + $0x30] sm:%s263]
                  %285 = vst [vmem:[%s271 + $0x18] sm:%s263] %v284
                  %v286 = vld [vmem:[%s270 + $0x38] sm:%s263]
                  %287 = vst [vmem:[%s271 + $0x1c] sm:%s263] %v286
                  %v288 = vld [vmem:[%s270 + $0x40] sm:%s263]
                  %289 = vst [vmem:[%s271 + $0x20] sm:%s263] %v288
                  %v290 = vld [vmem:[%s270 + $0x48] sm:%s263]
                  %291 = vst [vmem:[%s271 + $0x24] sm:%s263] %v290
                  %v292 = vld [vmem:[%s270 + $0x50] sm:%s263]
                  %293 = vst [vmem:[%s271 + $0x28] sm:%s263] %v292
                  %v294 = vld [vmem:[%s270 + $0x58] sm:%s263]
                  %295 = vst [vmem:[%s271 + $0x2c] sm:%s263] %v294
                  %v296 = vld [vmem:[%s270 + $0x60] sm:%s263]
                  %297 = vst [vmem:[%s271 + $0x30] sm:%s263] %v296
                  %v298 = vld [vmem:[%s270 + $0x68] sm:%s263]
                  %299 = vst [vmem:[%s271 + $0x34] sm:%s263] %v298
                  %v300 = vld [vmem:[%s270 + $0x70] sm:%s263]
                  %301 = vst [vmem:[%s271 + $0x38] sm:%s263] %v300
                  %v302 = vld [vmem:[%s270 + $0x78] sm:%s263]
                  %303 = vst [vmem:[%s271 + $0x3c] sm:%s263] %v302
                $region59: #{tscd_forward.17} parent=46 // loop_footer
                  %s269 = sadd.s32 1, %s265
                $region60: #{tscd_forward.17} parent=46 // loop_footer_branch
                  %264 = sbr.rel target = $region56
                $region61: #{tscd_forward.17} parent=46 // loop_exit
                  _
              $region47: #{tscd_forward.17} parent=31 // pred_fallthru
                _
            $region32: #{tscd_forward.17} parent=27 // pred_fallthru
              _
            // Predicated region
            $region33: #{tscd_forward.17} parent=27 // pred_check
              _
            $region34: #{tscd_forward.17} parent=27 // pred_check_branch
              %209 = sbr.rel (0) target = $region36
            $region35: #{tscd_forward.17} parent=27 // pred_region
              %s211 = ssub.s32 16, 1
              loop: start=0, step=1, limit=1
              $region37: #{tscd_forward.17} parent=35 // loop_pre_header
                _
              $region38: #{tscd_forward.17} parent=35 // loop_header
                %s213 = sphi 0, %s217
                %p214 = scmp.ge.s32.totalorder %s213, 1
                %s218 = sphi %s203, %s203
                %s219 = sphi %s198, %s198
              $region39: #{tscd_forward.17} parent=35 // loop_header_branch
                %216 = sbr.rel (%p214) target = $region43
              $region40: #{tscd_forward.17} parent=35 // loop_body
                %v220 = vld [vmem:[%s218] sm:%s211]
                %221 = vst [vmem:[%s219] sm:%s211] %v220
                %v222 = vld [vmem:[%s218 + $0x8] sm:%s211]
                %223 = vst [vmem:[%s219 + $0x4] sm:%s211] %v222
                %v224 = vld [vmem:[%s218 + $0x10] sm:%s211]
                %225 = vst [vmem:[%s219 + $0x8] sm:%s211] %v224
                %v226 = vld [vmem:[%s218 + $0x18] sm:%s211]
                %227 = vst [vmem:[%s219 + $0xc] sm:%s211] %v226
                %v228 = vld [vmem:[%s218 + $0x20] sm:%s211]
                %229 = vst [vmem:[%s219 + $0x10] sm:%s211] %v228
                %v230 = vld [vmem:[%s218 + $0x28] sm:%s211]
                %231 = vst [vmem:[%s219 + $0x14] sm:%s211] %v230
                %v232 = vld [vmem:[%s218 + $0x30] sm:%s211]
                %233 = vst [vmem:[%s219 + $0x18] sm:%s211] %v232
                %v234 = vld [vmem:[%s218 + $0x38] sm:%s211]
                %235 = vst [vmem:[%s219 + $0x1c] sm:%s211] %v234
                %v236 = vld [vmem:[%s218 + $0x40] sm:%s211]
                %237 = vst [vmem:[%s219 + $0x20] sm:%s211] %v236
                %v238 = vld [vmem:[%s218 + $0x48] sm:%s211]
                %239 = vst [vmem:[%s219 + $0x24] sm:%s211] %v238
                %v240 = vld [vmem:[%s218 + $0x50] sm:%s211]
                %241 = vst [vmem:[%s219 + $0x28] sm:%s211] %v240
                %v242 = vld [vmem:[%s218 + $0x58] sm:%s211]
                %243 = vst [vmem:[%s219 + $0x2c] sm:%s211] %v242
                %v244 = vld [vmem:[%s218 + $0x60] sm:%s211]
                %245 = vst [vmem:[%s219 + $0x30] sm:%s211] %v244
                %v246 = vld [vmem:[%s218 + $0x68] sm:%s211]
                %247 = vst [vmem:[%s219 + $0x34] sm:%s211] %v246
                %v248 = vld [vmem:[%s218 + $0x70] sm:%s211]
                %249 = vst [vmem:[%s219 + $0x38] sm:%s211] %v248
                %v250 = vld [vmem:[%s218 + $0x78] sm:%s211]
                %251 = vst [vmem:[%s219 + $0x3c] sm:%s211] %v250
              $region41: #{tscd_forward.17} parent=35 // loop_footer
                %s217 = sadd.s32 1, %s213
              $region42: #{tscd_forward.17} parent=35 // loop_footer_branch
                %212 = sbr.rel target = $region38
              $region43: #{tscd_forward.17} parent=35 // loop_exit
                _
            $region36: #{tscd_forward.17} parent=27 // pred_fallthru
              _
          $region28: #{tscd_forward.17} parent=23 // pred_fallthru
            _
          %304 = vnop
        $region24: #{tscd_forward.17} parent=19 // pred_fallthru
          _
        // Predicated region
        $region62: #{tscd_forward.17} parent=19 // pred_check
          %p305 = pneg %p79
        $region63: #{tscd_forward.17} parent=19 // pred_check_branch
          %307 = sbr.rel (%p305) target = $region65
        $region64: #{tscd_forward.17} parent=19 // pred_region
          %s308 = sand.u32 %s69, 1
          %s309 = sand.u32 %s69, 1
          %s310 = smul.addr %s309, 64
          %s311 = scalar_lea.vmem [#allocation4], %s310
          %s312 = smul.u32 16, %s17
          %s313 = smul.addr %s312, 2
          %s314 = sadd.s32 %s19, %s313
          %s315 = smul.addr %s314, 4
          %s316 = scalar_lea.vmem %s1, %s315
          // Predicated region
          $region66: #{tscd_forward.17} parent=64 // pred_check
            _
          $region67: #{tscd_forward.17} parent=64 // pred_check_branch
            %318 = sbr.rel (0) target = $region69
          $region68: #{tscd_forward.17} parent=64 // pred_region
            // Predicated region
            $region70: #{tscd_forward.17} parent=68 // pred_check
              _
            $region71: #{tscd_forward.17} parent=68 // pred_check_branch
              %320 = sbr.rel target = $region73
            $region72: #{tscd_forward.17} parent=68 // pred_region
              // Predicated region
              $region85: #{tscd_forward.17} parent=72 // pred_check
                _
              $region86: #{tscd_forward.17} parent=72 // pred_check_branch
                %366 = sbr.rel (0) target = $region88
              $region87: #{tscd_forward.17} parent=72 // pred_region
                loop: start=0, step=1, limit=1
                $region89: #{tscd_forward.17} parent=87 // loop_pre_header
                  _
                $region90: #{tscd_forward.17} parent=87 // loop_header
                  %s368 = sphi 0, %s372
                  %p369 = scmp.ge.s32.totalorder %s368, 1
                  %s373 = sphi %s316, %s316
                  %s374 = sphi %s311, %s311
                $region91: #{tscd_forward.17} parent=87 // loop_header_branch
                  %371 = sbr.rel (%p369) target = $region95
                $region92: #{tscd_forward.17} parent=87 // loop_body
                  _
                $region93: #{tscd_forward.17} parent=87 // loop_footer
                  %s372 = sadd.s32 1, %s368
                $region94: #{tscd_forward.17} parent=87 // loop_footer_branch
                  %367 = sbr.rel target = $region90
                $region95: #{tscd_forward.17} parent=87 // loop_exit
                  _
                %s376 = ssub.s32 16, 1
                loop: start=0, step=1, limit=1
                $region96: #{tscd_forward.17} parent=87 // loop_pre_header
                  _
                $region97: #{tscd_forward.17} parent=87 // loop_header
                  %s378 = sphi 0, %s382
                  %p379 = scmp.ge.s32.totalorder %s378, 1
                  %s383 = sphi %s316, %s316
                  %s384 = sphi %s311, %s311
                $region98: #{tscd_forward.17} parent=87 // loop_header_branch
                  %381 = sbr.rel (%p379) target = $region102
                $region99: #{tscd_forward.17} parent=87 // loop_body
                  %v385 = vld [vmem:[%s383] sm:%s376]
                  %386 = vst [vmem:[%s384] sm:%s376] %v385
                  %v387 = vld [vmem:[%s383 + $0x8] sm:%s376]
                  %388 = vst [vmem:[%s384 + $0x4] sm:%s376] %v387
                  %v389 = vld [vmem:[%s383 + $0x10] sm:%s376]
                  %390 = vst [vmem:[%s384 + $0x8] sm:%s376] %v389
                  %v391 = vld [vmem:[%s383 + $0x18] sm:%s376]
                  %392 = vst [vmem:[%s384 + $0xc] sm:%s376] %v391
                  %v393 = vld [vmem:[%s383 + $0x20] sm:%s376]
                  %394 = vst [vmem:[%s384 + $0x10] sm:%s376] %v393
                  %v395 = vld [vmem:[%s383 + $0x28] sm:%s376]
                  %396 = vst [vmem:[%s384 + $0x14] sm:%s376] %v395
                  %v397 = vld [vmem:[%s383 + $0x30] sm:%s376]
                  %398 = vst [vmem:[%s384 + $0x18] sm:%s376] %v397
                  %v399 = vld [vmem:[%s383 + $0x38] sm:%s376]
                  %400 = vst [vmem:[%s384 + $0x1c] sm:%s376] %v399
                  %v401 = vld [vmem:[%s383 + $0x40] sm:%s376]
                  %402 = vst [vmem:[%s384 + $0x20] sm:%s376] %v401
                  %v403 = vld [vmem:[%s383 + $0x48] sm:%s376]
                  %404 = vst [vmem:[%s384 + $0x24] sm:%s376] %v403
                  %v405 = vld [vmem:[%s383 + $0x50] sm:%s376]
                  %406 = vst [vmem:[%s384 + $0x28] sm:%s376] %v405
                  %v407 = vld [vmem:[%s383 + $0x58] sm:%s376]
                  %408 = vst [vmem:[%s384 + $0x2c] sm:%s376] %v407
                  %v409 = vld [vmem:[%s383 + $0x60] sm:%s376]
                  %410 = vst [vmem:[%s384 + $0x30] sm:%s376] %v409
                  %v411 = vld [vmem:[%s383 + $0x68] sm:%s376]
                  %412 = vst [vmem:[%s384 + $0x34] sm:%s376] %v411
                  %v413 = vld [vmem:[%s383 + $0x70] sm:%s376]
                  %414 = vst [vmem:[%s384 + $0x38] sm:%s376] %v413
                  %v415 = vld [vmem:[%s383 + $0x78] sm:%s376]
                  %416 = vst [vmem:[%s384 + $0x3c] sm:%s376] %v415
                $region100: #{tscd_forward.17} parent=87 // loop_footer
                  %s382 = sadd.s32 1, %s378
                $region101: #{tscd_forward.17} parent=87 // loop_footer_branch
                  %377 = sbr.rel target = $region97
                $region102: #{tscd_forward.17} parent=87 // loop_exit
                  _
              $region88: #{tscd_forward.17} parent=72 // pred_fallthru
                _
            $region73: #{tscd_forward.17} parent=68 // pred_fallthru
              _
            // Predicated region
            $region74: #{tscd_forward.17} parent=68 // pred_check
              _
            $region75: #{tscd_forward.17} parent=68 // pred_check_branch
              %322 = sbr.rel (0) target = $region77
            $region76: #{tscd_forward.17} parent=68 // pred_region
              %s324 = ssub.s32 16, 1
              loop: start=0, step=1, limit=1
              $region78: #{tscd_forward.17} parent=76 // loop_pre_header
                _
              $region79: #{tscd_forward.17} parent=76 // loop_header
                %s326 = sphi 0, %s330
                %p327 = scmp.ge.s32.totalorder %s326, 1
                %s331 = sphi %s316, %s316
                %s332 = sphi %s311, %s311
              $region80: #{tscd_forward.17} parent=76 // loop_header_branch
                %329 = sbr.rel (%p327) target = $region84
              $region81: #{tscd_forward.17} parent=76 // loop_body
                %v333 = vld [vmem:[%s331] sm:%s324]
                %334 = vst [vmem:[%s332] sm:%s324] %v333
                %v335 = vld [vmem:[%s331 + $0x8] sm:%s324]
                %336 = vst [vmem:[%s332 + $0x4] sm:%s324] %v335
                %v337 = vld [vmem:[%s331 + $0x10] sm:%s324]
                %338 = vst [vmem:[%s332 + $0x8] sm:%s324] %v337
                %v339 = vld [vmem:[%s331 + $0x18] sm:%s324]
                %340 = vst [vmem:[%s332 + $0xc] sm:%s324] %v339
                %v341 = vld [vmem:[%s331 + $0x20] sm:%s324]
                %342 = vst [vmem:[%s332 + $0x10] sm:%s324] %v341
                %v343 = vld [vmem:[%s331 + $0x28] sm:%s324]
                %344 = vst [vmem:[%s332 + $0x14] sm:%s324] %v343
                %v345 = vld [vmem:[%s331 + $0x30] sm:%s324]
                %346 = vst [vmem:[%s332 + $0x18] sm:%s324] %v345
                %v347 = vld [vmem:[%s331 + $0x38] sm:%s324]
                %348 = vst [vmem:[%s332 + $0x1c] sm:%s324] %v347
                %v349 = vld [vmem:[%s331 + $0x40] sm:%s324]
                %350 = vst [vmem:[%s332 + $0x20] sm:%s324] %v349
                %v351 = vld [vmem:[%s331 + $0x48] sm:%s324]
                %352 = vst [vmem:[%s332 + $0x24] sm:%s324] %v351
                %v353 = vld [vmem:[%s331 + $0x50] sm:%s324]
                %354 = vst [vmem:[%s332 + $0x28] sm:%s324] %v353
                %v355 = vld [vmem:[%s331 + $0x58] sm:%s324]
                %356 = vst [vmem:[%s332 + $0x2c] sm:%s324] %v355
                %v357 = vld [vmem:[%s331 + $0x60] sm:%s324]
                %358 = vst [vmem:[%s332 + $0x30] sm:%s324] %v357
                %v359 = vld [vmem:[%s331 + $0x68] sm:%s324]
                %360 = vst [vmem:[%s332 + $0x34] sm:%s324] %v359
                %v361 = vld [vmem:[%s331 + $0x70] sm:%s324]
                %362 = vst [vmem:[%s332 + $0x38] sm:%s324] %v361
                %v363 = vld [vmem:[%s331 + $0x78] sm:%s324]
                %364 = vst [vmem:[%s332 + $0x3c] sm:%s324] %v363
              $region82: #{tscd_forward.17} parent=76 // loop_footer
                %s330 = sadd.s32 1, %s326
              $region83: #{tscd_forward.17} parent=76 // loop_footer_branch
                %325 = sbr.rel target = $region79
              $region84: #{tscd_forward.17} parent=76 // loop_exit
                _
            $region77: #{tscd_forward.17} parent=68 // pred_fallthru
              _
          $region69: #{tscd_forward.17} parent=64 // pred_fallthru
            _
          %417 = vnop
        $region65: #{tscd_forward.17} parent=19 // pred_fallthru
          _
        // Predicated region
        $region103: #{tscd_forward.17} parent=19 // pred_check
          %p418 = pneg %p107
        $region104: #{tscd_forward.17} parent=19 // pred_check_branch
          %420 = sbr.rel (%p418) target = $region106
        $region105: #{tscd_forward.17} parent=19 // pred_region
          %s421 = smul.u32 16, %s19
          %p422 = scmp.lt.s32.totalorder %s421, 31
          %s423 = scalar_select %p422, %s421, 31
          %p424 = scmp.lt.s32.totalorder %s18, 0
          %s425 = scalar_select %p424, %s18, 0
          %s426 = sadd.s32 %s425, %s423
          %s427 = smul.addr %s426, 4
          %s428 = scalar_lea.vmem %s2, %s427
          %s429 = smul.u32 16, %s19
        $region106: #{tscd_forward.17} parent=19 // pred_fallthru
          _
      $region20: #{tscd_forward.17} parent=5 // pred_fallthru
        _
      %p430 = scmp.le.s32.totalorder 1, %s10
      %p431 = scmp.lt.s32.totalorder %s10, 3
      %p432 = pnand %p430, %p431
      %p433 = pneg %p432
      // Predicated region
      $region107: #{tscd_forward.17} parent=5 // pred_check
        _
      $region108: #{tscd_forward.17} parent=5 // pred_check_branch
        %435 = sbr.rel (%p432) target = $region110
      $region109: #{tscd_forward.17} parent=5 // pred_region
        %s436 = ssub.s32 %s10, 1
        %s437 = sand.u32 %s44, 1
        %s438 = sand.u32 %s44, 1
        %s439 = smul.addr %s438, 64
        %s440 = scalar_lea.vmem [#allocation3], %s439
        // Predicated region
        $region111: #{tscd_forward.17} parent=109 // pred_check
          %p441 = pneg %p57
        $region112: #{tscd_forward.17} parent=109 // pred_check_branch
          %443 = sbr.rel (%p441) target = $region114
        $region113: #{tscd_forward.17} parent=109 // pred_region
          _
        $region114: #{tscd_forward.17} parent=109 // pred_fallthru
          _
        %s444 = sand.u32 %s72, 1
        %s445 = sand.u32 %s72, 1
        %s446 = smul.addr %s445, 64
        %s447 = scalar_lea.vmem [#allocation4], %s446
        // Predicated region
        $region115: #{tscd_forward.17} parent=109 // pred_check
          %p448 = pneg %p85
        $region116: #{tscd_forward.17} parent=109 // pred_check_branch
          %450 = sbr.rel (%p448) target = $region118
        $region117: #{tscd_forward.17} parent=109 // pred_region
          _
        $region118: #{tscd_forward.17} parent=109 // pred_fallthru
          _
        %s451 = sand.u32 %s44, 1
        %s452 = sand.u32 %s44, 1
        %s453 = smul.addr %s452, 64
        %s454 = scalar_lea.vmem [#allocation3], %s453
        %p455 = pneg %p57
        %p456 = pneg %p54
        %s457 = sand.u32 %s72, 1
        %s458 = sand.u32 %s72, 1
        %s459 = smul.addr %s458, 64
        %s460 = scalar_lea.vmem [#allocation4], %s459
        %p461 = pneg %p85
        %p462 = pneg %p82
        %s463 = smul.u32 16, %s22
        %p464 = scmp.lt.s32.totalorder %s463, 31
        %s465 = scalar_select %p464, %s463, 31
        %p466 = scmp.lt.s32.totalorder %s21, 0
        %s467 = scalar_select %p466, %s21, 0
        %s468 = sadd.s32 %s467, %s465
        %s469 = smul.addr %s468, 4
        %s470 = scalar_lea.vmem %s2, %s469
        %p471 = pneg %p113
        %p472 = pneg %p110
        %p473 = scmp.lt.s32.totalorder %s21, 0
        %s474 = scalar_select %p473, %s21, 0
        %s475 = scalar_lea.vmem %s3, %s474
        %p476 = pneg %p139
        %p477 = pneg %p136
        %p478 = pneg %p167
        %p479 = pneg %p164
        %s480 = smul.u32 16, %s20
        %p481 = scmp.lt.s32.totalorder %s480, 15
        %s482 = scalar_select %p481, %s480, 15
        %p483 = scmp.lt.s32.totalorder %s21, 0
        %s484 = scalar_select %p483, %s21, 0
        %s485 = sadd.s32 %s484, %s482
        %s486 = smul.addr %s485, 8
        %s487 = scalar_lea.vmem %s4, %s486
        %s488 = smul.u32 16, %s20
        %s489 = smul.u32 16, %s20
        %s490 = smul.u32 16, %s22
        %p491 = scmp.lt.s32.totalorder %s490, 31
        %s492 = scalar_select %p491, %s490, 31
        %p493 = scmp.lt.s32.totalorder %s21, 0
        %s494 = scalar_select %p493, %s21, 0
        %s495 = sadd.s32 %s494, %s492
        %s496 = smul.addr %s495, 4
        %s497 = scalar_lea.vmem %s2, %s496
        %s498 = smul.u32 16, %s22
        %p499 = scmp.lt.s32.totalorder %s21, 0
        %s500 = scalar_select %p499, %s21, 0
        %s501 = scalar_lea.vmem %s3, %s500
        %s502 = smul.u32 16, %s20
        %p503 = scmp.lt.s32.totalorder %s502, 15
        %s504 = scalar_select %p503, %s502, 15
        %p505 = scmp.lt.s32.totalorder %s21, 0
        %s506 = scalar_select %p505, %s21, 0
        %s507 = sadd.s32 %s506, %s504
        %s508 = smul.addr %s507, 8
        %s509 = scalar_lea.vmem %s4, %s508
        %s510 = smul.u32 16, %s20
        %p512 = scmp.eq.s32.totalorder %s22, 0
        // Predicated region
        $region119: #{tscd_forward.17} parent=109 // pred_check
          %p513 = pneg %p512
        $region120: #{tscd_forward.17} parent=109 // pred_check_branch
          %515 = sbr.rel (%p513) target = $region122
        $region121: #{tscd_forward.17} parent=109 // pred_region
          %516 = vst [vmem:[#allocation2] sm:$0xff] 0.0
          %517 = vst [vmem:[#allocation2 + $0x8] sm:$0xff] 0.0
          %518 = vst [vmem:[#allocation2 + $0x10] sm:$0xff] 0.0
          %519 = vst [vmem:[#allocation2 + $0x18] sm:$0xff] 0.0
          %520 = vst [vmem:[#allocation2 + $0x20] sm:$0xff] 0.0
          %521 = vst [vmem:[#allocation2 + $0x28] sm:$0xff] 0.0
          %522 = vst [vmem:[#allocation2 + $0x30] sm:$0xff] 0.0
          %523 = vst [vmem:[#allocation2 + $0x38] sm:$0xff] 0.0
          %524 = vst [vmem:[#allocation2 + $0x40] sm:$0xff] 0.0
          %525 = vst [vmem:[#allocation2 + $0x48] sm:$0xff] 0.0
          %526 = vst [vmem:[#allocation2 + $0x50] sm:$0xff] 0.0
          %527 = vst [vmem:[#allocation2 + $0x58] sm:$0xff] 0.0
          %528 = vst [vmem:[#allocation2 + $0x60] sm:$0xff] 0.0
          %529 = vst [vmem:[#allocation2 + $0x68] sm:$0xff] 0.0
          %530 = vst [vmem:[#allocation2 + $0x70] sm:$0xff] 0.0
          %531 = vst [vmem:[#allocation2 + $0x78] sm:$0xff] 0.0
        $region122: #{tscd_forward.17} parent=109 // pred_fallthru
          _
        %v532 = vld [vmem:[%s440] sm:$0xf]
        %v533 = vld [vmem:[%s440 + $0x4] sm:$0xf]
        %v534 = vld [vmem:[%s440 + $0x8] sm:$0xf]
        %v535 = vld [vmem:[%s440 + $0xc] sm:$0xf]
        %v536 = vld [vmem:[%s440 + $0x10] sm:$0xf]
        %v537 = vld [vmem:[%s440 + $0x14] sm:$0xf]
        %v538 = vld [vmem:[%s440 + $0x18] sm:$0xf]
        %v539 = vld [vmem:[%s440 + $0x1c] sm:$0xf]
        %v540 = vld [vmem:[%s440 + $0x20] sm:$0xf]
        %v541 = vld [vmem:[%s440 + $0x24] sm:$0xf]
        %v542 = vld [vmem:[%s440 + $0x28] sm:$0xf]
        %v543 = vld [vmem:[%s440 + $0x2c] sm:$0xf]
        %v544 = vld [vmem:[%s440 + $0x30] sm:$0xf]
        %v545 = vld [vmem:[%s440 + $0x34] sm:$0xf]
        %v546 = vld [vmem:[%s440 + $0x38] sm:$0xf]
        %v547 = vld [vmem:[%s440 + $0x3c] sm:$0xf]
        %v548 = vld [vmem:[%s447] sm:$0xf]
        %v549 = vld [vmem:[%s447 + $0x4] sm:$0xf]
        %v550 = vld [vmem:[%s447 + $0x8] sm:$0xf]
        %v551 = vld [vmem:[%s447 + $0xc] sm:$0xf]
        %v552 = vld [vmem:[%s447 + $0x10] sm:$0xf]
        %v553 = vld [vmem:[%s447 + $0x14] sm:$0xf]
        %v554 = vld [vmem:[%s447 + $0x18] sm:$0xf]
        %v555 = vld [vmem:[%s447 + $0x1c] sm:$0xf]
        %v556 = vld [vmem:[%s447 + $0x20] sm:$0xf]
        %v557 = vld [vmem:[%s447 + $0x24] sm:$0xf]
        %v558 = vld [vmem:[%s447 + $0x28] sm:$0xf]
        %v559 = vld [vmem:[%s447 + $0x2c] sm:$0xf]
        %v560 = vld [vmem:[%s447 + $0x30] sm:$0xf]
        %v561 = vld [vmem:[%s447 + $0x34] sm:$0xf]
        %v562 = vld [vmem:[%s447 + $0x38] sm:$0xf]
        %v563 = vld [vmem:[%s447 + $0x3c] sm:$0xf]
        %v564 = vadd.bf16 %v532, %v548
        %v565 = vadd.bf16 %v533, %v549
        %v566 = vadd.bf16 %v534, %v550
        %v567 = vadd.bf16 %v535, %v551
        %v568 = vadd.bf16 %v536, %v552
        %v569 = vadd.bf16 %v537, %v553
        %v570 = vadd.bf16 %v538, %v554
        %v571 = vadd.bf16 %v539, %v555
        %v572 = vadd.bf16 %v540, %v556
        %v573 = vadd.bf16 %v541, %v557
        %v574 = vadd.bf16 %v542, %v558
        %v575 = vadd.bf16 %v543, %v559
        %v576 = vadd.bf16 %v544, %v560
        %v577 = vadd.bf16 %v545, %v561
        %v578 = vadd.bf16 %v546, %v562
        %v579 = vadd.bf16 %v547, %v563
        %v580 = vld [vmem:[#allocation2] sm:$0xff]
        %v581 = vld [vmem:[#allocation2 + $0x8] sm:$0xff]
        %v582 = vld [vmem:[#allocation2 + $0x10] sm:$0xff]
        %v583 = vld [vmem:[#allocation2 + $0x18] sm:$0xff]
        %v584 = vld [vmem:[#allocation2 + $0x20] sm:$0xff]
        %v585 = vld [vmem:[#allocation2 + $0x28] sm:$0xff]
        %v586 = vld [vmem:[#allocation2 + $0x30] sm:$0xff]
        %v587 = vld [vmem:[#allocation2 + $0x38] sm:$0xff]
        %v588 = vld [vmem:[#allocation2 + $0x40] sm:$0xff]
        %v589 = vld [vmem:[#allocation2 + $0x48] sm:$0xff]
        %v590 = vld [vmem:[#allocation2 + $0x50] sm:$0xff]
        %v591 = vld [vmem:[#allocation2 + $0x58] sm:$0xff]
        %v592 = vld [vmem:[#allocation2 + $0x60] sm:$0xff]
        %v593 = vld [vmem:[#allocation2 + $0x68] sm:$0xff]
        %v594 = vld [vmem:[#allocation2 + $0x70] sm:$0xff]
        %v595 = vld [vmem:[#allocation2 + $0x78] sm:$0xff]
        %v596 = vld [vmem:[%s497] sm:$0xf]
        %v597 = vld [vmem:[%s497 + $0x4] sm:$0xf]
        %v598 = vld [vmem:[%s497 + $0x8] sm:$0xf]
        %v599 = vld [vmem:[%s497 + $0xc] sm:$0xf]
        %v600 = vld [vmem:[%s497 + $0x10] sm:$0xf]
        %v601 = vld [vmem:[%s497 + $0x14] sm:$0xf]
        %v602 = vld [vmem:[%s497 + $0x18] sm:$0xf]
        %v603 = vld [vmem:[%s497 + $0x1c] sm:$0xf]
        %v604 = vld [vmem:[%s497 + $0x20] sm:$0xf]
        %v605 = vld [vmem:[%s497 + $0x24] sm:$0xf]
        %v606 = vld [vmem:[%s497 + $0x28] sm:$0xf]
        %v607 = vld [vmem:[%s497 + $0x2c] sm:$0xf]
        %v608 = vld [vmem:[%s497 + $0x30] sm:$0xf]
        %v609 = vld [vmem:[%s497 + $0x34] sm:$0xf]
        %v610 = vld [vmem:[%s497 + $0x38] sm:$0xf]
        %v611 = vld [vmem:[%s497 + $0x3c] sm:$0xf]
        %v628 = vunpack.c.l.b16 %v564
        %v629 = vunpack.c.l.b16 %v565
        %v630 = vunpack.c.l.b16 %v566
        %v631 = vunpack.c.l.b16 %v567
        %v632 = vunpack.c.l.b16 %v568
        %v633 = vunpack.c.l.b16 %v569
        %v634 = vunpack.c.l.b16 %v570
        %v635 = vunpack.c.l.b16 %v571
        %v636 = vunpack.c.l.b16 %v572
        %v637 = vunpack.c.l.b16 %v573
        %v638 = vunpack.c.l.b16 %v574
        %v639 = vunpack.c.l.b16 %v575
        %v640 = vunpack.c.l.b16 %v576
        %v641 = vunpack.c.l.b16 %v577
        %v642 = vunpack.c.l.b16 %v578
        %v643 = vunpack.c.l.b16 %v579
        %v644 = vpack.c.b16 %v629, %v628
        %v645 = vpack.c.b16 %v631, %v630
        %v646 = vpack.c.b16 %v633, %v632
        %v647 = vpack.c.b16 %v635, %v634
        %v648 = vpack.c.b16 %v637, %v636
        %v649 = vpack.c.b16 %v639, %v638
        %v650 = vpack.c.b16 %v641, %v640
        %v651 = vpack.c.b16 %v643, %v642
        %v676 = vunpack.c.l.b16 %v596
        %v677 = vunpack.c.l.b16 %v597
        %v678 = vunpack.c.l.b16 %v598
        %v679 = vunpack.c.l.b16 %v599
        %v680 = vunpack.c.l.b16 %v600
        %v681 = vunpack.c.l.b16 %v601
        %v682 = vunpack.c.l.b16 %v602
        %v683 = vunpack.c.l.b16 %v603
        %v684 = vunpack.c.l.b16 %v604
        %v685 = vunpack.c.l.b16 %v605
        %v686 = vunpack.c.l.b16 %v606
        %v687 = vunpack.c.l.b16 %v607
        %v688 = vunpack.c.l.b16 %v608
        %v689 = vunpack.c.l.b16 %v609
        %v690 = vunpack.c.l.b16 %v610
        %v691 = vunpack.c.l.b16 %v611
        %v692 = vpack.c.b16 %v677, %v676
        %v693 = vpack.c.b16 %v679, %v678
        %v694 = vpack.c.b16 %v681, %v680
        %v695 = vpack.c.b16 %v683, %v682
        %v696 = vpack.c.b16 %v685, %v684
        %v697 = vpack.c.b16 %v687, %v686
        %v698 = vpack.c.b16 %v689, %v688
        %v699 = vpack.c.b16 %v691, %v690
        %708 = vmatprep.subr.bf16.mxu0 0
        %709 = vmatpush1.bf16.msra.mxu0 %v699
        %710 = vmatprep.subr.bf16.mxu0 0
        %711 = vmatpush1.bf16.msra.mxu0 %v698
        %712 = vmatprep.subr.bf16.mxu0 0
        %713 = vmatpush1.bf16.msra.mxu0 %v697
        %714 = vmatprep.subr.bf16.mxu0 0
        %715 = vmatpush1.bf16.msra.mxu0 %v696
        %716 = vmatprep.subr.bf16.mxu0 0
        %717 = vmatpush1.bf16.msra.mxu0 %v695
        %718 = vmatprep.subr.bf16.mxu0 0
        %719 = vmatpush1.bf16.msra.mxu0 %v694
        %720 = vmatprep.subr.bf16.mxu0 0
        %721 = vmatpush1.bf16.msra.mxu0 %v693
        %722 = vmatprep.subr.bf16.mxu0 0
        %723 = vmatpush1.bf16.msra.mxu0 %v692
        %724 = vmatprep.subr.bf16.mxu0 0
        %725 = vmatpush2.bf16.msra.mxu0 0
        %726 = vmatprep.subr.bf16.mxu0 0
        %727 = vmatpush2.bf16.msra.mxu0 0
        %728 = vmatprep.subr.bf16.mxu0 0
        %729 = vmatpush2.bf16.msra.mxu0 0
        %730 = vmatprep.subr.bf16.mxu0 0
        %731 = vmatpush2.bf16.msra.mxu0 0
        %732 = vmatprep.subr.bf16.mxu0 0
        %733 = vmatpush2.bf16.msra.mxu0 0
        %734 = vmatprep.subr.bf16.mxu0 0
        %735 = vmatpush2.bf16.msra.mxu0 0
        %736 = vmatprep.subr.bf16.mxu0 0
        %737 = vmatpush2.bf16.msra.mxu0 0
        %738 = vmatprep.subr.bf16.mxu0 0
        %739 = vmatpush2.bf16.msra.mxu0 0
        %740 = vmatprep.mubr.bf16.mxu0 0
        %741 = vmatmul.mubr.bf16.gmra.mxu0 %v644
        %v742 = vpop.f32.mrf.mxu0
        %v743 = vadd.f32 0.0, %v742
        %v744 = vpop.f32.mrf.mxu0
        %v745 = vpop.f32.mrf.mxu0
        %v746 = vadd.f32 0.0, %v745
        %v747 = vpop.f32.mrf.mxu0
        %748 = vmatprep.mubr.bf16.mxu0 0
        %749 = vmatmul.mubr.bf16.gmra.mxu0 %v645
        %v750 = vpop.f32.mrf.mxu0
        %v751 = vadd.f32 0.0, %v750
        %v752 = vpop.f32.mrf.mxu0
        %v753 = vpop.f32.mrf.mxu0
        %v754 = vadd.f32 0.0, %v753
        %v755 = vpop.f32.mrf.mxu0
        %756 = vmatprep.mubr.bf16.mxu0 0
        %757 = vmatmul.mubr.bf16.gmra.mxu0 %v646
        %v758 = vpop.f32.mrf.mxu0
        %v759 = vadd.f32 0.0, %v758
        %v760 = vpop.f32.mrf.mxu0
        %v761 = vpop.f32.mrf.mxu0
        %v762 = vadd.f32 0.0, %v761
        %v763 = vpop.f32.mrf.mxu0
        %764 = vmatprep.mubr.bf16.mxu0 0
        %765 = vmatmul.mubr.bf16.gmra.mxu0 %v647
        %v766 = vpop.f32.mrf.mxu0
        %v767 = vadd.f32 0.0, %v766
        %v768 = vpop.f32.mrf.mxu0
        %v769 = vpop.f32.mrf.mxu0
        %v770 = vadd.f32 0.0, %v769
        %v771 = vpop.f32.mrf.mxu0
        %772 = vmatprep.mubr.bf16.mxu0 0
        %773 = vmatmul.mubr.bf16.gmra.mxu0 %v648
        %v774 = vpop.f32.mrf.mxu0
        %v775 = vadd.f32 0.0, %v774
        %v776 = vpop.f32.mrf.mxu0
        %v777 = vpop.f32.mrf.mxu0
        %v778 = vadd.f32 0.0, %v777
        %v779 = vpop.f32.mrf.mxu0
        %780 = vmatprep.mubr.bf16.mxu0 0
        %781 = vmatmul.mubr.bf16.gmra.mxu0 %v649
        %v782 = vpop.f32.mrf.mxu0
        %v783 = vadd.f32 0.0, %v782
        %v784 = vpop.f32.mrf.mxu0
        %v785 = vpop.f32.mrf.mxu0
        %v786 = vadd.f32 0.0, %v785
        %v787 = vpop.f32.mrf.mxu0
        %788 = vmatprep.mubr.bf16.mxu0 0
        %789 = vmatmul.mubr.bf16.gmra.mxu0 %v650
        %v790 = vpop.f32.mrf.mxu0
        %v791 = vadd.f32 0.0, %v790
        %v792 = vpop.f32.mrf.mxu0
        %v793 = vpop.f32.mrf.mxu0
        %v794 = vadd.f32 0.0, %v793
        %v795 = vpop.f32.mrf.mxu0
        %796 = vmatprep.mubr.bf16.mxu0 0
        %797 = vmatmul.mubr.bf16.gmra.mxu0 %v651
        %v798 = vpop.f32.mrf.mxu0
        %v799 = vadd.f32 0.0, %v798
        %v800 = vpop.f32.mrf.mxu0
        %v801 = vpop.f32.mrf.mxu0
        %v802 = vadd.f32 0.0, %v801
        %v803 = vpop.f32.mrf.mxu0
        %804 = vdwg.mxu0
        %v805 = vadd.f32 %v580, %v743
        %v806 = vadd.f32 %v581, %v746
        %v807 = vadd.f32 %v582, %v751
        %v808 = vadd.f32 %v583, %v754
        %v809 = vadd.f32 %v584, %v759
        %v810 = vadd.f32 %v585, %v762
        %v811 = vadd.f32 %v586, %v767
        %v812 = vadd.f32 %v587, %v770
        %v813 = vadd.f32 %v588, %v775
        %v814 = vadd.f32 %v589, %v778
        %v815 = vadd.f32 %v590, %v783
        %v816 = vadd.f32 %v591, %v786
        %v817 = vadd.f32 %v592, %v791
        %v818 = vadd.f32 %v593, %v794
        %v819 = vadd.f32 %v594, %v799
        %v820 = vadd.f32 %v595, %v802
        %821 = vst [vmem:[#allocation2] sm:$0xff] %v805
        %822 = vst [vmem:[#allocation2 + $0x8] sm:$0xff] %v806
        %823 = vst [vmem:[#allocation2 + $0x10] sm:$0xff] %v807
        %824 = vst [vmem:[#allocation2 + $0x18] sm:$0xff] %v808
        %825 = vst [vmem:[#allocation2 + $0x20] sm:$0xff] %v809
        %826 = vst [vmem:[#allocation2 + $0x28] sm:$0xff] %v810
        %827 = vst [vmem:[#allocation2 + $0x30] sm:$0xff] %v811
        %828 = vst [vmem:[#allocation2 + $0x38] sm:$0xff] %v812
        %829 = vst [vmem:[#allocation2 + $0x40] sm:$0xff] %v813
        %830 = vst [vmem:[#allocation2 + $0x48] sm:$0xff] %v814
        %831 = vst [vmem:[#allocation2 + $0x50] sm:$0xff] %v815
        %832 = vst [vmem:[#allocation2 + $0x58] sm:$0xff] %v816
        %833 = vst [vmem:[#allocation2 + $0x60] sm:$0xff] %v817
        %834 = vst [vmem:[#allocation2 + $0x68] sm:$0xff] %v818
        %835 = vst [vmem:[#allocation2 + $0x70] sm:$0xff] %v819
        %836 = vst [vmem:[#allocation2 + $0x78] sm:$0xff] %v820
        %p837 = scmp.eq.s32.totalorder %s22, 1
        // Predicated region
        $region123: #{tscd_forward.17} parent=109 // pred_check
          %p838 = pneg %p837
        $region124: #{tscd_forward.17} parent=109 // pred_check_branch
          %840 = sbr.rel (%p838) target = $region126
        $region125: #{tscd_forward.17} parent=109 // pred_region
          %v841 = vld [vmem:[#allocation2] sm:$0xff]
          %v842 = vld [vmem:[#allocation2 + $0x8] sm:$0xff]
          %v843 = vld [vmem:[#allocation2 + $0x10] sm:$0xff]
          %v844 = vld [vmem:[#allocation2 + $0x18] sm:$0xff]
          %v845 = vld [vmem:[#allocation2 + $0x20] sm:$0xff]
          %v846 = vld [vmem:[#allocation2 + $0x28] sm:$0xff]
          %v847 = vld [vmem:[#allocation2 + $0x30] sm:$0xff]
          %v848 = vld [vmem:[#allocation2 + $0x38] sm:$0xff]
          %v849 = vld [vmem:[#allocation2 + $0x40] sm:$0xff]
          %v850 = vld [vmem:[#allocation2 + $0x48] sm:$0xff]
          %v851 = vld [vmem:[#allocation2 + $0x50] sm:$0xff]
          %v852 = vld [vmem:[#allocation2 + $0x58] sm:$0xff]
          %v853 = vld [vmem:[#allocation2 + $0x60] sm:$0xff]
          %v854 = vld [vmem:[#allocation2 + $0x68] sm:$0xff]
          %v855 = vld [vmem:[#allocation2 + $0x70] sm:$0xff]
          %v856 = vld [vmem:[#allocation2 + $0x78] sm:$0xff]
          %v857 = vld [vmem:[%s501] sm:$0x1]
          %v859 = vlaneseq
          %v860 = vshrl.u32 %v859, 7
          %v861 = vsub.s32 0, %v860
          %v862 = vrot.slane %v857, %v861
          %v864 = vadd.f32 %v841, %v862
          %v865 = vadd.f32 %v842, %v862
          %v866 = vadd.f32 %v843, %v862
          %v867 = vadd.f32 %v844, %v862
          %v868 = vadd.f32 %v845, %v862
          %v869 = vadd.f32 %v846, %v862
          %v870 = vadd.f32 %v847, %v862
          %v871 = vadd.f32 %v848, %v862
          %v872 = vadd.f32 %v849, %v862
          %v873 = vadd.f32 %v850, %v862
          %v874 = vadd.f32 %v851, %v862
          %v875 = vadd.f32 %v852, %v862
          %v876 = vadd.f32 %v853, %v862
          %v877 = vadd.f32 %v854, %v862
          %v878 = vadd.f32 %v855, %v862
          %v879 = vadd.f32 %v856, %v862
          %v880 = vlaneseq
          %v881 = vand.u32 %v880, 127
          %vm882 = vcmp.lt.s32.totalorder %v881, 5
          %v883 = vsel %vm882, %v864, -inf
          %v884 = vsel %vm882, %v865, -inf
          %v885 = vsel %vm882, %v866, -inf
          %v886 = vsel %vm882, %v867, -inf
          %v887 = vsel %vm882, %v868, -inf
          %v888 = vsel %vm882, %v869, -inf
          %v889 = vsel %vm882, %v870, -inf
          %v890 = vsel %vm882, %v871, -inf
          %v891 = vsel %vm882, %v872, -inf
          %v892 = vsel %vm882, %v873, -inf
          %v893 = vsel %vm882, %v874, -inf
          %v894 = vsel %vm882, %v875, -inf
          %v895 = vsel %vm882, %v876, -inf
          %v896 = vsel %vm882, %v877, -inf
          %v897 = vsel %vm882, %v878, -inf
          %v898 = vsel %vm882, %v879, -inf
          %899 = vmax.xlane.f32.xlu0 %v883
          %v900 = vpop.xlane.xlu0 %899
          %901 = vmax.xlane.f32.xlu0 %v884
          %v902 = vpop.xlane.xlu0 %901
          %903 = vmax.xlane.f32.xlu0 %v885
          %v904 = vpop.xlane.xlu0 %903
          %905 = vmax.xlane.f32.xlu0 %v886
          %v906 = vpop.xlane.xlu0 %905
          %907 = vmax.xlane.f32.xlu0 %v887
          %v908 = vpop.xlane.xlu0 %907
          %909 = vmax.xlane.f32.xlu0 %v888
          %v910 = vpop.xlane.xlu0 %909
          %911 = vmax.xlane.f32.xlu0 %v889
          %v912 = vpop.xlane.xlu0 %911
          %913 = vmax.xlane.f32.xlu0 %v890
          %v914 = vpop.xlane.xlu0 %913
          %915 = vmax.xlane.f32.xlu0 %v891
          %v916 = vpop.xlane.xlu0 %915
          %917 = vmax.xlane.f32.xlu0 %v892
          %v918 = vpop.xlane.xlu0 %917
          %919 = vmax.xlane.f32.xlu0 %v893
          %v920 = vpop.xlane.xlu0 %919
          %921 = vmax.xlane.f32.xlu0 %v894
          %v922 = vpop.xlane.xlu0 %921
          %923 = vmax.xlane.f32.xlu0 %v895
          %v924 = vpop.xlane.xlu0 %923
          %925 = vmax.xlane.f32.xlu0 %v896
          %v926 = vpop.xlane.xlu0 %925
          %927 = vmax.xlane.f32.xlu0 %v897
          %v928 = vpop.xlane.xlu0 %927
          %929 = vmax.xlane.f32.xlu0 %v898
          %v930 = vpop.xlane.xlu0 %929
          %v931 = vsub.f32 %v883, %v900
          %v932 = vsub.f32 %v884, %v902
          %v933 = vsub.f32 %v885, %v904
          %v934 = vsub.f32 %v886, %v906
          %v935 = vsub.f32 %v887, %v908
          %v936 = vsub.f32 %v888, %v910
          %v937 = vsub.f32 %v889, %v912
          %v938 = vsub.f32 %v890, %v914
          %v939 = vsub.f32 %v891, %v916
          %v940 = vsub.f32 %v892, %v918
          %v941 = vsub.f32 %v893, %v920
          %v942 = vsub.f32 %v894, %v922
          %v943 = vsub.f32 %v895, %v924
          %v944 = vsub.f32 %v896, %v926
          %v945 = vsub.f32 %v897, %v928
          %v946 = vsub.f32 %v898, %v930
          %v947 = vmul.f32 %v931, 1.442695
          %v948 = vpow.pop %v947
          %v949 = vmul.f32 %v932, 1.442695
          %v950 = vpow.pop %v949
          %v951 = vmul.f32 %v933, 1.442695
          %v952 = vpow.pop %v951
          %v953 = vmul.f32 %v934, 1.442695
          %v954 = vpow.pop %v953
          %v955 = vmul.f32 %v935, 1.442695
          %v956 = vpow.pop %v955
          %v957 = vmul.f32 %v936, 1.442695
          %v958 = vpow.pop %v957
          %v959 = vmul.f32 %v937, 1.442695
          %v960 = vpow.pop %v959
          %v961 = vmul.f32 %v938, 1.442695
          %v962 = vpow.pop %v961
          %v963 = vmul.f32 %v939, 1.442695
          %v964 = vpow.pop %v963
          %v965 = vmul.f32 %v940, 1.442695
          %v966 = vpow.pop %v965
          %v967 = vmul.f32 %v941, 1.442695
          %v968 = vpow.pop %v967
          %v969 = vmul.f32 %v942, 1.442695
          %v970 = vpow.pop %v969
          %v971 = vmul.f32 %v943, 1.442695
          %v972 = vpow.pop %v971
          %v973 = vmul.f32 %v944, 1.442695
          %v974 = vpow.pop %v973
          %v975 = vmul.f32 %v945, 1.442695
          %v976 = vpow.pop %v975
          %v977 = vmul.f32 %v946, 1.442695
          %v978 = vpow.pop %v977
          %979 = vadd.xlane.f32.xlu0 %v948
          %v980 = vpop.xlane.xlu0 %979
          %981 = vadd.xlane.f32.xlu0 %v950
          %v982 = vpop.xlane.xlu0 %981
          %983 = vadd.xlane.f32.xlu0 %v952
          %v984 = vpop.xlane.xlu0 %983
          %985 = vadd.xlane.f32.xlu0 %v954
          %v986 = vpop.xlane.xlu0 %985
          %987 = vadd.xlane.f32.xlu0 %v956
          %v988 = vpop.xlane.xlu0 %987
          %989 = vadd.xlane.f32.xlu0 %v958
          %v990 = vpop.xlane.xlu0 %989
          %991 = vadd.xlane.f32.xlu0 %v960
          %v992 = vpop.xlane.xlu0 %991
          %993 = vadd.xlane.f32.xlu0 %v962
          %v994 = vpop.xlane.xlu0 %993
          %995 = vadd.xlane.f32.xlu0 %v964
          %v996 = vpop.xlane.xlu0 %995
          %997 = vadd.xlane.f32.xlu0 %v966
          %v998 = vpop.xlane.xlu0 %997
          %999 = vadd.xlane.f32.xlu0 %v968
          %v1000 = vpop.xlane.xlu0 %999
          %1001 = vadd.xlane.f32.xlu0 %v970
          %v1002 = vpop.xlane.xlu0 %1001
          %1003 = vadd.xlane.f32.xlu0 %v972
          %v1004 = vpop.xlane.xlu0 %1003
          %1005 = vadd.xlane.f32.xlu0 %v974
          %v1006 = vpop.xlane.xlu0 %1005
          %1007 = vadd.xlane.f32.xlu0 %v976
          %v1008 = vpop.xlane.xlu0 %1007
          %1009 = vadd.xlane.f32.xlu0 %v978
          %v1010 = vpop.xlane.xlu0 %1009
          %v1011 = vrcp.pop %v980
          %v1012 = vrcp.pop %v982
          %v1013 = vrcp.pop %v984
          %v1014 = vrcp.pop %v986
          %v1015 = vrcp.pop %v988
          %v1016 = vrcp.pop %v990
          %v1017 = vrcp.pop %v992
          %v1018 = vrcp.pop %v994
          %v1019 = vrcp.pop %v996
          %v1020 = vrcp.pop %v998
          %v1021 = vrcp.pop %v1000
          %v1022 = vrcp.pop %v1002
          %v1023 = vrcp.pop %v1004
          %v1024 = vrcp.pop %v1006
          %v1025 = vrcp.pop %v1008
          %v1026 = vrcp.pop %v1010
          %v1027 = vmul.f32 %v948, %v1011
          %v1028 = vmul.f32 %v950, %v1012
          %v1029 = vmul.f32 %v952, %v1013
          %v1030 = vmul.f32 %v954, %v1014
          %v1031 = vmul.f32 %v956, %v1015
          %v1032 = vmul.f32 %v958, %v1016
          %v1033 = vmul.f32 %v960, %v1017
          %v1034 = vmul.f32 %v962, %v1018
          %v1035 = vmul.f32 %v964, %v1019
          %v1036 = vmul.f32 %v966, %v1020
          %v1037 = vmul.f32 %v968, %v1021
          %v1038 = vmul.f32 %v970, %v1022
          %v1039 = vmul.f32 %v972, %v1023
          %v1040 = vmul.f32 %v974, %v1024
          %v1041 = vmul.f32 %v976, %v1025
          %v1042 = vmul.f32 %v978, %v1026
          %1043 = vst [vmem:[%s509] sm:$0xff] %v1027
          %1044 = vst [vmem:[%s509 + $0x8] sm:$0xff] %v1028
          %1045 = vst [vmem:[%s509 + $0x10] sm:$0xff] %v1029
          %1046 = vst [vmem:[%s509 + $0x18] sm:$0xff] %v1030
          %1047 = vst [vmem:[%s509 + $0x20] sm:$0xff] %v1031
          %1048 = vst [vmem:[%s509 + $0x28] sm:$0xff] %v1032
          %1049 = vst [vmem:[%s509 + $0x30] sm:$0xff] %v1033
          %1050 = vst [vmem:[%s509 + $0x38] sm:$0xff] %v1034
          %1051 = vst [vmem:[%s509 + $0x40] sm:$0xff] %v1035
          %1052 = vst [vmem:[%s509 + $0x48] sm:$0xff] %v1036
          %1053 = vst [vmem:[%s509 + $0x50] sm:$0xff] %v1037
          %1054 = vst [vmem:[%s509 + $0x58] sm:$0xff] %v1038
          %1055 = vst [vmem:[%s509 + $0x60] sm:$0xff] %v1039
          %1056 = vst [vmem:[%s509 + $0x68] sm:$0xff] %v1040
          %1057 = vst [vmem:[%s509 + $0x70] sm:$0xff] %v1041
          %1058 = vst [vmem:[%s509 + $0x78] sm:$0xff] %v1042
        $region126: #{tscd_forward.17} parent=109 // pred_fallthru
          _
        %s1059 = smul.u32 16, %s20
        %p1060 = scmp.lt.s32.totalorder %s1059, 15
        %s1061 = scalar_select %p1060, %s1059, 15
        %p1062 = scmp.lt.s32.totalorder %s21, 0
        %s1063 = scalar_select %p1062, %s21, 0
        %s1064 = sadd.s32 %s1063, %s1061
        %s1065 = smul.addr %s1064, 8
        %s1066 = scalar_lea.vmem %s4, %s1065
        // Predicated region
        $region127: #{tscd_forward.17} parent=109 // pred_check
          %p1067 = pneg %p164
        $region128: #{tscd_forward.17} parent=109 // pred_check_branch
          %1069 = sbr.rel (%p1067) target = $region130
        $region129: #{tscd_forward.17} parent=109 // pred_region
          %s1070 = smul.u32 16, %s20
        $region130: #{tscd_forward.17} parent=109 // pred_fallthru
          _
        // Predicated region
        $region131: #{tscd_forward.17} parent=109 // pred_check
          %p1071 = pneg %p164
        $region132: #{tscd_forward.17} parent=109 // pred_check_branch
          %1073 = sbr.rel (%p1071) target = $region134
        $region133: #{tscd_forward.17} parent=109 // pred_region
          %s1074 = smul.u32 16, %s20
          %p1075 = scmp.lt.s32.totalorder %s1074, 15
          %s1076 = scalar_select %p1075, %s1074, 15
          %p1077 = scmp.lt.s32.totalorder %s21, 0
          %s1078 = scalar_select %p1077, %s21, 0
          %s1079 = sadd.s32 %s1078, %s1076
          %s1080 = smul.addr %s1079, 8
          %s1081 = scalar_lea.vmem %s4, %s1080
        $region134: #{tscd_forward.17} parent=109 // pred_fallthru
          _
      $region110: #{tscd_forward.17} parent=5 // pred_fallthru
        _
      %p1082 = scmp.le.s32.totalorder 2, %s10
      // Predicated region
      $region135: #{tscd_forward.17} parent=5 // pred_check
        %p1083 = pneg %p1082
      $region136: #{tscd_forward.17} parent=5 // pred_check_branch
        %1085 = sbr.rel (%p1083) target = $region138
      $region137: #{tscd_forward.17} parent=5 // pred_region
        %s1086 = ssub.s32 %s10, 2
      $region138: #{tscd_forward.17} parent=5 // pred_fallthru
        _
    $region6: #{tscd_forward.17} parent=1 // loop_footer
      %s14 = sadd.s32 1, %s10
    $region7: #{tscd_forward.17} parent=1 // loop_footer_branch
      %9 = sbr.rel target = $region3
    $region8: #{tscd_forward.17} parent=1 // loop_exit
      _

</llo_original>
